<compile_context>
chip_gen: v6e
topology: v6e:2x2x1
jax: 0.10.0
libtpu: 0.0.40
codegen_flags: <defaults>
</compile_context>

<pallas_src>
import jax
import jax.numpy as jnp
from jax.experimental import pallas as pl
from jax.experimental.pallas import tpu as pltpu


# ---------------------------------------------------------------------------
# Pallas kernel: conv + bias + maxpool(3,3) + relu + fc + log_softmax
# ---------------------------------------------------------------------------
def _convnet_kernel(p_ref, wc_ref, bc_ref, wfc_ref, bfc_ref, out_ref):
    # p_ref   : (25, 64, TB) VMEM  deduped patches: [r0*5+c0, pi*8+pj, batch]
    #                               p[r0*5+c0, pi*8+pj, n] = x[n, 3*pi+r0, 3*pj+c0]
    # wc_ref  : (3, 9)       SMEM  conv weight [out_ch, ki*3+kj]
    # bc_ref  : (3,)         SMEM  conv bias
    # wfc_ref : (3, 10, 64)  VMEM  fc weight split per conv channel
    # bfc_ref : (10, 1)      VMEM  fc bias
    # out_ref : (10, TB)     VMEM  log-probs (class-major, batch on lanes)
    logits = None
    for oc in range(3):                       # conv output channel
        pooled_oc = None
        for di in range(3):                   # pool-window offset (di, dj)
            for dj in range(3):
                acc = None
                for ki in range(3):           # conv tap (ki, kj)
                    for kj in range(3):
                        blk = p_ref[(di + ki) * 5 + (dj + kj)]          # (64, TB)
                        term = wc_ref[oc, ki * 3 + kj] * blk            # scalar*vec (VPU)
                        acc = term if acc is None else acc + term
                # acc == conv(x)[oc, 3*pi+di, 3*pj+dj] - bias, for all (pi,pj,n)
                pooled_oc = acc if pooled_oc is None else jnp.maximum(pooled_oc, acc)
        # conv bias is constant per channel -> commutes with the max; then ReLU
        pooled_oc = jnp.maximum(pooled_oc + bc_ref[oc], 0.0)            # (64, TB)
        # FC contribution of this channel on the MXU: (10, 64) @ (64, TB)
        contrib = jnp.dot(wfc_ref[oc], pooled_oc,
                          preferred_element_type=jnp.float32)           # (10, TB)
        logits = contrib if logits is None else logits + contrib
    logits = logits + bfc_ref[...]                                      # (10, TB)

    # log_softmax over classes (sublane axis) for the whole tile at once
    m = jnp.max(logits, axis=0, keepdims=True)                          # (1, TB)
    sh = logits - m
    lse = jnp.log(jnp.sum(jnp.exp(sh), axis=0, keepdims=True))
    out_ref[...] = sh - lse                                             # single block store


# ---------------------------------------------------------------------------
# Glue: deduped patch extraction (pure data movement, stays in plain JAX)
# ---------------------------------------------------------------------------
def _build_patches(xs):
    # xs: (N, 28, 28) -> (25, 64, N)
    # patches[r0*5+c0, pi*8+pj, n] = xs[n, 3*pi + r0, 3*pj + c0], r0,c0 in [0,5)
    # Only 25 distinct pixel offsets are needed (vs 81 in full im2col).
    # TODO(synk): the stride-3 window gather stays in XLA glue; an in-kernel
    # version would need stride-3 lane gathers which have no clean Pallas path.
    n = xs.shape[0]
    blocks = []
    for r0 in range(5):
        for c0 in range(5):
            sub = xs[:, r0:r0 + 22:3, c0:c0 + 22:3]      # (N, 8, 8)
            blocks.append(sub.reshape(n, 64))
    return jnp.stack(blocks, axis=0).transpose(0, 2, 1)   # (25, 64, N)


# ---------------------------------------------------------------------------
# Wrapper
# ---------------------------------------------------------------------------
@jax.jit
def convnet_forward(x, wc, bc, wfc, bfc):
    """x: (N,1,28,28) f32. wc: (3,1,3,3), bc: (3,), wfc: (10,192), bfc: (10,)."""
    n = x.shape[0]
    xs = x[:, 0].astype(jnp.float32)                       # (N, 28, 28)
    patches = _build_patches(xs)                           # (25, 64, N)
    wc_r = wc.reshape(3, 9).astype(jnp.float32)            # (3, 9)
    bc_r = bc.astype(jnp.float32)                          # (3,)
    # torch flatten order is (C, H, W): wfc[:, oc*64 + s] -> split per channel
    wfc3 = wfc.astype(jnp.float32).reshape(10, 3, 64).transpose(1, 0, 2)  # (3,10,64)
    bfc_r = bfc.astype(jnp.float32).reshape(10, 1)         # (10, 1)

    # Batch tile: 256 lanes (~1.6 MiB/patch buffer, ~3.2 MiB double-buffered)
    # fits comfortably in the 32 MiB scoped VMEM default on v5e/v6e/v7x.
    tb = 256 if n >= 256 else n
    grid = (pl.cdiv(n, tb),)

    out_t = pl.pallas_call(
        _convnet_kernel,
        out_shape=jax.ShapeDtypeStruct((10, n), jnp.float32),
        grid=grid,
        in_specs=[
            pl.BlockSpec((25, 64, tb), lambda i: (0, 0, i)),
            pl.BlockSpec(memory_space=pltpu.MemorySpace.SMEM),   # conv weight scalars
            pl.BlockSpec(memory_space=pltpu.MemorySpace.SMEM),   # conv bias scalars
            pl.BlockSpec((3, 10, 64), lambda i: (0, 0, 0)),      # fc weight (VMEM-resident)
            pl.BlockSpec((10, 1), lambda i: (0, 0)),             # fc bias
        ],
        out_specs=pl.BlockSpec((10, tb), lambda i: (0, i)),
        compiler_params=pltpu.CompilerParams(
            dimension_semantics=("parallel",)),
    )(patches, wc_r, bc_r, wfc3, bfc_r)
    return out_t.T                                         # (N, 10)


# ---------------------------------------------------------------------------
# Pure-JAX reference of the PyTorch forward (for a sanity check)
# ---------------------------------------------------------------------------
def reference_forward(x, wc, bc, wfc, bfc):
    y = jax.lax.conv_general_dilated(
        x, wc, window_strides=(1, 1), padding="VALID",
        dimension_numbers=("NCHW", "OIHW", "NCHW"),
        precision=jax.lax.Precision.HIGHEST,
    ) + bc.reshape(1, 3, 1, 1)                                      # (N,3,26,26)
    y = jax.lax.reduce_window(y, -jnp.inf, jax.lax.max,
                              (1, 1, 3, 3), (1, 1, 3, 3), "VALID")   # (N,3,8,8)
    y = jnp.maximum(y, 0.0)
    y = y.reshape(x.shape[0], 192)
    logits = jnp.dot(y, wfc.T, precision=jax.lax.Precision.HIGHEST) + bfc
    return jax.nn.log_softmax(logits, axis=1)


if __name__ == "__main__":
    key = jax.random.PRNGKey(0)
    kx, kw1, kb1, kw2, kb2 = jax.random.split(key, 5)

    # forward implies 28x28 input: conv(3x3)->26, pool(3)->8, 3*8*8 = 192
    b1 = 1.0 / jnp.sqrt(9.0)     # conv fan_in = 1*3*3
    b2 = 1.0 / jnp.sqrt(192.0)   # fc fan_in = 192
    wc = jax.random.uniform(kw1, (3, 1, 3, 3), jnp.float32, -b1, b1)
    bc = jax.random.uniform(kb1, (3,), jnp.float32, -b1, b1)
    wfc = jax.random.uniform(kw2, (10, 192), jnp.float32, -b2, b2)
    bfc = jax.random.uniform(kb2, (10,), jnp.float32, -b2, b2)

    # small batch (required demo shape) + a multi-tile batch to exercise the grid
    for n_batch in (2, 512):
        xb = jax.random.normal(kx, (n_batch, 1, 28, 28), dtype=jnp.float32)
        out = jax.block_until_ready(convnet_forward(xb, wc, bc, wfc, bfc))
        ref = jax.block_until_ready(reference_forward(xb, wc, bc, wfc, bfc))
        if not jnp.allclose(out, ref, atol=1e-3, rtol=1e-3):
            raise AssertionError(
                f"Pallas output mismatch at N={n_batch}, "
                f"max abs diff = {float(jnp.max(jnp.abs(out - ref)))}")

    print("KERNEL_OK")
</pallas_src>

<mosaic_0001>
module attributes {stable_mosaic.version = 11 : i64} {
  func.func @_convnet_kernel(%arg0: i32, %arg1: memref<25x64x2xf32, #tpu.memory_space<vmem>>, %arg2: memref<3x9xf32, #tpu.memory_space<smem>>, %arg3: memref<3xf32, #tpu.memory_space<smem>>, %arg4: memref<3x10x64xf32, #tpu.memory_space<vmem>>, %arg5: memref<10x1xf32, #tpu.memory_space<vmem>>, %arg6: memref<10x2xf32, #tpu.memory_space<vmem>>) attributes {dimension_semantics = [#tpu.dimension_semantics<parallel>], iteration_bounds = array<i64: 1>, scalar_prefetch = 0 : i64, scratch_operands = 0 : i64, tpu.core_type = #tpu.core_type<tc>, window_params = [{transform_indices = @transform_0, window_bounds = array<i64: 25, 64, 2>}, {transform_indices = @transform_1, window_bounds = array<i64: 3, 9>}, {transform_indices = @transform_2, window_bounds = array<i64: 3>}, {pipeline_mode = #tpu.pipeline_mode<synchronous>, transform_indices = @transform_3, window_bounds = array<i64: 3, 10, 64>}, {pipeline_mode = #tpu.pipeline_mode<synchronous>, transform_indices = @transform_4, window_bounds = array<i64: 10, 1>}, {transform_indices = @transform_5, window_bounds = array<i64: 10, 2>}]} {
    %c0 = arith.constant 0 : index
    %c0_0 = arith.constant 0 : index
    %c0_1 = arith.constant 0 : index
    %0 = vector.load %arg1[%c0, %c0_0, %c0_1] : memref<25x64x2xf32, #tpu.memory_space<vmem>>, vector<1x64x2xf32>
    %1 = vector.shape_cast %0 : vector<1x64x2xf32> to vector<64x2xf32>
    %c0_2 = arith.constant 0 : index
    %c0_3 = arith.constant 0 : index
    %2 = memref.load %arg2[%c0_2, %c0_3] : memref<3x9xf32, #tpu.memory_space<smem>>
    %3 = vector.broadcast %2 : f32 to vector<64x2xf32>
    %4 = arith.mulf %3, %1 : vector<64x2xf32>
    %c1 = arith.constant 1 : index
    %c0_4 = arith.constant 0 : index
    %c0_5 = arith.constant 0 : index
    %5 = vector.load %arg1[%c1, %c0_4, %c0_5] : memref<25x64x2xf32, #tpu.memory_space<vmem>>, vector<1x64x2xf32>
    %6 = vector.shape_cast %5 : vector<1x64x2xf32> to vector<64x2xf32>
    %c0_6 = arith.constant 0 : index
    %c1_7 = arith.constant 1 : index
    %7 = memref.load %arg2[%c0_6, %c1_7] : memref<3x9xf32, #tpu.memory_space<smem>>
    %8 = vector.broadcast %7 : f32 to vector<64x2xf32>
    %9 = arith.mulf %8, %6 : vector<64x2xf32>
    %10 = arith.addf %4, %9 : vector<64x2xf32>
    %c2 = arith.constant 2 : index
    %c0_8 = arith.constant 0 : index
    %c0_9 = arith.constant 0 : index
    %11 = vector.load %arg1[%c2, %c0_8, %c0_9] : memref<25x64x2xf32, #tpu.memory_space<vmem>>, vector<1x64x2xf32>
    %12 = vector.shape_cast %11 : vector<1x64x2xf32> to vector<64x2xf32>
    %c0_10 = arith.constant 0 : index
    %c2_11 = arith.constant 2 : index
    %13 = memref.load %arg2[%c0_10, %c2_11] : memref<3x9xf32, #tpu.memory_space<smem>>
    %14 = vector.broadcast %13 : f32 to vector<64x2xf32>
    %15 = arith.mulf %14, %12 : vector<64x2xf32>
    %16 = arith.addf %10, %15 : vector<64x2xf32>
    %c5 = arith.constant 5 : index
    %c0_12 = arith.constant 0 : index
    %c0_13 = arith.constant 0 : index
    %17 = vector.load %arg1[%c5, %c0_12, %c0_13] : memref<25x64x2xf32, #tpu.memory_space<vmem>>, vector<1x64x2xf32>
    %18 = vector.shape_cast %17 : vector<1x64x2xf32> to vector<64x2xf32>
    %c0_14 = arith.constant 0 : index
    %c3 = arith.constant 3 : index
    %19 = memref.load %arg2[%c0_14, %c3] : memref<3x9xf32, #tpu.memory_space<smem>>
    %20 = vector.broadcast %19 : f32 to vector<64x2xf32>
    %21 = arith.mulf %20, %18 : vector<64x2xf32>
    %22 = arith.addf %16, %21 : vector<64x2xf32>
    %c6 = arith.constant 6 : index
    %c0_15 = arith.constant 0 : index
    %c0_16 = arith.constant 0 : index
    %23 = vector.load %arg1[%c6, %c0_15, %c0_16] : memref<25x64x2xf32, #tpu.memory_space<vmem>>, vector<1x64x2xf32>
    %24 = vector.shape_cast %23 : vector<1x64x2xf32> to vector<64x2xf32>
    %c0_17 = arith.constant 0 : index
    %c4 = arith.constant 4 : index
    %25 = memref.load %arg2[%c0_17, %c4] : memref<3x9xf32, #tpu.memory_space<smem>>
    %26 = vector.broadcast %25 : f32 to vector<64x2xf32>
    %27 = arith.mulf %26, %24 : vector<64x2xf32>
    %28 = arith.addf %22, %27 : vector<64x2xf32>
    %c7 = arith.constant 7 : index
    %c0_18 = arith.constant 0 : index
    %c0_19 = arith.constant 0 : index
    %29 = vector.load %arg1[%c7, %c0_18, %c0_19] : memref<25x64x2xf32, #tpu.memory_space<vmem>>, vector<1x64x2xf32>
    %30 = vector.shape_cast %29 : vector<1x64x2xf32> to vector<64x2xf32>
    %c0_20 = arith.constant 0 : index
    %c5_21 = arith.constant 5 : index
    %31 = memref.load %arg2[%c0_20, %c5_21] : memref<3x9xf32, #tpu.memory_space<smem>>
    %32 = vector.broadcast %31 : f32 to vector<64x2xf32>
    %33 = arith.mulf %32, %30 : vector<64x2xf32>
    %34 = arith.addf %28, %33 : vector<64x2xf32>
    %c10 = arith.constant 10 : index
    %c0_22 = arith.constant 0 : index
    %c0_23 = arith.constant 0 : index
    %35 = vector.load %arg1[%c10, %c0_22, %c0_23] : memref<25x64x2xf32, #tpu.memory_space<vmem>>, vector<1x64x2xf32>
    %36 = vector.shape_cast %35 : vector<1x64x2xf32> to vector<64x2xf32>
    %c0_24 = arith.constant 0 : index
    %c6_25 = arith.constant 6 : index
    %37 = memref.load %arg2[%c0_24, %c6_25] : memref<3x9xf32, #tpu.memory_space<smem>>
    %38 = vector.broadcast %37 : f32 to vector<64x2xf32>
    %39 = arith.mulf %38, %36 : vector<64x2xf32>
    %40 = arith.addf %34, %39 : vector<64x2xf32>
    %c11 = arith.constant 11 : index
    %c0_26 = arith.constant 0 : index
    %c0_27 = arith.constant 0 : index
    %41 = vector.load %arg1[%c11, %c0_26, %c0_27] : memref<25x64x2xf32, #tpu.memory_space<vmem>>, vector<1x64x2xf32>
    %42 = vector.shape_cast %41 : vector<1x64x2xf32> to vector<64x2xf32>
    %c0_28 = arith.constant 0 : index
    %c7_29 = arith.constant 7 : index
    %43 = memref.load %arg2[%c0_28, %c7_29] : memref<3x9xf32, #tpu.memory_space<smem>>
    %44 = vector.broadcast %43 : f32 to vector<64x2xf32>
    %45 = arith.mulf %44, %42 : vector<64x2xf32>
    %46 = arith.addf %40, %45 : vector<64x2xf32>
    %c12 = arith.constant 12 : index
    %c0_30 = arith.constant 0 : index
    %c0_31 = arith.constant 0 : index
    %47 = vector.load %arg1[%c12, %c0_30, %c0_31] : memref<25x64x2xf32, #tpu.memory_space<vmem>>, vector<1x64x2xf32>
    %48 = vector.shape_cast %47 : vector<1x64x2xf32> to vector<64x2xf32>
    %c0_32 = arith.constant 0 : index
    %c8 = arith.constant 8 : index
    %49 = memref.load %arg2[%c0_32, %c8] : memref<3x9xf32, #tpu.memory_space<smem>>
    %50 = vector.broadcast %49 : f32 to vector<64x2xf32>
    %51 = arith.mulf %50, %48 : vector<64x2xf32>
    %52 = arith.addf %46, %51 : vector<64x2xf32>
    %c1_33 = arith.constant 1 : index
    %c0_34 = arith.constant 0 : index
    %c0_35 = arith.constant 0 : index
    %53 = vector.load %arg1[%c1_33, %c0_34, %c0_35] : memref<25x64x2xf32, #tpu.memory_space<vmem>>, vector<1x64x2xf32>
    %54 = vector.shape_cast %53 : vector<1x64x2xf32> to vector<64x2xf32>
    %c0_36 = arith.constant 0 : index
    %c0_37 = arith.constant 0 : index
    %55 = memref.load %arg2[%c0_36, %c0_37] : memref<3x9xf32, #tpu.memory_space<smem>>
    %56 = vector.broadcast %55 : f32 to vector<64x2xf32>
    %57 = arith.mulf %56, %54 : vector<64x2xf32>
    %c2_38 = arith.constant 2 : index
    %c0_39 = arith.constant 0 : index
    %c0_40 = arith.constant 0 : index
    %58 = vector.load %arg1[%c2_38, %c0_39, %c0_40] : memref<25x64x2xf32, #tpu.memory_space<vmem>>, vector<1x64x2xf32>
    %59 = vector.shape_cast %58 : vector<1x64x2xf32> to vector<64x2xf32>
    %c0_41 = arith.constant 0 : index
    %c1_42 = arith.constant 1 : index
    %60 = memref.load %arg2[%c0_41, %c1_42] : memref<3x9xf32, #tpu.memory_space<smem>>
    %61 = vector.broadcast %60 : f32 to vector<64x2xf32>
    %62 = arith.mulf %61, %59 : vector<64x2xf32>
    %63 = arith.addf %57, %62 : vector<64x2xf32>
    %c3_43 = arith.constant 3 : index
    %c0_44 = arith.constant 0 : index
    %c0_45 = arith.constant 0 : index
    %64 = vector.load %arg1[%c3_43, %c0_44, %c0_45] : memref<25x64x2xf32, #tpu.memory_space<vmem>>, vector<1x64x2xf32>
    %65 = vector.shape_cast %64 : vector<1x64x2xf32> to vector<64x2xf32>
    %c0_46 = arith.constant 0 : index
    %c2_47 = arith.constant 2 : index
    %66 = memref.load %arg2[%c0_46, %c2_47] : memref<3x9xf32, #tpu.memory_space<smem>>
    %67 = vector.broadcast %66 : f32 to vector<64x2xf32>
    %68 = arith.mulf %67, %65 : vector<64x2xf32>
    %69 = arith.addf %63, %68 : vector<64x2xf32>
    %c6_48 = arith.constant 6 : index
    %c0_49 = arith.constant 0 : index
    %c0_50 = arith.constant 0 : index
    %70 = vector.load %arg1[%c6_48, %c0_49, %c0_50] : memref<25x64x2xf32, #tpu.memory_space<vmem>>, vector<1x64x2xf32>
    %71 = vector.shape_cast %70 : vector<1x64x2xf32> to vector<64x2xf32>
    %c0_51 = arith.constant 0 : index
    %c3_52 = arith.constant 3 : index
    %72 = memref.load %arg2[%c0_51, %c3_52] : memref<3x9xf32, #tpu.memory_space<smem>>
    %73 = vector.broadcast %72 : f32 to vector<64x2xf32>
    %74 = arith.mulf %73, %71 : vector<64x2xf32>
    %75 = arith.addf %69, %74 : vector<64x2xf32>
    %c7_53 = arith.constant 7 : index
    %c0_54 = arith.constant 0 : index
    %c0_55 = arith.constant 0 : index
    %76 = vector.load %arg1[%c7_53, %c0_54, %c0_55] : memref<25x64x2xf32, #tpu.memory_space<vmem>>, vector<1x64x2xf32>
    %77 = vector.shape_cast %76 : vector<1x64x2xf32> to vector<64x2xf32>
    %c0_56 = arith.constant 0 : index
    %c4_57 = arith.constant 4 : index
    %78 = memref.load %arg2[%c0_56, %c4_57] : memref<3x9xf32, #tpu.memory_space<smem>>
    %79 = vector.broadcast %78 : f32 to vector<64x2xf32>
    %80 = arith.mulf %79, %77 : vector<64x2xf32>
    %81 = arith.addf %75, %80 : vector<64x2xf32>
    %c8_58 = arith.constant 8 : index
    %c0_59 = arith.constant 0 : index
    %c0_60 = arith.constant 0 : index
    %82 = vector.load %arg1[%c8_58, %c0_59, %c0_60] : memref<25x64x2xf32, #tpu.memory_space<vmem>>, vector<1x64x2xf32>
    %83 = vector.shape_cast %82 : vector<1x64x2xf32> to vector<64x2xf32>
    %c0_61 = arith.constant 0 : index
    %c5_62 = arith.constant 5 : index
    %84 = memref.load %arg2[%c0_61, %c5_62] : memref<3x9xf32, #tpu.memory_space<smem>>
    %85 = vector.broadcast %84 : f32 to vector<64x2xf32>
    %86 = arith.mulf %85, %83 : vector<64x2xf32>
    %87 = arith.addf %81, %86 : vector<64x2xf32>
    %c11_63 = arith.constant 11 : index
    %c0_64 = arith.constant 0 : index
    %c0_65 = arith.constant 0 : index
    %88 = vector.load %arg1[%c11_63, %c0_64, %c0_65] : memref<25x64x2xf32, #tpu.memory_space<vmem>>, vector<1x64x2xf32>
    %89 = vector.shape_cast %88 : vector<1x64x2xf32> to vector<64x2xf32>
    %c0_66 = arith.constant 0 : index
    %c6_67 = arith.constant 6 : index
    %90 = memref.load %arg2[%c0_66, %c6_67] : memref<3x9xf32, #tpu.memory_space<smem>>
    %91 = vector.broadcast %90 : f32 to vector<64x2xf32>
    %92 = arith.mulf %91, %89 : vector<64x2xf32>
    %93 = arith.addf %87, %92 : vector<64x2xf32>
    %c12_68 = arith.constant 12 : index
    %c0_69 = arith.constant 0 : index
    %c0_70 = arith.constant 0 : index
    %94 = vector.load %arg1[%c12_68, %c0_69, %c0_70] : memref<25x64x2xf32, #tpu.memory_space<vmem>>, vector<1x64x2xf32>
    %95 = vector.shape_cast %94 : vector<1x64x2xf32> to vector<64x2xf32>
    %c0_71 = arith.constant 0 : index
    %c7_72 = arith.constant 7 : index
    %96 = memref.load %arg2[%c0_71, %c7_72] : memref<3x9xf32, #tpu.memory_space<smem>>
    %97 = vector.broadcast %96 : f32 to vector<64x2xf32>
    %98 = arith.mulf %97, %95 : vector<64x2xf32>
    %99 = arith.addf %93, %98 : vector<64x2xf32>
    %c13 = arith.constant 13 : index
    %c0_73 = arith.constant 0 : index
    %c0_74 = arith.constant 0 : index
    %100 = vector.load %arg1[%c13, %c0_73, %c0_74] : memref<25x64x2xf32, #tpu.memory_space<vmem>>, vector<1x64x2xf32>
    %101 = vector.shape_cast %100 : vector<1x64x2xf32> to vector<64x2xf32>
    %c0_75 = arith.constant 0 : index
    %c8_76 = arith.constant 8 : index
    %102 = memref.load %arg2[%c0_75, %c8_76] : memref<3x9xf32, #tpu.memory_space<smem>>
    %103 = vector.broadcast %102 : f32 to vector<64x2xf32>
    %104 = arith.mulf %103, %101 : vector<64x2xf32>
    %105 = arith.addf %99, %104 : vector<64x2xf32>
    %106 = arith.maximumf %52, %105 : vector<64x2xf32>
    %c2_77 = arith.constant 2 : index
    %c0_78 = arith.constant 0 : index
    %c0_79 = arith.constant 0 : index
    %107 = vector.load %arg1[%c2_77, %c0_78, %c0_79] : memref<25x64x2xf32, #tpu.memory_space<vmem>>, vector<1x64x2xf32>
    %108 = vector.shape_cast %107 : vector<1x64x2xf32> to vector<64x2xf32>
    %c0_80 = arith.constant 0 : index
    %c0_81 = arith.constant 0 : index
    %109 = memref.load %arg2[%c0_80, %c0_81] : memref<3x9xf32, #tpu.memory_space<smem>>
    %110 = vector.broadcast %109 : f32 to vector<64x2xf32>
    %111 = arith.mulf %110, %108 : vector<64x2xf32>
    %c3_82 = arith.constant 3 : index
    %c0_83 = arith.constant 0 : index
    %c0_84 = arith.constant 0 : index
    %112 = vector.load %arg1[%c3_82, %c0_83, %c0_84] : memref<25x64x2xf32, #tpu.memory_space<vmem>>, vector<1x64x2xf32>
    %113 = vector.shape_cast %112 : vector<1x64x2xf32> to vector<64x2xf32>
    %c0_85 = arith.constant 0 : index
    %c1_86 = arith.constant 1 : index
    %114 = memref.load %arg2[%c0_85, %c1_86] : memref<3x9xf32, #tpu.memory_space<smem>>
    %115 = vector.broadcast %114 : f32 to vector<64x2xf32>
    %116 = arith.mulf %115, %113 : vector<64x2xf32>
    %117 = arith.addf %111, %116 : vector<64x2xf32>
    %c4_87 = arith.constant 4 : index
    %c0_88 = arith.constant 0 : index
    %c0_89 = arith.constant 0 : index
    %118 = vector.load %arg1[%c4_87, %c0_88, %c0_89] : memref<25x64x2xf32, #tpu.memory_space<vmem>>, vector<1x64x2xf32>
    %119 = vector.shape_cast %118 : vector<1x64x2xf32> to vector<64x2xf32>
    %c0_90 = arith.constant 0 : index
    %c2_91 = arith.constant 2 : index
    %120 = memref.load %arg2[%c0_90, %c2_91] : memref<3x9xf32, #tpu.memory_space<smem>>
    %121 = vector.broadcast %120 : f32 to vector<64x2xf32>
    %122 = arith.mulf %121, %119 : vector<64x2xf32>
    %123 = arith.addf %117, %122 : vector<64x2xf32>
    %c7_92 = arith.constant 7 : index
    %c0_93 = arith.constant 0 : index
    %c0_94 = arith.constant 0 : index
    %124 = vector.load %arg1[%c7_92, %c0_93, %c0_94] : memref<25x64x2xf32, #tpu.memory_space<vmem>>, vector<1x64x2xf32>
    %125 = vector.shape_cast %124 : vector<1x64x2xf32> to vector<64x2xf32>
    %c0_95 = arith.constant 0 : index
    %c3_96 = arith.constant 3 : index
    %126 = memref.load %arg2[%c0_95, %c3_96] : memref<3x9xf32, #tpu.memory_space<smem>>
    %127 = vector.broadcast %126 : f32 to vector<64x2xf32>
    %128 = arith.mulf %127, %125 : vector<64x2xf32>
    %129 = arith.addf %123, %128 : vector<64x2xf32>
    %c8_97 = arith.constant 8 : index
    %c0_98 = arith.constant 0 : index
    %c0_99 = arith.constant 0 : index
    %130 = vector.load %arg1[%c8_97, %c0_98, %c0_99] : memref<25x64x2xf32, #tpu.memory_space<vmem>>, vector<1x64x2xf32>
    %131 = vector.shape_cast %130 : vector<1x64x2xf32> to vector<64x2xf32>
    %c0_100 = arith.constant 0 : index
    %c4_101 = arith.constant 4 : index
    %132 = memref.load %arg2[%c0_100, %c4_101] : memref<3x9xf32, #tpu.memory_space<smem>>
    %133 = vector.broadcast %132 : f32 to vector<64x2xf32>
    %134 = arith.mulf %133, %131 : vector<64x2xf32>
    %135 = arith.addf %129, %134 : vector<64x2xf32>
    %c9 = arith.constant 9 : index
    %c0_102 = arith.constant 0 : index
    %c0_103 = arith.constant 0 : index
    %136 = vector.load %arg1[%c9, %c0_102, %c0_103] : memref<25x64x2xf32, #tpu.memory_space<vmem>>, vector<1x64x2xf32>
    %137 = vector.shape_cast %136 : vector<1x64x2xf32> to vector<64x2xf32>
    %c0_104 = arith.constant 0 : index
    %c5_105 = arith.constant 5 : index
    %138 = memref.load %arg2[%c0_104, %c5_105] : memref<3x9xf32, #tpu.memory_space<smem>>
    %139 = vector.broadcast %138 : f32 to vector<64x2xf32>
    %140 = arith.mulf %139, %137 : vector<64x2xf32>
    %141 = arith.addf %135, %140 : vector<64x2xf32>
    %c12_106 = arith.constant 12 : index
    %c0_107 = arith.constant 0 : index
    %c0_108 = arith.constant 0 : index
    %142 = vector.load %arg1[%c12_106, %c0_107, %c0_108] : memref<25x64x2xf32, #tpu.memory_space<vmem>>, vector<1x64x2xf32>
    %143 = vector.shape_cast %142 : vector<1x64x2xf32> to vector<64x2xf32>
    %c0_109 = arith.constant 0 : index
    %c6_110 = arith.constant 6 : index
    %144 = memref.load %arg2[%c0_109, %c6_110] : memref<3x9xf32, #tpu.memory_space<smem>>
    %145 = vector.broadcast %144 : f32 to vector<64x2xf32>
    %146 = arith.mulf %145, %143 : vector<64x2xf32>
    %147 = arith.addf %141, %146 : vector<64x2xf32>
    %c13_111 = arith.constant 13 : index
    %c0_112 = arith.constant 0 : index
    %c0_113 = arith.constant 0 : index
    %148 = vector.load %arg1[%c13_111, %c0_112, %c0_113] : memref<25x64x2xf32, #tpu.memory_space<vmem>>, vector<1x64x2xf32>
    %149 = vector.shape_cast %148 : vector<1x64x2xf32> to vector<64x2xf32>
    %c0_114 = arith.constant 0 : index
    %c7_115 = arith.constant 7 : index
    %150 = memref.load %arg2[%c0_114, %c7_115] : memref<3x9xf32, #tpu.memory_space<smem>>
    %151 = vector.broadcast %150 : f32 to vector<64x2xf32>
    %152 = arith.mulf %151, %149 : vector<64x2xf32>
    %153 = arith.addf %147, %152 : vector<64x2xf32>
    %c14 = arith.constant 14 : index
    %c0_116 = arith.constant 0 : index
    %c0_117 = arith.constant 0 : index
    %154 = vector.load %arg1[%c14, %c0_116, %c0_117] : memref<25x64x2xf32, #tpu.memory_space<vmem>>, vector<1x64x2xf32>
    %155 = vector.shape_cast %154 : vector<1x64x2xf32> to vector<64x2xf32>
    %c0_118 = arith.constant 0 : index
    %c8_119 = arith.constant 8 : index
    %156 = memref.load %arg2[%c0_118, %c8_119] : memref<3x9xf32, #tpu.memory_space<smem>>
    %157 = vector.broadcast %156 : f32 to vector<64x2xf32>
    %158 = arith.mulf %157, %155 : vector<64x2xf32>
    %159 = arith.addf %153, %158 : vector<64x2xf32>
    %160 = arith.maximumf %106, %159 : vector<64x2xf32>
    %c5_120 = arith.constant 5 : index
    %c0_121 = arith.constant 0 : index
    %c0_122 = arith.constant 0 : index
    %161 = vector.load %arg1[%c5_120, %c0_121, %c0_122] : memref<25x64x2xf32, #tpu.memory_space<vmem>>, vector<1x64x2xf32>
    %162 = vector.shape_cast %161 : vector<1x64x2xf32> to vector<64x2xf32>
    %c0_123 = arith.constant 0 : index
    %c0_124 = arith.constant 0 : index
    %163 = memref.load %arg2[%c0_123, %c0_124] : memref<3x9xf32, #tpu.memory_space<smem>>
    %164 = vector.broadcast %163 : f32 to vector<64x2xf32>
    %165 = arith.mulf %164, %162 : vector<64x2xf32>
    %c6_125 = arith.constant 6 : index
    %c0_126 = arith.constant 0 : index
    %c0_127 = arith.constant 0 : index
    %166 = vector.load %arg1[%c6_125, %c0_126, %c0_127] : memref<25x64x2xf32, #tpu.memory_space<vmem>>, vector<1x64x2xf32>
    %167 = vector.shape_cast %166 : vector<1x64x2xf32> to vector<64x2xf32>
    %c0_128 = arith.constant 0 : index
    %c1_129 = arith.constant 1 : index
    %168 = memref.load %arg2[%c0_128, %c1_129] : memref<3x9xf32, #tpu.memory_space<smem>>
    %169 = vector.broadcast %168 : f32 to vector<64x2xf32>
    %170 = arith.mulf %169, %167 : vector<64x2xf32>
    %171 = arith.addf %165, %170 : vector<64x2xf32>
    %c7_130 = arith.constant 7 : index
    %c0_131 = arith.constant 0 : index
    %c0_132 = arith.constant 0 : index
    %172 = vector.load %arg1[%c7_130, %c0_131, %c0_132] : memref<25x64x2xf32, #tpu.memory_space<vmem>>, vector<1x64x2xf32>
    %173 = vector.shape_cast %172 : vector<1x64x2xf32> to vector<64x2xf32>
    %c0_133 = arith.constant 0 : index
    %c2_134 = arith.constant 2 : index
    %174 = memref.load %arg2[%c0_133, %c2_134] : memref<3x9xf32, #tpu.memory_space<smem>>
    %175 = vector.broadcast %174 : f32 to vector<64x2xf32>
    %176 = arith.mulf %175, %173 : vector<64x2xf32>
    %177 = arith.addf %171, %176 : vector<64x2xf32>
    %c10_135 = arith.constant 10 : index
    %c0_136 = arith.constant 0 : index
    %c0_137 = arith.constant 0 : index
    %178 = vector.load %arg1[%c10_135, %c0_136, %c0_137] : memref<25x64x2xf32, #tpu.memory_space<vmem>>, vector<1x64x2xf32>
    %179 = vector.shape_cast %178 : vector<1x64x2xf32> to vector<64x2xf32>
    %c0_138 = arith.constant 0 : index
    %c3_139 = arith.constant 3 : index
    %180 = memref.load %arg2[%c0_138, %c3_139] : memref<3x9xf32, #tpu.memory_space<smem>>
    %181 = vector.broadcast %180 : f32 to vector<64x2xf32>
    %182 = arith.mulf %181, %179 : vector<64x2xf32>
    %183 = arith.addf %177, %182 : vector<64x2xf32>
    %c11_140 = arith.constant 11 : index
    %c0_141 = arith.constant 0 : index
    %c0_142 = arith.constant 0 : index
    %184 = vector.load %arg1[%c11_140, %c0_141, %c0_142] : memref<25x64x2xf32, #tpu.memory_space<vmem>>, vector<1x64x2xf32>
    %185 = vector.shape_cast %184 : vector<1x64x2xf32> to vector<64x2xf32>
    %c0_143 = arith.constant 0 : index
    %c4_144 = arith.constant 4 : index
    %186 = memref.load %arg2[%c0_143, %c4_144] : memref<3x9xf32, #tpu.memory_space<smem>>
    %187 = vector.broadcast %186 : f32 to vector<64x2xf32>
    %188 = arith.mulf %187, %185 : vector<64x2xf32>
    %189 = arith.addf %183, %188 : vector<64x2xf32>
    %c12_145 = arith.constant 12 : index
    %c0_146 = arith.constant 0 : index
    %c0_147 = arith.constant 0 : index
    %190 = vector.load %arg1[%c12_145, %c0_146, %c0_147] : memref<25x64x2xf32, #tpu.memory_space<vmem>>, vector<1x64x2xf32>
    %191 = vector.shape_cast %190 : vector<1x64x2xf32> to vector<64x2xf32>
    %c0_148 = arith.constant 0 : index
    %c5_149 = arith.constant 5 : index
    %192 = memref.load %arg2[%c0_148, %c5_149] : memref<3x9xf32, #tpu.memory_space<smem>>
    %193 = vector.broadcast %192 : f32 to vector<64x2xf32>
    %194 = arith.mulf %193, %191 : vector<64x2xf32>
    %195 = arith.addf %189, %194 : vector<64x2xf32>
    %c15 = arith.constant 15 : index
    %c0_150 = arith.constant 0 : index
    %c0_151 = arith.constant 0 : index
    %196 = vector.load %arg1[%c15, %c0_150, %c0_151] : memref<25x64x2xf32, #tpu.memory_space<vmem>>, vector<1x64x2xf32>
    %197 = vector.shape_cast %196 : vector<1x64x2xf32> to vector<64x2xf32>
    %c0_152 = arith.constant 0 : index
    %c6_153 = arith.constant 6 : index
    %198 = memref.load %arg2[%c0_152, %c6_153] : memref<3x9xf32, #tpu.memory_space<smem>>
    %199 = vector.broadcast %198 : f32 to vector<64x2xf32>
    %200 = arith.mulf %199, %197 : vector<64x2xf32>
    %201 = arith.addf %195, %200 : vector<64x2xf32>
    %c16 = arith.constant 16 : index
    %c0_154 = arith.constant 0 : index
    %c0_155 = arith.constant 0 : index
    %202 = vector.load %arg1[%c16, %c0_154, %c0_155] : memref<25x64x2xf32, #tpu.memory_space<vmem>>, vector<1x64x2xf32>
    %203 = vector.shape_cast %202 : vector<1x64x2xf32> to vector<64x2xf32>
    %c0_156 = arith.constant 0 : index
    %c7_157 = arith.constant 7 : index
    %204 = memref.load %arg2[%c0_156, %c7_157] : memref<3x9xf32, #tpu.memory_space<smem>>
    %205 = vector.broadcast %204 : f32 to vector<64x2xf32>
    %206 = arith.mulf %205, %203 : vector<64x2xf32>
    %207 = arith.addf %201, %206 : vector<64x2xf32>
    %c17 = arith.constant 17 : index
    %c0_158 = arith.constant 0 : index
    %c0_159 = arith.constant 0 : index
    %208 = vector.load %arg1[%c17, %c0_158, %c0_159] : memref<25x64x2xf32, #tpu.memory_space<vmem>>, vector<1x64x2xf32>
    %209 = vector.shape_cast %208 : vector<1x64x2xf32> to vector<64x2xf32>
    %c0_160 = arith.constant 0 : index
    %c8_161 = arith.constant 8 : index
    %210 = memref.load %arg2[%c0_160, %c8_161] : memref<3x9xf32, #tpu.memory_space<smem>>
    %211 = vector.broadcast %210 : f32 to vector<64x2xf32>
    %212 = arith.mulf %211, %209 : vector<64x2xf32>
    %213 = arith.addf %207, %212 : vector<64x2xf32>
    %214 = arith.maximumf %160, %213 : vector<64x2xf32>
    %c6_162 = arith.constant 6 : index
    %c0_163 = arith.constant 0 : index
    %c0_164 = arith.constant 0 : index
    %215 = vector.load %arg1[%c6_162, %c0_163, %c0_164] : memref<25x64x2xf32, #tpu.memory_space<vmem>>, vector<1x64x2xf32>
    %216 = vector.shape_cast %215 : vector<1x64x2xf32> to vector<64x2xf32>
    %c0_165 = arith.constant 0 : index
    %c0_166 = arith.constant 0 : index
    %217 = memref.load %arg2[%c0_165, %c0_166] : memref<3x9xf32, #tpu.memory_space<smem>>
    %218 = vector.broadcast %217 : f32 to vector<64x2xf32>
    %219 = arith.mulf %218, %216 : vector<64x2xf32>
    %c7_167 = arith.constant 7 : index
    %c0_168 = arith.constant 0 : index
    %c0_169 = arith.constant 0 : index
    %220 = vector.load %arg1[%c7_167, %c0_168, %c0_169] : memref<25x64x2xf32, #tpu.memory_space<vmem>>, vector<1x64x2xf32>
    %221 = vector.shape_cast %220 : vector<1x64x2xf32> to vector<64x2xf32>
    %c0_170 = arith.constant 0 : index
    %c1_171 = arith.constant 1 : index
    %222 = memref.load %arg2[%c0_170, %c1_171] : memref<3x9xf32, #tpu.memory_space<smem>>
    %223 = vector.broadcast %222 : f32 to vector<64x2xf32>
    %224 = arith.mulf %223, %221 : vector<64x2xf32>
    %225 = arith.addf %219, %224 : vector<64x2xf32>
    %c8_172 = arith.constant 8 : index
    %c0_173 = arith.constant 0 : index
    %c0_174 = arith.constant 0 : index
    %226 = vector.load %arg1[%c8_172, %c0_173, %c0_174] : memref<25x64x2xf32, #tpu.memory_space<vmem>>, vector<1x64x2xf32>
    %227 = vector.shape_cast %226 : vector<1x64x2xf32> to vector<64x2xf32>
    %c0_175 = arith.constant 0 : index
    %c2_176 = arith.constant 2 : index
    %228 = memref.load %arg2[%c0_175, %c2_176] : memref<3x9xf32, #tpu.memory_space<smem>>
    %229 = vector.broadcast %228 : f32 to vector<64x2xf32>
    %230 = arith.mulf %229, %227 : vector<64x2xf32>
    %231 = arith.addf %225, %230 : vector<64x2xf32>
    %c11_177 = arith.constant 11 : index
    %c0_178 = arith.constant 0 : index
    %c0_179 = arith.constant 0 : index
    %232 = vector.load %arg1[%c11_177, %c0_178, %c0_179] : memref<25x64x2xf32, #tpu.memory_space<vmem>>, vector<1x64x2xf32>
    %233 = vector.shape_cast %232 : vector<1x64x2xf32> to vector<64x2xf32>
    %c0_180 = arith.constant 0 : index
    %c3_181 = arith.constant 3 : index
    %234 = memref.load %arg2[%c0_180, %c3_181] : memref<3x9xf32, #tpu.memory_space<smem>>
    %235 = vector.broadcast %234 : f32 to vector<64x2xf32>
    %236 = arith.mulf %235, %233 : vector<64x2xf32>
    %237 = arith.addf %231, %236 : vector<64x2xf32>
    %c12_182 = arith.constant 12 : index
    %c0_183 = arith.constant 0 : index
    %c0_184 = arith.constant 0 : index
    %238 = vector.load %arg1[%c12_182, %c0_183, %c0_184] : memref<25x64x2xf32, #tpu.memory_space<vmem>>, vector<1x64x2xf32>
    %239 = vector.shape_cast %238 : vector<1x64x2xf32> to vector<64x2xf32>
    %c0_185 = arith.constant 0 : index
    %c4_186 = arith.constant 4 : index
    %240 = memref.load %arg2[%c0_185, %c4_186] : memref<3x9xf32, #tpu.memory_space<smem>>
    %241 = vector.broadcast %240 : f32 to vector<64x2xf32>
    %242 = arith.mulf %241, %239 : vector<64x2xf32>
    %243 = arith.addf %237, %242 : vector<64x2xf32>
    %c13_187 = arith.constant 13 : index
    %c0_188 = arith.constant 0 : index
    %c0_189 = arith.constant 0 : index
    %244 = vector.load %arg1[%c13_187, %c0_188, %c0_189] : memref<25x64x2xf32, #tpu.memory_space<vmem>>, vector<1x64x2xf32>
    %245 = vector.shape_cast %244 : vector<1x64x2xf32> to vector<64x2xf32>
    %c0_190 = arith.constant 0 : index
    %c5_191 = arith.constant 5 : index
    %246 = memref.load %arg2[%c0_190, %c5_191] : memref<3x9xf32, #tpu.memory_space<smem>>
    %247 = vector.broadcast %246 : f32 to vector<64x2xf32>
    %248 = arith.mulf %247, %245 : vector<64x2xf32>
    %249 = arith.addf %243, %248 : vector<64x2xf32>
    %c16_192 = arith.constant 16 : index
    %c0_193 = arith.constant 0 : index
    %c0_194 = arith.constant 0 : index
    %250 = vector.load %arg1[%c16_192, %c0_193, %c0_194] : memref<25x64x2xf32, #tpu.memory_space<vmem>>, vector<1x64x2xf32>
    %251 = vector.shape_cast %250 : vector<1x64x2xf32> to vector<64x2xf32>
    %c0_195 = arith.constant 0 : index
    %c6_196 = arith.constant 6 : index
    %252 = memref.load %arg2[%c0_195, %c6_196] : memref<3x9xf32, #tpu.memory_space<smem>>
    %253 = vector.broadcast %252 : f32 to vector<64x2xf32>
    %254 = arith.mulf %253, %251 : vector<64x2xf32>
    %255 = arith.addf %249, %254 : vector<64x2xf32>
    %c17_197 = arith.constant 17 : index
    %c0_198 = arith.constant 0 : index
    %c0_199 = arith.constant 0 : index
    %256 = vector.load %arg1[%c17_197, %c0_198, %c0_199] : memref<25x64x2xf32, #tpu.memory_space<vmem>>, vector<1x64x2xf32>
    %257 = vector.shape_cast %256 : vector<1x64x2xf32> to vector<64x2xf32>
    %c0_200 = arith.constant 0 : index
    %c7_201 = arith.constant 7 : index
    %258 = memref.load %arg2[%c0_200, %c7_201] : memref<3x9xf32, #tpu.memory_space<smem>>
    %259 = vector.broadcast %258 : f32 to vector<64x2xf32>
    %260 = arith.mulf %259, %257 : vector<64x2xf32>
    %261 = arith.addf %255, %260 : vector<64x2xf32>
    %c18 = arith.constant 18 : index
    %c0_202 = arith.constant 0 : index
    %c0_203 = arith.constant 0 : index
    %262 = vector.load %arg1[%c18, %c0_202, %c0_203] : memref<25x64x2xf32, #tpu.memory_space<vmem>>, vector<1x64x2xf32>
    %263 = vector.shape_cast %262 : vector<1x64x2xf32> to vector<64x2xf32>
    %c0_204 = arith.constant 0 : index
    %c8_205 = arith.constant 8 : index
    %264 = memref.load %arg2[%c0_204, %c8_205] : memref<3x9xf32, #tpu.memory_space<smem>>
    %265 = vector.broadcast %264 : f32 to vector<64x2xf32>
    %266 = arith.mulf %265, %263 : vector<64x2xf32>
    %267 = arith.addf %261, %266 : vector<64x2xf32>
    %268 = arith.maximumf %214, %267 : vector<64x2xf32>
    %c7_206 = arith.constant 7 : index
    %c0_207 = arith.constant 0 : index
    %c0_208 = arith.constant 0 : index
    %269 = vector.load %arg1[%c7_206, %c0_207, %c0_208] : memref<25x64x2xf32, #tpu.memory_space<vmem>>, vector<1x64x2xf32>
    %270 = vector.shape_cast %269 : vector<1x64x2xf32> to vector<64x2xf32>
    %c0_209 = arith.constant 0 : index
    %c0_210 = arith.constant 0 : index
    %271 = memref.load %arg2[%c0_209, %c0_210] : memref<3x9xf32, #tpu.memory_space<smem>>
    %272 = vector.broadcast %271 : f32 to vector<64x2xf32>
    %273 = arith.mulf %272, %270 : vector<64x2xf32>
    %c8_211 = arith.constant 8 : index
    %c0_212 = arith.constant 0 : index
    %c0_213 = arith.constant 0 : index
    %274 = vector.load %arg1[%c8_211, %c0_212, %c0_213] : memref<25x64x2xf32, #tpu.memory_space<vmem>>, vector<1x64x2xf32>
    %275 = vector.shape_cast %274 : vector<1x64x2xf32> to vector<64x2xf32>
    %c0_214 = arith.constant 0 : index
    %c1_215 = arith.constant 1 : index
    %276 = memref.load %arg2[%c0_214, %c1_215] : memref<3x9xf32, #tpu.memory_space<smem>>
    %277 = vector.broadcast %276 : f32 to vector<64x2xf32>
    %278 = arith.mulf %277, %275 : vector<64x2xf32>
    %279 = arith.addf %273, %278 : vector<64x2xf32>
    %c9_216 = arith.constant 9 : index
    %c0_217 = arith.constant 0 : index
    %c0_218 = arith.constant 0 : index
    %280 = vector.load %arg1[%c9_216, %c0_217, %c0_218] : memref<25x64x2xf32, #tpu.memory_space<vmem>>, vector<1x64x2xf32>
    %281 = vector.shape_cast %280 : vector<1x64x2xf32> to vector<64x2xf32>
    %c0_219 = arith.constant 0 : index
    %c2_220 = arith.constant 2 : index
    %282 = memref.load %arg2[%c0_219, %c2_220] : memref<3x9xf32, #tpu.memory_space<smem>>
    %283 = vector.broadcast %282 : f32 to vector<64x2xf32>
    %284 = arith.mulf %283, %281 : vector<64x2xf32>
    %285 = arith.addf %279, %284 : vector<64x2xf32>
    %c12_221 = arith.constant 12 : index
    %c0_222 = arith.constant 0 : index
    %c0_223 = arith.constant 0 : index
    %286 = vector.load %arg1[%c12_221, %c0_222, %c0_223] : memref<25x64x2xf32, #tpu.memory_space<vmem>>, vector<1x64x2xf32>
    %287 = vector.shape_cast %286 : vector<1x64x2xf32> to vector<64x2xf32>
    %c0_224 = arith.constant 0 : index
    %c3_225 = arith.constant 3 : index
    %288 = memref.load %arg2[%c0_224, %c3_225] : memref<3x9xf32, #tpu.memory_space<smem>>
    %289 = vector.broadcast %288 : f32 to vector<64x2xf32>
    %290 = arith.mulf %289, %287 : vector<64x2xf32>
    %291 = arith.addf %285, %290 : vector<64x2xf32>
    %c13_226 = arith.constant 13 : index
    %c0_227 = arith.constant 0 : index
    %c0_228 = arith.constant 0 : index
    %292 = vector.load %arg1[%c13_226, %c0_227, %c0_228] : memref<25x64x2xf32, #tpu.memory_space<vmem>>, vector<1x64x2xf32>
    %293 = vector.shape_cast %292 : vector<1x64x2xf32> to vector<64x2xf32>
    %c0_229 = arith.constant 0 : index
    %c4_230 = arith.constant 4 : index
    %294 = memref.load %arg2[%c0_229, %c4_230] : memref<3x9xf32, #tpu.memory_space<smem>>
    %295 = vector.broadcast %294 : f32 to vector<64x2xf32>
    %296 = arith.mulf %295, %293 : vector<64x2xf32>
    %297 = arith.addf %291, %296 : vector<64x2xf32>
    %c14_231 = arith.constant 14 : index
    %c0_232 = arith.constant 0 : index
    %c0_233 = arith.constant 0 : index
    %298 = vector.load %arg1[%c14_231, %c0_232, %c0_233] : memref<25x64x2xf32, #tpu.memory_space<vmem>>, vector<1x64x2xf32>
    %299 = vector.shape_cast %298 : vector<1x64x2xf32> to vector<64x2xf32>
    %c0_234 = arith.constant 0 : index
    %c5_235 = arith.constant 5 : index
    %300 = memref.load %arg2[%c0_234, %c5_235] : memref<3x9xf32, #tpu.memory_space<smem>>
    %301 = vector.broadcast %300 : f32 to vector<64x2xf32>
    %302 = arith.mulf %301, %299 : vector<64x2xf32>
    %303 = arith.addf %297, %302 : vector<64x2xf32>
    %c17_236 = arith.constant 17 : index
    %c0_237 = arith.constant 0 : index
    %c0_238 = arith.constant 0 : index
    %304 = vector.load %arg1[%c17_236, %c0_237, %c0_238] : memref<25x64x2xf32, #tpu.memory_space<vmem>>, vector<1x64x2xf32>
    %305 = vector.shape_cast %304 : vector<1x64x2xf32> to vector<64x2xf32>
    %c0_239 = arith.constant 0 : index
    %c6_240 = arith.constant 6 : index
    %306 = memref.load %arg2[%c0_239, %c6_240] : memref<3x9xf32, #tpu.memory_space<smem>>
    %307 = vector.broadcast %306 : f32 to vector<64x2xf32>
    %308 = arith.mulf %307, %305 : vector<64x2xf32>
    %309 = arith.addf %303, %308 : vector<64x2xf32>
    %c18_241 = arith.constant 18 : index
    %c0_242 = arith.constant 0 : index
    %c0_243 = arith.constant 0 : index
    %310 = vector.load %arg1[%c18_241, %c0_242, %c0_243] : memref<25x64x2xf32, #tpu.memory_space<vmem>>, vector<1x64x2xf32>
    %311 = vector.shape_cast %310 : vector<1x64x2xf32> to vector<64x2xf32>
    %c0_244 = arith.constant 0 : index
    %c7_245 = arith.constant 7 : index
    %312 = memref.load %arg2[%c0_244, %c7_245] : memref<3x9xf32, #tpu.memory_space<smem>>
    %313 = vector.broadcast %312 : f32 to vector<64x2xf32>
    %314 = arith.mulf %313, %311 : vector<64x2xf32>
    %315 = arith.addf %309, %314 : vector<64x2xf32>
    %c19 = arith.constant 19 : index
    %c0_246 = arith.constant 0 : index
    %c0_247 = arith.constant 0 : index
    %316 = vector.load %arg1[%c19, %c0_246, %c0_247] : memref<25x64x2xf32, #tpu.memory_space<vmem>>, vector<1x64x2xf32>
    %317 = vector.shape_cast %316 : vector<1x64x2xf32> to vector<64x2xf32>
    %c0_248 = arith.constant 0 : index
    %c8_249 = arith.constant 8 : index
    %318 = memref.load %arg2[%c0_248, %c8_249] : memref<3x9xf32, #tpu.memory_space<smem>>
    %319 = vector.broadcast %318 : f32 to vector<64x2xf32>
    %320 = arith.mulf %319, %317 : vector<64x2xf32>
    %321 = arith.addf %315, %320 : vector<64x2xf32>
    %322 = arith.maximumf %268, %321 : vector<64x2xf32>
    %c10_250 = arith.constant 10 : index
    %c0_251 = arith.constant 0 : index
    %c0_252 = arith.constant 0 : index
    %323 = vector.load %arg1[%c10_250, %c0_251, %c0_252] : memref<25x64x2xf32, #tpu.memory_space<vmem>>, vector<1x64x2xf32>
    %324 = vector.shape_cast %323 : vector<1x64x2xf32> to vector<64x2xf32>
    %c0_253 = arith.constant 0 : index
    %c0_254 = arith.constant 0 : index
    %325 = memref.load %arg2[%c0_253, %c0_254] : memref<3x9xf32, #tpu.memory_space<smem>>
    %326 = vector.broadcast %325 : f32 to vector<64x2xf32>
    %327 = arith.mulf %326, %324 : vector<64x2xf32>
    %c11_255 = arith.constant 11 : index
    %c0_256 = arith.constant 0 : index
    %c0_257 = arith.constant 0 : index
    %328 = vector.load %arg1[%c11_255, %c0_256, %c0_257] : memref<25x64x2xf32, #tpu.memory_space<vmem>>, vector<1x64x2xf32>
    %329 = vector.shape_cast %328 : vector<1x64x2xf32> to vector<64x2xf32>
    %c0_258 = arith.constant 0 : index
    %c1_259 = arith.constant 1 : index
    %330 = memref.load %arg2[%c0_258, %c1_259] : memref<3x9xf32, #tpu.memory_space<smem>>
    %331 = vector.broadcast %330 : f32 to vector<64x2xf32>
    %332 = arith.mulf %331, %329 : vector<64x2xf32>
    %333 = arith.addf %327, %332 : vector<64x2xf32>
    %c12_260 = arith.constant 12 : index
    %c0_261 = arith.constant 0 : index
    %c0_262 = arith.constant 0 : index
    %334 = vector.load %arg1[%c12_260, %c0_261, %c0_262] : memref<25x64x2xf32, #tpu.memory_space<vmem>>, vector<1x64x2xf32>
    %335 = vector.shape_cast %334 : vector<1x64x2xf32> to vector<64x2xf32>
    %c0_263 = arith.constant 0 : index
    %c2_264 = arith.constant 2 : index
    %336 = memref.load %arg2[%c0_263, %c2_264] : memref<3x9xf32, #tpu.memory_space<smem>>
    %337 = vector.broadcast %336 : f32 to vector<64x2xf32>
    %338 = arith.mulf %337, %335 : vector<64x2xf32>
    %339 = arith.addf %333, %338 : vector<64x2xf32>
    %c15_265 = arith.constant 15 : index
    %c0_266 = arith.constant 0 : index
    %c0_267 = arith.constant 0 : index
    %340 = vector.load %arg1[%c15_265, %c0_266, %c0_267] : memref<25x64x2xf32, #tpu.memory_space<vmem>>, vector<1x64x2xf32>
    %341 = vector.shape_cast %340 : vector<1x64x2xf32> to vector<64x2xf32>
    %c0_268 = arith.constant 0 : index
    %c3_269 = arith.constant 3 : index
    %342 = memref.load %arg2[%c0_268, %c3_269] : memref<3x9xf32, #tpu.memory_space<smem>>
    %343 = vector.broadcast %342 : f32 to vector<64x2xf32>
    %344 = arith.mulf %343, %341 : vector<64x2xf32>
    %345 = arith.addf %339, %344 : vector<64x2xf32>
    %c16_270 = arith.constant 16 : index
    %c0_271 = arith.constant 0 : index
    %c0_272 = arith.constant 0 : index
    %346 = vector.load %arg1[%c16_270, %c0_271, %c0_272] : memref<25x64x2xf32, #tpu.memory_space<vmem>>, vector<1x64x2xf32>
    %347 = vector.shape_cast %346 : vector<1x64x2xf32> to vector<64x2xf32>
    %c0_273 = arith.constant 0 : index
    %c4_274 = arith.constant 4 : index
    %348 = memref.load %arg2[%c0_273, %c4_274] : memref<3x9xf32, #tpu.memory_space<smem>>
    %349 = vector.broadcast %348 : f32 to vector<64x2xf32>
    %350 = arith.mulf %349, %347 : vector<64x2xf32>
    %351 = arith.addf %345, %350 : vector<64x2xf32>
    %c17_275 = arith.constant 17 : index
    %c0_276 = arith.constant 0 : index
    %c0_277 = arith.constant 0 : index
    %352 = vector.load %arg1[%c17_275, %c0_276, %c0_277] : memref<25x64x2xf32, #tpu.memory_space<vmem>>, vector<1x64x2xf32>
    %353 = vector.shape_cast %352 : vector<1x64x2xf32> to vector<64x2xf32>
    %c0_278 = arith.constant 0 : index
    %c5_279 = arith.constant 5 : index
    %354 = memref.load %arg2[%c0_278, %c5_279] : memref<3x9xf32, #tpu.memory_space<smem>>
    %355 = vector.broadcast %354 : f32 to vector<64x2xf32>
    %356 = arith.mulf %355, %353 : vector<64x2xf32>
    %357 = arith.addf %351, %356 : vector<64x2xf32>
    %c20 = arith.constant 20 : index
    %c0_280 = arith.constant 0 : index
    %c0_281 = arith.constant 0 : index
    %358 = vector.load %arg1[%c20, %c0_280, %c0_281] : memref<25x64x2xf32, #tpu.memory_space<vmem>>, vector<1x64x2xf32>
    %359 = vector.shape_cast %358 : vector<1x64x2xf32> to vector<64x2xf32>
    %c0_282 = arith.constant 0 : index
    %c6_283 = arith.constant 6 : index
    %360 = memref.load %arg2[%c0_282, %c6_283] : memref<3x9xf32, #tpu.memory_space<smem>>
    %361 = vector.broadcast %360 : f32 to vector<64x2xf32>
    %362 = arith.mulf %361, %359 : vector<64x2xf32>
    %363 = arith.addf %357, %362 : vector<64x2xf32>
    %c21 = arith.constant 21 : index
    %c0_284 = arith.constant 0 : index
    %c0_285 = arith.constant 0 : index
    %364 = vector.load %arg1[%c21, %c0_284, %c0_285] : memref<25x64x2xf32, #tpu.memory_space<vmem>>, vector<1x64x2xf32>
    %365 = vector.shape_cast %364 : vector<1x64x2xf32> to vector<64x2xf32>
    %c0_286 = arith.constant 0 : index
    %c7_287 = arith.constant 7 : index
    %366 = memref.load %arg2[%c0_286, %c7_287] : memref<3x9xf32, #tpu.memory_space<smem>>
    %367 = vector.broadcast %366 : f32 to vector<64x2xf32>
    %368 = arith.mulf %367, %365 : vector<64x2xf32>
    %369 = arith.addf %363, %368 : vector<64x2xf32>
    %c22 = arith.constant 22 : index
    %c0_288 = arith.constant 0 : index
    %c0_289 = arith.constant 0 : index
    %370 = vector.load %arg1[%c22, %c0_288, %c0_289] : memref<25x64x2xf32, #tpu.memory_space<vmem>>, vector<1x64x2xf32>
    %371 = vector.shape_cast %370 : vector<1x64x2xf32> to vector<64x2xf32>
    %c0_290 = arith.constant 0 : index
    %c8_291 = arith.constant 8 : index
    %372 = memref.load %arg2[%c0_290, %c8_291] : memref<3x9xf32, #tpu.memory_space<smem>>
    %373 = vector.broadcast %372 : f32 to vector<64x2xf32>
    %374 = arith.mulf %373, %371 : vector<64x2xf32>
    %375 = arith.addf %369, %374 : vector<64x2xf32>
    %376 = arith.maximumf %322, %375 : vector<64x2xf32>
    %c11_292 = arith.constant 11 : index
    %c0_293 = arith.constant 0 : index
    %c0_294 = arith.constant 0 : index
    %377 = vector.load %arg1[%c11_292, %c0_293, %c0_294] : memref<25x64x2xf32, #tpu.memory_space<vmem>>, vector<1x64x2xf32>
    %378 = vector.shape_cast %377 : vector<1x64x2xf32> to vector<64x2xf32>
    %c0_295 = arith.constant 0 : index
    %c0_296 = arith.constant 0 : index
    %379 = memref.load %arg2[%c0_295, %c0_296] : memref<3x9xf32, #tpu.memory_space<smem>>
    %380 = vector.broadcast %379 : f32 to vector<64x2xf32>
    %381 = arith.mulf %380, %378 : vector<64x2xf32>
    %c12_297 = arith.constant 12 : index
    %c0_298 = arith.constant 0 : index
    %c0_299 = arith.constant 0 : index
    %382 = vector.load %arg1[%c12_297, %c0_298, %c0_299] : memref<25x64x2xf32, #tpu.memory_space<vmem>>, vector<1x64x2xf32>
    %383 = vector.shape_cast %382 : vector<1x64x2xf32> to vector<64x2xf32>
    %c0_300 = arith.constant 0 : index
    %c1_301 = arith.constant 1 : index
    %384 = memref.load %arg2[%c0_300, %c1_301] : memref<3x9xf32, #tpu.memory_space<smem>>
    %385 = vector.broadcast %384 : f32 to vector<64x2xf32>
    %386 = arith.mulf %385, %383 : vector<64x2xf32>
    %387 = arith.addf %381, %386 : vector<64x2xf32>
    %c13_302 = arith.constant 13 : index
    %c0_303 = arith.constant 0 : index
    %c0_304 = arith.constant 0 : index
    %388 = vector.load %arg1[%c13_302, %c0_303, %c0_304] : memref<25x64x2xf32, #tpu.memory_space<vmem>>, vector<1x64x2xf32>
    %389 = vector.shape_cast %388 : vector<1x64x2xf32> to vector<64x2xf32>
    %c0_305 = arith.constant 0 : index
    %c2_306 = arith.constant 2 : index
    %390 = memref.load %arg2[%c0_305, %c2_306] : memref<3x9xf32, #tpu.memory_space<smem>>
    %391 = vector.broadcast %390 : f32 to vector<64x2xf32>
    %392 = arith.mulf %391, %389 : vector<64x2xf32>
    %393 = arith.addf %387, %392 : vector<64x2xf32>
    %c16_307 = arith.constant 16 : index
    %c0_308 = arith.constant 0 : index
    %c0_309 = arith.constant 0 : index
    %394 = vector.load %arg1[%c16_307, %c0_308, %c0_309] : memref<25x64x2xf32, #tpu.memory_space<vmem>>, vector<1x64x2xf32>
    %395 = vector.shape_cast %394 : vector<1x64x2xf32> to vector<64x2xf32>
    %c0_310 = arith.constant 0 : index
    %c3_311 = arith.constant 3 : index
    %396 = memref.load %arg2[%c0_310, %c3_311] : memref<3x9xf32, #tpu.memory_space<smem>>
    %397 = vector.broadcast %396 : f32 to vector<64x2xf32>
    %398 = arith.mulf %397, %395 : vector<64x2xf32>
    %399 = arith.addf %393, %398 : vector<64x2xf32>
    %c17_312 = arith.constant 17 : index
    %c0_313 = arith.constant 0 : index
    %c0_314 = arith.constant 0 : index
    %400 = vector.load %arg1[%c17_312, %c0_313, %c0_314] : memref<25x64x2xf32, #tpu.memory_space<vmem>>, vector<1x64x2xf32>
    %401 = vector.shape_cast %400 : vector<1x64x2xf32> to vector<64x2xf32>
    %c0_315 = arith.constant 0 : index
    %c4_316 = arith.constant 4 : index
    %402 = memref.load %arg2[%c0_315, %c4_316] : memref<3x9xf32, #tpu.memory_space<smem>>
    %403 = vector.broadcast %402 : f32 to vector<64x2xf32>
    %404 = arith.mulf %403, %401 : vector<64x2xf32>
    %405 = arith.addf %399, %404 : vector<64x2xf32>
    %c18_317 = arith.constant 18 : index
    %c0_318 = arith.constant 0 : index
    %c0_319 = arith.constant 0 : index
    %406 = vector.load %arg1[%c18_317, %c0_318, %c0_319] : memref<25x64x2xf32, #tpu.memory_space<vmem>>, vector<1x64x2xf32>
    %407 = vector.shape_cast %406 : vector<1x64x2xf32> to vector<64x2xf32>
    %c0_320 = arith.constant 0 : index
    %c5_321 = arith.constant 5 : index
    %408 = memref.load %arg2[%c0_320, %c5_321] : memref<3x9xf32, #tpu.memory_space<smem>>
    %409 = vector.broadcast %408 : f32 to vector<64x2xf32>
    %410 = arith.mulf %409, %407 : vector<64x2xf32>
    %411 = arith.addf %405, %410 : vector<64x2xf32>
    %c21_322 = arith.constant 21 : index
    %c0_323 = arith.constant 0 : index
    %c0_324 = arith.constant 0 : index
    %412 = vector.load %arg1[%c21_322, %c0_323, %c0_324] : memref<25x64x2xf32, #tpu.memory_space<vmem>>, vector<1x64x2xf32>
    %413 = vector.shape_cast %412 : vector<1x64x2xf32> to vector<64x2xf32>
    %c0_325 = arith.constant 0 : index
    %c6_326 = arith.constant 6 : index
    %414 = memref.load %arg2[%c0_325, %c6_326] : memref<3x9xf32, #tpu.memory_space<smem>>
    %415 = vector.broadcast %414 : f32 to vector<64x2xf32>
    %416 = arith.mulf %415, %413 : vector<64x2xf32>
    %417 = arith.addf %411, %416 : vector<64x2xf32>
    %c22_327 = arith.constant 22 : index
    %c0_328 = arith.constant 0 : index
    %c0_329 = arith.constant 0 : index
    %418 = vector.load %arg1[%c22_327, %c0_328, %c0_329] : memref<25x64x2xf32, #tpu.memory_space<vmem>>, vector<1x64x2xf32>
    %419 = vector.shape_cast %418 : vector<1x64x2xf32> to vector<64x2xf32>
    %c0_330 = arith.constant 0 : index
    %c7_331 = arith.constant 7 : index
    %420 = memref.load %arg2[%c0_330, %c7_331] : memref<3x9xf32, #tpu.memory_space<smem>>
    %421 = vector.broadcast %420 : f32 to vector<64x2xf32>
    %422 = arith.mulf %421, %419 : vector<64x2xf32>
    %423 = arith.addf %417, %422 : vector<64x2xf32>
    %c23 = arith.constant 23 : index
    %c0_332 = arith.constant 0 : index
    %c0_333 = arith.constant 0 : index
    %424 = vector.load %arg1[%c23, %c0_332, %c0_333] : memref<25x64x2xf32, #tpu.memory_space<vmem>>, vector<1x64x2xf32>
    %425 = vector.shape_cast %424 : vector<1x64x2xf32> to vector<64x2xf32>
    %c0_334 = arith.constant 0 : index
    %c8_335 = arith.constant 8 : index
    %426 = memref.load %arg2[%c0_334, %c8_335] : memref<3x9xf32, #tpu.memory_space<smem>>
    %427 = vector.broadcast %426 : f32 to vector<64x2xf32>
    %428 = arith.mulf %427, %425 : vector<64x2xf32>
    %429 = arith.addf %423, %428 : vector<64x2xf32>
    %430 = arith.maximumf %376, %429 : vector<64x2xf32>
    %c12_336 = arith.constant 12 : index
    %c0_337 = arith.constant 0 : index
    %c0_338 = arith.constant 0 : index
    %431 = vector.load %arg1[%c12_336, %c0_337, %c0_338] : memref<25x64x2xf32, #tpu.memory_space<vmem>>, vector<1x64x2xf32>
    %432 = vector.shape_cast %431 : vector<1x64x2xf32> to vector<64x2xf32>
    %c0_339 = arith.constant 0 : index
    %c0_340 = arith.constant 0 : index
    %433 = memref.load %arg2[%c0_339, %c0_340] : memref<3x9xf32, #tpu.memory_space<smem>>
    %434 = vector.broadcast %433 : f32 to vector<64x2xf32>
    %435 = arith.mulf %434, %432 : vector<64x2xf32>
    %c13_341 = arith.constant 13 : index
    %c0_342 = arith.constant 0 : index
    %c0_343 = arith.constant 0 : index
    %436 = vector.load %arg1[%c13_341, %c0_342, %c0_343] : memref<25x64x2xf32, #tpu.memory_space<vmem>>, vector<1x64x2xf32>
    %437 = vector.shape_cast %436 : vector<1x64x2xf32> to vector<64x2xf32>
    %c0_344 = arith.constant 0 : index
    %c1_345 = arith.constant 1 : index
    %438 = memref.load %arg2[%c0_344, %c1_345] : memref<3x9xf32, #tpu.memory_space<smem>>
    %439 = vector.broadcast %438 : f32 to vector<64x2xf32>
    %440 = arith.mulf %439, %437 : vector<64x2xf32>
    %441 = arith.addf %435, %440 : vector<64x2xf32>
    %c14_346 = arith.constant 14 : index
    %c0_347 = arith.constant 0 : index
    %c0_348 = arith.constant 0 : index
    %442 = vector.load %arg1[%c14_346, %c0_347, %c0_348] : memref<25x64x2xf32, #tpu.memory_space<vmem>>, vector<1x64x2xf32>
    %443 = vector.shape_cast %442 : vector<1x64x2xf32> to vector<64x2xf32>
    %c0_349 = arith.constant 0 : index
    %c2_350 = arith.constant 2 : index
    %444 = memref.load %arg2[%c0_349, %c2_350] : memref<3x9xf32, #tpu.memory_space<smem>>
    %445 = vector.broadcast %444 : f32 to vector<64x2xf32>
    %446 = arith.mulf %445, %443 : vector<64x2xf32>
    %447 = arith.addf %441, %446 : vector<64x2xf32>
    %c17_351 = arith.constant 17 : index
    %c0_352 = arith.constant 0 : index
    %c0_353 = arith.constant 0 : index
    %448 = vector.load %arg1[%c17_351, %c0_352, %c0_353] : memref<25x64x2xf32, #tpu.memory_space<vmem>>, vector<1x64x2xf32>
    %449 = vector.shape_cast %448 : vector<1x64x2xf32> to vector<64x2xf32>
    %c0_354 = arith.constant 0 : index
    %c3_355 = arith.constant 3 : index
    %450 = memref.load %arg2[%c0_354, %c3_355] : memref<3x9xf32, #tpu.memory_space<smem>>
    %451 = vector.broadcast %450 : f32 to vector<64x2xf32>
    %452 = arith.mulf %451, %449 : vector<64x2xf32>
    %453 = arith.addf %447, %452 : vector<64x2xf32>
    %c18_356 = arith.constant 18 : index
    %c0_357 = arith.constant 0 : index
    %c0_358 = arith.constant 0 : index
    %454 = vector.load %arg1[%c18_356, %c0_357, %c0_358] : memref<25x64x2xf32, #tpu.memory_space<vmem>>, vector<1x64x2xf32>
    %455 = vector.shape_cast %454 : vector<1x64x2xf32> to vector<64x2xf32>
    %c0_359 = arith.constant 0 : index
    %c4_360 = arith.constant 4 : index
    %456 = memref.load %arg2[%c0_359, %c4_360] : memref<3x9xf32, #tpu.memory_space<smem>>
    %457 = vector.broadcast %456 : f32 to vector<64x2xf32>
    %458 = arith.mulf %457, %455 : vector<64x2xf32>
    %459 = arith.addf %453, %458 : vector<64x2xf32>
    %c19_361 = arith.constant 19 : index
    %c0_362 = arith.constant 0 : index
    %c0_363 = arith.constant 0 : index
    %460 = vector.load %arg1[%c19_361, %c0_362, %c0_363] : memref<25x64x2xf32, #tpu.memory_space<vmem>>, vector<1x64x2xf32>
    %461 = vector.shape_cast %460 : vector<1x64x2xf32> to vector<64x2xf32>
    %c0_364 = arith.constant 0 : index
    %c5_365 = arith.constant 5 : index
    %462 = memref.load %arg2[%c0_364, %c5_365] : memref<3x9xf32, #tpu.memory_space<smem>>
    %463 = vector.broadcast %462 : f32 to vector<64x2xf32>
    %464 = arith.mulf %463, %461 : vector<64x2xf32>
    %465 = arith.addf %459, %464 : vector<64x2xf32>
    %c22_366 = arith.constant 22 : index
    %c0_367 = arith.constant 0 : index
    %c0_368 = arith.constant 0 : index
    %466 = vector.load %arg1[%c22_366, %c0_367, %c0_368] : memref<25x64x2xf32, #tpu.memory_space<vmem>>, vector<1x64x2xf32>
    %467 = vector.shape_cast %466 : vector<1x64x2xf32> to vector<64x2xf32>
    %c0_369 = arith.constant 0 : index
    %c6_370 = arith.constant 6 : index
    %468 = memref.load %arg2[%c0_369, %c6_370] : memref<3x9xf32, #tpu.memory_space<smem>>
    %469 = vector.broadcast %468 : f32 to vector<64x2xf32>
    %470 = arith.mulf %469, %467 : vector<64x2xf32>
    %471 = arith.addf %465, %470 : vector<64x2xf32>
    %c23_371 = arith.constant 23 : index
    %c0_372 = arith.constant 0 : index
    %c0_373 = arith.constant 0 : index
    %472 = vector.load %arg1[%c23_371, %c0_372, %c0_373] : memref<25x64x2xf32, #tpu.memory_space<vmem>>, vector<1x64x2xf32>
    %473 = vector.shape_cast %472 : vector<1x64x2xf32> to vector<64x2xf32>
    %c0_374 = arith.constant 0 : index
    %c7_375 = arith.constant 7 : index
    %474 = memref.load %arg2[%c0_374, %c7_375] : memref<3x9xf32, #tpu.memory_space<smem>>
    %475 = vector.broadcast %474 : f32 to vector<64x2xf32>
    %476 = arith.mulf %475, %473 : vector<64x2xf32>
    %477 = arith.addf %471, %476 : vector<64x2xf32>
    %c24 = arith.constant 24 : index
    %c0_376 = arith.constant 0 : index
    %c0_377 = arith.constant 0 : index
    %478 = vector.load %arg1[%c24, %c0_376, %c0_377] : memref<25x64x2xf32, #tpu.memory_space<vmem>>, vector<1x64x2xf32>
    %479 = vector.shape_cast %478 : vector<1x64x2xf32> to vector<64x2xf32>
    %c0_378 = arith.constant 0 : index
    %c8_379 = arith.constant 8 : index
    %480 = memref.load %arg2[%c0_378, %c8_379] : memref<3x9xf32, #tpu.memory_space<smem>>
    %481 = vector.broadcast %480 : f32 to vector<64x2xf32>
    %482 = arith.mulf %481, %479 : vector<64x2xf32>
    %483 = arith.addf %477, %482 : vector<64x2xf32>
    %484 = arith.maximumf %430, %483 : vector<64x2xf32>
    %c0_380 = arith.constant 0 : index
    %485 = memref.load %arg3[%c0_380] : memref<3xf32, #tpu.memory_space<smem>>
    %486 = vector.broadcast %485 : f32 to vector<64x2xf32>
    %487 = arith.addf %484, %486 : vector<64x2xf32>
    %cst = arith.constant 0.000000e+00 : f32
    %488 = vector.broadcast %cst : f32 to vector<64x2xf32>
    %489 = arith.maximumf %487, %488 : vector<64x2xf32>
    %c0_381 = arith.constant 0 : index
    %c0_382 = arith.constant 0 : index
    %c0_383 = arith.constant 0 : index
    %490 = vector.load %arg4[%c0_381, %c0_382, %c0_383] : memref<3x10x64xf32, #tpu.memory_space<vmem>>, vector<1x10x64xf32>
    %491 = vector.shape_cast %490 : vector<1x10x64xf32> to vector<10x64xf32>
    %cst_384 = arith.constant dense<0.000000e+00> : vector<10x2xf32>
    %492 = tpu.matmul %491, %489, %cst_384 {dimension_numbers = #tpu.dot_dimension_numbers<[1], [0], [0], [1], [0, 0, 1, 1], [], []>} : vector<10x64xf32>, vector<64x2xf32>, vector<10x2xf32> -> vector<10x2xf32>
    %c0_385 = arith.constant 0 : index
    %c0_386 = arith.constant 0 : index
    %c0_387 = arith.constant 0 : index
    %493 = vector.load %arg1[%c0_385, %c0_386, %c0_387] : memref<25x64x2xf32, #tpu.memory_space<vmem>>, vector<1x64x2xf32>
    %494 = vector.shape_cast %493 : vector<1x64x2xf32> to vector<64x2xf32>
    %c1_388 = arith.constant 1 : index
    %c0_389 = arith.constant 0 : index
    %495 = memref.load %arg2[%c1_388, %c0_389] : memref<3x9xf32, #tpu.memory_space<smem>>
    %496 = vector.broadcast %495 : f32 to vector<64x2xf32>
    %497 = arith.mulf %496, %494 : vector<64x2xf32>
    %c1_390 = arith.constant 1 : index
    %c0_391 = arith.constant 0 : index
    %c0_392 = arith.constant 0 : index
    %498 = vector.load %arg1[%c1_390, %c0_391, %c0_392] : memref<25x64x2xf32, #tpu.memory_space<vmem>>, vector<1x64x2xf32>
    %499 = vector.shape_cast %498 : vector<1x64x2xf32> to vector<64x2xf32>
    %c1_393 = arith.constant 1 : index
    %c1_394 = arith.constant 1 : index
    %500 = memref.load %arg2[%c1_393, %c1_394] : memref<3x9xf32, #tpu.memory_space<smem>>
    %501 = vector.broadcast %500 : f32 to vector<64x2xf32>
    %502 = arith.mulf %501, %499 : vector<64x2xf32>
    %503 = arith.addf %497, %502 : vector<64x2xf32>
    %c2_395 = arith.constant 2 : index
    %c0_396 = arith.constant 0 : index
    %c0_397 = arith.constant 0 : index
    %504 = vector.load %arg1[%c2_395, %c0_396, %c0_397] : memref<25x64x2xf32, #tpu.memory_space<vmem>>, vector<1x64x2xf32>
    %505 = vector.shape_cast %504 : vector<1x64x2xf32> to vector<64x2xf32>
    %c1_398 = arith.constant 1 : index
    %c2_399 = arith.constant 2 : index
    %506 = memref.load %arg2[%c1_398, %c2_399] : memref<3x9xf32, #tpu.memory_space<smem>>
    %507 = vector.broadcast %506 : f32 to vector<64x2xf32>
    %508 = arith.mulf %507, %505 : vector<64x2xf32>
    %509 = arith.addf %503, %508 : vector<64x2xf32>
    %c5_400 = arith.constant 5 : index
    %c0_401 = arith.constant 0 : index
    %c0_402 = arith.constant 0 : index
    %510 = vector.load %arg1[%c5_400, %c0_401, %c0_402] : memref<25x64x2xf32, #tpu.memory_space<vmem>>, vector<1x64x2xf32>
    %511 = vector.shape_cast %510 : vector<1x64x2xf32> to vector<64x2xf32>
    %c1_403 = arith.constant 1 : index
    %c3_404 = arith.constant 3 : index
    %512 = memref.load %arg2[%c1_403, %c3_404] : memref<3x9xf32, #tpu.memory_space<smem>>
    %513 = vector.broadcast %512 : f32 to vector<64x2xf32>
    %514 = arith.mulf %513, %511 : vector<64x2xf32>
    %515 = arith.addf %509, %514 : vector<64x2xf32>
    %c6_405 = arith.constant 6 : index
    %c0_406 = arith.constant 0 : index
    %c0_407 = arith.constant 0 : index
    %516 = vector.load %arg1[%c6_405, %c0_406, %c0_407] : memref<25x64x2xf32, #tpu.memory_space<vmem>>, vector<1x64x2xf32>
    %517 = vector.shape_cast %516 : vector<1x64x2xf32> to vector<64x2xf32>
    %c1_408 = arith.constant 1 : index
    %c4_409 = arith.constant 4 : index
    %518 = memref.load %arg2[%c1_408, %c4_409] : memref<3x9xf32, #tpu.memory_space<smem>>
    %519 = vector.broadcast %518 : f32 to vector<64x2xf32>
    %520 = arith.mulf %519, %517 : vector<64x2xf32>
    %521 = arith.addf %515, %520 : vector<64x2xf32>
    %c7_410 = arith.constant 7 : index
    %c0_411 = arith.constant 0 : index
    %c0_412 = arith.constant 0 : index
    %522 = vector.load %arg1[%c7_410, %c0_411, %c0_412] : memref<25x64x2xf32, #tpu.memory_space<vmem>>, vector<1x64x2xf32>
    %523 = vector.shape_cast %522 : vector<1x64x2xf32> to vector<64x2xf32>
    %c1_413 = arith.constant 1 : index
    %c5_414 = arith.constant 5 : index
    %524 = memref.load %arg2[%c1_413, %c5_414] : memref<3x9xf32, #tpu.memory_space<smem>>
    %525 = vector.broadcast %524 : f32 to vector<64x2xf32>
    %526 = arith.mulf %525, %523 : vector<64x2xf32>
    %527 = arith.addf %521, %526 : vector<64x2xf32>
    %c10_415 = arith.constant 10 : index
    %c0_416 = arith.constant 0 : index
    %c0_417 = arith.constant 0 : index
    %528 = vector.load %arg1[%c10_415, %c0_416, %c0_417] : memref<25x64x2xf32, #tpu.memory_space<vmem>>, vector<1x64x2xf32>
    %529 = vector.shape_cast %528 : vector<1x64x2xf32> to vector<64x2xf32>
    %c1_418 = arith.constant 1 : index
    %c6_419 = arith.constant 6 : index
    %530 = memref.load %arg2[%c1_418, %c6_419] : memref<3x9xf32, #tpu.memory_space<smem>>
    %531 = vector.broadcast %530 : f32 to vector<64x2xf32>
    %532 = arith.mulf %531, %529 : vector<64x2xf32>
    %533 = arith.addf %527, %532 : vector<64x2xf32>
    %c11_420 = arith.constant 11 : index
    %c0_421 = arith.constant 0 : index
    %c0_422 = arith.constant 0 : index
    %534 = vector.load %arg1[%c11_420, %c0_421, %c0_422] : memref<25x64x2xf32, #tpu.memory_space<vmem>>, vector<1x64x2xf32>
    %535 = vector.shape_cast %534 : vector<1x64x2xf32> to vector<64x2xf32>
    %c1_423 = arith.constant 1 : index
    %c7_424 = arith.constant 7 : index
    %536 = memref.load %arg2[%c1_423, %c7_424] : memref<3x9xf32, #tpu.memory_space<smem>>
    %537 = vector.broadcast %536 : f32 to vector<64x2xf32>
    %538 = arith.mulf %537, %535 : vector<64x2xf32>
    %539 = arith.addf %533, %538 : vector<64x2xf32>
    %c12_425 = arith.constant 12 : index
    %c0_426 = arith.constant 0 : index
    %c0_427 = arith.constant 0 : index
    %540 = vector.load %arg1[%c12_425, %c0_426, %c0_427] : memref<25x64x2xf32, #tpu.memory_space<vmem>>, vector<1x64x2xf32>
    %541 = vector.shape_cast %540 : vector<1x64x2xf32> to vector<64x2xf32>
    %c1_428 = arith.constant 1 : index
    %c8_429 = arith.constant 8 : index
    %542 = memref.load %arg2[%c1_428, %c8_429] : memref<3x9xf32, #tpu.memory_space<smem>>
    %543 = vector.broadcast %542 : f32 to vector<64x2xf32>
    %544 = arith.mulf %543, %541 : vector<64x2xf32>
    %545 = arith.addf %539, %544 : vector<64x2xf32>
    %c1_430 = arith.constant 1 : index
    %c0_431 = arith.constant 0 : index
    %c0_432 = arith.constant 0 : index
    %546 = vector.load %arg1[%c1_430, %c0_431, %c0_432] : memref<25x64x2xf32, #tpu.memory_space<vmem>>, vector<1x64x2xf32>
    %547 = vector.shape_cast %546 : vector<1x64x2xf32> to vector<64x2xf32>
    %c1_433 = arith.constant 1 : index
    %c0_434 = arith.constant 0 : index
    %548 = memref.load %arg2[%c1_433, %c0_434] : memref<3x9xf32, #tpu.memory_space<smem>>
    %549 = vector.broadcast %548 : f32 to vector<64x2xf32>
    %550 = arith.mulf %549, %547 : vector<64x2xf32>
    %c2_435 = arith.constant 2 : index
    %c0_436 = arith.constant 0 : index
    %c0_437 = arith.constant 0 : index
    %551 = vector.load %arg1[%c2_435, %c0_436, %c0_437] : memref<25x64x2xf32, #tpu.memory_space<vmem>>, vector<1x64x2xf32>
    %552 = vector.shape_cast %551 : vector<1x64x2xf32> to vector<64x2xf32>
    %c1_438 = arith.constant 1 : index
    %c1_439 = arith.constant 1 : index
    %553 = memref.load %arg2[%c1_438, %c1_439] : memref<3x9xf32, #tpu.memory_space<smem>>
    %554 = vector.broadcast %553 : f32 to vector<64x2xf32>
    %555 = arith.mulf %554, %552 : vector<64x2xf32>
    %556 = arith.addf %550, %555 : vector<64x2xf32>
    %c3_440 = arith.constant 3 : index
    %c0_441 = arith.constant 0 : index
    %c0_442 = arith.constant 0 : index
    %557 = vector.load %arg1[%c3_440, %c0_441, %c0_442] : memref<25x64x2xf32, #tpu.memory_space<vmem>>, vector<1x64x2xf32>
    %558 = vector.shape_cast %557 : vector<1x64x2xf32> to vector<64x2xf32>
    %c1_443 = arith.constant 1 : index
    %c2_444 = arith.constant 2 : index
    %559 = memref.load %arg2[%c1_443, %c2_444] : memref<3x9xf32, #tpu.memory_space<smem>>
    %560 = vector.broadcast %559 : f32 to vector<64x2xf32>
    %561 = arith.mulf %560, %558 : vector<64x2xf32>
    %562 = arith.addf %556, %561 : vector<64x2xf32>
    %c6_445 = arith.constant 6 : index
    %c0_446 = arith.constant 0 : index
    %c0_447 = arith.constant 0 : index
    %563 = vector.load %arg1[%c6_445, %c0_446, %c0_447] : memref<25x64x2xf32, #tpu.memory_space<vmem>>, vector<1x64x2xf32>
    %564 = vector.shape_cast %563 : vector<1x64x2xf32> to vector<64x2xf32>
    %c1_448 = arith.constant 1 : index
    %c3_449 = arith.constant 3 : index
    %565 = memref.load %arg2[%c1_448, %c3_449] : memref<3x9xf32, #tpu.memory_space<smem>>
    %566 = vector.broadcast %565 : f32 to vector<64x2xf32>
    %567 = arith.mulf %566, %564 : vector<64x2xf32>
    %568 = arith.addf %562, %567 : vector<64x2xf32>
    %c7_450 = arith.constant 7 : index
    %c0_451 = arith.constant 0 : index
    %c0_452 = arith.constant 0 : index
    %569 = vector.load %arg1[%c7_450, %c0_451, %c0_452] : memref<25x64x2xf32, #tpu.memory_space<vmem>>, vector<1x64x2xf32>
    %570 = vector.shape_cast %569 : vector<1x64x2xf32> to vector<64x2xf32>
    %c1_453 = arith.constant 1 : index
    %c4_454 = arith.constant 4 : index
    %571 = memref.load %arg2[%c1_453, %c4_454] : memref<3x9xf32, #tpu.memory_space<smem>>
    %572 = vector.broadcast %571 : f32 to vector<64x2xf32>
    %573 = arith.mulf %572, %570 : vector<64x2xf32>
    %574 = arith.addf %568, %573 : vector<64x2xf32>
    %c8_455 = arith.constant 8 : index
    %c0_456 = arith.constant 0 : index
    %c0_457 = arith.constant 0 : index
    %575 = vector.load %arg1[%c8_455, %c0_456, %c0_457] : memref<25x64x2xf32, #tpu.memory_space<vmem>>, vector<1x64x2xf32>
    %576 = vector.shape_cast %575 : vector<1x64x2xf32> to vector<64x2xf32>
    %c1_458 = arith.constant 1 : index
    %c5_459 = arith.constant 5 : index
    %577 = memref.load %arg2[%c1_458, %c5_459] : memref<3x9xf32, #tpu.memory_space<smem>>
    %578 = vector.broadcast %577 : f32 to vector<64x2xf32>
    %579 = arith.mulf %578, %576 : vector<64x2xf32>
    %580 = arith.addf %574, %579 : vector<64x2xf32>
    %c11_460 = arith.constant 11 : index
    %c0_461 = arith.constant 0 : index
    %c0_462 = arith.constant 0 : index
    %581 = vector.load %arg1[%c11_460, %c0_461, %c0_462] : memref<25x64x2xf32, #tpu.memory_space<vmem>>, vector<1x64x2xf32>
    %582 = vector.shape_cast %581 : vector<1x64x2xf32> to vector<64x2xf32>
    %c1_463 = arith.constant 1 : index
    %c6_464 = arith.constant 6 : index
    %583 = memref.load %arg2[%c1_463, %c6_464] : memref<3x9xf32, #tpu.memory_space<smem>>
    %584 = vector.broadcast %583 : f32 to vector<64x2xf32>
    %585 = arith.mulf %584, %582 : vector<64x2xf32>
    %586 = arith.addf %580, %585 : vector<64x2xf32>
    %c12_465 = arith.constant 12 : index
    %c0_466 = arith.constant 0 : index
    %c0_467 = arith.constant 0 : index
    %587 = vector.load %arg1[%c12_465, %c0_466, %c0_467] : memref<25x64x2xf32, #tpu.memory_space<vmem>>, vector<1x64x2xf32>
    %588 = vector.shape_cast %587 : vector<1x64x2xf32> to vector<64x2xf32>
    %c1_468 = arith.constant 1 : index
    %c7_469 = arith.constant 7 : index
    %589 = memref.load %arg2[%c1_468, %c7_469] : memref<3x9xf32, #tpu.memory_space<smem>>
    %590 = vector.broadcast %589 : f32 to vector<64x2xf32>
    %591 = arith.mulf %590, %588 : vector<64x2xf32>
    %592 = arith.addf %586, %591 : vector<64x2xf32>
    %c13_470 = arith.constant 13 : index
    %c0_471 = arith.constant 0 : index
    %c0_472 = arith.constant 0 : index
    %593 = vector.load %arg1[%c13_470, %c0_471, %c0_472] : memref<25x64x2xf32, #tpu.memory_space<vmem>>, vector<1x64x2xf32>
    %594 = vector.shape_cast %593 : vector<1x64x2xf32> to vector<64x2xf32>
    %c1_473 = arith.constant 1 : index
    %c8_474 = arith.constant 8 : index
    %595 = memref.load %arg2[%c1_473, %c8_474] : memref<3x9xf32, #tpu.memory_space<smem>>
    %596 = vector.broadcast %595 : f32 to vector<64x2xf32>
    %597 = arith.mulf %596, %594 : vector<64x2xf32>
    %598 = arith.addf %592, %597 : vector<64x2xf32>
    %599 = arith.maximumf %545, %598 : vector<64x2xf32>
    %c2_475 = arith.constant 2 : index
    %c0_476 = arith.constant 0 : index
    %c0_477 = arith.constant 0 : index
    %600 = vector.load %arg1[%c2_475, %c0_476, %c0_477] : memref<25x64x2xf32, #tpu.memory_space<vmem>>, vector<1x64x2xf32>
    %601 = vector.shape_cast %600 : vector<1x64x2xf32> to vector<64x2xf32>
    %c1_478 = arith.constant 1 : index
    %c0_479 = arith.constant 0 : index
    %602 = memref.load %arg2[%c1_478, %c0_479] : memref<3x9xf32, #tpu.memory_space<smem>>
    %603 = vector.broadcast %602 : f32 to vector<64x2xf32>
    %604 = arith.mulf %603, %601 : vector<64x2xf32>
    %c3_480 = arith.constant 3 : index
    %c0_481 = arith.constant 0 : index
    %c0_482 = arith.constant 0 : index
    %605 = vector.load %arg1[%c3_480, %c0_481, %c0_482] : memref<25x64x2xf32, #tpu.memory_space<vmem>>, vector<1x64x2xf32>
    %606 = vector.shape_cast %605 : vector<1x64x2xf32> to vector<64x2xf32>
    %c1_483 = arith.constant 1 : index
    %c1_484 = arith.constant 1 : index
    %607 = memref.load %arg2[%c1_483, %c1_484] : memref<3x9xf32, #tpu.memory_space<smem>>
    %608 = vector.broadcast %607 : f32 to vector<64x2xf32>
    %609 = arith.mulf %608, %606 : vector<64x2xf32>
    %610 = arith.addf %604, %609 : vector<64x2xf32>
    %c4_485 = arith.constant 4 : index
    %c0_486 = arith.constant 0 : index
    %c0_487 = arith.constant 0 : index
    %611 = vector.load %arg1[%c4_485, %c0_486, %c0_487] : memref<25x64x2xf32, #tpu.memory_space<vmem>>, vector<1x64x2xf32>
    %612 = vector.shape_cast %611 : vector<1x64x2xf32> to vector<64x2xf32>
    %c1_488 = arith.constant 1 : index
    %c2_489 = arith.constant 2 : index
    %613 = memref.load %arg2[%c1_488, %c2_489] : memref<3x9xf32, #tpu.memory_space<smem>>
    %614 = vector.broadcast %613 : f32 to vector<64x2xf32>
    %615 = arith.mulf %614, %612 : vector<64x2xf32>
    %616 = arith.addf %610, %615 : vector<64x2xf32>
    %c7_490 = arith.constant 7 : index
    %c0_491 = arith.constant 0 : index
    %c0_492 = arith.constant 0 : index
    %617 = vector.load %arg1[%c7_490, %c0_491, %c0_492] : memref<25x64x2xf32, #tpu.memory_space<vmem>>, vector<1x64x2xf32>
    %618 = vector.shape_cast %617 : vector<1x64x2xf32> to vector<64x2xf32>
    %c1_493 = arith.constant 1 : index
    %c3_494 = arith.constant 3 : index
    %619 = memref.load %arg2[%c1_493, %c3_494] : memref<3x9xf32, #tpu.memory_space<smem>>
    %620 = vector.broadcast %619 : f32 to vector<64x2xf32>
    %621 = arith.mulf %620, %618 : vector<64x2xf32>
    %622 = arith.addf %616, %621 : vector<64x2xf32>
    %c8_495 = arith.constant 8 : index
    %c0_496 = arith.constant 0 : index
    %c0_497 = arith.constant 0 : index
    %623 = vector.load %arg1[%c8_495, %c0_496, %c0_497] : memref<25x64x2xf32, #tpu.memory_space<vmem>>, vector<1x64x2xf32>
    %624 = vector.shape_cast %623 : vector<1x64x2xf32> to vector<64x2xf32>
    %c1_498 = arith.constant 1 : index
    %c4_499 = arith.constant 4 : index
    %625 = memref.load %arg2[%c1_498, %c4_499] : memref<3x9xf32, #tpu.memory_space<smem>>
    %626 = vector.broadcast %625 : f32 to vector<64x2xf32>
    %627 = arith.mulf %626, %624 : vector<64x2xf32>
    %628 = arith.addf %622, %627 : vector<64x2xf32>
    %c9_500 = arith.constant 9 : index
    %c0_501 = arith.constant 0 : index
    %c0_502 = arith.constant 0 : index
    %629 = vector.load %arg1[%c9_500, %c0_501, %c0_502] : memref<25x64x2xf32, #tpu.memory_space<vmem>>, vector<1x64x2xf32>
    %630 = vector.shape_cast %629 : vector<1x64x2xf32> to vector<64x2xf32>
    %c1_503 = arith.constant 1 : index
    %c5_504 = arith.constant 5 : index
    %631 = memref.load %arg2[%c1_503, %c5_504] : memref<3x9xf32, #tpu.memory_space<smem>>
    %632 = vector.broadcast %631 : f32 to vector<64x2xf32>
    %633 = arith.mulf %632, %630 : vector<64x2xf32>
    %634 = arith.addf %628, %633 : vector<64x2xf32>
    %c12_505 = arith.constant 12 : index
    %c0_506 = arith.constant 0 : index
    %c0_507 = arith.constant 0 : index
    %635 = vector.load %arg1[%c12_505, %c0_506, %c0_507] : memref<25x64x2xf32, #tpu.memory_space<vmem>>, vector<1x64x2xf32>
    %636 = vector.shape_cast %635 : vector<1x64x2xf32> to vector<64x2xf32>
    %c1_508 = arith.constant 1 : index
    %c6_509 = arith.constant 6 : index
    %637 = memref.load %arg2[%c1_508, %c6_509] : memref<3x9xf32, #tpu.memory_space<smem>>
    %638 = vector.broadcast %637 : f32 to vector<64x2xf32>
    %639 = arith.mulf %638, %636 : vector<64x2xf32>
    %640 = arith.addf %634, %639 : vector<64x2xf32>
    %c13_510 = arith.constant 13 : index
    %c0_511 = arith.constant 0 : index
    %c0_512 = arith.constant 0 : index
    %641 = vector.load %arg1[%c13_510, %c0_511, %c0_512] : memref<25x64x2xf32, #tpu.memory_space<vmem>>, vector<1x64x2xf32>
    %642 = vector.shape_cast %641 : vector<1x64x2xf32> to vector<64x2xf32>
    %c1_513 = arith.constant 1 : index
    %c7_514 = arith.constant 7 : index
    %643 = memref.load %arg2[%c1_513, %c7_514] : memref<3x9xf32, #tpu.memory_space<smem>>
    %644 = vector.broadcast %643 : f32 to vector<64x2xf32>
    %645 = arith.mulf %644, %642 : vector<64x2xf32>
    %646 = arith.addf %640, %645 : vector<64x2xf32>
    %c14_515 = arith.constant 14 : index
    %c0_516 = arith.constant 0 : index
    %c0_517 = arith.constant 0 : index
    %647 = vector.load %arg1[%c14_515, %c0_516, %c0_517] : memref<25x64x2xf32, #tpu.memory_space<vmem>>, vector<1x64x2xf32>
    %648 = vector.shape_cast %647 : vector<1x64x2xf32> to vector<64x2xf32>
    %c1_518 = arith.constant 1 : index
    %c8_519 = arith.constant 8 : index
    %649 = memref.load %arg2[%c1_518, %c8_519] : memref<3x9xf32, #tpu.memory_space<smem>>
    %650 = vector.broadcast %649 : f32 to vector<64x2xf32>
    %651 = arith.mulf %650, %648 : vector<64x2xf32>
    %652 = arith.addf %646, %651 : vector<64x2xf32>
    %653 = arith.maximumf %599, %652 : vector<64x2xf32>
    %c5_520 = arith.constant 5 : index
    %c0_521 = arith.constant 0 : index
    %c0_522 = arith.constant 0 : index
    %654 = vector.load %arg1[%c5_520, %c0_521, %c0_522] : memref<25x64x2xf32, #tpu.memory_space<vmem>>, vector<1x64x2xf32>
    %655 = vector.shape_cast %654 : vector<1x64x2xf32> to vector<64x2xf32>
    %c1_523 = arith.constant 1 : index
    %c0_524 = arith.constant 0 : index
    %656 = memref.load %arg2[%c1_523, %c0_524] : memref<3x9xf32, #tpu.memory_space<smem>>
    %657 = vector.broadcast %656 : f32 to vector<64x2xf32>
    %658 = arith.mulf %657, %655 : vector<64x2xf32>
    %c6_525 = arith.constant 6 : index
    %c0_526 = arith.constant 0 : index
    %c0_527 = arith.constant 0 : index
    %659 = vector.load %arg1[%c6_525, %c0_526, %c0_527] : memref<25x64x2xf32, #tpu.memory_space<vmem>>, vector<1x64x2xf32>
    %660 = vector.shape_cast %659 : vector<1x64x2xf32> to vector<64x2xf32>
    %c1_528 = arith.constant 1 : index
    %c1_529 = arith.constant 1 : index
    %661 = memref.load %arg2[%c1_528, %c1_529] : memref<3x9xf32, #tpu.memory_space<smem>>
    %662 = vector.broadcast %661 : f32 to vector<64x2xf32>
    %663 = arith.mulf %662, %660 : vector<64x2xf32>
    %664 = arith.addf %658, %663 : vector<64x2xf32>
    %c7_530 = arith.constant 7 : index
    %c0_531 = arith.constant 0 : index
    %c0_532 = arith.constant 0 : index
    %665 = vector.load %arg1[%c7_530, %c0_531, %c0_532] : memref<25x64x2xf32, #tpu.memory_space<vmem>>, vector<1x64x2xf32>
    %666 = vector.shape_cast %665 : vector<1x64x2xf32> to vector<64x2xf32>
    %c1_533 = arith.constant 1 : index
    %c2_534 = arith.constant 2 : index
    %667 = memref.load %arg2[%c1_533, %c2_534] : memref<3x9xf32, #tpu.memory_space<smem>>
    %668 = vector.broadcast %667 : f32 to vector<64x2xf32>
    %669 = arith.mulf %668, %666 : vector<64x2xf32>
    %670 = arith.addf %664, %669 : vector<64x2xf32>
    %c10_535 = arith.constant 10 : index
    %c0_536 = arith.constant 0 : index
    %c0_537 = arith.constant 0 : index
    %671 = vector.load %arg1[%c10_535, %c0_536, %c0_537] : memref<25x64x2xf32, #tpu.memory_space<vmem>>, vector<1x64x2xf32>
    %672 = vector.shape_cast %671 : vector<1x64x2xf32> to vector<64x2xf32>
    %c1_538 = arith.constant 1 : index
    %c3_539 = arith.constant 3 : index
    %673 = memref.load %arg2[%c1_538, %c3_539] : memref<3x9xf32, #tpu.memory_space<smem>>
    %674 = vector.broadcast %673 : f32 to vector<64x2xf32>
    %675 = arith.mulf %674, %672 : vector<64x2xf32>
    %676 = arith.addf %670, %675 : vector<64x2xf32>
    %c11_540 = arith.constant 11 : index
    %c0_541 = arith.constant 0 : index
    %c0_542 = arith.constant 0 : index
    %677 = vector.load %arg1[%c11_540, %c0_541, %c0_542] : memref<25x64x2xf32, #tpu.memory_space<vmem>>, vector<1x64x2xf32>
    %678 = vector.shape_cast %677 : vector<1x64x2xf32> to vector<64x2xf32>
    %c1_543 = arith.constant 1 : index
    %c4_544 = arith.constant 4 : index
    %679 = memref.load %arg2[%c1_543, %c4_544] : memref<3x9xf32, #tpu.memory_space<smem>>
    %680 = vector.broadcast %679 : f32 to vector<64x2xf32>
    %681 = arith.mulf %680, %678 : vector<64x2xf32>
    %682 = arith.addf %676, %681 : vector<64x2xf32>
    %c12_545 = arith.constant 12 : index
    %c0_546 = arith.constant 0 : index
    %c0_547 = arith.constant 0 : index
    %683 = vector.load %arg1[%c12_545, %c0_546, %c0_547] : memref<25x64x2xf32, #tpu.memory_space<vmem>>, vector<1x64x2xf32>
    %684 = vector.shape_cast %683 : vector<1x64x2xf32> to vector<64x2xf32>
    %c1_548 = arith.constant 1 : index
    %c5_549 = arith.constant 5 : index
    %685 = memref.load %arg2[%c1_548, %c5_549] : memref<3x9xf32, #tpu.memory_space<smem>>
    %686 = vector.broadcast %685 : f32 to vector<64x2xf32>
    %687 = arith.mulf %686, %684 : vector<64x2xf32>
    %688 = arith.addf %682, %687 : vector<64x2xf32>
    %c15_550 = arith.constant 15 : index
    %c0_551 = arith.constant 0 : index
    %c0_552 = arith.constant 0 : index
    %689 = vector.load %arg1[%c15_550, %c0_551, %c0_552] : memref<25x64x2xf32, #tpu.memory_space<vmem>>, vector<1x64x2xf32>
    %690 = vector.shape_cast %689 : vector<1x64x2xf32> to vector<64x2xf32>
    %c1_553 = arith.constant 1 : index
    %c6_554 = arith.constant 6 : index
    %691 = memref.load %arg2[%c1_553, %c6_554] : memref<3x9xf32, #tpu.memory_space<smem>>
    %692 = vector.broadcast %691 : f32 to vector<64x2xf32>
    %693 = arith.mulf %692, %690 : vector<64x2xf32>
    %694 = arith.addf %688, %693 : vector<64x2xf32>
    %c16_555 = arith.constant 16 : index
    %c0_556 = arith.constant 0 : index
    %c0_557 = arith.constant 0 : index
    %695 = vector.load %arg1[%c16_555, %c0_556, %c0_557] : memref<25x64x2xf32, #tpu.memory_space<vmem>>, vector<1x64x2xf32>
    %696 = vector.shape_cast %695 : vector<1x64x2xf32> to vector<64x2xf32>
    %c1_558 = arith.constant 1 : index
    %c7_559 = arith.constant 7 : index
    %697 = memref.load %arg2[%c1_558, %c7_559] : memref<3x9xf32, #tpu.memory_space<smem>>
    %698 = vector.broadcast %697 : f32 to vector<64x2xf32>
    %699 = arith.mulf %698, %696 : vector<64x2xf32>
    %700 = arith.addf %694, %699 : vector<64x2xf32>
    %c17_560 = arith.constant 17 : index
    %c0_561 = arith.constant 0 : index
    %c0_562 = arith.constant 0 : index
    %701 = vector.load %arg1[%c17_560, %c0_561, %c0_562] : memref<25x64x2xf32, #tpu.memory_space<vmem>>, vector<1x64x2xf32>
    %702 = vector.shape_cast %701 : vector<1x64x2xf32> to vector<64x2xf32>
    %c1_563 = arith.constant 1 : index
    %c8_564 = arith.constant 8 : index
    %703 = memref.load %arg2[%c1_563, %c8_564] : memref<3x9xf32, #tpu.memory_space<smem>>
    %704 = vector.broadcast %703 : f32 to vector<64x2xf32>
    %705 = arith.mulf %704, %702 : vector<64x2xf32>
    %706 = arith.addf %700, %705 : vector<64x2xf32>
    %707 = arith.maximumf %653, %706 : vector<64x2xf32>
    %c6_565 = arith.constant 6 : index
    %c0_566 = arith.constant 0 : index
    %c0_567 = arith.constant 0 : index
    %708 = vector.load %arg1[%c6_565, %c0_566, %c0_567] : memref<25x64x2xf32, #tpu.memory_space<vmem>>, vector<1x64x2xf32>
    %709 = vector.shape_cast %708 : vector<1x64x2xf32> to vector<64x2xf32>
    %c1_568 = arith.constant 1 : index
    %c0_569 = arith.constant 0 : index
    %710 = memref.load %arg2[%c1_568, %c0_569] : memref<3x9xf32, #tpu.memory_space<smem>>
    %711 = vector.broadcast %710 : f32 to vector<64x2xf32>
    %712 = arith.mulf %711, %709 : vector<64x2xf32>
    %c7_570 = arith.constant 7 : index
    %c0_571 = arith.constant 0 : index
    %c0_572 = arith.constant 0 : index
    %713 = vector.load %arg1[%c7_570, %c0_571, %c0_572] : memref<25x64x2xf32, #tpu.memory_space<vmem>>, vector<1x64x2xf32>
    %714 = vector.shape_cast %713 : vector<1x64x2xf32> to vector<64x2xf32>
    %c1_573 = arith.constant 1 : index
    %c1_574 = arith.constant 1 : index
    %715 = memref.load %arg2[%c1_573, %c1_574] : memref<3x9xf32, #tpu.memory_space<smem>>
    %716 = vector.broadcast %715 : f32 to vector<64x2xf32>
    %717 = arith.mulf %716, %714 : vector<64x2xf32>
    %718 = arith.addf %712, %717 : vector<64x2xf32>
    %c8_575 = arith.constant 8 : index
    %c0_576 = arith.constant 0 : index
    %c0_577 = arith.constant 0 : index
    %719 = vector.load %arg1[%c8_575, %c0_576, %c0_577] : memref<25x64x2xf32, #tpu.memory_space<vmem>>, vector<1x64x2xf32>
    %720 = vector.shape_cast %719 : vector<1x64x2xf32> to vector<64x2xf32>
    %c1_578 = arith.constant 1 : index
    %c2_579 = arith.constant 2 : index
    %721 = memref.load %arg2[%c1_578, %c2_579] : memref<3x9xf32, #tpu.memory_space<smem>>
    %722 = vector.broadcast %721 : f32 to vector<64x2xf32>
    %723 = arith.mulf %722, %720 : vector<64x2xf32>
    %724 = arith.addf %718, %723 : vector<64x2xf32>
    %c11_580 = arith.constant 11 : index
    %c0_581 = arith.constant 0 : index
    %c0_582 = arith.constant 0 : index
    %725 = vector.load %arg1[%c11_580, %c0_581, %c0_582] : memref<25x64x2xf32, #tpu.memory_space<vmem>>, vector<1x64x2xf32>
    %726 = vector.shape_cast %725 : vector<1x64x2xf32> to vector<64x2xf32>
    %c1_583 = arith.constant 1 : index
    %c3_584 = arith.constant 3 : index
    %727 = memref.load %arg2[%c1_583, %c3_584] : memref<3x9xf32, #tpu.memory_space<smem>>
    %728 = vector.broadcast %727 : f32 to vector<64x2xf32>
    %729 = arith.mulf %728, %726 : vector<64x2xf32>
    %730 = arith.addf %724, %729 : vector<64x2xf32>
    %c12_585 = arith.constant 12 : index
    %c0_586 = arith.constant 0 : index
    %c0_587 = arith.constant 0 : index
    %731 = vector.load %arg1[%c12_585, %c0_586, %c0_587] : memref<25x64x2xf32, #tpu.memory_space<vmem>>, vector<1x64x2xf32>
    %732 = vector.shape_cast %731 : vector<1x64x2xf32> to vector<64x2xf32>
    %c1_588 = arith.constant 1 : index
    %c4_589 = arith.constant 4 : index
    %733 = memref.load %arg2[%c1_588, %c4_589] : memref<3x9xf32, #tpu.memory_space<smem>>
    %734 = vector.broadcast %733 : f32 to vector<64x2xf32>
    %735 = arith.mulf %734, %732 : vector<64x2xf32>
    %736 = arith.addf %730, %735 : vector<64x2xf32>
    %c13_590 = arith.constant 13 : index
    %c0_591 = arith.constant 0 : index
    %c0_592 = arith.constant 0 : index
    %737 = vector.load %arg1[%c13_590, %c0_591, %c0_592] : memref<25x64x2xf32, #tpu.memory_space<vmem>>, vector<1x64x2xf32>
    %738 = vector.shape_cast %737 : vector<1x64x2xf32> to vector<64x2xf32>
    %c1_593 = arith.constant 1 : index
    %c5_594 = arith.constant 5 : index
    %739 = memref.load %arg2[%c1_593, %c5_594] : memref<3x9xf32, #tpu.memory_space<smem>>
    %740 = vector.broadcast %739 : f32 to vector<64x2xf32>
    %741 = arith.mulf %740, %738 : vector<64x2xf32>
    %742 = arith.addf %736, %741 : vector<64x2xf32>
    %c16_595 = arith.constant 16 : index
    %c0_596 = arith.constant 0 : index
    %c0_597 = arith.constant 0 : index
    %743 = vector.load %arg1[%c16_595, %c0_596, %c0_597] : memref<25x64x2xf32, #tpu.memory_space<vmem>>, vector<1x64x2xf32>
    %744 = vector.shape_cast %743 : vector<1x64x2xf32> to vector<64x2xf32>
    %c1_598 = arith.constant 1 : index
    %c6_599 = arith.constant 6 : index
    %745 = memref.load %arg2[%c1_598, %c6_599] : memref<3x9xf32, #tpu.memory_space<smem>>
    %746 = vector.broadcast %745 : f32 to vector<64x2xf32>
    %747 = arith.mulf %746, %744 : vector<64x2xf32>
    %748 = arith.addf %742, %747 : vector<64x2xf32>
    %c17_600 = arith.constant 17 : index
    %c0_601 = arith.constant 0 : index
    %c0_602 = arith.constant 0 : index
    %749 = vector.load %arg1[%c17_600, %c0_601, %c0_602] : memref<25x64x2xf32, #tpu.memory_space<vmem>>, vector<1x64x2xf32>
    %750 = vector.shape_cast %749 : vector<1x64x2xf32> to vector<64x2xf32>
    %c1_603 = arith.constant 1 : index
    %c7_604 = arith.constant 7 : index
    %751 = memref.load %arg2[%c1_603, %c7_604] : memref<3x9xf32, #tpu.memory_space<smem>>
    %752 = vector.broadcast %751 : f32 to vector<64x2xf32>
    %753 = arith.mulf %752, %750 : vector<64x2xf32>
    %754 = arith.addf %748, %753 : vector<64x2xf32>
    %c18_605 = arith.constant 18 : index
    %c0_606 = arith.constant 0 : index
    %c0_607 = arith.constant 0 : index
    %755 = vector.load %arg1[%c18_605, %c0_606, %c0_607] : memref<25x64x2xf32, #tpu.memory_space<vmem>>, vector<1x64x2xf32>
    %756 = vector.shape_cast %755 : vector<1x64x2xf32> to vector<64x2xf32>
    %c1_608 = arith.constant 1 : index
    %c8_609 = arith.constant 8 : index
    %757 = memref.load %arg2[%c1_608, %c8_609] : memref<3x9xf32, #tpu.memory_space<smem>>
    %758 = vector.broadcast %757 : f32 to vector<64x2xf32>
    %759 = arith.mulf %758, %756 : vector<64x2xf32>
    %760 = arith.addf %754, %759 : vector<64x2xf32>
    %761 = arith.maximumf %707, %760 : vector<64x2xf32>
    %c7_610 = arith.constant 7 : index
    %c0_611 = arith.constant 0 : index
    %c0_612 = arith.constant 0 : index
    %762 = vector.load %arg1[%c7_610, %c0_611, %c0_612] : memref<25x64x2xf32, #tpu.memory_space<vmem>>, vector<1x64x2xf32>
    %763 = vector.shape_cast %762 : vector<1x64x2xf32> to vector<64x2xf32>
    %c1_613 = arith.constant 1 : index
    %c0_614 = arith.constant 0 : index
    %764 = memref.load %arg2[%c1_613, %c0_614] : memref<3x9xf32, #tpu.memory_space<smem>>
    %765 = vector.broadcast %764 : f32 to vector<64x2xf32>
    %766 = arith.mulf %765, %763 : vector<64x2xf32>
    %c8_615 = arith.constant 8 : index
    %c0_616 = arith.constant 0 : index
    %c0_617 = arith.constant 0 : index
    %767 = vector.load %arg1[%c8_615, %c0_616, %c0_617] : memref<25x64x2xf32, #tpu.memory_space<vmem>>, vector<1x64x2xf32>
    %768 = vector.shape_cast %767 : vector<1x64x2xf32> to vector<64x2xf32>
    %c1_618 = arith.constant 1 : index
    %c1_619 = arith.constant 1 : index
    %769 = memref.load %arg2[%c1_618, %c1_619] : memref<3x9xf32, #tpu.memory_space<smem>>
    %770 = vector.broadcast %769 : f32 to vector<64x2xf32>
    %771 = arith.mulf %770, %768 : vector<64x2xf32>
    %772 = arith.addf %766, %771 : vector<64x2xf32>
    %c9_620 = arith.constant 9 : index
    %c0_621 = arith.constant 0 : index
    %c0_622 = arith.constant 0 : index
    %773 = vector.load %arg1[%c9_620, %c0_621, %c0_622] : memref<25x64x2xf32, #tpu.memory_space<vmem>>, vector<1x64x2xf32>
    %774 = vector.shape_cast %773 : vector<1x64x2xf32> to vector<64x2xf32>
    %c1_623 = arith.constant 1 : index
    %c2_624 = arith.constant 2 : index
    %775 = memref.load %arg2[%c1_623, %c2_624] : memref<3x9xf32, #tpu.memory_space<smem>>
    %776 = vector.broadcast %775 : f32 to vector<64x2xf32>
    %777 = arith.mulf %776, %774 : vector<64x2xf32>
    %778 = arith.addf %772, %777 : vector<64x2xf32>
    %c12_625 = arith.constant 12 : index
    %c0_626 = arith.constant 0 : index
    %c0_627 = arith.constant 0 : index
    %779 = vector.load %arg1[%c12_625, %c0_626, %c0_627] : memref<25x64x2xf32, #tpu.memory_space<vmem>>, vector<1x64x2xf32>
    %780 = vector.shape_cast %779 : vector<1x64x2xf32> to vector<64x2xf32>
    %c1_628 = arith.constant 1 : index
    %c3_629 = arith.constant 3 : index
    %781 = memref.load %arg2[%c1_628, %c3_629] : memref<3x9xf32, #tpu.memory_space<smem>>
    %782 = vector.broadcast %781 : f32 to vector<64x2xf32>
    %783 = arith.mulf %782, %780 : vector<64x2xf32>
    %784 = arith.addf %778, %783 : vector<64x2xf32>
    %c13_630 = arith.constant 13 : index
    %c0_631 = arith.constant 0 : index
    %c0_632 = arith.constant 0 : index
    %785 = vector.load %arg1[%c13_630, %c0_631, %c0_632] : memref<25x64x2xf32, #tpu.memory_space<vmem>>, vector<1x64x2xf32>
    %786 = vector.shape_cast %785 : vector<1x64x2xf32> to vector<64x2xf32>
    %c1_633 = arith.constant 1 : index
    %c4_634 = arith.constant 4 : index
    %787 = memref.load %arg2[%c1_633, %c4_634] : memref<3x9xf32, #tpu.memory_space<smem>>
    %788 = vector.broadcast %787 : f32 to vector<64x2xf32>
    %789 = arith.mulf %788, %786 : vector<64x2xf32>
    %790 = arith.addf %784, %789 : vector<64x2xf32>
    %c14_635 = arith.constant 14 : index
    %c0_636 = arith.constant 0 : index
    %c0_637 = arith.constant 0 : index
    %791 = vector.load %arg1[%c14_635, %c0_636, %c0_637] : memref<25x64x2xf32, #tpu.memory_space<vmem>>, vector<1x64x2xf32>
    %792 = vector.shape_cast %791 : vector<1x64x2xf32> to vector<64x2xf32>
    %c1_638 = arith.constant 1 : index
    %c5_639 = arith.constant 5 : index
    %793 = memref.load %arg2[%c1_638, %c5_639] : memref<3x9xf32, #tpu.memory_space<smem>>
    %794 = vector.broadcast %793 : f32 to vector<64x2xf32>
    %795 = arith.mulf %794, %792 : vector<64x2xf32>
    %796 = arith.addf %790, %795 : vector<64x2xf32>
    %c17_640 = arith.constant 17 : index
    %c0_641 = arith.constant 0 : index
    %c0_642 = arith.constant 0 : index
    %797 = vector.load %arg1[%c17_640, %c0_641, %c0_642] : memref<25x64x2xf32, #tpu.memory_space<vmem>>, vector<1x64x2xf32>
    %798 = vector.shape_cast %797 : vector<1x64x2xf32> to vector<64x2xf32>
    %c1_643 = arith.constant 1 : index
    %c6_644 = arith.constant 6 : index
    %799 = memref.load %arg2[%c1_643, %c6_644] : memref<3x9xf32, #tpu.memory_space<smem>>
    %800 = vector.broadcast %799 : f32 to vector<64x2xf32>
    %801 = arith.mulf %800, %798 : vector<64x2xf32>
    %802 = arith.addf %796, %801 : vector<64x2xf32>
    %c18_645 = arith.constant 18 : index
    %c0_646 = arith.constant 0 : index
    %c0_647 = arith.constant 0 : index
    %803 = vector.load %arg1[%c18_645, %c0_646, %c0_647] : memref<25x64x2xf32, #tpu.memory_space<vmem>>, vector<1x64x2xf32>
    %804 = vector.shape_cast %803 : vector<1x64x2xf32> to vector<64x2xf32>
    %c1_648 = arith.constant 1 : index
    %c7_649 = arith.constant 7 : index
    %805 = memref.load %arg2[%c1_648, %c7_649] : memref<3x9xf32, #tpu.memory_space<smem>>
    %806 = vector.broadcast %805 : f32 to vector<64x2xf32>
    %807 = arith.mulf %806, %804 : vector<64x2xf32>
    %808 = arith.addf %802, %807 : vector<64x2xf32>
    %c19_650 = arith.constant 19 : index
    %c0_651 = arith.constant 0 : index
    %c0_652 = arith.constant 0 : index
    %809 = vector.load %arg1[%c19_650, %c0_651, %c0_652] : memref<25x64x2xf32, #tpu.memory_space<vmem>>, vector<1x64x2xf32>
    %810 = vector.shape_cast %809 : vector<1x64x2xf32> to vector<64x2xf32>
    %c1_653 = arith.constant 1 : index
    %c8_654 = arith.constant 8 : index
    %811 = memref.load %arg2[%c1_653, %c8_654] : memref<3x9xf32, #tpu.memory_space<smem>>
    %812 = vector.broadcast %811 : f32 to vector<64x2xf32>
    %813 = arith.mulf %812, %810 : vector<64x2xf32>
    %814 = arith.addf %808, %813 : vector<64x2xf32>
    %815 = arith.maximumf %761, %814 : vector<64x2xf32>
    %c10_655 = arith.constant 10 : index
    %c0_656 = arith.constant 0 : index
    %c0_657 = arith.constant 0 : index
    %816 = vector.load %arg1[%c10_655, %c0_656, %c0_657] : memref<25x64x2xf32, #tpu.memory_space<vmem>>, vector<1x64x2xf32>
    %817 = vector.shape_cast %816 : vector<1x64x2xf32> to vector<64x2xf32>
    %c1_658 = arith.constant 1 : index
    %c0_659 = arith.constant 0 : index
    %818 = memref.load %arg2[%c1_658, %c0_659] : memref<3x9xf32, #tpu.memory_space<smem>>
    %819 = vector.broadcast %818 : f32 to vector<64x2xf32>
    %820 = arith.mulf %819, %817 : vector<64x2xf32>
    %c11_660 = arith.constant 11 : index
    %c0_661 = arith.constant 0 : index
    %c0_662 = arith.constant 0 : index
    %821 = vector.load %arg1[%c11_660, %c0_661, %c0_662] : memref<25x64x2xf32, #tpu.memory_space<vmem>>, vector<1x64x2xf32>
    %822 = vector.shape_cast %821 : vector<1x64x2xf32> to vector<64x2xf32>
    %c1_663 = arith.constant 1 : index
    %c1_664 = arith.constant 1 : index
    %823 = memref.load %arg2[%c1_663, %c1_664] : memref<3x9xf32, #tpu.memory_space<smem>>
    %824 = vector.broadcast %823 : f32 to vector<64x2xf32>
    %825 = arith.mulf %824, %822 : vector<64x2xf32>
    %826 = arith.addf %820, %825 : vector<64x2xf32>
    %c12_665 = arith.constant 12 : index
    %c0_666 = arith.constant 0 : index
    %c0_667 = arith.constant 0 : index
    %827 = vector.load %arg1[%c12_665, %c0_666, %c0_667] : memref<25x64x2xf32, #tpu.memory_space<vmem>>, vector<1x64x2xf32>
    %828 = vector.shape_cast %827 : vector<1x64x2xf32> to vector<64x2xf32>
    %c1_668 = arith.constant 1 : index
    %c2_669 = arith.constant 2 : index
    %829 = memref.load %arg2[%c1_668, %c2_669] : memref<3x9xf32, #tpu.memory_space<smem>>
    %830 = vector.broadcast %829 : f32 to vector<64x2xf32>
    %831 = arith.mulf %830, %828 : vector<64x2xf32>
    %832 = arith.addf %826, %831 : vector<64x2xf32>
    %c15_670 = arith.constant 15 : index
    %c0_671 = arith.constant 0 : index
    %c0_672 = arith.constant 0 : index
    %833 = vector.load %arg1[%c15_670, %c0_671, %c0_672] : memref<25x64x2xf32, #tpu.memory_space<vmem>>, vector<1x64x2xf32>
    %834 = vector.shape_cast %833 : vector<1x64x2xf32> to vector<64x2xf32>
    %c1_673 = arith.constant 1 : index
    %c3_674 = arith.constant 3 : index
    %835 = memref.load %arg2[%c1_673, %c3_674] : memref<3x9xf32, #tpu.memory_space<smem>>
    %836 = vector.broadcast %835 : f32 to vector<64x2xf32>
    %837 = arith.mulf %836, %834 : vector<64x2xf32>
    %838 = arith.addf %832, %837 : vector<64x2xf32>
    %c16_675 = arith.constant 16 : index
    %c0_676 = arith.constant 0 : index
    %c0_677 = arith.constant 0 : index
    %839 = vector.load %arg1[%c16_675, %c0_676, %c0_677] : memref<25x64x2xf32, #tpu.memory_space<vmem>>, vector<1x64x2xf32>
    %840 = vector.shape_cast %839 : vector<1x64x2xf32> to vector<64x2xf32>
    %c1_678 = arith.constant 1 : index
    %c4_679 = arith.constant 4 : index
    %841 = memref.load %arg2[%c1_678, %c4_679] : memref<3x9xf32, #tpu.memory_space<smem>>
    %842 = vector.broadcast %841 : f32 to vector<64x2xf32>
    %843 = arith.mulf %842, %840 : vector<64x2xf32>
    %844 = arith.addf %838, %843 : vector<64x2xf32>
    %c17_680 = arith.constant 17 : index
    %c0_681 = arith.constant 0 : index
    %c0_682 = arith.constant 0 : index
    %845 = vector.load %arg1[%c17_680, %c0_681, %c0_682] : memref<25x64x2xf32, #tpu.memory_space<vmem>>, vector<1x64x2xf32>
    %846 = vector.shape_cast %845 : vector<1x64x2xf32> to vector<64x2xf32>
    %c1_683 = arith.constant 1 : index
    %c5_684 = arith.constant 5 : index
    %847 = memref.load %arg2[%c1_683, %c5_684] : memref<3x9xf32, #tpu.memory_space<smem>>
    %848 = vector.broadcast %847 : f32 to vector<64x2xf32>
    %849 = arith.mulf %848, %846 : vector<64x2xf32>
    %850 = arith.addf %844, %849 : vector<64x2xf32>
    %c20_685 = arith.constant 20 : index
    %c0_686 = arith.constant 0 : index
    %c0_687 = arith.constant 0 : index
    %851 = vector.load %arg1[%c20_685, %c0_686, %c0_687] : memref<25x64x2xf32, #tpu.memory_space<vmem>>, vector<1x64x2xf32>
    %852 = vector.shape_cast %851 : vector<1x64x2xf32> to vector<64x2xf32>
    %c1_688 = arith.constant 1 : index
    %c6_689 = arith.constant 6 : index
    %853 = memref.load %arg2[%c1_688, %c6_689] : memref<3x9xf32, #tpu.memory_space<smem>>
    %854 = vector.broadcast %853 : f32 to vector<64x2xf32>
    %855 = arith.mulf %854, %852 : vector<64x2xf32>
    %856 = arith.addf %850, %855 : vector<64x2xf32>
    %c21_690 = arith.constant 21 : index
    %c0_691 = arith.constant 0 : index
    %c0_692 = arith.constant 0 : index
    %857 = vector.load %arg1[%c21_690, %c0_691, %c0_692] : memref<25x64x2xf32, #tpu.memory_space<vmem>>, vector<1x64x2xf32>
    %858 = vector.shape_cast %857 : vector<1x64x2xf32> to vector<64x2xf32>
    %c1_693 = arith.constant 1 : index
    %c7_694 = arith.constant 7 : index
    %859 = memref.load %arg2[%c1_693, %c7_694] : memref<3x9xf32, #tpu.memory_space<smem>>
    %860 = vector.broadcast %859 : f32 to vector<64x2xf32>
    %861 = arith.mulf %860, %858 : vector<64x2xf32>
    %862 = arith.addf %856, %861 : vector<64x2xf32>
    %c22_695 = arith.constant 22 : index
    %c0_696 = arith.constant 0 : index
    %c0_697 = arith.constant 0 : index
    %863 = vector.load %arg1[%c22_695, %c0_696, %c0_697] : memref<25x64x2xf32, #tpu.memory_space<vmem>>, vector<1x64x2xf32>
    %864 = vector.shape_cast %863 : vector<1x64x2xf32> to vector<64x2xf32>
    %c1_698 = arith.constant 1 : index
    %c8_699 = arith.constant 8 : index
    %865 = memref.load %arg2[%c1_698, %c8_699] : memref<3x9xf32, #tpu.memory_space<smem>>
    %866 = vector.broadcast %865 : f32 to vector<64x2xf32>
    %867 = arith.mulf %866, %864 : vector<64x2xf32>
    %868 = arith.addf %862, %867 : vector<64x2xf32>
    %869 = arith.maximumf %815, %868 : vector<64x2xf32>
    %c11_700 = arith.constant 11 : index
    %c0_701 = arith.constant 0 : index
    %c0_702 = arith.constant 0 : index
    %870 = vector.load %arg1[%c11_700, %c0_701, %c0_702] : memref<25x64x2xf32, #tpu.memory_space<vmem>>, vector<1x64x2xf32>
    %871 = vector.shape_cast %870 : vector<1x64x2xf32> to vector<64x2xf32>
    %c1_703 = arith.constant 1 : index
    %c0_704 = arith.constant 0 : index
    %872 = memref.load %arg2[%c1_703, %c0_704] : memref<3x9xf32, #tpu.memory_space<smem>>
    %873 = vector.broadcast %872 : f32 to vector<64x2xf32>
    %874 = arith.mulf %873, %871 : vector<64x2xf32>
    %c12_705 = arith.constant 12 : index
    %c0_706 = arith.constant 0 : index
    %c0_707 = arith.constant 0 : index
    %875 = vector.load %arg1[%c12_705, %c0_706, %c0_707] : memref<25x64x2xf32, #tpu.memory_space<vmem>>, vector<1x64x2xf32>
    %876 = vector.shape_cast %875 : vector<1x64x2xf32> to vector<64x2xf32>
    %c1_708 = arith.constant 1 : index
    %c1_709 = arith.constant 1 : index
    %877 = memref.load %arg2[%c1_708, %c1_709] : memref<3x9xf32, #tpu.memory_space<smem>>
    %878 = vector.broadcast %877 : f32 to vector<64x2xf32>
    %879 = arith.mulf %878, %876 : vector<64x2xf32>
    %880 = arith.addf %874, %879 : vector<64x2xf32>
    %c13_710 = arith.constant 13 : index
    %c0_711 = arith.constant 0 : index
    %c0_712 = arith.constant 0 : index
    %881 = vector.load %arg1[%c13_710, %c0_711, %c0_712] : memref<25x64x2xf32, #tpu.memory_space<vmem>>, vector<1x64x2xf32>
    %882 = vector.shape_cast %881 : vector<1x64x2xf32> to vector<64x2xf32>
    %c1_713 = arith.constant 1 : index
    %c2_714 = arith.constant 2 : index
    %883 = memref.load %arg2[%c1_713, %c2_714] : memref<3x9xf32, #tpu.memory_space<smem>>
    %884 = vector.broadcast %883 : f32 to vector<64x2xf32>
    %885 = arith.mulf %884, %882 : vector<64x2xf32>
    %886 = arith.addf %880, %885 : vector<64x2xf32>
    %c16_715 = arith.constant 16 : index
    %c0_716 = arith.constant 0 : index
    %c0_717 = arith.constant 0 : index
    %887 = vector.load %arg1[%c16_715, %c0_716, %c0_717] : memref<25x64x2xf32, #tpu.memory_space<vmem>>, vector<1x64x2xf32>
    %888 = vector.shape_cast %887 : vector<1x64x2xf32> to vector<64x2xf32>
    %c1_718 = arith.constant 1 : index
    %c3_719 = arith.constant 3 : index
    %889 = memref.load %arg2[%c1_718, %c3_719] : memref<3x9xf32, #tpu.memory_space<smem>>
    %890 = vector.broadcast %889 : f32 to vector<64x2xf32>
    %891 = arith.mulf %890, %888 : vector<64x2xf32>
    %892 = arith.addf %886, %891 : vector<64x2xf32>
    %c17_720 = arith.constant 17 : index
    %c0_721 = arith.constant 0 : index
    %c0_722 = arith.constant 0 : index
    %893 = vector.load %arg1[%c17_720, %c0_721, %c0_722] : memref<25x64x2xf32, #tpu.memory_space<vmem>>, vector<1x64x2xf32>
    %894 = vector.shape_cast %893 : vector<1x64x2xf32> to vector<64x2xf32>
    %c1_723 = arith.constant 1 : index
    %c4_724 = arith.constant 4 : index
    %895 = memref.load %arg2[%c1_723, %c4_724] : memref<3x9xf32, #tpu.memory_space<smem>>
    %896 = vector.broadcast %895 : f32 to vector<64x2xf32>
    %897 = arith.mulf %896, %894 : vector<64x2xf32>
    %898 = arith.addf %892, %897 : vector<64x2xf32>
    %c18_725 = arith.constant 18 : index
    %c0_726 = arith.constant 0 : index
    %c0_727 = arith.constant 0 : index
    %899 = vector.load %arg1[%c18_725, %c0_726, %c0_727] : memref<25x64x2xf32, #tpu.memory_space<vmem>>, vector<1x64x2xf32>
    %900 = vector.shape_cast %899 : vector<1x64x2xf32> to vector<64x2xf32>
    %c1_728 = arith.constant 1 : index
    %c5_729 = arith.constant 5 : index
    %901 = memref.load %arg2[%c1_728, %c5_729] : memref<3x9xf32, #tpu.memory_space<smem>>
    %902 = vector.broadcast %901 : f32 to vector<64x2xf32>
    %903 = arith.mulf %902, %900 : vector<64x2xf32>
    %904 = arith.addf %898, %903 : vector<64x2xf32>
    %c21_730 = arith.constant 21 : index
    %c0_731 = arith.constant 0 : index
    %c0_732 = arith.constant 0 : index
    %905 = vector.load %arg1[%c21_730, %c0_731, %c0_732] : memref<25x64x2xf32, #tpu.memory_space<vmem>>, vector<1x64x2xf32>
    %906 = vector.shape_cast %905 : vector<1x64x2xf32> to vector<64x2xf32>
    %c1_733 = arith.constant 1 : index
    %c6_734 = arith.constant 6 : index
    %907 = memref.load %arg2[%c1_733, %c6_734] : memref<3x9xf32, #tpu.memory_space<smem>>
    %908 = vector.broadcast %907 : f32 to vector<64x2xf32>
    %909 = arith.mulf %908, %906 : vector<64x2xf32>
    %910 = arith.addf %904, %909 : vector<64x2xf32>
    %c22_735 = arith.constant 22 : index
    %c0_736 = arith.constant 0 : index
    %c0_737 = arith.constant 0 : index
    %911 = vector.load %arg1[%c22_735, %c0_736, %c0_737] : memref<25x64x2xf32, #tpu.memory_space<vmem>>, vector<1x64x2xf32>
    %912 = vector.shape_cast %911 : vector<1x64x2xf32> to vector<64x2xf32>
    %c1_738 = arith.constant 1 : index
    %c7_739 = arith.constant 7 : index
    %913 = memref.load %arg2[%c1_738, %c7_739] : memref<3x9xf32, #tpu.memory_space<smem>>
    %914 = vector.broadcast %913 : f32 to vector<64x2xf32>
    %915 = arith.mulf %914, %912 : vector<64x2xf32>
    %916 = arith.addf %910, %915 : vector<64x2xf32>
    %c23_740 = arith.constant 23 : index
    %c0_741 = arith.constant 0 : index
    %c0_742 = arith.constant 0 : index
    %917 = vector.load %arg1[%c23_740, %c0_741, %c0_742] : memref<25x64x2xf32, #tpu.memory_space<vmem>>, vector<1x64x2xf32>
    %918 = vector.shape_cast %917 : vector<1x64x2xf32> to vector<64x2xf32>
    %c1_743 = arith.constant 1 : index
    %c8_744 = arith.constant 8 : index
    %919 = memref.load %arg2[%c1_743, %c8_744] : memref<3x9xf32, #tpu.memory_space<smem>>
    %920 = vector.broadcast %919 : f32 to vector<64x2xf32>
    %921 = arith.mulf %920, %918 : vector<64x2xf32>
    %922 = arith.addf %916, %921 : vector<64x2xf32>
    %923 = arith.maximumf %869, %922 : vector<64x2xf32>
    %c12_745 = arith.constant 12 : index
    %c0_746 = arith.constant 0 : index
    %c0_747 = arith.constant 0 : index
    %924 = vector.load %arg1[%c12_745, %c0_746, %c0_747] : memref<25x64x2xf32, #tpu.memory_space<vmem>>, vector<1x64x2xf32>
    %925 = vector.shape_cast %924 : vector<1x64x2xf32> to vector<64x2xf32>
    %c1_748 = arith.constant 1 : index
    %c0_749 = arith.constant 0 : index
    %926 = memref.load %arg2[%c1_748, %c0_749] : memref<3x9xf32, #tpu.memory_space<smem>>
    %927 = vector.broadcast %926 : f32 to vector<64x2xf32>
    %928 = arith.mulf %927, %925 : vector<64x2xf32>
    %c13_750 = arith.constant 13 : index
    %c0_751 = arith.constant 0 : index
    %c0_752 = arith.constant 0 : index
    %929 = vector.load %arg1[%c13_750, %c0_751, %c0_752] : memref<25x64x2xf32, #tpu.memory_space<vmem>>, vector<1x64x2xf32>
    %930 = vector.shape_cast %929 : vector<1x64x2xf32> to vector<64x2xf32>
    %c1_753 = arith.constant 1 : index
    %c1_754 = arith.constant 1 : index
    %931 = memref.load %arg2[%c1_753, %c1_754] : memref<3x9xf32, #tpu.memory_space<smem>>
    %932 = vector.broadcast %931 : f32 to vector<64x2xf32>
    %933 = arith.mulf %932, %930 : vector<64x2xf32>
    %934 = arith.addf %928, %933 : vector<64x2xf32>
    %c14_755 = arith.constant 14 : index
    %c0_756 = arith.constant 0 : index
    %c0_757 = arith.constant 0 : index
    %935 = vector.load %arg1[%c14_755, %c0_756, %c0_757] : memref<25x64x2xf32, #tpu.memory_space<vmem>>, vector<1x64x2xf32>
    %936 = vector.shape_cast %935 : vector<1x64x2xf32> to vector<64x2xf32>
    %c1_758 = arith.constant 1 : index
    %c2_759 = arith.constant 2 : index
    %937 = memref.load %arg2[%c1_758, %c2_759] : memref<3x9xf32, #tpu.memory_space<smem>>
    %938 = vector.broadcast %937 : f32 to vector<64x2xf32>
    %939 = arith.mulf %938, %936 : vector<64x2xf32>
    %940 = arith.addf %934, %939 : vector<64x2xf32>
    %c17_760 = arith.constant 17 : index
    %c0_761 = arith.constant 0 : index
    %c0_762 = arith.constant 0 : index
    %941 = vector.load %arg1[%c17_760, %c0_761, %c0_762] : memref<25x64x2xf32, #tpu.memory_space<vmem>>, vector<1x64x2xf32>
    %942 = vector.shape_cast %941 : vector<1x64x2xf32> to vector<64x2xf32>
    %c1_763 = arith.constant 1 : index
    %c3_764 = arith.constant 3 : index
    %943 = memref.load %arg2[%c1_763, %c3_764] : memref<3x9xf32, #tpu.memory_space<smem>>
    %944 = vector.broadcast %943 : f32 to vector<64x2xf32>
    %945 = arith.mulf %944, %942 : vector<64x2xf32>
    %946 = arith.addf %940, %945 : vector<64x2xf32>
    %c18_765 = arith.constant 18 : index
    %c0_766 = arith.constant 0 : index
    %c0_767 = arith.constant 0 : index
    %947 = vector.load %arg1[%c18_765, %c0_766, %c0_767] : memref<25x64x2xf32, #tpu.memory_space<vmem>>, vector<1x64x2xf32>
    %948 = vector.shape_cast %947 : vector<1x64x2xf32> to vector<64x2xf32>
    %c1_768 = arith.constant 1 : index
    %c4_769 = arith.constant 4 : index
    %949 = memref.load %arg2[%c1_768, %c4_769] : memref<3x9xf32, #tpu.memory_space<smem>>
    %950 = vector.broadcast %949 : f32 to vector<64x2xf32>
    %951 = arith.mulf %950, %948 : vector<64x2xf32>
    %952 = arith.addf %946, %951 : vector<64x2xf32>
    %c19_770 = arith.constant 19 : index
    %c0_771 = arith.constant 0 : index
    %c0_772 = arith.constant 0 : index
    %953 = vector.load %arg1[%c19_770, %c0_771, %c0_772] : memref<25x64x2xf32, #tpu.memory_space<vmem>>, vector<1x64x2xf32>
    %954 = vector.shape_cast %953 : vector<1x64x2xf32> to vector<64x2xf32>
    %c1_773 = arith.constant 1 : index
    %c5_774 = arith.constant 5 : index
    %955 = memref.load %arg2[%c1_773, %c5_774] : memref<3x9xf32, #tpu.memory_space<smem>>
    %956 = vector.broadcast %955 : f32 to vector<64x2xf32>
    %957 = arith.mulf %956, %954 : vector<64x2xf32>
    %958 = arith.addf %952, %957 : vector<64x2xf32>
    %c22_775 = arith.constant 22 : index
    %c0_776 = arith.constant 0 : index
    %c0_777 = arith.constant 0 : index
    %959 = vector.load %arg1[%c22_775, %c0_776, %c0_777] : memref<25x64x2xf32, #tpu.memory_space<vmem>>, vector<1x64x2xf32>
    %960 = vector.shape_cast %959 : vector<1x64x2xf32> to vector<64x2xf32>
    %c1_778 = arith.constant 1 : index
    %c6_779 = arith.constant 6 : index
    %961 = memref.load %arg2[%c1_778, %c6_779] : memref<3x9xf32, #tpu.memory_space<smem>>
    %962 = vector.broadcast %961 : f32 to vector<64x2xf32>
    %963 = arith.mulf %962, %960 : vector<64x2xf32>
    %964 = arith.addf %958, %963 : vector<64x2xf32>
    %c23_780 = arith.constant 23 : index
    %c0_781 = arith.constant 0 : index
    %c0_782 = arith.constant 0 : index
    %965 = vector.load %arg1[%c23_780, %c0_781, %c0_782] : memref<25x64x2xf32, #tpu.memory_space<vmem>>, vector<1x64x2xf32>
    %966 = vector.shape_cast %965 : vector<1x64x2xf32> to vector<64x2xf32>
    %c1_783 = arith.constant 1 : index
    %c7_784 = arith.constant 7 : index
    %967 = memref.load %arg2[%c1_783, %c7_784] : memref<3x9xf32, #tpu.memory_space<smem>>
    %968 = vector.broadcast %967 : f32 to vector<64x2xf32>
    %969 = arith.mulf %968, %966 : vector<64x2xf32>
    %970 = arith.addf %964, %969 : vector<64x2xf32>
    %c24_785 = arith.constant 24 : index
    %c0_786 = arith.constant 0 : index
    %c0_787 = arith.constant 0 : index
    %971 = vector.load %arg1[%c24_785, %c0_786, %c0_787] : memref<25x64x2xf32, #tpu.memory_space<vmem>>, vector<1x64x2xf32>
    %972 = vector.shape_cast %971 : vector<1x64x2xf32> to vector<64x2xf32>
    %c1_788 = arith.constant 1 : index
    %c8_789 = arith.constant 8 : index
    %973 = memref.load %arg2[%c1_788, %c8_789] : memref<3x9xf32, #tpu.memory_space<smem>>
    %974 = vector.broadcast %973 : f32 to vector<64x2xf32>
    %975 = arith.mulf %974, %972 : vector<64x2xf32>
    %976 = arith.addf %970, %975 : vector<64x2xf32>
    %977 = arith.maximumf %923, %976 : vector<64x2xf32>
    %c1_790 = arith.constant 1 : index
    %978 = memref.load %arg3[%c1_790] : memref<3xf32, #tpu.memory_space<smem>>
    %979 = vector.broadcast %978 : f32 to vector<64x2xf32>
    %980 = arith.addf %977, %979 : vector<64x2xf32>
    %cst_791 = arith.constant 0.000000e+00 : f32
    %981 = vector.broadcast %cst_791 : f32 to vector<64x2xf32>
    %982 = arith.maximumf %980, %981 : vector<64x2xf32>
    %c1_792 = arith.constant 1 : index
    %c0_793 = arith.constant 0 : index
    %c0_794 = arith.constant 0 : index
    %983 = vector.load %arg4[%c1_792, %c0_793, %c0_794] : memref<3x10x64xf32, #tpu.memory_space<vmem>>, vector<1x10x64xf32>
    %984 = vector.shape_cast %983 : vector<1x10x64xf32> to vector<10x64xf32>
    %cst_795 = arith.constant dense<0.000000e+00> : vector<10x2xf32>
    %985 = tpu.matmul %984, %982, %cst_795 {dimension_numbers = #tpu.dot_dimension_numbers<[1], [0], [0], [1], [0, 0, 1, 1], [], []>} : vector<10x64xf32>, vector<64x2xf32>, vector<10x2xf32> -> vector<10x2xf32>
    %986 = arith.addf %492, %985 : vector<10x2xf32>
    %c0_796 = arith.constant 0 : index
    %c0_797 = arith.constant 0 : index
    %c0_798 = arith.constant 0 : index
    %987 = vector.load %arg1[%c0_796, %c0_797, %c0_798] : memref<25x64x2xf32, #tpu.memory_space<vmem>>, vector<1x64x2xf32>
    %988 = vector.shape_cast %987 : vector<1x64x2xf32> to vector<64x2xf32>
    %c2_799 = arith.constant 2 : index
    %c0_800 = arith.constant 0 : index
    %989 = memref.load %arg2[%c2_799, %c0_800] : memref<3x9xf32, #tpu.memory_space<smem>>
    %990 = vector.broadcast %989 : f32 to vector<64x2xf32>
    %991 = arith.mulf %990, %988 : vector<64x2xf32>
    %c1_801 = arith.constant 1 : index
    %c0_802 = arith.constant 0 : index
    %c0_803 = arith.constant 0 : index
    %992 = vector.load %arg1[%c1_801, %c0_802, %c0_803] : memref<25x64x2xf32, #tpu.memory_space<vmem>>, vector<1x64x2xf32>
    %993 = vector.shape_cast %992 : vector<1x64x2xf32> to vector<64x2xf32>
    %c2_804 = arith.constant 2 : index
    %c1_805 = arith.constant 1 : index
    %994 = memref.load %arg2[%c2_804, %c1_805] : memref<3x9xf32, #tpu.memory_space<smem>>
    %995 = vector.broadcast %994 : f32 to vector<64x2xf32>
    %996 = arith.mulf %995, %993 : vector<64x2xf32>
    %997 = arith.addf %991, %996 : vector<64x2xf32>
    %c2_806 = arith.constant 2 : index
    %c0_807 = arith.constant 0 : index
    %c0_808 = arith.constant 0 : index
    %998 = vector.load %arg1[%c2_806, %c0_807, %c0_808] : memref<25x64x2xf32, #tpu.memory_space<vmem>>, vector<1x64x2xf32>
    %999 = vector.shape_cast %998 : vector<1x64x2xf32> to vector<64x2xf32>
    %c2_809 = arith.constant 2 : index
    %c2_810 = arith.constant 2 : index
    %1000 = memref.load %arg2[%c2_809, %c2_810] : memref<3x9xf32, #tpu.memory_space<smem>>
    %1001 = vector.broadcast %1000 : f32 to vector<64x2xf32>
    %1002 = arith.mulf %1001, %999 : vector<64x2xf32>
    %1003 = arith.addf %997, %1002 : vector<64x2xf32>
    %c5_811 = arith.constant 5 : index
    %c0_812 = arith.constant 0 : index
    %c0_813 = arith.constant 0 : index
    %1004 = vector.load %arg1[%c5_811, %c0_812, %c0_813] : memref<25x64x2xf32, #tpu.memory_space<vmem>>, vector<1x64x2xf32>
    %1005 = vector.shape_cast %1004 : vector<1x64x2xf32> to vector<64x2xf32>
    %c2_814 = arith.constant 2 : index
    %c3_815 = arith.constant 3 : index
    %1006 = memref.load %arg2[%c2_814, %c3_815] : memref<3x9xf32, #tpu.memory_space<smem>>
    %1007 = vector.broadcast %1006 : f32 to vector<64x2xf32>
    %1008 = arith.mulf %1007, %1005 : vector<64x2xf32>
    %1009 = arith.addf %1003, %1008 : vector<64x2xf32>
    %c6_816 = arith.constant 6 : index
    %c0_817 = arith.constant 0 : index
    %c0_818 = arith.constant 0 : index
    %1010 = vector.load %arg1[%c6_816, %c0_817, %c0_818] : memref<25x64x2xf32, #tpu.memory_space<vmem>>, vector<1x64x2xf32>
    %1011 = vector.shape_cast %1010 : vector<1x64x2xf32> to vector<64x2xf32>
    %c2_819 = arith.constant 2 : index
    %c4_820 = arith.constant 4 : index
    %1012 = memref.load %arg2[%c2_819, %c4_820] : memref<3x9xf32, #tpu.memory_space<smem>>
    %1013 = vector.broadcast %1012 : f32 to vector<64x2xf32>
    %1014 = arith.mulf %1013, %1011 : vector<64x2xf32>
    %1015 = arith.addf %1009, %1014 : vector<64x2xf32>
    %c7_821 = arith.constant 7 : index
    %c0_822 = arith.constant 0 : index
    %c0_823 = arith.constant 0 : index
    %1016 = vector.load %arg1[%c7_821, %c0_822, %c0_823] : memref<25x64x2xf32, #tpu.memory_space<vmem>>, vector<1x64x2xf32>
    %1017 = vector.shape_cast %1016 : vector<1x64x2xf32> to vector<64x2xf32>
    %c2_824 = arith.constant 2 : index
    %c5_825 = arith.constant 5 : index
    %1018 = memref.load %arg2[%c2_824, %c5_825] : memref<3x9xf32, #tpu.memory_space<smem>>
    %1019 = vector.broadcast %1018 : f32 to vector<64x2xf32>
    %1020 = arith.mulf %1019, %1017 : vector<64x2xf32>
    %1021 = arith.addf %1015, %1020 : vector<64x2xf32>
    %c10_826 = arith.constant 10 : index
    %c0_827 = arith.constant 0 : index
    %c0_828 = arith.constant 0 : index
    %1022 = vector.load %arg1[%c10_826, %c0_827, %c0_828] : memref<25x64x2xf32, #tpu.memory_space<vmem>>, vector<1x64x2xf32>
    %1023 = vector.shape_cast %1022 : vector<1x64x2xf32> to vector<64x2xf32>
    %c2_829 = arith.constant 2 : index
    %c6_830 = arith.constant 6 : index
    %1024 = memref.load %arg2[%c2_829, %c6_830] : memref<3x9xf32, #tpu.memory_space<smem>>
    %1025 = vector.broadcast %1024 : f32 to vector<64x2xf32>
    %1026 = arith.mulf %1025, %1023 : vector<64x2xf32>
    %1027 = arith.addf %1021, %1026 : vector<64x2xf32>
    %c11_831 = arith.constant 11 : index
    %c0_832 = arith.constant 0 : index
    %c0_833 = arith.constant 0 : index
    %1028 = vector.load %arg1[%c11_831, %c0_832, %c0_833] : memref<25x64x2xf32, #tpu.memory_space<vmem>>, vector<1x64x2xf32>
    %1029 = vector.shape_cast %1028 : vector<1x64x2xf32> to vector<64x2xf32>
    %c2_834 = arith.constant 2 : index
    %c7_835 = arith.constant 7 : index
    %1030 = memref.load %arg2[%c2_834, %c7_835] : memref<3x9xf32, #tpu.memory_space<smem>>
    %1031 = vector.broadcast %1030 : f32 to vector<64x2xf32>
    %1032 = arith.mulf %1031, %1029 : vector<64x2xf32>
    %1033 = arith.addf %1027, %1032 : vector<64x2xf32>
    %c12_836 = arith.constant 12 : index
    %c0_837 = arith.constant 0 : index
    %c0_838 = arith.constant 0 : index
    %1034 = vector.load %arg1[%c12_836, %c0_837, %c0_838] : memref<25x64x2xf32, #tpu.memory_space<vmem>>, vector<1x64x2xf32>
    %1035 = vector.shape_cast %1034 : vector<1x64x2xf32> to vector<64x2xf32>
    %c2_839 = arith.constant 2 : index
    %c8_840 = arith.constant 8 : index
    %1036 = memref.load %arg2[%c2_839, %c8_840] : memref<3x9xf32, #tpu.memory_space<smem>>
    %1037 = vector.broadcast %1036 : f32 to vector<64x2xf32>
    %1038 = arith.mulf %1037, %1035 : vector<64x2xf32>
    %1039 = arith.addf %1033, %1038 : vector<64x2xf32>
    %c1_841 = arith.constant 1 : index
    %c0_842 = arith.constant 0 : index
    %c0_843 = arith.constant 0 : index
    %1040 = vector.load %arg1[%c1_841, %c0_842, %c0_843] : memref<25x64x2xf32, #tpu.memory_space<vmem>>, vector<1x64x2xf32>
    %1041 = vector.shape_cast %1040 : vector<1x64x2xf32> to vector<64x2xf32>
    %c2_844 = arith.constant 2 : index
    %c0_845 = arith.constant 0 : index
    %1042 = memref.load %arg2[%c2_844, %c0_845] : memref<3x9xf32, #tpu.memory_space<smem>>
    %1043 = vector.broadcast %1042 : f32 to vector<64x2xf32>
    %1044 = arith.mulf %1043, %1041 : vector<64x2xf32>
    %c2_846 = arith.constant 2 : index
    %c0_847 = arith.constant 0 : index
    %c0_848 = arith.constant 0 : index
    %1045 = vector.load %arg1[%c2_846, %c0_847, %c0_848] : memref<25x64x2xf32, #tpu.memory_space<vmem>>, vector<1x64x2xf32>
    %1046 = vector.shape_cast %1045 : vector<1x64x2xf32> to vector<64x2xf32>
    %c2_849 = arith.constant 2 : index
    %c1_850 = arith.constant 1 : index
    %1047 = memref.load %arg2[%c2_849, %c1_850] : memref<3x9xf32, #tpu.memory_space<smem>>
    %1048 = vector.broadcast %1047 : f32 to vector<64x2xf32>
    %1049 = arith.mulf %1048, %1046 : vector<64x2xf32>
    %1050 = arith.addf %1044, %1049 : vector<64x2xf32>
    %c3_851 = arith.constant 3 : index
    %c0_852 = arith.constant 0 : index
    %c0_853 = arith.constant 0 : index
    %1051 = vector.load %arg1[%c3_851, %c0_852, %c0_853] : memref<25x64x2xf32, #tpu.memory_space<vmem>>, vector<1x64x2xf32>
    %1052 = vector.shape_cast %1051 : vector<1x64x2xf32> to vector<64x2xf32>
    %c2_854 = arith.constant 2 : index
    %c2_855 = arith.constant 2 : index
    %1053 = memref.load %arg2[%c2_854, %c2_855] : memref<3x9xf32, #tpu.memory_space<smem>>
    %1054 = vector.broadcast %1053 : f32 to vector<64x2xf32>
    %1055 = arith.mulf %1054, %1052 : vector<64x2xf32>
    %1056 = arith.addf %1050, %1055 : vector<64x2xf32>
    %c6_856 = arith.constant 6 : index
    %c0_857 = arith.constant 0 : index
    %c0_858 = arith.constant 0 : index
    %1057 = vector.load %arg1[%c6_856, %c0_857, %c0_858] : memref<25x64x2xf32, #tpu.memory_space<vmem>>, vector<1x64x2xf32>
    %1058 = vector.shape_cast %1057 : vector<1x64x2xf32> to vector<64x2xf32>
    %c2_859 = arith.constant 2 : index
    %c3_860 = arith.constant 3 : index
    %1059 = memref.load %arg2[%c2_859, %c3_860] : memref<3x9xf32, #tpu.memory_space<smem>>
    %1060 = vector.broadcast %1059 : f32 to vector<64x2xf32>
    %1061 = arith.mulf %1060, %1058 : vector<64x2xf32>
    %1062 = arith.addf %1056, %1061 : vector<64x2xf32>
    %c7_861 = arith.constant 7 : index
    %c0_862 = arith.constant 0 : index
    %c0_863 = arith.constant 0 : index
    %1063 = vector.load %arg1[%c7_861, %c0_862, %c0_863] : memref<25x64x2xf32, #tpu.memory_space<vmem>>, vector<1x64x2xf32>
    %1064 = vector.shape_cast %1063 : vector<1x64x2xf32> to vector<64x2xf32>
    %c2_864 = arith.constant 2 : index
    %c4_865 = arith.constant 4 : index
    %1065 = memref.load %arg2[%c2_864, %c4_865] : memref<3x9xf32, #tpu.memory_space<smem>>
    %1066 = vector.broadcast %1065 : f32 to vector<64x2xf32>
    %1067 = arith.mulf %1066, %1064 : vector<64x2xf32>
    %1068 = arith.addf %1062, %1067 : vector<64x2xf32>
    %c8_866 = arith.constant 8 : index
    %c0_867 = arith.constant 0 : index
    %c0_868 = arith.constant 0 : index
    %1069 = vector.load %arg1[%c8_866, %c0_867, %c0_868] : memref<25x64x2xf32, #tpu.memory_space<vmem>>, vector<1x64x2xf32>
    %1070 = vector.shape_cast %1069 : vector<1x64x2xf32> to vector<64x2xf32>
    %c2_869 = arith.constant 2 : index
    %c5_870 = arith.constant 5 : index
    %1071 = memref.load %arg2[%c2_869, %c5_870] : memref<3x9xf32, #tpu.memory_space<smem>>
    %1072 = vector.broadcast %1071 : f32 to vector<64x2xf32>
    %1073 = arith.mulf %1072, %1070 : vector<64x2xf32>
    %1074 = arith.addf %1068, %1073 : vector<64x2xf32>
    %c11_871 = arith.constant 11 : index
    %c0_872 = arith.constant 0 : index
    %c0_873 = arith.constant 0 : index
    %1075 = vector.load %arg1[%c11_871, %c0_872, %c0_873] : memref<25x64x2xf32, #tpu.memory_space<vmem>>, vector<1x64x2xf32>
    %1076 = vector.shape_cast %1075 : vector<1x64x2xf32> to vector<64x2xf32>
    %c2_874 = arith.constant 2 : index
    %c6_875 = arith.constant 6 : index
    %1077 = memref.load %arg2[%c2_874, %c6_875] : memref<3x9xf32, #tpu.memory_space<smem>>
    %1078 = vector.broadcast %1077 : f32 to vector<64x2xf32>
    %1079 = arith.mulf %1078, %1076 : vector<64x2xf32>
    %1080 = arith.addf %1074, %1079 : vector<64x2xf32>
    %c12_876 = arith.constant 12 : index
    %c0_877 = arith.constant 0 : index
    %c0_878 = arith.constant 0 : index
    %1081 = vector.load %arg1[%c12_876, %c0_877, %c0_878] : memref<25x64x2xf32, #tpu.memory_space<vmem>>, vector<1x64x2xf32>
    %1082 = vector.shape_cast %1081 : vector<1x64x2xf32> to vector<64x2xf32>
    %c2_879 = arith.constant 2 : index
    %c7_880 = arith.constant 7 : index
    %1083 = memref.load %arg2[%c2_879, %c7_880] : memref<3x9xf32, #tpu.memory_space<smem>>
    %1084 = vector.broadcast %1083 : f32 to vector<64x2xf32>
    %1085 = arith.mulf %1084, %1082 : vector<64x2xf32>
    %1086 = arith.addf %1080, %1085 : vector<64x2xf32>
    %c13_881 = arith.constant 13 : index
    %c0_882 = arith.constant 0 : index
    %c0_883 = arith.constant 0 : index
    %1087 = vector.load %arg1[%c13_881, %c0_882, %c0_883] : memref<25x64x2xf32, #tpu.memory_space<vmem>>, vector<1x64x2xf32>
    %1088 = vector.shape_cast %1087 : vector<1x64x2xf32> to vector<64x2xf32>
    %c2_884 = arith.constant 2 : index
    %c8_885 = arith.constant 8 : index
    %1089 = memref.load %arg2[%c2_884, %c8_885] : memref<3x9xf32, #tpu.memory_space<smem>>
    %1090 = vector.broadcast %1089 : f32 to vector<64x2xf32>
    %1091 = arith.mulf %1090, %1088 : vector<64x2xf32>
    %1092 = arith.addf %1086, %1091 : vector<64x2xf32>
    %1093 = arith.maximumf %1039, %1092 : vector<64x2xf32>
    %c2_886 = arith.constant 2 : index
    %c0_887 = arith.constant 0 : index
    %c0_888 = arith.constant 0 : index
    %1094 = vector.load %arg1[%c2_886, %c0_887, %c0_888] : memref<25x64x2xf32, #tpu.memory_space<vmem>>, vector<1x64x2xf32>
    %1095 = vector.shape_cast %1094 : vector<1x64x2xf32> to vector<64x2xf32>
    %c2_889 = arith.constant 2 : index
    %c0_890 = arith.constant 0 : index
    %1096 = memref.load %arg2[%c2_889, %c0_890] : memref<3x9xf32, #tpu.memory_space<smem>>
    %1097 = vector.broadcast %1096 : f32 to vector<64x2xf32>
    %1098 = arith.mulf %1097, %1095 : vector<64x2xf32>
    %c3_891 = arith.constant 3 : index
    %c0_892 = arith.constant 0 : index
    %c0_893 = arith.constant 0 : index
    %1099 = vector.load %arg1[%c3_891, %c0_892, %c0_893] : memref<25x64x2xf32, #tpu.memory_space<vmem>>, vector<1x64x2xf32>
    %1100 = vector.shape_cast %1099 : vector<1x64x2xf32> to vector<64x2xf32>
    %c2_894 = arith.constant 2 : index
    %c1_895 = arith.constant 1 : index
    %1101 = memref.load %arg2[%c2_894, %c1_895] : memref<3x9xf32, #tpu.memory_space<smem>>
    %1102 = vector.broadcast %1101 : f32 to vector<64x2xf32>
    %1103 = arith.mulf %1102, %1100 : vector<64x2xf32>
    %1104 = arith.addf %1098, %1103 : vector<64x2xf32>
    %c4_896 = arith.constant 4 : index
    %c0_897 = arith.constant 0 : index
    %c0_898 = arith.constant 0 : index
    %1105 = vector.load %arg1[%c4_896, %c0_897, %c0_898] : memref<25x64x2xf32, #tpu.memory_space<vmem>>, vector<1x64x2xf32>
    %1106 = vector.shape_cast %1105 : vector<1x64x2xf32> to vector<64x2xf32>
    %c2_899 = arith.constant 2 : index
    %c2_900 = arith.constant 2 : index
    %1107 = memref.load %arg2[%c2_899, %c2_900] : memref<3x9xf32, #tpu.memory_space<smem>>
    %1108 = vector.broadcast %1107 : f32 to vector<64x2xf32>
    %1109 = arith.mulf %1108, %1106 : vector<64x2xf32>
    %1110 = arith.addf %1104, %1109 : vector<64x2xf32>
    %c7_901 = arith.constant 7 : index
    %c0_902 = arith.constant 0 : index
    %c0_903 = arith.constant 0 : index
    %1111 = vector.load %arg1[%c7_901, %c0_902, %c0_903] : memref<25x64x2xf32, #tpu.memory_space<vmem>>, vector<1x64x2xf32>
    %1112 = vector.shape_cast %1111 : vector<1x64x2xf32> to vector<64x2xf32>
    %c2_904 = arith.constant 2 : index
    %c3_905 = arith.constant 3 : index
    %1113 = memref.load %arg2[%c2_904, %c3_905] : memref<3x9xf32, #tpu.memory_space<smem>>
    %1114 = vector.broadcast %1113 : f32 to vector<64x2xf32>
    %1115 = arith.mulf %1114, %1112 : vector<64x2xf32>
    %1116 = arith.addf %1110, %1115 : vector<64x2xf32>
    %c8_906 = arith.constant 8 : index
    %c0_907 = arith.constant 0 : index
    %c0_908 = arith.constant 0 : index
    %1117 = vector.load %arg1[%c8_906, %c0_907, %c0_908] : memref<25x64x2xf32, #tpu.memory_space<vmem>>, vector<1x64x2xf32>
    %1118 = vector.shape_cast %1117 : vector<1x64x2xf32> to vector<64x2xf32>
    %c2_909 = arith.constant 2 : index
    %c4_910 = arith.constant 4 : index
    %1119 = memref.load %arg2[%c2_909, %c4_910] : memref<3x9xf32, #tpu.memory_space<smem>>
    %1120 = vector.broadcast %1119 : f32 to vector<64x2xf32>
    %1121 = arith.mulf %1120, %1118 : vector<64x2xf32>
    %1122 = arith.addf %1116, %1121 : vector<64x2xf32>
    %c9_911 = arith.constant 9 : index
    %c0_912 = arith.constant 0 : index
    %c0_913 = arith.constant 0 : index
    %1123 = vector.load %arg1[%c9_911, %c0_912, %c0_913] : memref<25x64x2xf32, #tpu.memory_space<vmem>>, vector<1x64x2xf32>
    %1124 = vector.shape_cast %1123 : vector<1x64x2xf32> to vector<64x2xf32>
    %c2_914 = arith.constant 2 : index
    %c5_915 = arith.constant 5 : index
    %1125 = memref.load %arg2[%c2_914, %c5_915] : memref<3x9xf32, #tpu.memory_space<smem>>
    %1126 = vector.broadcast %1125 : f32 to vector<64x2xf32>
    %1127 = arith.mulf %1126, %1124 : vector<64x2xf32>
    %1128 = arith.addf %1122, %1127 : vector<64x2xf32>
    %c12_916 = arith.constant 12 : index
    %c0_917 = arith.constant 0 : index
    %c0_918 = arith.constant 0 : index
    %1129 = vector.load %arg1[%c12_916, %c0_917, %c0_918] : memref<25x64x2xf32, #tpu.memory_space<vmem>>, vector<1x64x2xf32>
    %1130 = vector.shape_cast %1129 : vector<1x64x2xf32> to vector<64x2xf32>
    %c2_919 = arith.constant 2 : index
    %c6_920 = arith.constant 6 : index
    %1131 = memref.load %arg2[%c2_919, %c6_920] : memref<3x9xf32, #tpu.memory_space<smem>>
    %1132 = vector.broadcast %1131 : f32 to vector<64x2xf32>
    %1133 = arith.mulf %1132, %1130 : vector<64x2xf32>
    %1134 = arith.addf %1128, %1133 : vector<64x2xf32>
    %c13_921 = arith.constant 13 : index
    %c0_922 = arith.constant 0 : index
    %c0_923 = arith.constant 0 : index
    %1135 = vector.load %arg1[%c13_921, %c0_922, %c0_923] : memref<25x64x2xf32, #tpu.memory_space<vmem>>, vector<1x64x2xf32>
    %1136 = vector.shape_cast %1135 : vector<1x64x2xf32> to vector<64x2xf32>
    %c2_924 = arith.constant 2 : index
    %c7_925 = arith.constant 7 : index
    %1137 = memref.load %arg2[%c2_924, %c7_925] : memref<3x9xf32, #tpu.memory_space<smem>>
    %1138 = vector.broadcast %1137 : f32 to vector<64x2xf32>
    %1139 = arith.mulf %1138, %1136 : vector<64x2xf32>
    %1140 = arith.addf %1134, %1139 : vector<64x2xf32>
    %c14_926 = arith.constant 14 : index
    %c0_927 = arith.constant 0 : index
    %c0_928 = arith.constant 0 : index
    %1141 = vector.load %arg1[%c14_926, %c0_927, %c0_928] : memref<25x64x2xf32, #tpu.memory_space<vmem>>, vector<1x64x2xf32>
    %1142 = vector.shape_cast %1141 : vector<1x64x2xf32> to vector<64x2xf32>
    %c2_929 = arith.constant 2 : index
    %c8_930 = arith.constant 8 : index
    %1143 = memref.load %arg2[%c2_929, %c8_930] : memref<3x9xf32, #tpu.memory_space<smem>>
    %1144 = vector.broadcast %1143 : f32 to vector<64x2xf32>
    %1145 = arith.mulf %1144, %1142 : vector<64x2xf32>
    %1146 = arith.addf %1140, %1145 : vector<64x2xf32>
    %1147 = arith.maximumf %1093, %1146 : vector<64x2xf32>
    %c5_931 = arith.constant 5 : index
    %c0_932 = arith.constant 0 : index
    %c0_933 = arith.constant 0 : index
    %1148 = vector.load %arg1[%c5_931, %c0_932, %c0_933] : memref<25x64x2xf32, #tpu.memory_space<vmem>>, vector<1x64x2xf32>
    %1149 = vector.shape_cast %1148 : vector<1x64x2xf32> to vector<64x2xf32>
    %c2_934 = arith.constant 2 : index
    %c0_935 = arith.constant 0 : index
    %1150 = memref.load %arg2[%c2_934, %c0_935] : memref<3x9xf32, #tpu.memory_space<smem>>
    %1151 = vector.broadcast %1150 : f32 to vector<64x2xf32>
    %1152 = arith.mulf %1151, %1149 : vector<64x2xf32>
    %c6_936 = arith.constant 6 : index
    %c0_937 = arith.constant 0 : index
    %c0_938 = arith.constant 0 : index
    %1153 = vector.load %arg1[%c6_936, %c0_937, %c0_938] : memref<25x64x2xf32, #tpu.memory_space<vmem>>, vector<1x64x2xf32>
    %1154 = vector.shape_cast %1153 : vector<1x64x2xf32> to vector<64x2xf32>
    %c2_939 = arith.constant 2 : index
    %c1_940 = arith.constant 1 : index
    %1155 = memref.load %arg2[%c2_939, %c1_940] : memref<3x9xf32, #tpu.memory_space<smem>>
    %1156 = vector.broadcast %1155 : f32 to vector<64x2xf32>
    %1157 = arith.mulf %1156, %1154 : vector<64x2xf32>
    %1158 = arith.addf %1152, %1157 : vector<64x2xf32>
    %c7_941 = arith.constant 7 : index
    %c0_942 = arith.constant 0 : index
    %c0_943 = arith.constant 0 : index
    %1159 = vector.load %arg1[%c7_941, %c0_942, %c0_943] : memref<25x64x2xf32, #tpu.memory_space<vmem>>, vector<1x64x2xf32>
    %1160 = vector.shape_cast %1159 : vector<1x64x2xf32> to vector<64x2xf32>
    %c2_944 = arith.constant 2 : index
    %c2_945 = arith.constant 2 : index
    %1161 = memref.load %arg2[%c2_944, %c2_945] : memref<3x9xf32, #tpu.memory_space<smem>>
    %1162 = vector.broadcast %1161 : f32 to vector<64x2xf32>
    %1163 = arith.mulf %1162, %1160 : vector<64x2xf32>
    %1164 = arith.addf %1158, %1163 : vector<64x2xf32>
    %c10_946 = arith.constant 10 : index
    %c0_947 = arith.constant 0 : index
    %c0_948 = arith.constant 0 : index
    %1165 = vector.load %arg1[%c10_946, %c0_947, %c0_948] : memref<25x64x2xf32, #tpu.memory_space<vmem>>, vector<1x64x2xf32>
    %1166 = vector.shape_cast %1165 : vector<1x64x2xf32> to vector<64x2xf32>
    %c2_949 = arith.constant 2 : index
    %c3_950 = arith.constant 3 : index
    %1167 = memref.load %arg2[%c2_949, %c3_950] : memref<3x9xf32, #tpu.memory_space<smem>>
    %1168 = vector.broadcast %1167 : f32 to vector<64x2xf32>
    %1169 = arith.mulf %1168, %1166 : vector<64x2xf32>
    %1170 = arith.addf %1164, %1169 : vector<64x2xf32>
    %c11_951 = arith.constant 11 : index
    %c0_952 = arith.constant 0 : index
    %c0_953 = arith.constant 0 : index
    %1171 = vector.load %arg1[%c11_951, %c0_952, %c0_953] : memref<25x64x2xf32, #tpu.memory_space<vmem>>, vector<1x64x2xf32>
    %1172 = vector.shape_cast %1171 : vector<1x64x2xf32> to vector<64x2xf32>
    %c2_954 = arith.constant 2 : index
    %c4_955 = arith.constant 4 : index
    %1173 = memref.load %arg2[%c2_954, %c4_955] : memref<3x9xf32, #tpu.memory_space<smem>>
    %1174 = vector.broadcast %1173 : f32 to vector<64x2xf32>
    %1175 = arith.mulf %1174, %1172 : vector<64x2xf32>
    %1176 = arith.addf %1170, %1175 : vector<64x2xf32>
    %c12_956 = arith.constant 12 : index
    %c0_957 = arith.constant 0 : index
    %c0_958 = arith.constant 0 : index
    %1177 = vector.load %arg1[%c12_956, %c0_957, %c0_958] : memref<25x64x2xf32, #tpu.memory_space<vmem>>, vector<1x64x2xf32>
    %1178 = vector.shape_cast %1177 : vector<1x64x2xf32> to vector<64x2xf32>
    %c2_959 = arith.constant 2 : index
    %c5_960 = arith.constant 5 : index
    %1179 = memref.load %arg2[%c2_959, %c5_960] : memref<3x9xf32, #tpu.memory_space<smem>>
    %1180 = vector.broadcast %1179 : f32 to vector<64x2xf32>
    %1181 = arith.mulf %1180, %1178 : vector<64x2xf32>
    %1182 = arith.addf %1176, %1181 : vector<64x2xf32>
    %c15_961 = arith.constant 15 : index
    %c0_962 = arith.constant 0 : index
    %c0_963 = arith.constant 0 : index
    %1183 = vector.load %arg1[%c15_961, %c0_962, %c0_963] : memref<25x64x2xf32, #tpu.memory_space<vmem>>, vector<1x64x2xf32>
    %1184 = vector.shape_cast %1183 : vector<1x64x2xf32> to vector<64x2xf32>
    %c2_964 = arith.constant 2 : index
    %c6_965 = arith.constant 6 : index
    %1185 = memref.load %arg2[%c2_964, %c6_965] : memref<3x9xf32, #tpu.memory_space<smem>>
    %1186 = vector.broadcast %1185 : f32 to vector<64x2xf32>
    %1187 = arith.mulf %1186, %1184 : vector<64x2xf32>
    %1188 = arith.addf %1182, %1187 : vector<64x2xf32>
    %c16_966 = arith.constant 16 : index
    %c0_967 = arith.constant 0 : index
    %c0_968 = arith.constant 0 : index
    %1189 = vector.load %arg1[%c16_966, %c0_967, %c0_968] : memref<25x64x2xf32, #tpu.memory_space<vmem>>, vector<1x64x2xf32>
    %1190 = vector.shape_cast %1189 : vector<1x64x2xf32> to vector<64x2xf32>
    %c2_969 = arith.constant 2 : index
    %c7_970 = arith.constant 7 : index
    %1191 = memref.load %arg2[%c2_969, %c7_970] : memref<3x9xf32, #tpu.memory_space<smem>>
    %1192 = vector.broadcast %1191 : f32 to vector<64x2xf32>
    %1193 = arith.mulf %1192, %1190 : vector<64x2xf32>
    %1194 = arith.addf %1188, %1193 : vector<64x2xf32>
    %c17_971 = arith.constant 17 : index
    %c0_972 = arith.constant 0 : index
    %c0_973 = arith.constant 0 : index
    %1195 = vector.load %arg1[%c17_971, %c0_972, %c0_973] : memref<25x64x2xf32, #tpu.memory_space<vmem>>, vector<1x64x2xf32>
    %1196 = vector.shape_cast %1195 : vector<1x64x2xf32> to vector<64x2xf32>
    %c2_974 = arith.constant 2 : index
    %c8_975 = arith.constant 8 : index
    %1197 = memref.load %arg2[%c2_974, %c8_975] : memref<3x9xf32, #tpu.memory_space<smem>>
    %1198 = vector.broadcast %1197 : f32 to vector<64x2xf32>
    %1199 = arith.mulf %1198, %1196 : vector<64x2xf32>
    %1200 = arith.addf %1194, %1199 : vector<64x2xf32>
    %1201 = arith.maximumf %1147, %1200 : vector<64x2xf32>
    %c6_976 = arith.constant 6 : index
    %c0_977 = arith.constant 0 : index
    %c0_978 = arith.constant 0 : index
    %1202 = vector.load %arg1[%c6_976, %c0_977, %c0_978] : memref<25x64x2xf32, #tpu.memory_space<vmem>>, vector<1x64x2xf32>
    %1203 = vector.shape_cast %1202 : vector<1x64x2xf32> to vector<64x2xf32>
    %c2_979 = arith.constant 2 : index
    %c0_980 = arith.constant 0 : index
    %1204 = memref.load %arg2[%c2_979, %c0_980] : memref<3x9xf32, #tpu.memory_space<smem>>
    %1205 = vector.broadcast %1204 : f32 to vector<64x2xf32>
    %1206 = arith.mulf %1205, %1203 : vector<64x2xf32>
    %c7_981 = arith.constant 7 : index
    %c0_982 = arith.constant 0 : index
    %c0_983 = arith.constant 0 : index
    %1207 = vector.load %arg1[%c7_981, %c0_982, %c0_983] : memref<25x64x2xf32, #tpu.memory_space<vmem>>, vector<1x64x2xf32>
    %1208 = vector.shape_cast %1207 : vector<1x64x2xf32> to vector<64x2xf32>
    %c2_984 = arith.constant 2 : index
    %c1_985 = arith.constant 1 : index
    %1209 = memref.load %arg2[%c2_984, %c1_985] : memref<3x9xf32, #tpu.memory_space<smem>>
    %1210 = vector.broadcast %1209 : f32 to vector<64x2xf32>
    %1211 = arith.mulf %1210, %1208 : vector<64x2xf32>
    %1212 = arith.addf %1206, %1211 : vector<64x2xf32>
    %c8_986 = arith.constant 8 : index
    %c0_987 = arith.constant 0 : index
    %c0_988 = arith.constant 0 : index
    %1213 = vector.load %arg1[%c8_986, %c0_987, %c0_988] : memref<25x64x2xf32, #tpu.memory_space<vmem>>, vector<1x64x2xf32>
    %1214 = vector.shape_cast %1213 : vector<1x64x2xf32> to vector<64x2xf32>
    %c2_989 = arith.constant 2 : index
    %c2_990 = arith.constant 2 : index
    %1215 = memref.load %arg2[%c2_989, %c2_990] : memref<3x9xf32, #tpu.memory_space<smem>>
    %1216 = vector.broadcast %1215 : f32 to vector<64x2xf32>
    %1217 = arith.mulf %1216, %1214 : vector<64x2xf32>
    %1218 = arith.addf %1212, %1217 : vector<64x2xf32>
    %c11_991 = arith.constant 11 : index
    %c0_992 = arith.constant 0 : index
    %c0_993 = arith.constant 0 : index
    %1219 = vector.load %arg1[%c11_991, %c0_992, %c0_993] : memref<25x64x2xf32, #tpu.memory_space<vmem>>, vector<1x64x2xf32>
    %1220 = vector.shape_cast %1219 : vector<1x64x2xf32> to vector<64x2xf32>
    %c2_994 = arith.constant 2 : index
    %c3_995 = arith.constant 3 : index
    %1221 = memref.load %arg2[%c2_994, %c3_995] : memref<3x9xf32, #tpu.memory_space<smem>>
    %1222 = vector.broadcast %1221 : f32 to vector<64x2xf32>
    %1223 = arith.mulf %1222, %1220 : vector<64x2xf32>
    %1224 = arith.addf %1218, %1223 : vector<64x2xf32>
    %c12_996 = arith.constant 12 : index
    %c0_997 = arith.constant 0 : index
    %c0_998 = arith.constant 0 : index
    %1225 = vector.load %arg1[%c12_996, %c0_997, %c0_998] : memref<25x64x2xf32, #tpu.memory_space<vmem>>, vector<1x64x2xf32>
    %1226 = vector.shape_cast %1225 : vector<1x64x2xf32> to vector<64x2xf32>
    %c2_999 = arith.constant 2 : index
    %c4_1000 = arith.constant 4 : index
    %1227 = memref.load %arg2[%c2_999, %c4_1000] : memref<3x9xf32, #tpu.memory_space<smem>>
    %1228 = vector.broadcast %1227 : f32 to vector<64x2xf32>
    %1229 = arith.mulf %1228, %1226 : vector<64x2xf32>
    %1230 = arith.addf %1224, %1229 : vector<64x2xf32>
    %c13_1001 = arith.constant 13 : index
    %c0_1002 = arith.constant 0 : index
    %c0_1003 = arith.constant 0 : index
    %1231 = vector.load %arg1[%c13_1001, %c0_1002, %c0_1003] : memref<25x64x2xf32, #tpu.memory_space<vmem>>, vector<1x64x2xf32>
    %1232 = vector.shape_cast %1231 : vector<1x64x2xf32> to vector<64x2xf32>
    %c2_1004 = arith.constant 2 : index
    %c5_1005 = arith.constant 5 : index
    %1233 = memref.load %arg2[%c2_1004, %c5_1005] : memref<3x9xf32, #tpu.memory_space<smem>>
    %1234 = vector.broadcast %1233 : f32 to vector<64x2xf32>
    %1235 = arith.mulf %1234, %1232 : vector<64x2xf32>
    %1236 = arith.addf %1230, %1235 : vector<64x2xf32>
    %c16_1006 = arith.constant 16 : index
    %c0_1007 = arith.constant 0 : index
    %c0_1008 = arith.constant 0 : index
    %1237 = vector.load %arg1[%c16_1006, %c0_1007, %c0_1008] : memref<25x64x2xf32, #tpu.memory_space<vmem>>, vector<1x64x2xf32>
    %1238 = vector.shape_cast %1237 : vector<1x64x2xf32> to vector<64x2xf32>
    %c2_1009 = arith.constant 2 : index
    %c6_1010 = arith.constant 6 : index
    %1239 = memref.load %arg2[%c2_1009, %c6_1010] : memref<3x9xf32, #tpu.memory_space<smem>>
    %1240 = vector.broadcast %1239 : f32 to vector<64x2xf32>
    %1241 = arith.mulf %1240, %1238 : vector<64x2xf32>
    %1242 = arith.addf %1236, %1241 : vector<64x2xf32>
    %c17_1011 = arith.constant 17 : index
    %c0_1012 = arith.constant 0 : index
    %c0_1013 = arith.constant 0 : index
    %1243 = vector.load %arg1[%c17_1011, %c0_1012, %c0_1013] : memref<25x64x2xf32, #tpu.memory_space<vmem>>, vector<1x64x2xf32>
    %1244 = vector.shape_cast %1243 : vector<1x64x2xf32> to vector<64x2xf32>
    %c2_1014 = arith.constant 2 : index
    %c7_1015 = arith.constant 7 : index
    %1245 = memref.load %arg2[%c2_1014, %c7_1015] : memref<3x9xf32, #tpu.memory_space<smem>>
    %1246 = vector.broadcast %1245 : f32 to vector<64x2xf32>
    %1247 = arith.mulf %1246, %1244 : vector<64x2xf32>
    %1248 = arith.addf %1242, %1247 : vector<64x2xf32>
    %c18_1016 = arith.constant 18 : index
    %c0_1017 = arith.constant 0 : index
    %c0_1018 = arith.constant 0 : index
    %1249 = vector.load %arg1[%c18_1016, %c0_1017, %c0_1018] : memref<25x64x2xf32, #tpu.memory_space<vmem>>, vector<1x64x2xf32>
    %1250 = vector.shape_cast %1249 : vector<1x64x2xf32> to vector<64x2xf32>
    %c2_1019 = arith.constant 2 : index
    %c8_1020 = arith.constant 8 : index
    %1251 = memref.load %arg2[%c2_1019, %c8_1020] : memref<3x9xf32, #tpu.memory_space<smem>>
    %1252 = vector.broadcast %1251 : f32 to vector<64x2xf32>
    %1253 = arith.mulf %1252, %1250 : vector<64x2xf32>
    %1254 = arith.addf %1248, %1253 : vector<64x2xf32>
    %1255 = arith.maximumf %1201, %1254 : vector<64x2xf32>
    %c7_1021 = arith.constant 7 : index
    %c0_1022 = arith.constant 0 : index
    %c0_1023 = arith.constant 0 : index
    %1256 = vector.load %arg1[%c7_1021, %c0_1022, %c0_1023] : memref<25x64x2xf32, #tpu.memory_space<vmem>>, vector<1x64x2xf32>
    %1257 = vector.shape_cast %1256 : vector<1x64x2xf32> to vector<64x2xf32>
    %c2_1024 = arith.constant 2 : index
    %c0_1025 = arith.constant 0 : index
    %1258 = memref.load %arg2[%c2_1024, %c0_1025] : memref<3x9xf32, #tpu.memory_space<smem>>
    %1259 = vector.broadcast %1258 : f32 to vector<64x2xf32>
    %1260 = arith.mulf %1259, %1257 : vector<64x2xf32>
    %c8_1026 = arith.constant 8 : index
    %c0_1027 = arith.constant 0 : index
    %c0_1028 = arith.constant 0 : index
    %1261 = vector.load %arg1[%c8_1026, %c0_1027, %c0_1028] : memref<25x64x2xf32, #tpu.memory_space<vmem>>, vector<1x64x2xf32>
    %1262 = vector.shape_cast %1261 : vector<1x64x2xf32> to vector<64x2xf32>
    %c2_1029 = arith.constant 2 : index
    %c1_1030 = arith.constant 1 : index
    %1263 = memref.load %arg2[%c2_1029, %c1_1030] : memref<3x9xf32, #tpu.memory_space<smem>>
    %1264 = vector.broadcast %1263 : f32 to vector<64x2xf32>
    %1265 = arith.mulf %1264, %1262 : vector<64x2xf32>
    %1266 = arith.addf %1260, %1265 : vector<64x2xf32>
    %c9_1031 = arith.constant 9 : index
    %c0_1032 = arith.constant 0 : index
    %c0_1033 = arith.constant 0 : index
    %1267 = vector.load %arg1[%c9_1031, %c0_1032, %c0_1033] : memref<25x64x2xf32, #tpu.memory_space<vmem>>, vector<1x64x2xf32>
    %1268 = vector.shape_cast %1267 : vector<1x64x2xf32> to vector<64x2xf32>
    %c2_1034 = arith.constant 2 : index
    %c2_1035 = arith.constant 2 : index
    %1269 = memref.load %arg2[%c2_1034, %c2_1035] : memref<3x9xf32, #tpu.memory_space<smem>>
    %1270 = vector.broadcast %1269 : f32 to vector<64x2xf32>
    %1271 = arith.mulf %1270, %1268 : vector<64x2xf32>
    %1272 = arith.addf %1266, %1271 : vector<64x2xf32>
    %c12_1036 = arith.constant 12 : index
    %c0_1037 = arith.constant 0 : index
    %c0_1038 = arith.constant 0 : index
    %1273 = vector.load %arg1[%c12_1036, %c0_1037, %c0_1038] : memref<25x64x2xf32, #tpu.memory_space<vmem>>, vector<1x64x2xf32>
    %1274 = vector.shape_cast %1273 : vector<1x64x2xf32> to vector<64x2xf32>
    %c2_1039 = arith.constant 2 : index
    %c3_1040 = arith.constant 3 : index
    %1275 = memref.load %arg2[%c2_1039, %c3_1040] : memref<3x9xf32, #tpu.memory_space<smem>>
    %1276 = vector.broadcast %1275 : f32 to vector<64x2xf32>
    %1277 = arith.mulf %1276, %1274 : vector<64x2xf32>
    %1278 = arith.addf %1272, %1277 : vector<64x2xf32>
    %c13_1041 = arith.constant 13 : index
    %c0_1042 = arith.constant 0 : index
    %c0_1043 = arith.constant 0 : index
    %1279 = vector.load %arg1[%c13_1041, %c0_1042, %c0_1043] : memref<25x64x2xf32, #tpu.memory_space<vmem>>, vector<1x64x2xf32>
    %1280 = vector.shape_cast %1279 : vector<1x64x2xf32> to vector<64x2xf32>
    %c2_1044 = arith.constant 2 : index
    %c4_1045 = arith.constant 4 : index
    %1281 = memref.load %arg2[%c2_1044, %c4_1045] : memref<3x9xf32, #tpu.memory_space<smem>>
    %1282 = vector.broadcast %1281 : f32 to vector<64x2xf32>
    %1283 = arith.mulf %1282, %1280 : vector<64x2xf32>
    %1284 = arith.addf %1278, %1283 : vector<64x2xf32>
    %c14_1046 = arith.constant 14 : index
    %c0_1047 = arith.constant 0 : index
    %c0_1048 = arith.constant 0 : index
    %1285 = vector.load %arg1[%c14_1046, %c0_1047, %c0_1048] : memref<25x64x2xf32, #tpu.memory_space<vmem>>, vector<1x64x2xf32>
    %1286 = vector.shape_cast %1285 : vector<1x64x2xf32> to vector<64x2xf32>
    %c2_1049 = arith.constant 2 : index
    %c5_1050 = arith.constant 5 : index
    %1287 = memref.load %arg2[%c2_1049, %c5_1050] : memref<3x9xf32, #tpu.memory_space<smem>>
    %1288 = vector.broadcast %1287 : f32 to vector<64x2xf32>
    %1289 = arith.mulf %1288, %1286 : vector<64x2xf32>
    %1290 = arith.addf %1284, %1289 : vector<64x2xf32>
    %c17_1051 = arith.constant 17 : index
    %c0_1052 = arith.constant 0 : index
    %c0_1053 = arith.constant 0 : index
    %1291 = vector.load %arg1[%c17_1051, %c0_1052, %c0_1053] : memref<25x64x2xf32, #tpu.memory_space<vmem>>, vector<1x64x2xf32>
    %1292 = vector.shape_cast %1291 : vector<1x64x2xf32> to vector<64x2xf32>
    %c2_1054 = arith.constant 2 : index
    %c6_1055 = arith.constant 6 : index
    %1293 = memref.load %arg2[%c2_1054, %c6_1055] : memref<3x9xf32, #tpu.memory_space<smem>>
    %1294 = vector.broadcast %1293 : f32 to vector<64x2xf32>
    %1295 = arith.mulf %1294, %1292 : vector<64x2xf32>
    %1296 = arith.addf %1290, %1295 : vector<64x2xf32>
    %c18_1056 = arith.constant 18 : index
    %c0_1057 = arith.constant 0 : index
    %c0_1058 = arith.constant 0 : index
    %1297 = vector.load %arg1[%c18_1056, %c0_1057, %c0_1058] : memref<25x64x2xf32, #tpu.memory_space<vmem>>, vector<1x64x2xf32>
    %1298 = vector.shape_cast %1297 : vector<1x64x2xf32> to vector<64x2xf32>
    %c2_1059 = arith.constant 2 : index
    %c7_1060 = arith.constant 7 : index
    %1299 = memref.load %arg2[%c2_1059, %c7_1060] : memref<3x9xf32, #tpu.memory_space<smem>>
    %1300 = vector.broadcast %1299 : f32 to vector<64x2xf32>
    %1301 = arith.mulf %1300, %1298 : vector<64x2xf32>
    %1302 = arith.addf %1296, %1301 : vector<64x2xf32>
    %c19_1061 = arith.constant 19 : index
    %c0_1062 = arith.constant 0 : index
    %c0_1063 = arith.constant 0 : index
    %1303 = vector.load %arg1[%c19_1061, %c0_1062, %c0_1063] : memref<25x64x2xf32, #tpu.memory_space<vmem>>, vector<1x64x2xf32>
    %1304 = vector.shape_cast %1303 : vector<1x64x2xf32> to vector<64x2xf32>
    %c2_1064 = arith.constant 2 : index
    %c8_1065 = arith.constant 8 : index
    %1305 = memref.load %arg2[%c2_1064, %c8_1065] : memref<3x9xf32, #tpu.memory_space<smem>>
    %1306 = vector.broadcast %1305 : f32 to vector<64x2xf32>
    %1307 = arith.mulf %1306, %1304 : vector<64x2xf32>
    %1308 = arith.addf %1302, %1307 : vector<64x2xf32>
    %1309 = arith.maximumf %1255, %1308 : vector<64x2xf32>
    %c10_1066 = arith.constant 10 : index
    %c0_1067 = arith.constant 0 : index
    %c0_1068 = arith.constant 0 : index
    %1310 = vector.load %arg1[%c10_1066, %c0_1067, %c0_1068] : memref<25x64x2xf32, #tpu.memory_space<vmem>>, vector<1x64x2xf32>
    %1311 = vector.shape_cast %1310 : vector<1x64x2xf32> to vector<64x2xf32>
    %c2_1069 = arith.constant 2 : index
    %c0_1070 = arith.constant 0 : index
    %1312 = memref.load %arg2[%c2_1069, %c0_1070] : memref<3x9xf32, #tpu.memory_space<smem>>
    %1313 = vector.broadcast %1312 : f32 to vector<64x2xf32>
    %1314 = arith.mulf %1313, %1311 : vector<64x2xf32>
    %c11_1071 = arith.constant 11 : index
    %c0_1072 = arith.constant 0 : index
    %c0_1073 = arith.constant 0 : index
    %1315 = vector.load %arg1[%c11_1071, %c0_1072, %c0_1073] : memref<25x64x2xf32, #tpu.memory_space<vmem>>, vector<1x64x2xf32>
    %1316 = vector.shape_cast %1315 : vector<1x64x2xf32> to vector<64x2xf32>
    %c2_1074 = arith.constant 2 : index
    %c1_1075 = arith.constant 1 : index
    %1317 = memref.load %arg2[%c2_1074, %c1_1075] : memref<3x9xf32, #tpu.memory_space<smem>>
    %1318 = vector.broadcast %1317 : f32 to vector<64x2xf32>
    %1319 = arith.mulf %1318, %1316 : vector<64x2xf32>
    %1320 = arith.addf %1314, %1319 : vector<64x2xf32>
    %c12_1076 = arith.constant 12 : index
    %c0_1077 = arith.constant 0 : index
    %c0_1078 = arith.constant 0 : index
    %1321 = vector.load %arg1[%c12_1076, %c0_1077, %c0_1078] : memref<25x64x2xf32, #tpu.memory_space<vmem>>, vector<1x64x2xf32>
    %1322 = vector.shape_cast %1321 : vector<1x64x2xf32> to vector<64x2xf32>
    %c2_1079 = arith.constant 2 : index
    %c2_1080 = arith.constant 2 : index
    %1323 = memref.load %arg2[%c2_1079, %c2_1080] : memref<3x9xf32, #tpu.memory_space<smem>>
    %1324 = vector.broadcast %1323 : f32 to vector<64x2xf32>
    %1325 = arith.mulf %1324, %1322 : vector<64x2xf32>
    %1326 = arith.addf %1320, %1325 : vector<64x2xf32>
    %c15_1081 = arith.constant 15 : index
    %c0_1082 = arith.constant 0 : index
    %c0_1083 = arith.constant 0 : index
    %1327 = vector.load %arg1[%c15_1081, %c0_1082, %c0_1083] : memref<25x64x2xf32, #tpu.memory_space<vmem>>, vector<1x64x2xf32>
    %1328 = vector.shape_cast %1327 : vector<1x64x2xf32> to vector<64x2xf32>
    %c2_1084 = arith.constant 2 : index
    %c3_1085 = arith.constant 3 : index
    %1329 = memref.load %arg2[%c2_1084, %c3_1085] : memref<3x9xf32, #tpu.memory_space<smem>>
    %1330 = vector.broadcast %1329 : f32 to vector<64x2xf32>
    %1331 = arith.mulf %1330, %1328 : vector<64x2xf32>
    %1332 = arith.addf %1326, %1331 : vector<64x2xf32>
    %c16_1086 = arith.constant 16 : index
    %c0_1087 = arith.constant 0 : index
    %c0_1088 = arith.constant 0 : index
    %1333 = vector.load %arg1[%c16_1086, %c0_1087, %c0_1088] : memref<25x64x2xf32, #tpu.memory_space<vmem>>, vector<1x64x2xf32>
    %1334 = vector.shape_cast %1333 : vector<1x64x2xf32> to vector<64x2xf32>
    %c2_1089 = arith.constant 2 : index
    %c4_1090 = arith.constant 4 : index
    %1335 = memref.load %arg2[%c2_1089, %c4_1090] : memref<3x9xf32, #tpu.memory_space<smem>>
    %1336 = vector.broadcast %1335 : f32 to vector<64x2xf32>
    %1337 = arith.mulf %1336, %1334 : vector<64x2xf32>
    %1338 = arith.addf %1332, %1337 : vector<64x2xf32>
    %c17_1091 = arith.constant 17 : index
    %c0_1092 = arith.constant 0 : index
    %c0_1093 = arith.constant 0 : index
    %1339 = vector.load %arg1[%c17_1091, %c0_1092, %c0_1093] : memref<25x64x2xf32, #tpu.memory_space<vmem>>, vector<1x64x2xf32>
    %1340 = vector.shape_cast %1339 : vector<1x64x2xf32> to vector<64x2xf32>
    %c2_1094 = arith.constant 2 : index
    %c5_1095 = arith.constant 5 : index
    %1341 = memref.load %arg2[%c2_1094, %c5_1095] : memref<3x9xf32, #tpu.memory_space<smem>>
    %1342 = vector.broadcast %1341 : f32 to vector<64x2xf32>
    %1343 = arith.mulf %1342, %1340 : vector<64x2xf32>
    %1344 = arith.addf %1338, %1343 : vector<64x2xf32>
    %c20_1096 = arith.constant 20 : index
    %c0_1097 = arith.constant 0 : index
    %c0_1098 = arith.constant 0 : index
    %1345 = vector.load %arg1[%c20_1096, %c0_1097, %c0_1098] : memref<25x64x2xf32, #tpu.memory_space<vmem>>, vector<1x64x2xf32>
    %1346 = vector.shape_cast %1345 : vector<1x64x2xf32> to vector<64x2xf32>
    %c2_1099 = arith.constant 2 : index
    %c6_1100 = arith.constant 6 : index
    %1347 = memref.load %arg2[%c2_1099, %c6_1100] : memref<3x9xf32, #tpu.memory_space<smem>>
    %1348 = vector.broadcast %1347 : f32 to vector<64x2xf32>
    %1349 = arith.mulf %1348, %1346 : vector<64x2xf32>
    %1350 = arith.addf %1344, %1349 : vector<64x2xf32>
    %c21_1101 = arith.constant 21 : index
    %c0_1102 = arith.constant 0 : index
    %c0_1103 = arith.constant 0 : index
    %1351 = vector.load %arg1[%c21_1101, %c0_1102, %c0_1103] : memref<25x64x2xf32, #tpu.memory_space<vmem>>, vector<1x64x2xf32>
    %1352 = vector.shape_cast %1351 : vector<1x64x2xf32> to vector<64x2xf32>
    %c2_1104 = arith.constant 2 : index
    %c7_1105 = arith.constant 7 : index
    %1353 = memref.load %arg2[%c2_1104, %c7_1105] : memref<3x9xf32, #tpu.memory_space<smem>>
    %1354 = vector.broadcast %1353 : f32 to vector<64x2xf32>
    %1355 = arith.mulf %1354, %1352 : vector<64x2xf32>
    %1356 = arith.addf %1350, %1355 : vector<64x2xf32>
    %c22_1106 = arith.constant 22 : index
    %c0_1107 = arith.constant 0 : index
    %c0_1108 = arith.constant 0 : index
    %1357 = vector.load %arg1[%c22_1106, %c0_1107, %c0_1108] : memref<25x64x2xf32, #tpu.memory_space<vmem>>, vector<1x64x2xf32>
    %1358 = vector.shape_cast %1357 : vector<1x64x2xf32> to vector<64x2xf32>
    %c2_1109 = arith.constant 2 : index
    %c8_1110 = arith.constant 8 : index
    %1359 = memref.load %arg2[%c2_1109, %c8_1110] : memref<3x9xf32, #tpu.memory_space<smem>>
    %1360 = vector.broadcast %1359 : f32 to vector<64x2xf32>
    %1361 = arith.mulf %1360, %1358 : vector<64x2xf32>
    %1362 = arith.addf %1356, %1361 : vector<64x2xf32>
    %1363 = arith.maximumf %1309, %1362 : vector<64x2xf32>
    %c11_1111 = arith.constant 11 : index
    %c0_1112 = arith.constant 0 : index
    %c0_1113 = arith.constant 0 : index
    %1364 = vector.load %arg1[%c11_1111, %c0_1112, %c0_1113] : memref<25x64x2xf32, #tpu.memory_space<vmem>>, vector<1x64x2xf32>
    %1365 = vector.shape_cast %1364 : vector<1x64x2xf32> to vector<64x2xf32>
    %c2_1114 = arith.constant 2 : index
    %c0_1115 = arith.constant 0 : index
    %1366 = memref.load %arg2[%c2_1114, %c0_1115] : memref<3x9xf32, #tpu.memory_space<smem>>
    %1367 = vector.broadcast %1366 : f32 to vector<64x2xf32>
    %1368 = arith.mulf %1367, %1365 : vector<64x2xf32>
    %c12_1116 = arith.constant 12 : index
    %c0_1117 = arith.constant 0 : index
    %c0_1118 = arith.constant 0 : index
    %1369 = vector.load %arg1[%c12_1116, %c0_1117, %c0_1118] : memref<25x64x2xf32, #tpu.memory_space<vmem>>, vector<1x64x2xf32>
    %1370 = vector.shape_cast %1369 : vector<1x64x2xf32> to vector<64x2xf32>
    %c2_1119 = arith.constant 2 : index
    %c1_1120 = arith.constant 1 : index
    %1371 = memref.load %arg2[%c2_1119, %c1_1120] : memref<3x9xf32, #tpu.memory_space<smem>>
    %1372 = vector.broadcast %1371 : f32 to vector<64x2xf32>
    %1373 = arith.mulf %1372, %1370 : vector<64x2xf32>
    %1374 = arith.addf %1368, %1373 : vector<64x2xf32>
    %c13_1121 = arith.constant 13 : index
    %c0_1122 = arith.constant 0 : index
    %c0_1123 = arith.constant 0 : index
    %1375 = vector.load %arg1[%c13_1121, %c0_1122, %c0_1123] : memref<25x64x2xf32, #tpu.memory_space<vmem>>, vector<1x64x2xf32>
    %1376 = vector.shape_cast %1375 : vector<1x64x2xf32> to vector<64x2xf32>
    %c2_1124 = arith.constant 2 : index
    %c2_1125 = arith.constant 2 : index
    %1377 = memref.load %arg2[%c2_1124, %c2_1125] : memref<3x9xf32, #tpu.memory_space<smem>>
    %1378 = vector.broadcast %1377 : f32 to vector<64x2xf32>
    %1379 = arith.mulf %1378, %1376 : vector<64x2xf32>
    %1380 = arith.addf %1374, %1379 : vector<64x2xf32>
    %c16_1126 = arith.constant 16 : index
    %c0_1127 = arith.constant 0 : index
    %c0_1128 = arith.constant 0 : index
    %1381 = vector.load %arg1[%c16_1126, %c0_1127, %c0_1128] : memref<25x64x2xf32, #tpu.memory_space<vmem>>, vector<1x64x2xf32>
    %1382 = vector.shape_cast %1381 : vector<1x64x2xf32> to vector<64x2xf32>
    %c2_1129 = arith.constant 2 : index
    %c3_1130 = arith.constant 3 : index
    %1383 = memref.load %arg2[%c2_1129, %c3_1130] : memref<3x9xf32, #tpu.memory_space<smem>>
    %1384 = vector.broadcast %1383 : f32 to vector<64x2xf32>
    %1385 = arith.mulf %1384, %1382 : vector<64x2xf32>
    %1386 = arith.addf %1380, %1385 : vector<64x2xf32>
    %c17_1131 = arith.constant 17 : index
    %c0_1132 = arith.constant 0 : index
    %c0_1133 = arith.constant 0 : index
    %1387 = vector.load %arg1[%c17_1131, %c0_1132, %c0_1133] : memref<25x64x2xf32, #tpu.memory_space<vmem>>, vector<1x64x2xf32>
    %1388 = vector.shape_cast %1387 : vector<1x64x2xf32> to vector<64x2xf32>
    %c2_1134 = arith.constant 2 : index
    %c4_1135 = arith.constant 4 : index
    %1389 = memref.load %arg2[%c2_1134, %c4_1135] : memref<3x9xf32, #tpu.memory_space<smem>>
    %1390 = vector.broadcast %1389 : f32 to vector<64x2xf32>
    %1391 = arith.mulf %1390, %1388 : vector<64x2xf32>
    %1392 = arith.addf %1386, %1391 : vector<64x2xf32>
    %c18_1136 = arith.constant 18 : index
    %c0_1137 = arith.constant 0 : index
    %c0_1138 = arith.constant 0 : index
    %1393 = vector.load %arg1[%c18_1136, %c0_1137, %c0_1138] : memref<25x64x2xf32, #tpu.memory_space<vmem>>, vector<1x64x2xf32>
    %1394 = vector.shape_cast %1393 : vector<1x64x2xf32> to vector<64x2xf32>
    %c2_1139 = arith.constant 2 : index
    %c5_1140 = arith.constant 5 : index
    %1395 = memref.load %arg2[%c2_1139, %c5_1140] : memref<3x9xf32, #tpu.memory_space<smem>>
    %1396 = vector.broadcast %1395 : f32 to vector<64x2xf32>
    %1397 = arith.mulf %1396, %1394 : vector<64x2xf32>
    %1398 = arith.addf %1392, %1397 : vector<64x2xf32>
    %c21_1141 = arith.constant 21 : index
    %c0_1142 = arith.constant 0 : index
    %c0_1143 = arith.constant 0 : index
    %1399 = vector.load %arg1[%c21_1141, %c0_1142, %c0_1143] : memref<25x64x2xf32, #tpu.memory_space<vmem>>, vector<1x64x2xf32>
    %1400 = vector.shape_cast %1399 : vector<1x64x2xf32> to vector<64x2xf32>
    %c2_1144 = arith.constant 2 : index
    %c6_1145 = arith.constant 6 : index
    %1401 = memref.load %arg2[%c2_1144, %c6_1145] : memref<3x9xf32, #tpu.memory_space<smem>>
    %1402 = vector.broadcast %1401 : f32 to vector<64x2xf32>
    %1403 = arith.mulf %1402, %1400 : vector<64x2xf32>
    %1404 = arith.addf %1398, %1403 : vector<64x2xf32>
    %c22_1146 = arith.constant 22 : index
    %c0_1147 = arith.constant 0 : index
    %c0_1148 = arith.constant 0 : index
    %1405 = vector.load %arg1[%c22_1146, %c0_1147, %c0_1148] : memref<25x64x2xf32, #tpu.memory_space<vmem>>, vector<1x64x2xf32>
    %1406 = vector.shape_cast %1405 : vector<1x64x2xf32> to vector<64x2xf32>
    %c2_1149 = arith.constant 2 : index
    %c7_1150 = arith.constant 7 : index
    %1407 = memref.load %arg2[%c2_1149, %c7_1150] : memref<3x9xf32, #tpu.memory_space<smem>>
    %1408 = vector.broadcast %1407 : f32 to vector<64x2xf32>
    %1409 = arith.mulf %1408, %1406 : vector<64x2xf32>
    %1410 = arith.addf %1404, %1409 : vector<64x2xf32>
    %c23_1151 = arith.constant 23 : index
    %c0_1152 = arith.constant 0 : index
    %c0_1153 = arith.constant 0 : index
    %1411 = vector.load %arg1[%c23_1151, %c0_1152, %c0_1153] : memref<25x64x2xf32, #tpu.memory_space<vmem>>, vector<1x64x2xf32>
    %1412 = vector.shape_cast %1411 : vector<1x64x2xf32> to vector<64x2xf32>
    %c2_1154 = arith.constant 2 : index
    %c8_1155 = arith.constant 8 : index
    %1413 = memref.load %arg2[%c2_1154, %c8_1155] : memref<3x9xf32, #tpu.memory_space<smem>>
    %1414 = vector.broadcast %1413 : f32 to vector<64x2xf32>
    %1415 = arith.mulf %1414, %1412 : vector<64x2xf32>
    %1416 = arith.addf %1410, %1415 : vector<64x2xf32>
    %1417 = arith.maximumf %1363, %1416 : vector<64x2xf32>
    %c12_1156 = arith.constant 12 : index
    %c0_1157 = arith.constant 0 : index
    %c0_1158 = arith.constant 0 : index
    %1418 = vector.load %arg1[%c12_1156, %c0_1157, %c0_1158] : memref<25x64x2xf32, #tpu.memory_space<vmem>>, vector<1x64x2xf32>
    %1419 = vector.shape_cast %1418 : vector<1x64x2xf32> to vector<64x2xf32>
    %c2_1159 = arith.constant 2 : index
    %c0_1160 = arith.constant 0 : index
    %1420 = memref.load %arg2[%c2_1159, %c0_1160] : memref<3x9xf32, #tpu.memory_space<smem>>
    %1421 = vector.broadcast %1420 : f32 to vector<64x2xf32>
    %1422 = arith.mulf %1421, %1419 : vector<64x2xf32>
    %c13_1161 = arith.constant 13 : index
    %c0_1162 = arith.constant 0 : index
    %c0_1163 = arith.constant 0 : index
    %1423 = vector.load %arg1[%c13_1161, %c0_1162, %c0_1163] : memref<25x64x2xf32, #tpu.memory_space<vmem>>, vector<1x64x2xf32>
    %1424 = vector.shape_cast %1423 : vector<1x64x2xf32> to vector<64x2xf32>
    %c2_1164 = arith.constant 2 : index
    %c1_1165 = arith.constant 1 : index
    %1425 = memref.load %arg2[%c2_1164, %c1_1165] : memref<3x9xf32, #tpu.memory_space<smem>>
    %1426 = vector.broadcast %1425 : f32 to vector<64x2xf32>
    %1427 = arith.mulf %1426, %1424 : vector<64x2xf32>
    %1428 = arith.addf %1422, %1427 : vector<64x2xf32>
    %c14_1166 = arith.constant 14 : index
    %c0_1167 = arith.constant 0 : index
    %c0_1168 = arith.constant 0 : index
    %1429 = vector.load %arg1[%c14_1166, %c0_1167, %c0_1168] : memref<25x64x2xf32, #tpu.memory_space<vmem>>, vector<1x64x2xf32>
    %1430 = vector.shape_cast %1429 : vector<1x64x2xf32> to vector<64x2xf32>
    %c2_1169 = arith.constant 2 : index
    %c2_1170 = arith.constant 2 : index
    %1431 = memref.load %arg2[%c2_1169, %c2_1170] : memref<3x9xf32, #tpu.memory_space<smem>>
    %1432 = vector.broadcast %1431 : f32 to vector<64x2xf32>
    %1433 = arith.mulf %1432, %1430 : vector<64x2xf32>
    %1434 = arith.addf %1428, %1433 : vector<64x2xf32>
    %c17_1171 = arith.constant 17 : index
    %c0_1172 = arith.constant 0 : index
    %c0_1173 = arith.constant 0 : index
    %1435 = vector.load %arg1[%c17_1171, %c0_1172, %c0_1173] : memref<25x64x2xf32, #tpu.memory_space<vmem>>, vector<1x64x2xf32>
    %1436 = vector.shape_cast %1435 : vector<1x64x2xf32> to vector<64x2xf32>
    %c2_1174 = arith.constant 2 : index
    %c3_1175 = arith.constant 3 : index
    %1437 = memref.load %arg2[%c2_1174, %c3_1175] : memref<3x9xf32, #tpu.memory_space<smem>>
    %1438 = vector.broadcast %1437 : f32 to vector<64x2xf32>
    %1439 = arith.mulf %1438, %1436 : vector<64x2xf32>
    %1440 = arith.addf %1434, %1439 : vector<64x2xf32>
    %c18_1176 = arith.constant 18 : index
    %c0_1177 = arith.constant 0 : index
    %c0_1178 = arith.constant 0 : index
    %1441 = vector.load %arg1[%c18_1176, %c0_1177, %c0_1178] : memref<25x64x2xf32, #tpu.memory_space<vmem>>, vector<1x64x2xf32>
    %1442 = vector.shape_cast %1441 : vector<1x64x2xf32> to vector<64x2xf32>
    %c2_1179 = arith.constant 2 : index
    %c4_1180 = arith.constant 4 : index
    %1443 = memref.load %arg2[%c2_1179, %c4_1180] : memref<3x9xf32, #tpu.memory_space<smem>>
    %1444 = vector.broadcast %1443 : f32 to vector<64x2xf32>
    %1445 = arith.mulf %1444, %1442 : vector<64x2xf32>
    %1446 = arith.addf %1440, %1445 : vector<64x2xf32>
    %c19_1181 = arith.constant 19 : index
    %c0_1182 = arith.constant 0 : index
    %c0_1183 = arith.constant 0 : index
    %1447 = vector.load %arg1[%c19_1181, %c0_1182, %c0_1183] : memref<25x64x2xf32, #tpu.memory_space<vmem>>, vector<1x64x2xf32>
    %1448 = vector.shape_cast %1447 : vector<1x64x2xf32> to vector<64x2xf32>
    %c2_1184 = arith.constant 2 : index
    %c5_1185 = arith.constant 5 : index
    %1449 = memref.load %arg2[%c2_1184, %c5_1185] : memref<3x9xf32, #tpu.memory_space<smem>>
    %1450 = vector.broadcast %1449 : f32 to vector<64x2xf32>
    %1451 = arith.mulf %1450, %1448 : vector<64x2xf32>
    %1452 = arith.addf %1446, %1451 : vector<64x2xf32>
    %c22_1186 = arith.constant 22 : index
    %c0_1187 = arith.constant 0 : index
    %c0_1188 = arith.constant 0 : index
    %1453 = vector.load %arg1[%c22_1186, %c0_1187, %c0_1188] : memref<25x64x2xf32, #tpu.memory_space<vmem>>, vector<1x64x2xf32>
    %1454 = vector.shape_cast %1453 : vector<1x64x2xf32> to vector<64x2xf32>
    %c2_1189 = arith.constant 2 : index
    %c6_1190 = arith.constant 6 : index
    %1455 = memref.load %arg2[%c2_1189, %c6_1190] : memref<3x9xf32, #tpu.memory_space<smem>>
    %1456 = vector.broadcast %1455 : f32 to vector<64x2xf32>
    %1457 = arith.mulf %1456, %1454 : vector<64x2xf32>
    %1458 = arith.addf %1452, %1457 : vector<64x2xf32>
    %c23_1191 = arith.constant 23 : index
    %c0_1192 = arith.constant 0 : index
    %c0_1193 = arith.constant 0 : index
    %1459 = vector.load %arg1[%c23_1191, %c0_1192, %c0_1193] : memref<25x64x2xf32, #tpu.memory_space<vmem>>, vector<1x64x2xf32>
    %1460 = vector.shape_cast %1459 : vector<1x64x2xf32> to vector<64x2xf32>
    %c2_1194 = arith.constant 2 : index
    %c7_1195 = arith.constant 7 : index
    %1461 = memref.load %arg2[%c2_1194, %c7_1195] : memref<3x9xf32, #tpu.memory_space<smem>>
    %1462 = vector.broadcast %1461 : f32 to vector<64x2xf32>
    %1463 = arith.mulf %1462, %1460 : vector<64x2xf32>
    %1464 = arith.addf %1458, %1463 : vector<64x2xf32>
    %c24_1196 = arith.constant 24 : index
    %c0_1197 = arith.constant 0 : index
    %c0_1198 = arith.constant 0 : index
    %1465 = vector.load %arg1[%c24_1196, %c0_1197, %c0_1198] : memref<25x64x2xf32, #tpu.memory_space<vmem>>, vector<1x64x2xf32>
    %1466 = vector.shape_cast %1465 : vector<1x64x2xf32> to vector<64x2xf32>
    %c2_1199 = arith.constant 2 : index
    %c8_1200 = arith.constant 8 : index
    %1467 = memref.load %arg2[%c2_1199, %c8_1200] : memref<3x9xf32, #tpu.memory_space<smem>>
    %1468 = vector.broadcast %1467 : f32 to vector<64x2xf32>
    %1469 = arith.mulf %1468, %1466 : vector<64x2xf32>
    %1470 = arith.addf %1464, %1469 : vector<64x2xf32>
    %1471 = arith.maximumf %1417, %1470 : vector<64x2xf32>
    %c2_1201 = arith.constant 2 : index
    %1472 = memref.load %arg3[%c2_1201] : memref<3xf32, #tpu.memory_space<smem>>
    %1473 = vector.broadcast %1472 : f32 to vector<64x2xf32>
    %1474 = arith.addf %1471, %1473 : vector<64x2xf32>
    %cst_1202 = arith.constant 0.000000e+00 : f32
    %1475 = vector.broadcast %cst_1202 : f32 to vector<64x2xf32>
    %1476 = arith.maximumf %1474, %1475 : vector<64x2xf32>
    %c2_1203 = arith.constant 2 : index
    %c0_1204 = arith.constant 0 : index
    %c0_1205 = arith.constant 0 : index
    %1477 = vector.load %arg4[%c2_1203, %c0_1204, %c0_1205] : memref<3x10x64xf32, #tpu.memory_space<vmem>>, vector<1x10x64xf32>
    %1478 = vector.shape_cast %1477 : vector<1x10x64xf32> to vector<10x64xf32>
    %cst_1206 = arith.constant dense<0.000000e+00> : vector<10x2xf32>
    %1479 = tpu.matmul %1478, %1476, %cst_1206 {dimension_numbers = #tpu.dot_dimension_numbers<[1], [0], [0], [1], [0, 0, 1, 1], [], []>} : vector<10x64xf32>, vector<64x2xf32>, vector<10x2xf32> -> vector<10x2xf32>
    %1480 = arith.addf %986, %1479 : vector<10x2xf32>
    %c0_1207 = arith.constant 0 : index
    %c0_1208 = arith.constant 0 : index
    %1481 = vector.load %arg5[%c0_1207, %c0_1208] : memref<10x1xf32, #tpu.memory_space<vmem>>, vector<10x1xf32>
    %1482 = vector.broadcast %1481 : vector<10x1xf32> to vector<10x2xf32>
    %1483 = arith.addf %1480, %1482 : vector<10x2xf32>
    %cst_1209 = arith.constant dense<0xFF800000> : vector<2xf32>
    %1484 = vector.multi_reduction <maximumf>, %1483, %cst_1209 [0] : vector<10x2xf32> to vector<2xf32>
    %1485 = vector.shape_cast %1484 : vector<2xf32> to vector<1x2xf32>
    %1486 = vector.broadcast %1485 : vector<1x2xf32> to vector<10x2xf32>
    %1487 = arith.subf %1483, %1486 : vector<10x2xf32>
    %1488 = math.exp %1487 : vector<10x2xf32>
    %cst_1210 = arith.constant dense<0.000000e+00> : vector<2xf32>
    %1489 = vector.multi_reduction <add>, %1488, %cst_1210 [0] : vector<10x2xf32> to vector<2xf32>
    %1490 = vector.shape_cast %1489 : vector<2xf32> to vector<1x2xf32>
    %1491 = math.log %1490 : vector<1x2xf32>
    %1492 = vector.broadcast %1491 : vector<1x2xf32> to vector<10x2xf32>
    %1493 = arith.subf %1487, %1492 : vector<10x2xf32>
    %c0_1211 = arith.constant 0 : index
    %c0_1212 = arith.constant 0 : index
    %1494 = vector.load %arg6[%c0_1211, %c0_1212] : memref<10x2xf32, #tpu.memory_space<vmem>>, vector<10x2xf32>
    tpu.vector_store %arg6[%c0_1211, %c0_1212], %1493 {strides = array<i32>} : memref<10x2xf32, #tpu.memory_space<vmem>>, vector<10x2xf32>,
    return
  }
  func.func @transform_0(%arg0: i32) -> (i32, i32, i32) {
    %c0_i32 = arith.constant 0 : i32
    %c0_i32_0 = arith.constant 0 : i32
    %c0_i32_1 = arith.constant 0 : i32
    return %c0_i32, %c0_i32_0, %arg0 : i32, i32, i32
  }
  func.func @transform_1(%arg0: i32) -> (i32, i32) {
    %c0_i32 = arith.constant 0 : i32
    %c0_i32_0 = arith.constant 0 : i32
    %c0_i32_1 = arith.constant 0 : i32
    return %c0_i32, %c0_i32_0 : i32, i32
  }
  func.func @transform_2(%arg0: i32) -> i32 {
    %c0_i32 = arith.constant 0 : i32
    %c0_i32_0 = arith.constant 0 : i32
    return %c0_i32 : i32
  }
  func.func @transform_3(%arg0: i32) -> (i32, i32, i32) {
    %c0_i32 = arith.constant 0 : i32
    %c0_i32_0 = arith.constant 0 : i32
    %c0_i32_1 = arith.constant 0 : i32
    %c0_i32_2 = arith.constant 0 : i32
    return %c0_i32, %c0_i32_0, %c0_i32_1 : i32, i32, i32
  }
  func.func @transform_4(%arg0: i32) -> (i32, i32) {
    %c0_i32 = arith.constant 0 : i32
    %c0_i32_0 = arith.constant 0 : i32
    %c0_i32_1 = arith.constant 0 : i32
    return %c0_i32, %c0_i32_0 : i32, i32
  }
  func.func @transform_5(%arg0: i32) -> (i32, i32) {
    %c0_i32 = arith.constant 0 : i32
    %c0_i32_0 = arith.constant 0 : i32
    return %c0_i32, %arg0 : i32, i32
  }
}

</mosaic_0001>

<llo_original>
// kernel: convnet_forward.1
$region0: #{convnet_forward.1}
  #allocation0 [shape = 'u32[]', space=smem, size = 0x4, offset = 0x4, fixed_abs, tag = 'smem constant byte address 0x4 - core index']
  #allocation1 [shape = 'u32[144,128]{1,0:T(1,128)}', space=vmem, size = 0x12000, scoped, tag = 'internal scratch']
  %s0 = inlined_call_operand.vmem [shape: f32[25,64,2], index: 0, kind: input, shape index: {}]
  %s1 = inlined_call_operand.vmem [shape: f32[3,9], index: 1, kind: input, shape index: {}]
  %s2 = inlined_call_operand.vmem [shape: f32[3], index: 2, kind: input, shape index: {}]
  %s3 = inlined_call_operand.vmem [shape: f32[3,10,64], index: 3, kind: input, shape index: {}]
  %s4 = inlined_call_operand.vmem [shape: f32[10,1], index: 4, kind: input, shape index: {}]
  %s5 = inlined_call_operand.vmem [shape: f32[10,2], index: 5, kind: output, shape index: {}]
  %s6 = sld [smem:[#allocation0]]
  $region38: #{convnet_forward.1} parent=0
    _
  %s8 = ssub.s32 1, %s6
  %s9 = scalar_select 0, %s8, %s6
  $region1: #{convnet_forward.1} parent=0
    #allocation2 [shape = 'u8[2048]{0}', space=smem, size = 0x800, scoped, tag = 'input window, operand 1, single buffered']
    #allocation3 [shape = 's32[1]{0}', space=sflag, size = 0x4, scoped, tag = 'scoped memory for convnet_forward.1']
    #allocation4 [shape = 'u8[512]{0}', space=smem, size = 0x200, scoped, tag = 'input window, operand 2, single buffered']
    #allocation5 [shape = 's32[1]{0}', space=sflag, size = 0x4, scoped, tag = 'scoped memory for convnet_forward.1']
    %10 = vsyncpa [#allocation3], 0
    %11 = vsyncpa [#allocation5], 0
    // Predicated region
    $region2: #{convnet_forward.1} parent=1 // pred_check
      _
    $region3: #{convnet_forward.1} parent=1 // pred_check_branch
      %13 = sbr.rel (0) target = $region5
    $region4: #{convnet_forward.1} parent=1 // pred_region
      _
    $region5: #{convnet_forward.1} parent=1 // pred_fallthru
      _
    // Predicated region
    $region6: #{convnet_forward.1} parent=1 // pred_check
      _
    $region7: #{convnet_forward.1} parent=1 // pred_check_branch
      %15 = sbr.rel (0) target = $region9
    $region8: #{convnet_forward.1} parent=1 // pred_region
      %s17 = ssub.s32 64, 64
      %18 = vsyncadd [#allocation3], %s17
      %s20 = sshll.u32 %s1, 4
      %s21 = int_to_ptr.vmem [resolvable:$true] %s20
      %23 = dma.vmem_to_smem %s21, 64, [#allocation2], [#allocation3]
    $region9: #{convnet_forward.1} parent=1 // pred_fallthru
      _
    // Predicated region
    $region10: #{convnet_forward.1} parent=1 // pred_check
      _
    $region11: #{convnet_forward.1} parent=1 // pred_check_branch
      %25 = sbr.rel (0) target = $region13
    $region12: #{convnet_forward.1} parent=1 // pred_region
      %s27 = ssub.s32 16, 16
      %28 = vsyncadd [#allocation5], %s27
      %s30 = sshll.u32 %s2, 4
      %s31 = int_to_ptr.vmem [resolvable:$true] %s30
      %33 = dma.vmem_to_smem %s31, 16, [#allocation4], [#allocation5]
    $region13: #{convnet_forward.1} parent=1 // pred_fallthru
      _
    // Predicated region
    $region14: #{convnet_forward.1} parent=1 // pred_check
      _
    $region15: #{convnet_forward.1} parent=1 // pred_check_branch
      %35 = sbr.rel (0) target = $region17
    $region16: #{convnet_forward.1} parent=1 // pred_region
      _
    $region17: #{convnet_forward.1} parent=1 // pred_fallthru
      _
    // Predicated region
    $region18: #{convnet_forward.1} parent=1 // pred_check
      _
    $region19: #{convnet_forward.1} parent=1 // pred_check_branch
      %37 = sbr.rel (0) target = $region21
    $region20: #{convnet_forward.1} parent=1 // pred_region
      _
    $region21: #{convnet_forward.1} parent=1 // pred_fallthru
      _
    // Predicated region
    $region22: #{convnet_forward.1} parent=1 // pred_check
      _
    $region23: #{convnet_forward.1} parent=1 // pred_check_branch
      %39 = sbr.rel (0) target = $region25
    $region24: #{convnet_forward.1} parent=1 // pred_region
      %40 = dma.done [#allocation3], 64
    $region25: #{convnet_forward.1} parent=1 // pred_fallthru
      _
    // Predicated region
    $region26: #{convnet_forward.1} parent=1 // pred_check
      _
    $region27: #{convnet_forward.1} parent=1 // pred_check_branch
      %42 = sbr.rel (0) target = $region29
    $region28: #{convnet_forward.1} parent=1 // pred_region
      %43 = dma.done [#allocation5], 16
    $region29: #{convnet_forward.1} parent=1 // pred_fallthru
      _
    %44 = sfence
    %v45 = vld [vmem:[%s0] sm:$0xff]
    %v46 = vld [vmem:[%s0 + $0x8] sm:$0xff]
    %v47 = vld [vmem:[%s0 + $0x10] sm:$0xff]
    %v48 = vld [vmem:[%s0 + $0x18] sm:$0xff]
    %v49 = vld [vmem:[%s0 + $0x20] sm:$0xff]
    %v50 = vld [vmem:[%s0 + $0x28] sm:$0xff]
    %v51 = vld [vmem:[%s0 + $0x30] sm:$0xff]
    %v52 = vld [vmem:[%s0 + $0x38] sm:$0xff]
    %s53 = sld [smem:[#allocation2]]
    %v54 = vstv %s53
    %v55 = vmul.f32 %v54, %v45
    %v56 = vmul.f32 %v54, %v46
    %v57 = vmul.f32 %v54, %v47
    %v58 = vmul.f32 %v54, %v48
    %v59 = vmul.f32 %v54, %v49
    %v60 = vmul.f32 %v54, %v50
    %v61 = vmul.f32 %v54, %v51
    %v62 = vmul.f32 %v54, %v52
    %s63 = scalar_lea.vmem %s0, 64
    %v64 = vld [vmem:[%s63] sm:$0xff]
    %v65 = vld [vmem:[%s63 + $0x8] sm:$0xff]
    %v66 = vld [vmem:[%s63 + $0x10] sm:$0xff]
    %v67 = vld [vmem:[%s63 + $0x18] sm:$0xff]
    %v68 = vld [vmem:[%s63 + $0x20] sm:$0xff]
    %v69 = vld [vmem:[%s63 + $0x28] sm:$0xff]
    %v70 = vld [vmem:[%s63 + $0x30] sm:$0xff]
    %v71 = vld [vmem:[%s63 + $0x38] sm:$0xff]
    %s72 = sld [smem:[#allocation2 + $0x1]]
    %v73 = vstv %s72
    %v74 = vmul.f32 %v73, %v64
    %v75 = vmul.f32 %v73, %v65
    %v76 = vmul.f32 %v73, %v66
    %v77 = vmul.f32 %v73, %v67
    %v78 = vmul.f32 %v73, %v68
    %v79 = vmul.f32 %v73, %v69
    %v80 = vmul.f32 %v73, %v70
    %v81 = vmul.f32 %v73, %v71
    %v82 = vadd.f32 %v55, %v74
    %v83 = vadd.f32 %v56, %v75
    %v84 = vadd.f32 %v57, %v76
    %v85 = vadd.f32 %v58, %v77
    %v86 = vadd.f32 %v59, %v78
    %v87 = vadd.f32 %v60, %v79
    %v88 = vadd.f32 %v61, %v80
    %v89 = vadd.f32 %v62, %v81
    %s90 = scalar_lea.vmem %s0, 128
    %v91 = vld [vmem:[%s90] sm:$0xff]
    %v92 = vld [vmem:[%s90 + $0x8] sm:$0xff]
    %v93 = vld [vmem:[%s90 + $0x10] sm:$0xff]
    %v94 = vld [vmem:[%s90 + $0x18] sm:$0xff]
    %v95 = vld [vmem:[%s90 + $0x20] sm:$0xff]
    %v96 = vld [vmem:[%s90 + $0x28] sm:$0xff]
    %v97 = vld [vmem:[%s90 + $0x30] sm:$0xff]
    %v98 = vld [vmem:[%s90 + $0x38] sm:$0xff]
    %s99 = sld [smem:[#allocation2 + $0x2]]
    %v100 = vstv %s99
    %v101 = vmul.f32 %v100, %v91
    %v102 = vmul.f32 %v100, %v92
    %v103 = vmul.f32 %v100, %v93
    %v104 = vmul.f32 %v100, %v94
    %v105 = vmul.f32 %v100, %v95
    %v106 = vmul.f32 %v100, %v96
    %v107 = vmul.f32 %v100, %v97
    %v108 = vmul.f32 %v100, %v98
    %v109 = vadd.f32 %v82, %v101
    %v110 = vadd.f32 %v83, %v102
    %v111 = vadd.f32 %v84, %v103
    %v112 = vadd.f32 %v85, %v104
    %v113 = vadd.f32 %v86, %v105
    %v114 = vadd.f32 %v87, %v106
    %v115 = vadd.f32 %v88, %v107
    %v116 = vadd.f32 %v89, %v108
    %s117 = scalar_lea.vmem %s0, 320
    %v118 = vld [vmem:[%s117] sm:$0xff]
    %v119 = vld [vmem:[%s117 + $0x8] sm:$0xff]
    %v120 = vld [vmem:[%s117 + $0x10] sm:$0xff]
    %v121 = vld [vmem:[%s117 + $0x18] sm:$0xff]
    %v122 = vld [vmem:[%s117 + $0x20] sm:$0xff]
    %v123 = vld [vmem:[%s117 + $0x28] sm:$0xff]
    %v124 = vld [vmem:[%s117 + $0x30] sm:$0xff]
    %v125 = vld [vmem:[%s117 + $0x38] sm:$0xff]
    %s126 = sld [smem:[#allocation2 + $0x3]]
    %v127 = vstv %s126
    %v128 = vmul.f32 %v127, %v118
    %v129 = vmul.f32 %v127, %v119
    %v130 = vmul.f32 %v127, %v120
    %v131 = vmul.f32 %v127, %v121
    %v132 = vmul.f32 %v127, %v122
    %v133 = vmul.f32 %v127, %v123
    %v134 = vmul.f32 %v127, %v124
    %v135 = vmul.f32 %v127, %v125
    %v136 = vadd.f32 %v109, %v128
    %v137 = vadd.f32 %v110, %v129
    %v138 = vadd.f32 %v111, %v130
    %v139 = vadd.f32 %v112, %v131
    %v140 = vadd.f32 %v113, %v132
    %v141 = vadd.f32 %v114, %v133
    %v142 = vadd.f32 %v115, %v134
    %v143 = vadd.f32 %v116, %v135
    %s144 = scalar_lea.vmem %s0, 384
    %v145 = vld [vmem:[%s144] sm:$0xff]
    %v146 = vld [vmem:[%s144 + $0x8] sm:$0xff]
    %v147 = vld [vmem:[%s144 + $0x10] sm:$0xff]
    %v148 = vld [vmem:[%s144 + $0x18] sm:$0xff]
    %v149 = vld [vmem:[%s144 + $0x20] sm:$0xff]
    %v150 = vld [vmem:[%s144 + $0x28] sm:$0xff]
    %v151 = vld [vmem:[%s144 + $0x30] sm:$0xff]
    %v152 = vld [vmem:[%s144 + $0x38] sm:$0xff]
    %s153 = sld [smem:[#allocation2 + $0x4]]
    %v154 = vstv %s153
    %v155 = vmul.f32 %v154, %v145
    %v156 = vmul.f32 %v154, %v146
    %v157 = vmul.f32 %v154, %v147
    %v158 = vmul.f32 %v154, %v148
    %v159 = vmul.f32 %v154, %v149
    %v160 = vmul.f32 %v154, %v150
    %v161 = vmul.f32 %v154, %v151
    %v162 = vmul.f32 %v154, %v152
    %v163 = vadd.f32 %v136, %v155
    %v164 = vadd.f32 %v137, %v156
    %v165 = vadd.f32 %v138, %v157
    %v166 = vadd.f32 %v139, %v158
    %v167 = vadd.f32 %v140, %v159
    %v168 = vadd.f32 %v141, %v160
    %v169 = vadd.f32 %v142, %v161
    %v170 = vadd.f32 %v143, %v162
    %s171 = scalar_lea.vmem %s0, 448
    %v172 = vld [vmem:[%s171] sm:$0xff]
    %v173 = vld [vmem:[%s171 + $0x8] sm:$0xff]
    %v174 = vld [vmem:[%s171 + $0x10] sm:$0xff]
    %v175 = vld [vmem:[%s171 + $0x18] sm:$0xff]
    %v176 = vld [vmem:[%s171 + $0x20] sm:$0xff]
    %v177 = vld [vmem:[%s171 + $0x28] sm:$0xff]
    %v178 = vld [vmem:[%s171 + $0x30] sm:$0xff]
    %v179 = vld [vmem:[%s171 + $0x38] sm:$0xff]
    %s180 = sld [smem:[#allocation2 + $0x5]]
    %v181 = vstv %s180
    %v182 = vmul.f32 %v181, %v172
    %v183 = vmul.f32 %v181, %v173
    %v184 = vmul.f32 %v181, %v174
    %v185 = vmul.f32 %v181, %v175
    %v186 = vmul.f32 %v181, %v176
    %v187 = vmul.f32 %v181, %v177
    %v188 = vmul.f32 %v181, %v178
    %v189 = vmul.f32 %v181, %v179
    %v190 = vadd.f32 %v163, %v182
    %v191 = vadd.f32 %v164, %v183
    %v192 = vadd.f32 %v165, %v184
    %v193 = vadd.f32 %v166, %v185
    %v194 = vadd.f32 %v167, %v186
    %v195 = vadd.f32 %v168, %v187
    %v196 = vadd.f32 %v169, %v188
    %v197 = vadd.f32 %v170, %v189
    %s198 = scalar_lea.vmem %s0, 640
    %v199 = vld [vmem:[%s198] sm:$0xff]
    %v200 = vld [vmem:[%s198 + $0x8] sm:$0xff]
    %v201 = vld [vmem:[%s198 + $0x10] sm:$0xff]
    %v202 = vld [vmem:[%s198 + $0x18] sm:$0xff]
    %v203 = vld [vmem:[%s198 + $0x20] sm:$0xff]
    %v204 = vld [vmem:[%s198 + $0x28] sm:$0xff]
    %v205 = vld [vmem:[%s198 + $0x30] sm:$0xff]
    %v206 = vld [vmem:[%s198 + $0x38] sm:$0xff]
    %s207 = sld [smem:[#allocation2 + $0x6]]
    %v208 = vstv %s207
    %v209 = vmul.f32 %v208, %v199
    %v210 = vmul.f32 %v208, %v200
    %v211 = vmul.f32 %v208, %v201
    %v212 = vmul.f32 %v208, %v202
    %v213 = vmul.f32 %v208, %v203
    %v214 = vmul.f32 %v208, %v204
    %v215 = vmul.f32 %v208, %v205
    %v216 = vmul.f32 %v208, %v206
    %v217 = vadd.f32 %v190, %v209
    %v218 = vadd.f32 %v191, %v210
    %v219 = vadd.f32 %v192, %v211
    %v220 = vadd.f32 %v193, %v212
    %v221 = vadd.f32 %v194, %v213
    %v222 = vadd.f32 %v195, %v214
    %v223 = vadd.f32 %v196, %v215
    %v224 = vadd.f32 %v197, %v216
    %s225 = scalar_lea.vmem %s0, 704
    %v226 = vld [vmem:[%s225] sm:$0xff]
    %v227 = vld [vmem:[%s225 + $0x8] sm:$0xff]
    %v228 = vld [vmem:[%s225 + $0x10] sm:$0xff]
    %v229 = vld [vmem:[%s225 + $0x18] sm:$0xff]
    %v230 = vld [vmem:[%s225 + $0x20] sm:$0xff]
    %v231 = vld [vmem:[%s225 + $0x28] sm:$0xff]
    %v232 = vld [vmem:[%s225 + $0x30] sm:$0xff]
    %v233 = vld [vmem:[%s225 + $0x38] sm:$0xff]
    %s234 = sld [smem:[#allocation2 + $0x7]]
    %v235 = vstv %s234
    %v236 = vmul.f32 %v235, %v226
    %v237 = vmul.f32 %v235, %v227
    %v238 = vmul.f32 %v235, %v228
    %v239 = vmul.f32 %v235, %v229
    %v240 = vmul.f32 %v235, %v230
    %v241 = vmul.f32 %v235, %v231
    %v242 = vmul.f32 %v235, %v232
    %v243 = vmul.f32 %v235, %v233
    %v244 = vadd.f32 %v217, %v236
    %v245 = vadd.f32 %v218, %v237
    %v246 = vadd.f32 %v219, %v238
    %v247 = vadd.f32 %v220, %v239
    %v248 = vadd.f32 %v221, %v240
    %v249 = vadd.f32 %v222, %v241
    %v250 = vadd.f32 %v223, %v242
    %v251 = vadd.f32 %v224, %v243
    %s252 = scalar_lea.vmem %s0, 768
    %v253 = vld [vmem:[%s252] sm:$0xff]
    %v254 = vld [vmem:[%s252 + $0x8] sm:$0xff]
    %v255 = vld [vmem:[%s252 + $0x10] sm:$0xff]
    %v256 = vld [vmem:[%s252 + $0x18] sm:$0xff]
    %v257 = vld [vmem:[%s252 + $0x20] sm:$0xff]
    %v258 = vld [vmem:[%s252 + $0x28] sm:$0xff]
    %v259 = vld [vmem:[%s252 + $0x30] sm:$0xff]
    %v260 = vld [vmem:[%s252 + $0x38] sm:$0xff]
    %s261 = sld [smem:[#allocation2 + $0x8]]
    %v262 = vstv %s261
    %v263 = vmul.f32 %v262, %v253
    %v264 = vmul.f32 %v262, %v254
    %v265 = vmul.f32 %v262, %v255
    %v266 = vmul.f32 %v262, %v256
    %v267 = vmul.f32 %v262, %v257
    %v268 = vmul.f32 %v262, %v258
    %v269 = vmul.f32 %v262, %v259
    %v270 = vmul.f32 %v262, %v260
    %v271 = vadd.f32 %v244, %v263
    %v272 = vadd.f32 %v245, %v264
    %v273 = vadd.f32 %v246, %v265
    %v274 = vadd.f32 %v247, %v266
    %v275 = vadd.f32 %v248, %v267
    %v276 = vadd.f32 %v249, %v268
    %v277 = vadd.f32 %v250, %v269
    %v278 = vadd.f32 %v251, %v270
    %v279 = vmul.f32 %v54, %v64
    %v280 = vmul.f32 %v54, %v65
    %v281 = vmul.f32 %v54, %v66
    %v282 = vmul.f32 %v54, %v67
    %v283 = vmul.f32 %v54, %v68
    %v284 = vmul.f32 %v54, %v69
    %v285 = vmul.f32 %v54, %v70
    %v286 = vmul.f32 %v54, %v71
    %v287 = vmul.f32 %v73, %v91
    %v288 = vmul.f32 %v73, %v92
    %v289 = vmul.f32 %v73, %v93
    %v290 = vmul.f32 %v73, %v94
    %v291 = vmul.f32 %v73, %v95
    %v292 = vmul.f32 %v73, %v96
    %v293 = vmul.f32 %v73, %v97
    %v294 = vmul.f32 %v73, %v98
    %v295 = vadd.f32 %v279, %v287
    %v296 = vadd.f32 %v280, %v288
    %v297 = vadd.f32 %v281, %v289
    %v298 = vadd.f32 %v282, %v290
    %v299 = vadd.f32 %v283, %v291
    %v300 = vadd.f32 %v284, %v292
    %v301 = vadd.f32 %v285, %v293
    %v302 = vadd.f32 %v286, %v294
    %s303 = scalar_lea.vmem %s0, 192
    %v304 = vld [vmem:[%s303] sm:$0xff]
    %v305 = vld [vmem:[%s303 + $0x8] sm:$0xff]
    %v306 = vld [vmem:[%s303 + $0x10] sm:$0xff]
    %v307 = vld [vmem:[%s303 + $0x18] sm:$0xff]
    %v308 = vld [vmem:[%s303 + $0x20] sm:$0xff]
    %v309 = vld [vmem:[%s303 + $0x28] sm:$0xff]
    %v310 = vld [vmem:[%s303 + $0x30] sm:$0xff]
    %v311 = vld [vmem:[%s303 + $0x38] sm:$0xff]
    %v312 = vmul.f32 %v100, %v304
    %v313 = vmul.f32 %v100, %v305
    %v314 = vmul.f32 %v100, %v306
    %v315 = vmul.f32 %v100, %v307
    %v316 = vmul.f32 %v100, %v308
    %v317 = vmul.f32 %v100, %v309
    %v318 = vmul.f32 %v100, %v310
    %v319 = vmul.f32 %v100, %v311
    %v320 = vadd.f32 %v295, %v312
    %v321 = vadd.f32 %v296, %v313
    %v322 = vadd.f32 %v297, %v314
    %v323 = vadd.f32 %v298, %v315
    %v324 = vadd.f32 %v299, %v316
    %v325 = vadd.f32 %v300, %v317
    %v326 = vadd.f32 %v301, %v318
    %v327 = vadd.f32 %v302, %v319
    %v328 = vmul.f32 %v127, %v145
    %v329 = vmul.f32 %v127, %v146
    %v330 = vmul.f32 %v127, %v147
    %v331 = vmul.f32 %v127, %v148
    %v332 = vmul.f32 %v127, %v149
    %v333 = vmul.f32 %v127, %v150
    %v334 = vmul.f32 %v127, %v151
    %v335 = vmul.f32 %v127, %v152
    %v336 = vadd.f32 %v320, %v328
    %v337 = vadd.f32 %v321, %v329
    %v338 = vadd.f32 %v322, %v330
    %v339 = vadd.f32 %v323, %v331
    %v340 = vadd.f32 %v324, %v332
    %v341 = vadd.f32 %v325, %v333
    %v342 = vadd.f32 %v326, %v334
    %v343 = vadd.f32 %v327, %v335
    %v344 = vmul.f32 %v154, %v172
    %v345 = vmul.f32 %v154, %v173
    %v346 = vmul.f32 %v154, %v174
    %v347 = vmul.f32 %v154, %v175
    %v348 = vmul.f32 %v154, %v176
    %v349 = vmul.f32 %v154, %v177
    %v350 = vmul.f32 %v154, %v178
    %v351 = vmul.f32 %v154, %v179
    %v352 = vadd.f32 %v336, %v344
    %v353 = vadd.f32 %v337, %v345
    %v354 = vadd.f32 %v338, %v346
    %v355 = vadd.f32 %v339, %v347
    %v356 = vadd.f32 %v340, %v348
    %v357 = vadd.f32 %v341, %v349
    %v358 = vadd.f32 %v342, %v350
    %v359 = vadd.f32 %v343, %v351
    %s360 = scalar_lea.vmem %s0, 512
    %v361 = vld [vmem:[%s360] sm:$0xff]
    %v362 = vld [vmem:[%s360 + $0x8] sm:$0xff]
    %v363 = vld [vmem:[%s360 + $0x10] sm:$0xff]
    %v364 = vld [vmem:[%s360 + $0x18] sm:$0xff]
    %v365 = vld [vmem:[%s360 + $0x20] sm:$0xff]
    %v366 = vld [vmem:[%s360 + $0x28] sm:$0xff]
    %v367 = vld [vmem:[%s360 + $0x30] sm:$0xff]
    %v368 = vld [vmem:[%s360 + $0x38] sm:$0xff]
    %v369 = vmul.f32 %v181, %v361
    %v370 = vmul.f32 %v181, %v362
    %v371 = vmul.f32 %v181, %v363
    %v372 = vmul.f32 %v181, %v364
    %v373 = vmul.f32 %v181, %v365
    %v374 = vmul.f32 %v181, %v366
    %v375 = vmul.f32 %v181, %v367
    %v376 = vmul.f32 %v181, %v368
    %v377 = vadd.f32 %v352, %v369
    %v378 = vadd.f32 %v353, %v370
    %v379 = vadd.f32 %v354, %v371
    %v380 = vadd.f32 %v355, %v372
    %v381 = vadd.f32 %v356, %v373
    %v382 = vadd.f32 %v357, %v374
    %v383 = vadd.f32 %v358, %v375
    %v384 = vadd.f32 %v359, %v376
    %v385 = vmul.f32 %v208, %v226
    %v386 = vmul.f32 %v208, %v227
    %v387 = vmul.f32 %v208, %v228
    %v388 = vmul.f32 %v208, %v229
    %v389 = vmul.f32 %v208, %v230
    %v390 = vmul.f32 %v208, %v231
    %v391 = vmul.f32 %v208, %v232
    %v392 = vmul.f32 %v208, %v233
    %v393 = vadd.f32 %v377, %v385
    %v394 = vadd.f32 %v378, %v386
    %v395 = vadd.f32 %v379, %v387
    %v396 = vadd.f32 %v380, %v388
    %v397 = vadd.f32 %v381, %v389
    %v398 = vadd.f32 %v382, %v390
    %v399 = vadd.f32 %v383, %v391
    %v400 = vadd.f32 %v384, %v392
    %v401 = vmul.f32 %v235, %v253
    %v402 = vmul.f32 %v235, %v254
    %v403 = vmul.f32 %v235, %v255
    %v404 = vmul.f32 %v235, %v256
    %v405 = vmul.f32 %v235, %v257
    %v406 = vmul.f32 %v235, %v258
    %v407 = vmul.f32 %v235, %v259
    %v408 = vmul.f32 %v235, %v260
    %v409 = vadd.f32 %v393, %v401
    %v410 = vadd.f32 %v394, %v402
    %v411 = vadd.f32 %v395, %v403
    %v412 = vadd.f32 %v396, %v404
    %v413 = vadd.f32 %v397, %v405
    %v414 = vadd.f32 %v398, %v406
    %v415 = vadd.f32 %v399, %v407
    %v416 = vadd.f32 %v400, %v408
    %s417 = scalar_lea.vmem %s0, 832
    %v418 = vld [vmem:[%s417] sm:$0xff]
    %v419 = vld [vmem:[%s417 + $0x8] sm:$0xff]
    %v420 = vld [vmem:[%s417 + $0x10] sm:$0xff]
    %v421 = vld [vmem:[%s417 + $0x18] sm:$0xff]
    %v422 = vld [vmem:[%s417 + $0x20] sm:$0xff]
    %v423 = vld [vmem:[%s417 + $0x28] sm:$0xff]
    %v424 = vld [vmem:[%s417 + $0x30] sm:$0xff]
    %v425 = vld [vmem:[%s417 + $0x38] sm:$0xff]
    %v426 = vmul.f32 %v262, %v418
    %v427 = vmul.f32 %v262, %v419
    %v428 = vmul.f32 %v262, %v420
    %v429 = vmul.f32 %v262, %v421
    %v430 = vmul.f32 %v262, %v422
    %v431 = vmul.f32 %v262, %v423
    %v432 = vmul.f32 %v262, %v424
    %v433 = vmul.f32 %v262, %v425
    %v434 = vadd.f32 %v409, %v426
    %v435 = vadd.f32 %v410, %v427
    %v436 = vadd.f32 %v411, %v428
    %v437 = vadd.f32 %v412, %v429
    %v438 = vadd.f32 %v413, %v430
    %v439 = vadd.f32 %v414, %v431
    %v440 = vadd.f32 %v415, %v432
    %v441 = vadd.f32 %v416, %v433
    %v442 = vmax.f32 %v271, %v434
    %v443 = vmax.f32 %v272, %v435
    %v444 = vmax.f32 %v273, %v436
    %v445 = vmax.f32 %v274, %v437
    %v446 = vmax.f32 %v275, %v438
    %v447 = vmax.f32 %v276, %v439
    %v448 = vmax.f32 %v277, %v440
    %v449 = vmax.f32 %v278, %v441
    %v450 = vmul.f32 %v54, %v91
    %v451 = vmul.f32 %v54, %v92
    %v452 = vmul.f32 %v54, %v93
    %v453 = vmul.f32 %v54, %v94
    %v454 = vmul.f32 %v54, %v95
    %v455 = vmul.f32 %v54, %v96
    %v456 = vmul.f32 %v54, %v97
    %v457 = vmul.f32 %v54, %v98
    %v458 = vmul.f32 %v73, %v304
    %v459 = vmul.f32 %v73, %v305
    %v460 = vmul.f32 %v73, %v306
    %v461 = vmul.f32 %v73, %v307
    %v462 = vmul.f32 %v73, %v308
    %v463 = vmul.f32 %v73, %v309
    %v464 = vmul.f32 %v73, %v310
    %v465 = vmul.f32 %v73, %v311
    %v466 = vadd.f32 %v450, %v458
    %v467 = vadd.f32 %v451, %v459
    %v468 = vadd.f32 %v452, %v460
    %v469 = vadd.f32 %v453, %v461
    %v470 = vadd.f32 %v454, %v462
    %v471 = vadd.f32 %v455, %v463
    %v472 = vadd.f32 %v456, %v464
    %v473 = vadd.f32 %v457, %v465
    %s474 = scalar_lea.vmem %s0, 256
    %v475 = vld [vmem:[%s474] sm:$0xff]
    %v476 = vld [vmem:[%s474 + $0x8] sm:$0xff]
    %v477 = vld [vmem:[%s474 + $0x10] sm:$0xff]
    %v478 = vld [vmem:[%s474 + $0x18] sm:$0xff]
    %v479 = vld [vmem:[%s474 + $0x20] sm:$0xff]
    %v480 = vld [vmem:[%s474 + $0x28] sm:$0xff]
    %v481 = vld [vmem:[%s474 + $0x30] sm:$0xff]
    %v482 = vld [vmem:[%s474 + $0x38] sm:$0xff]
    %v483 = vmul.f32 %v100, %v475
    %v484 = vmul.f32 %v100, %v476
    %v485 = vmul.f32 %v100, %v477
    %v486 = vmul.f32 %v100, %v478
    %v487 = vmul.f32 %v100, %v479
    %v488 = vmul.f32 %v100, %v480
    %v489 = vmul.f32 %v100, %v481
    %v490 = vmul.f32 %v100, %v482
    %v491 = vadd.f32 %v466, %v483
    %v492 = vadd.f32 %v467, %v484
    %v493 = vadd.f32 %v468, %v485
    %v494 = vadd.f32 %v469, %v486
    %v495 = vadd.f32 %v470, %v487
    %v496 = vadd.f32 %v471, %v488
    %v497 = vadd.f32 %v472, %v489
    %v498 = vadd.f32 %v473, %v490
    %v499 = vmul.f32 %v127, %v172
    %v500 = vmul.f32 %v127, %v173
    %v501 = vmul.f32 %v127, %v174
    %v502 = vmul.f32 %v127, %v175
    %v503 = vmul.f32 %v127, %v176
    %v504 = vmul.f32 %v127, %v177
    %v505 = vmul.f32 %v127, %v178
    %v506 = vmul.f32 %v127, %v179
    %v507 = vadd.f32 %v491, %v499
    %v508 = vadd.f32 %v492, %v500
    %v509 = vadd.f32 %v493, %v501
    %v510 = vadd.f32 %v494, %v502
    %v511 = vadd.f32 %v495, %v503
    %v512 = vadd.f32 %v496, %v504
    %v513 = vadd.f32 %v497, %v505
    %v514 = vadd.f32 %v498, %v506
    %v515 = vmul.f32 %v154, %v361
    %v516 = vmul.f32 %v154, %v362
    %v517 = vmul.f32 %v154, %v363
    %v518 = vmul.f32 %v154, %v364
    %v519 = vmul.f32 %v154, %v365
    %v520 = vmul.f32 %v154, %v366
    %v521 = vmul.f32 %v154, %v367
    %v522 = vmul.f32 %v154, %v368
    %v523 = vadd.f32 %v507, %v515
    %v524 = vadd.f32 %v508, %v516
    %v525 = vadd.f32 %v509, %v517
    %v526 = vadd.f32 %v510, %v518
    %v527 = vadd.f32 %v511, %v519
    %v528 = vadd.f32 %v512, %v520
    %v529 = vadd.f32 %v513, %v521
    %v530 = vadd.f32 %v514, %v522
    %s531 = scalar_lea.vmem %s0, 576
    %v532 = vld [vmem:[%s531] sm:$0xff]
    %v533 = vld [vmem:[%s531 + $0x8] sm:$0xff]
    %v534 = vld [vmem:[%s531 + $0x10] sm:$0xff]
    %v535 = vld [vmem:[%s531 + $0x18] sm:$0xff]
    %v536 = vld [vmem:[%s531 + $0x20] sm:$0xff]
    %v537 = vld [vmem:[%s531 + $0x28] sm:$0xff]
    %v538 = vld [vmem:[%s531 + $0x30] sm:$0xff]
    %v539 = vld [vmem:[%s531 + $0x38] sm:$0xff]
    %v540 = vmul.f32 %v181, %v532
    %v541 = vmul.f32 %v181, %v533
    %v542 = vmul.f32 %v181, %v534
    %v543 = vmul.f32 %v181, %v535
    %v544 = vmul.f32 %v181, %v536
    %v545 = vmul.f32 %v181, %v537
    %v546 = vmul.f32 %v181, %v538
    %v547 = vmul.f32 %v181, %v539
    %v548 = vadd.f32 %v523, %v540
    %v549 = vadd.f32 %v524, %v541
    %v550 = vadd.f32 %v525, %v542
    %v551 = vadd.f32 %v526, %v543
    %v552 = vadd.f32 %v527, %v544
    %v553 = vadd.f32 %v528, %v545
    %v554 = vadd.f32 %v529, %v546
    %v555 = vadd.f32 %v530, %v547
    %v556 = vmul.f32 %v208, %v253
    %v557 = vmul.f32 %v208, %v254
    %v558 = vmul.f32 %v208, %v255
    %v559 = vmul.f32 %v208, %v256
    %v560 = vmul.f32 %v208, %v257
    %v561 = vmul.f32 %v208, %v258
    %v562 = vmul.f32 %v208, %v259
    %v563 = vmul.f32 %v208, %v260
    %v564 = vadd.f32 %v548, %v556
    %v565 = vadd.f32 %v549, %v557
    %v566 = vadd.f32 %v550, %v558
    %v567 = vadd.f32 %v551, %v559
    %v568 = vadd.f32 %v552, %v560
    %v569 = vadd.f32 %v553, %v561
    %v570 = vadd.f32 %v554, %v562
    %v571 = vadd.f32 %v555, %v563
    %v572 = vmul.f32 %v235, %v418
    %v573 = vmul.f32 %v235, %v419
    %v574 = vmul.f32 %v235, %v420
    %v575 = vmul.f32 %v235, %v421
    %v576 = vmul.f32 %v235, %v422
    %v577 = vmul.f32 %v235, %v423
    %v578 = vmul.f32 %v235, %v424
    %v579 = vmul.f32 %v235, %v425
    %v580 = vadd.f32 %v564, %v572
    %v581 = vadd.f32 %v565, %v573
    %v582 = vadd.f32 %v566, %v574
    %v583 = vadd.f32 %v567, %v575
    %v584 = vadd.f32 %v568, %v576
    %v585 = vadd.f32 %v569, %v577
    %v586 = vadd.f32 %v570, %v578
    %v587 = vadd.f32 %v571, %v579
    %s588 = scalar_lea.vmem %s0, 896
    %v589 = vld [vmem:[%s588] sm:$0xff]
    %v590 = vld [vmem:[%s588 + $0x8] sm:$0xff]
    %v591 = vld [vmem:[%s588 + $0x10] sm:$0xff]
    %v592 = vld [vmem:[%s588 + $0x18] sm:$0xff]
    %v593 = vld [vmem:[%s588 + $0x20] sm:$0xff]
    %v594 = vld [vmem:[%s588 + $0x28] sm:$0xff]
    %v595 = vld [vmem:[%s588 + $0x30] sm:$0xff]
    %v596 = vld [vmem:[%s588 + $0x38] sm:$0xff]
    %v597 = vmul.f32 %v262, %v589
    %v598 = vmul.f32 %v262, %v590
    %v599 = vmul.f32 %v262, %v591
    %v600 = vmul.f32 %v262, %v592
    %v601 = vmul.f32 %v262, %v593
    %v602 = vmul.f32 %v262, %v594
    %v603 = vmul.f32 %v262, %v595
    %v604 = vmul.f32 %v262, %v596
    %v605 = vadd.f32 %v580, %v597
    %v606 = vadd.f32 %v581, %v598
    %v607 = vadd.f32 %v582, %v599
    %v608 = vadd.f32 %v583, %v600
    %v609 = vadd.f32 %v584, %v601
    %v610 = vadd.f32 %v585, %v602
    %v611 = vadd.f32 %v586, %v603
    %v612 = vadd.f32 %v587, %v604
    %v613 = vmax.f32 %v442, %v605
    %v614 = vmax.f32 %v443, %v606
    %v615 = vmax.f32 %v444, %v607
    %v616 = vmax.f32 %v445, %v608
    %v617 = vmax.f32 %v446, %v609
    %v618 = vmax.f32 %v447, %v610
    %v619 = vmax.f32 %v448, %v611
    %v620 = vmax.f32 %v449, %v612
    %v621 = vmul.f32 %v54, %v118
    %v622 = vmul.f32 %v54, %v119
    %v623 = vmul.f32 %v54, %v120
    %v624 = vmul.f32 %v54, %v121
    %v625 = vmul.f32 %v54, %v122
    %v626 = vmul.f32 %v54, %v123
    %v627 = vmul.f32 %v54, %v124
    %v628 = vmul.f32 %v54, %v125
    %v629 = vmul.f32 %v73, %v145
    %v630 = vmul.f32 %v73, %v146
    %v631 = vmul.f32 %v73, %v147
    %v632 = vmul.f32 %v73, %v148
    %v633 = vmul.f32 %v73, %v149
    %v634 = vmul.f32 %v73, %v150
    %v635 = vmul.f32 %v73, %v151
    %v636 = vmul.f32 %v73, %v152
    %v637 = vadd.f32 %v621, %v629
    %v638 = vadd.f32 %v622, %v630
    %v639 = vadd.f32 %v623, %v631
    %v640 = vadd.f32 %v624, %v632
    %v641 = vadd.f32 %v625, %v633
    %v642 = vadd.f32 %v626, %v634
    %v643 = vadd.f32 %v627, %v635
    %v644 = vadd.f32 %v628, %v636
    %v645 = vmul.f32 %v100, %v172
    %v646 = vmul.f32 %v100, %v173
    %v647 = vmul.f32 %v100, %v174
    %v648 = vmul.f32 %v100, %v175
    %v649 = vmul.f32 %v100, %v176
    %v650 = vmul.f32 %v100, %v177
    %v651 = vmul.f32 %v100, %v178
    %v652 = vmul.f32 %v100, %v179
    %v653 = vadd.f32 %v637, %v645
    %v654 = vadd.f32 %v638, %v646
    %v655 = vadd.f32 %v639, %v647
    %v656 = vadd.f32 %v640, %v648
    %v657 = vadd.f32 %v641, %v649
    %v658 = vadd.f32 %v642, %v650
    %v659 = vadd.f32 %v643, %v651
    %v660 = vadd.f32 %v644, %v652
    %v661 = vmul.f32 %v127, %v199
    %v662 = vmul.f32 %v127, %v200
    %v663 = vmul.f32 %v127, %v201
    %v664 = vmul.f32 %v127, %v202
    %v665 = vmul.f32 %v127, %v203
    %v666 = vmul.f32 %v127, %v204
    %v667 = vmul.f32 %v127, %v205
    %v668 = vmul.f32 %v127, %v206
    %v669 = vadd.f32 %v653, %v661
    %v670 = vadd.f32 %v654, %v662
    %v671 = vadd.f32 %v655, %v663
    %v672 = vadd.f32 %v656, %v664
    %v673 = vadd.f32 %v657, %v665
    %v674 = vadd.f32 %v658, %v666
    %v675 = vadd.f32 %v659, %v667
    %v676 = vadd.f32 %v660, %v668
    %v677 = vmul.f32 %v154, %v226
    %v678 = vmul.f32 %v154, %v227
    %v679 = vmul.f32 %v154, %v228
    %v680 = vmul.f32 %v154, %v229
    %v681 = vmul.f32 %v154, %v230
    %v682 = vmul.f32 %v154, %v231
    %v683 = vmul.f32 %v154, %v232
    %v684 = vmul.f32 %v154, %v233
    %v685 = vadd.f32 %v669, %v677
    %v686 = vadd.f32 %v670, %v678
    %v687 = vadd.f32 %v671, %v679
    %v688 = vadd.f32 %v672, %v680
    %v689 = vadd.f32 %v673, %v681
    %v690 = vadd.f32 %v674, %v682
    %v691 = vadd.f32 %v675, %v683
    %v692 = vadd.f32 %v676, %v684
    %v693 = vmul.f32 %v181, %v253
    %v694 = vmul.f32 %v181, %v254
    %v695 = vmul.f32 %v181, %v255
    %v696 = vmul.f32 %v181, %v256
    %v697 = vmul.f32 %v181, %v257
    %v698 = vmul.f32 %v181, %v258
    %v699 = vmul.f32 %v181, %v259
    %v700 = vmul.f32 %v181, %v260
    %v701 = vadd.f32 %v685, %v693
    %v702 = vadd.f32 %v686, %v694
    %v703 = vadd.f32 %v687, %v695
    %v704 = vadd.f32 %v688, %v696
    %v705 = vadd.f32 %v689, %v697
    %v706 = vadd.f32 %v690, %v698
    %v707 = vadd.f32 %v691, %v699
    %v708 = vadd.f32 %v692, %v700
    %s709 = scalar_lea.vmem %s0, 960
    %v710 = vld [vmem:[%s709] sm:$0xff]
    %v711 = vld [vmem:[%s709 + $0x8] sm:$0xff]
    %v712 = vld [vmem:[%s709 + $0x10] sm:$0xff]
    %v713 = vld [vmem:[%s709 + $0x18] sm:$0xff]
    %v714 = vld [vmem:[%s709 + $0x20] sm:$0xff]
    %v715 = vld [vmem:[%s709 + $0x28] sm:$0xff]
    %v716 = vld [vmem:[%s709 + $0x30] sm:$0xff]
    %v717 = vld [vmem:[%s709 + $0x38] sm:$0xff]
    %v718 = vmul.f32 %v208, %v710
    %v719 = vmul.f32 %v208, %v711
    %v720 = vmul.f32 %v208, %v712
    %v721 = vmul.f32 %v208, %v713
    %v722 = vmul.f32 %v208, %v714
    %v723 = vmul.f32 %v208, %v715
    %v724 = vmul.f32 %v208, %v716
    %v725 = vmul.f32 %v208, %v717
    %v726 = vadd.f32 %v701, %v718
    %v727 = vadd.f32 %v702, %v719
    %v728 = vadd.f32 %v703, %v720
    %v729 = vadd.f32 %v704, %v721
    %v730 = vadd.f32 %v705, %v722
    %v731 = vadd.f32 %v706, %v723
    %v732 = vadd.f32 %v707, %v724
    %v733 = vadd.f32 %v708, %v725
    %s734 = scalar_lea.vmem %s0, 1024
    %v735 = vld [vmem:[%s734] sm:$0xff]
    %v736 = vld [vmem:[%s734 + $0x8] sm:$0xff]
    %v737 = vld [vmem:[%s734 + $0x10] sm:$0xff]
    %v738 = vld [vmem:[%s734 + $0x18] sm:$0xff]
    %v739 = vld [vmem:[%s734 + $0x20] sm:$0xff]
    %v740 = vld [vmem:[%s734 + $0x28] sm:$0xff]
    %v741 = vld [vmem:[%s734 + $0x30] sm:$0xff]
    %v742 = vld [vmem:[%s734 + $0x38] sm:$0xff]
    %v743 = vmul.f32 %v235, %v735
    %v744 = vmul.f32 %v235, %v736
    %v745 = vmul.f32 %v235, %v737
    %v746 = vmul.f32 %v235, %v738
    %v747 = vmul.f32 %v235, %v739
    %v748 = vmul.f32 %v235, %v740
    %v749 = vmul.f32 %v235, %v741
    %v750 = vmul.f32 %v235, %v742
    %v751 = vadd.f32 %v726, %v743
    %v752 = vadd.f32 %v727, %v744
    %v753 = vadd.f32 %v728, %v745
    %v754 = vadd.f32 %v729, %v746
    %v755 = vadd.f32 %v730, %v747
    %v756 = vadd.f32 %v731, %v748
    %v757 = vadd.f32 %v732, %v749
    %v758 = vadd.f32 %v733, %v750
    %s759 = scalar_lea.vmem %s0, 1088
    %v760 = vld [vmem:[%s759] sm:$0xff]
    %v761 = vld [vmem:[%s759 + $0x8] sm:$0xff]
    %v762 = vld [vmem:[%s759 + $0x10] sm:$0xff]
    %v763 = vld [vmem:[%s759 + $0x18] sm:$0xff]
    %v764 = vld [vmem:[%s759 + $0x20] sm:$0xff]
    %v765 = vld [vmem:[%s759 + $0x28] sm:$0xff]
    %v766 = vld [vmem:[%s759 + $0x30] sm:$0xff]
    %v767 = vld [vmem:[%s759 + $0x38] sm:$0xff]
    %v768 = vmul.f32 %v262, %v760
    %v769 = vmul.f32 %v262, %v761
    %v770 = vmul.f32 %v262, %v762
    %v771 = vmul.f32 %v262, %v763
    %v772 = vmul.f32 %v262, %v764
    %v773 = vmul.f32 %v262, %v765
    %v774 = vmul.f32 %v262, %v766
    %v775 = vmul.f32 %v262, %v767
    %v776 = vadd.f32 %v751, %v768
    %v777 = vadd.f32 %v752, %v769
    %v778 = vadd.f32 %v753, %v770
    %v779 = vadd.f32 %v754, %v771
    %v780 = vadd.f32 %v755, %v772
    %v781 = vadd.f32 %v756, %v773
    %v782 = vadd.f32 %v757, %v774
    %v783 = vadd.f32 %v758, %v775
    %v784 = vmax.f32 %v613, %v776
    %v785 = vmax.f32 %v614, %v777
    %v786 = vmax.f32 %v615, %v778
    %v787 = vmax.f32 %v616, %v779
    %v788 = vmax.f32 %v617, %v780
    %v789 = vmax.f32 %v618, %v781
    %v790 = vmax.f32 %v619, %v782
    %v791 = vmax.f32 %v620, %v783
    %v792 = vmul.f32 %v54, %v145
    %v793 = vmul.f32 %v54, %v146
    %v794 = vmul.f32 %v54, %v147
    %v795 = vmul.f32 %v54, %v148
    %v796 = vmul.f32 %v54, %v149
    %v797 = vmul.f32 %v54, %v150
    %v798 = vmul.f32 %v54, %v151
    %v799 = vmul.f32 %v54, %v152
    %v800 = vmul.f32 %v73, %v172
    %v801 = vmul.f32 %v73, %v173
    %v802 = vmul.f32 %v73, %v174
    %v803 = vmul.f32 %v73, %v175
    %v804 = vmul.f32 %v73, %v176
    %v805 = vmul.f32 %v73, %v177
    %v806 = vmul.f32 %v73, %v178
    %v807 = vmul.f32 %v73, %v179
    %v808 = vadd.f32 %v792, %v800
    %v809 = vadd.f32 %v793, %v801
    %v810 = vadd.f32 %v794, %v802
    %v811 = vadd.f32 %v795, %v803
    %v812 = vadd.f32 %v796, %v804
    %v813 = vadd.f32 %v797, %v805
    %v814 = vadd.f32 %v798, %v806
    %v815 = vadd.f32 %v799, %v807
    %v816 = vmul.f32 %v100, %v361
    %v817 = vmul.f32 %v100, %v362
    %v818 = vmul.f32 %v100, %v363
    %v819 = vmul.f32 %v100, %v364
    %v820 = vmul.f32 %v100, %v365
    %v821 = vmul.f32 %v100, %v366
    %v822 = vmul.f32 %v100, %v367
    %v823 = vmul.f32 %v100, %v368
    %v824 = vadd.f32 %v808, %v816
    %v825 = vadd.f32 %v809, %v817
    %v826 = vadd.f32 %v810, %v818
    %v827 = vadd.f32 %v811, %v819
    %v828 = vadd.f32 %v812, %v820
    %v829 = vadd.f32 %v813, %v821
    %v830 = vadd.f32 %v814, %v822
    %v831 = vadd.f32 %v815, %v823
    %v832 = vmul.f32 %v127, %v226
    %v833 = vmul.f32 %v127, %v227
    %v834 = vmul.f32 %v127, %v228
    %v835 = vmul.f32 %v127, %v229
    %v836 = vmul.f32 %v127, %v230
    %v837 = vmul.f32 %v127, %v231
    %v838 = vmul.f32 %v127, %v232
    %v839 = vmul.f32 %v127, %v233
    %v840 = vadd.f32 %v824, %v832
    %v841 = vadd.f32 %v825, %v833
    %v842 = vadd.f32 %v826, %v834
    %v843 = vadd.f32 %v827, %v835
    %v844 = vadd.f32 %v828, %v836
    %v845 = vadd.f32 %v829, %v837
    %v846 = vadd.f32 %v830, %v838
    %v847 = vadd.f32 %v831, %v839
    %v848 = vmul.f32 %v154, %v253
    %v849 = vmul.f32 %v154, %v254
    %v850 = vmul.f32 %v154, %v255
    %v851 = vmul.f32 %v154, %v256
    %v852 = vmul.f32 %v154, %v257
    %v853 = vmul.f32 %v154, %v258
    %v854 = vmul.f32 %v154, %v259
    %v855 = vmul.f32 %v154, %v260
    %v856 = vadd.f32 %v840, %v848
    %v857 = vadd.f32 %v841, %v849
    %v858 = vadd.f32 %v842, %v850
    %v859 = vadd.f32 %v843, %v851
    %v860 = vadd.f32 %v844, %v852
    %v861 = vadd.f32 %v845, %v853
    %v862 = vadd.f32 %v846, %v854
    %v863 = vadd.f32 %v847, %v855
    %v864 = vmul.f32 %v181, %v418
    %v865 = vmul.f32 %v181, %v419
    %v866 = vmul.f32 %v181, %v420
    %v867 = vmul.f32 %v181, %v421
    %v868 = vmul.f32 %v181, %v422
    %v869 = vmul.f32 %v181, %v423
    %v870 = vmul.f32 %v181, %v424
    %v871 = vmul.f32 %v181, %v425
    %v872 = vadd.f32 %v856, %v864
    %v873 = vadd.f32 %v857, %v865
    %v874 = vadd.f32 %v858, %v866
    %v875 = vadd.f32 %v859, %v867
    %v876 = vadd.f32 %v860, %v868
    %v877 = vadd.f32 %v861, %v869
    %v878 = vadd.f32 %v862, %v870
    %v879 = vadd.f32 %v863, %v871
    %v880 = vmul.f32 %v208, %v735
    %v881 = vmul.f32 %v208, %v736
    %v882 = vmul.f32 %v208, %v737
    %v883 = vmul.f32 %v208, %v738
    %v884 = vmul.f32 %v208, %v739
    %v885 = vmul.f32 %v208, %v740
    %v886 = vmul.f32 %v208, %v741
    %v887 = vmul.f32 %v208, %v742
    %v888 = vadd.f32 %v872, %v880
    %v889 = vadd.f32 %v873, %v881
    %v890 = vadd.f32 %v874, %v882
    %v891 = vadd.f32 %v875, %v883
    %v892 = vadd.f32 %v876, %v884
    %v893 = vadd.f32 %v877, %v885
    %v894 = vadd.f32 %v878, %v886
    %v895 = vadd.f32 %v879, %v887
    %v896 = vmul.f32 %v235, %v760
    %v897 = vmul.f32 %v235, %v761
    %v898 = vmul.f32 %v235, %v762
    %v899 = vmul.f32 %v235, %v763
    %v900 = vmul.f32 %v235, %v764
    %v901 = vmul.f32 %v235, %v765
    %v902 = vmul.f32 %v235, %v766
    %v903 = vmul.f32 %v235, %v767
    %v904 = vadd.f32 %v888, %v896
    %v905 = vadd.f32 %v889, %v897
    %v906 = vadd.f32 %v890, %v898
    %v907 = vadd.f32 %v891, %v899
    %v908 = vadd.f32 %v892, %v900
    %v909 = vadd.f32 %v893, %v901
    %v910 = vadd.f32 %v894, %v902
    %v911 = vadd.f32 %v895, %v903
    %s912 = scalar_lea.vmem %s0, 1152
    %v913 = vld [vmem:[%s912] sm:$0xff]
    %v914 = vld [vmem:[%s912 + $0x8] sm:$0xff]
    %v915 = vld [vmem:[%s912 + $0x10] sm:$0xff]
    %v916 = vld [vmem:[%s912 + $0x18] sm:$0xff]
    %v917 = vld [vmem:[%s912 + $0x20] sm:$0xff]
    %v918 = vld [vmem:[%s912 + $0x28] sm:$0xff]
    %v919 = vld [vmem:[%s912 + $0x30] sm:$0xff]
    %v920 = vld [vmem:[%s912 + $0x38] sm:$0xff]
    %v921 = vmul.f32 %v262, %v913
    %v922 = vmul.f32 %v262, %v914
    %v923 = vmul.f32 %v262, %v915
    %v924 = vmul.f32 %v262, %v916
    %v925 = vmul.f32 %v262, %v917
    %v926 = vmul.f32 %v262, %v918
    %v927 = vmul.f32 %v262, %v919
    %v928 = vmul.f32 %v262, %v920
    %v929 = vadd.f32 %v904, %v921
    %v930 = vadd.f32 %v905, %v922
    %v931 = vadd.f32 %v906, %v923
    %v932 = vadd.f32 %v907, %v924
    %v933 = vadd.f32 %v908, %v925
    %v934 = vadd.f32 %v909, %v926
    %v935 = vadd.f32 %v910, %v927
    %v936 = vadd.f32 %v911, %v928
    %v937 = vmax.f32 %v784, %v929
    %v938 = vmax.f32 %v785, %v930
    %v939 = vmax.f32 %v786, %v931
    %v940 = vmax.f32 %v787, %v932
    %v941 = vmax.f32 %v788, %v933
    %v942 = vmax.f32 %v789, %v934
    %v943 = vmax.f32 %v790, %v935
    %v944 = vmax.f32 %v791, %v936
    %v945 = vmul.f32 %v54, %v172
    %v946 = vmul.f32 %v54, %v173
    %v947 = vmul.f32 %v54, %v174
    %v948 = vmul.f32 %v54, %v175
    %v949 = vmul.f32 %v54, %v176
    %v950 = vmul.f32 %v54, %v177
    %v951 = vmul.f32 %v54, %v178
    %v952 = vmul.f32 %v54, %v179
    %v953 = vmul.f32 %v73, %v361
    %v954 = vmul.f32 %v73, %v362
    %v955 = vmul.f32 %v73, %v363
    %v956 = vmul.f32 %v73, %v364
    %v957 = vmul.f32 %v73, %v365
    %v958 = vmul.f32 %v73, %v366
    %v959 = vmul.f32 %v73, %v367
    %v960 = vmul.f32 %v73, %v368
    %v961 = vadd.f32 %v945, %v953
    %v962 = vadd.f32 %v946, %v954
    %v963 = vadd.f32 %v947, %v955
    %v964 = vadd.f32 %v948, %v956
    %v965 = vadd.f32 %v949, %v957
    %v966 = vadd.f32 %v950, %v958
    %v967 = vadd.f32 %v951, %v959
    %v968 = vadd.f32 %v952, %v960
    %v969 = vmul.f32 %v100, %v532
    %v970 = vmul.f32 %v100, %v533
    %v971 = vmul.f32 %v100, %v534
    %v972 = vmul.f32 %v100, %v535
    %v973 = vmul.f32 %v100, %v536
    %v974 = vmul.f32 %v100, %v537
    %v975 = vmul.f32 %v100, %v538
    %v976 = vmul.f32 %v100, %v539
    %v977 = vadd.f32 %v961, %v969
    %v978 = vadd.f32 %v962, %v970
    %v979 = vadd.f32 %v963, %v971
    %v980 = vadd.f32 %v964, %v972
    %v981 = vadd.f32 %v965, %v973
    %v982 = vadd.f32 %v966, %v974
    %v983 = vadd.f32 %v967, %v975
    %v984 = vadd.f32 %v968, %v976
    %v985 = vmul.f32 %v127, %v253
    %v986 = vmul.f32 %v127, %v254
    %v987 = vmul.f32 %v127, %v255
    %v988 = vmul.f32 %v127, %v256
    %v989 = vmul.f32 %v127, %v257
    %v990 = vmul.f32 %v127, %v258
    %v991 = vmul.f32 %v127, %v259
    %v992 = vmul.f32 %v127, %v260
    %v993 = vadd.f32 %v977, %v985
    %v994 = vadd.f32 %v978, %v986
    %v995 = vadd.f32 %v979, %v987
    %v996 = vadd.f32 %v980, %v988
    %v997 = vadd.f32 %v981, %v989
    %v998 = vadd.f32 %v982, %v990
    %v999 = vadd.f32 %v983, %v991
    %v1000 = vadd.f32 %v984, %v992
    %v1001 = vmul.f32 %v154, %v418
    %v1002 = vmul.f32 %v154, %v419
    %v1003 = vmul.f32 %v154, %v420
    %v1004 = vmul.f32 %v154, %v421
    %v1005 = vmul.f32 %v154, %v422
    %v1006 = vmul.f32 %v154, %v423
    %v1007 = vmul.f32 %v154, %v424
    %v1008 = vmul.f32 %v154, %v425
    %v1009 = vadd.f32 %v993, %v1001
    %v1010 = vadd.f32 %v994, %v1002
    %v1011 = vadd.f32 %v995, %v1003
    %v1012 = vadd.f32 %v996, %v1004
    %v1013 = vadd.f32 %v997, %v1005
    %v1014 = vadd.f32 %v998, %v1006
    %v1015 = vadd.f32 %v999, %v1007
    %v1016 = vadd.f32 %v1000, %v1008
    %v1017 = vmul.f32 %v181, %v589
    %v1018 = vmul.f32 %v181, %v590
    %v1019 = vmul.f32 %v181, %v591
    %v1020 = vmul.f32 %v181, %v592
    %v1021 = vmul.f32 %v181, %v593
    %v1022 = vmul.f32 %v181, %v594
    %v1023 = vmul.f32 %v181, %v595
    %v1024 = vmul.f32 %v181, %v596
    %v1025 = vadd.f32 %v1009, %v1017
    %v1026 = vadd.f32 %v1010, %v1018
    %v1027 = vadd.f32 %v1011, %v1019
    %v1028 = vadd.f32 %v1012, %v1020
    %v1029 = vadd.f32 %v1013, %v1021
    %v1030 = vadd.f32 %v1014, %v1022
    %v1031 = vadd.f32 %v1015, %v1023
    %v1032 = vadd.f32 %v1016, %v1024
    %v1033 = vmul.f32 %v208, %v760
    %v1034 = vmul.f32 %v208, %v761
    %v1035 = vmul.f32 %v208, %v762
    %v1036 = vmul.f32 %v208, %v763
    %v1037 = vmul.f32 %v208, %v764
    %v1038 = vmul.f32 %v208, %v765
    %v1039 = vmul.f32 %v208, %v766
    %v1040 = vmul.f32 %v208, %v767
    %v1041 = vadd.f32 %v1025, %v1033
    %v1042 = vadd.f32 %v1026, %v1034
    %v1043 = vadd.f32 %v1027, %v1035
    %v1044 = vadd.f32 %v1028, %v1036
    %v1045 = vadd.f32 %v1029, %v1037
    %v1046 = vadd.f32 %v1030, %v1038
    %v1047 = vadd.f32 %v1031, %v1039
    %v1048 = vadd.f32 %v1032, %v1040
    %v1049 = vmul.f32 %v235, %v913
    %v1050 = vmul.f32 %v235, %v914
    %v1051 = vmul.f32 %v235, %v915
    %v1052 = vmul.f32 %v235, %v916
    %v1053 = vmul.f32 %v235, %v917
    %v1054 = vmul.f32 %v235, %v918
    %v1055 = vmul.f32 %v235, %v919
    %v1056 = vmul.f32 %v235, %v920
    %v1057 = vadd.f32 %v1041, %v1049
    %v1058 = vadd.f32 %v1042, %v1050
    %v1059 = vadd.f32 %v1043, %v1051
    %v1060 = vadd.f32 %v1044, %v1052
    %v1061 = vadd.f32 %v1045, %v1053
    %v1062 = vadd.f32 %v1046, %v1054
    %v1063 = vadd.f32 %v1047, %v1055
    %v1064 = vadd.f32 %v1048, %v1056
    %s1065 = scalar_lea.vmem %s0, 1216
    %v1066 = vld [vmem:[%s1065] sm:$0xff]
    %v1067 = vld [vmem:[%s1065 + $0x8] sm:$0xff]
    %v1068 = vld [vmem:[%s1065 + $0x10] sm:$0xff]
    %v1069 = vld [vmem:[%s1065 + $0x18] sm:$0xff]
    %v1070 = vld [vmem:[%s1065 + $0x20] sm:$0xff]
    %v1071 = vld [vmem:[%s1065 + $0x28] sm:$0xff]
    %v1072 = vld [vmem:[%s1065 + $0x30] sm:$0xff]
    %v1073 = vld [vmem:[%s1065 + $0x38] sm:$0xff]
    %v1074 = vmul.f32 %v262, %v1066
    %v1075 = vmul.f32 %v262, %v1067
    %v1076 = vmul.f32 %v262, %v1068
    %v1077 = vmul.f32 %v262, %v1069
    %v1078 = vmul.f32 %v262, %v1070
    %v1079 = vmul.f32 %v262, %v1071
    %v1080 = vmul.f32 %v262, %v1072
    %v1081 = vmul.f32 %v262, %v1073
    %v1082 = vadd.f32 %v1057, %v1074
    %v1083 = vadd.f32 %v1058, %v1075
    %v1084 = vadd.f32 %v1059, %v1076
    %v1085 = vadd.f32 %v1060, %v1077
    %v1086 = vadd.f32 %v1061, %v1078
    %v1087 = vadd.f32 %v1062, %v1079
    %v1088 = vadd.f32 %v1063, %v1080
    %v1089 = vadd.f32 %v1064, %v1081
    %v1090 = vmax.f32 %v937, %v1082
    %v1091 = vmax.f32 %v938, %v1083
    %v1092 = vmax.f32 %v939, %v1084
    %v1093 = vmax.f32 %v940, %v1085
    %v1094 = vmax.f32 %v941, %v1086
    %v1095 = vmax.f32 %v942, %v1087
    %v1096 = vmax.f32 %v943, %v1088
    %v1097 = vmax.f32 %v944, %v1089
    %v1098 = vmul.f32 %v54, %v199
    %v1099 = vmul.f32 %v54, %v200
    %v1100 = vmul.f32 %v54, %v201
    %v1101 = vmul.f32 %v54, %v202
    %v1102 = vmul.f32 %v54, %v203
    %v1103 = vmul.f32 %v54, %v204
    %v1104 = vmul.f32 %v54, %v205
    %v1105 = vmul.f32 %v54, %v206
    %v1106 = vmul.f32 %v73, %v226
    %v1107 = vmul.f32 %v73, %v227
    %v1108 = vmul.f32 %v73, %v228
    %v1109 = vmul.f32 %v73, %v229
    %v1110 = vmul.f32 %v73, %v230
    %v1111 = vmul.f32 %v73, %v231
    %v1112 = vmul.f32 %v73, %v232
    %v1113 = vmul.f32 %v73, %v233
    %v1114 = vadd.f32 %v1098, %v1106
    %v1115 = vadd.f32 %v1099, %v1107
    %v1116 = vadd.f32 %v1100, %v1108
    %v1117 = vadd.f32 %v1101, %v1109
    %v1118 = vadd.f32 %v1102, %v1110
    %v1119 = vadd.f32 %v1103, %v1111
    %v1120 = vadd.f32 %v1104, %v1112
    %v1121 = vadd.f32 %v1105, %v1113
    %v1122 = vmul.f32 %v100, %v253
    %v1123 = vmul.f32 %v100, %v254
    %v1124 = vmul.f32 %v100, %v255
    %v1125 = vmul.f32 %v100, %v256
    %v1126 = vmul.f32 %v100, %v257
    %v1127 = vmul.f32 %v100, %v258
    %v1128 = vmul.f32 %v100, %v259
    %v1129 = vmul.f32 %v100, %v260
    %v1130 = vadd.f32 %v1114, %v1122
    %v1131 = vadd.f32 %v1115, %v1123
    %v1132 = vadd.f32 %v1116, %v1124
    %v1133 = vadd.f32 %v1117, %v1125
    %v1134 = vadd.f32 %v1118, %v1126
    %v1135 = vadd.f32 %v1119, %v1127
    %v1136 = vadd.f32 %v1120, %v1128
    %v1137 = vadd.f32 %v1121, %v1129
    %v1138 = vmul.f32 %v127, %v710
    %v1139 = vmul.f32 %v127, %v711
    %v1140 = vmul.f32 %v127, %v712
    %v1141 = vmul.f32 %v127, %v713
    %v1142 = vmul.f32 %v127, %v714
    %v1143 = vmul.f32 %v127, %v715
    %v1144 = vmul.f32 %v127, %v716
    %v1145 = vmul.f32 %v127, %v717
    %v1146 = vadd.f32 %v1130, %v1138
    %v1147 = vadd.f32 %v1131, %v1139
    %v1148 = vadd.f32 %v1132, %v1140
    %v1149 = vadd.f32 %v1133, %v1141
    %v1150 = vadd.f32 %v1134, %v1142
    %v1151 = vadd.f32 %v1135, %v1143
    %v1152 = vadd.f32 %v1136, %v1144
    %v1153 = vadd.f32 %v1137, %v1145
    %v1154 = vmul.f32 %v154, %v735
    %v1155 = vmul.f32 %v154, %v736
    %v1156 = vmul.f32 %v154, %v737
    %v1157 = vmul.f32 %v154, %v738
    %v1158 = vmul.f32 %v154, %v739
    %v1159 = vmul.f32 %v154, %v740
    %v1160 = vmul.f32 %v154, %v741
    %v1161 = vmul.f32 %v154, %v742
    %v1162 = vadd.f32 %v1146, %v1154
    %v1163 = vadd.f32 %v1147, %v1155
    %v1164 = vadd.f32 %v1148, %v1156
    %v1165 = vadd.f32 %v1149, %v1157
    %v1166 = vadd.f32 %v1150, %v1158
    %v1167 = vadd.f32 %v1151, %v1159
    %v1168 = vadd.f32 %v1152, %v1160
    %v1169 = vadd.f32 %v1153, %v1161
    %v1170 = vmul.f32 %v181, %v760
    %v1171 = vmul.f32 %v181, %v761
    %v1172 = vmul.f32 %v181, %v762
    %v1173 = vmul.f32 %v181, %v763
    %v1174 = vmul.f32 %v181, %v764
    %v1175 = vmul.f32 %v181, %v765
    %v1176 = vmul.f32 %v181, %v766
    %v1177 = vmul.f32 %v181, %v767
    %v1178 = vadd.f32 %v1162, %v1170
    %v1179 = vadd.f32 %v1163, %v1171
    %v1180 = vadd.f32 %v1164, %v1172
    %v1181 = vadd.f32 %v1165, %v1173
    %v1182 = vadd.f32 %v1166, %v1174
    %v1183 = vadd.f32 %v1167, %v1175
    %v1184 = vadd.f32 %v1168, %v1176
    %v1185 = vadd.f32 %v1169, %v1177
    %s1186 = scalar_lea.vmem %s0, 1280
    %v1187 = vld [vmem:[%s1186] sm:$0xff]
    %v1188 = vld [vmem:[%s1186 + $0x8] sm:$0xff]
    %v1189 = vld [vmem:[%s1186 + $0x10] sm:$0xff]
    %v1190 = vld [vmem:[%s1186 + $0x18] sm:$0xff]
    %v1191 = vld [vmem:[%s1186 + $0x20] sm:$0xff]
    %v1192 = vld [vmem:[%s1186 + $0x28] sm:$0xff]
    %v1193 = vld [vmem:[%s1186 + $0x30] sm:$0xff]
    %v1194 = vld [vmem:[%s1186 + $0x38] sm:$0xff]
    %v1195 = vmul.f32 %v208, %v1187
    %v1196 = vmul.f32 %v208, %v1188
    %v1197 = vmul.f32 %v208, %v1189
    %v1198 = vmul.f32 %v208, %v1190
    %v1199 = vmul.f32 %v208, %v1191
    %v1200 = vmul.f32 %v208, %v1192
    %v1201 = vmul.f32 %v208, %v1193
    %v1202 = vmul.f32 %v208, %v1194
    %v1203 = vadd.f32 %v1178, %v1195
    %v1204 = vadd.f32 %v1179, %v1196
    %v1205 = vadd.f32 %v1180, %v1197
    %v1206 = vadd.f32 %v1181, %v1198
    %v1207 = vadd.f32 %v1182, %v1199
    %v1208 = vadd.f32 %v1183, %v1200
    %v1209 = vadd.f32 %v1184, %v1201
    %v1210 = vadd.f32 %v1185, %v1202
    %s1211 = scalar_lea.vmem %s0, 1344
    %v1212 = vld [vmem:[%s1211] sm:$0xff]
    %v1213 = vld [vmem:[%s1211 + $0x8] sm:$0xff]
    %v1214 = vld [vmem:[%s1211 + $0x10] sm:$0xff]
    %v1215 = vld [vmem:[%s1211 + $0x18] sm:$0xff]
    %v1216 = vld [vmem:[%s1211 + $0x20] sm:$0xff]
    %v1217 = vld [vmem:[%s1211 + $0x28] sm:$0xff]
    %v1218 = vld [vmem:[%s1211 + $0x30] sm:$0xff]
    %v1219 = vld [vmem:[%s1211 + $0x38] sm:$0xff]
    %v1220 = vmul.f32 %v235, %v1212
    %v1221 = vmul.f32 %v235, %v1213
    %v1222 = vmul.f32 %v235, %v1214
    %v1223 = vmul.f32 %v235, %v1215
    %v1224 = vmul.f32 %v235, %v1216
    %v1225 = vmul.f32 %v235, %v1217
    %v1226 = vmul.f32 %v235, %v1218
    %v1227 = vmul.f32 %v235, %v1219
    %v1228 = vadd.f32 %v1203, %v1220
    %v1229 = vadd.f32 %v1204, %v1221
    %v1230 = vadd.f32 %v1205, %v1222
    %v1231 = vadd.f32 %v1206, %v1223
    %v1232 = vadd.f32 %v1207, %v1224
    %v1233 = vadd.f32 %v1208, %v1225
    %v1234 = vadd.f32 %v1209, %v1226
    %v1235 = vadd.f32 %v1210, %v1227
    %s1236 = scalar_lea.vmem %s0, 1408
    %v1237 = vld [vmem:[%s1236] sm:$0xff]
    %v1238 = vld [vmem:[%s1236 + $0x8] sm:$0xff]
    %v1239 = vld [vmem:[%s1236 + $0x10] sm:$0xff]
    %v1240 = vld [vmem:[%s1236 + $0x18] sm:$0xff]
    %v1241 = vld [vmem:[%s1236 + $0x20] sm:$0xff]
    %v1242 = vld [vmem:[%s1236 + $0x28] sm:$0xff]
    %v1243 = vld [vmem:[%s1236 + $0x30] sm:$0xff]
    %v1244 = vld [vmem:[%s1236 + $0x38] sm:$0xff]
    %v1245 = vmul.f32 %v262, %v1237
    %v1246 = vmul.f32 %v262, %v1238
    %v1247 = vmul.f32 %v262, %v1239
    %v1248 = vmul.f32 %v262, %v1240
    %v1249 = vmul.f32 %v262, %v1241
    %v1250 = vmul.f32 %v262, %v1242
    %v1251 = vmul.f32 %v262, %v1243
    %v1252 = vmul.f32 %v262, %v1244
    %v1253 = vadd.f32 %v1228, %v1245
    %v1254 = vadd.f32 %v1229, %v1246
    %v1255 = vadd.f32 %v1230, %v1247
    %v1256 = vadd.f32 %v1231, %v1248
    %v1257 = vadd.f32 %v1232, %v1249
    %v1258 = vadd.f32 %v1233, %v1250
    %v1259 = vadd.f32 %v1234, %v1251
    %v1260 = vadd.f32 %v1235, %v1252
    %v1261 = vmax.f32 %v1090, %v1253
    %v1262 = vmax.f32 %v1091, %v1254
    %v1263 = vmax.f32 %v1092, %v1255
    %v1264 = vmax.f32 %v1093, %v1256
    %v1265 = vmax.f32 %v1094, %v1257
    %v1266 = vmax.f32 %v1095, %v1258
    %v1267 = vmax.f32 %v1096, %v1259
    %v1268 = vmax.f32 %v1097, %v1260
    %v1269 = vmul.f32 %v54, %v226
    %v1270 = vmul.f32 %v54, %v227
    %v1271 = vmul.f32 %v54, %v228
    %v1272 = vmul.f32 %v54, %v229
    %v1273 = vmul.f32 %v54, %v230
    %v1274 = vmul.f32 %v54, %v231
    %v1275 = vmul.f32 %v54, %v232
    %v1276 = vmul.f32 %v54, %v233
    %v1277 = vmul.f32 %v73, %v253
    %v1278 = vmul.f32 %v73, %v254
    %v1279 = vmul.f32 %v73, %v255
    %v1280 = vmul.f32 %v73, %v256
    %v1281 = vmul.f32 %v73, %v257
    %v1282 = vmul.f32 %v73, %v258
    %v1283 = vmul.f32 %v73, %v259
    %v1284 = vmul.f32 %v73, %v260
    %v1285 = vadd.f32 %v1269, %v1277
    %v1286 = vadd.f32 %v1270, %v1278
    %v1287 = vadd.f32 %v1271, %v1279
    %v1288 = vadd.f32 %v1272, %v1280
    %v1289 = vadd.f32 %v1273, %v1281
    %v1290 = vadd.f32 %v1274, %v1282
    %v1291 = vadd.f32 %v1275, %v1283
    %v1292 = vadd.f32 %v1276, %v1284
    %v1293 = vmul.f32 %v100, %v418
    %v1294 = vmul.f32 %v100, %v419
    %v1295 = vmul.f32 %v100, %v420
    %v1296 = vmul.f32 %v100, %v421
    %v1297 = vmul.f32 %v100, %v422
    %v1298 = vmul.f32 %v100, %v423
    %v1299 = vmul.f32 %v100, %v424
    %v1300 = vmul.f32 %v100, %v425
    %v1301 = vadd.f32 %v1285, %v1293
    %v1302 = vadd.f32 %v1286, %v1294
    %v1303 = vadd.f32 %v1287, %v1295
    %v1304 = vadd.f32 %v1288, %v1296
    %v1305 = vadd.f32 %v1289, %v1297
    %v1306 = vadd.f32 %v1290, %v1298
    %v1307 = vadd.f32 %v1291, %v1299
    %v1308 = vadd.f32 %v1292, %v1300
    %v1309 = vmul.f32 %v127, %v735
    %v1310 = vmul.f32 %v127, %v736
    %v1311 = vmul.f32 %v127, %v737
    %v1312 = vmul.f32 %v127, %v738
    %v1313 = vmul.f32 %v127, %v739
    %v1314 = vmul.f32 %v127, %v740
    %v1315 = vmul.f32 %v127, %v741
    %v1316 = vmul.f32 %v127, %v742
    %v1317 = vadd.f32 %v1301, %v1309
    %v1318 = vadd.f32 %v1302, %v1310
    %v1319 = vadd.f32 %v1303, %v1311
    %v1320 = vadd.f32 %v1304, %v1312
    %v1321 = vadd.f32 %v1305, %v1313
    %v1322 = vadd.f32 %v1306, %v1314
    %v1323 = vadd.f32 %v1307, %v1315
    %v1324 = vadd.f32 %v1308, %v1316
    %v1325 = vmul.f32 %v154, %v760
    %v1326 = vmul.f32 %v154, %v761
    %v1327 = vmul.f32 %v154, %v762
    %v1328 = vmul.f32 %v154, %v763
    %v1329 = vmul.f32 %v154, %v764
    %v1330 = vmul.f32 %v154, %v765
    %v1331 = vmul.f32 %v154, %v766
    %v1332 = vmul.f32 %v154, %v767
    %v1333 = vadd.f32 %v1317, %v1325
    %v1334 = vadd.f32 %v1318, %v1326
    %v1335 = vadd.f32 %v1319, %v1327
    %v1336 = vadd.f32 %v1320, %v1328
    %v1337 = vadd.f32 %v1321, %v1329
    %v1338 = vadd.f32 %v1322, %v1330
    %v1339 = vadd.f32 %v1323, %v1331
    %v1340 = vadd.f32 %v1324, %v1332
    %v1341 = vmul.f32 %v181, %v913
    %v1342 = vmul.f32 %v181, %v914
    %v1343 = vmul.f32 %v181, %v915
    %v1344 = vmul.f32 %v181, %v916
    %v1345 = vmul.f32 %v181, %v917
    %v1346 = vmul.f32 %v181, %v918
    %v1347 = vmul.f32 %v181, %v919
    %v1348 = vmul.f32 %v181, %v920
    %v1349 = vadd.f32 %v1333, %v1341
    %v1350 = vadd.f32 %v1334, %v1342
    %v1351 = vadd.f32 %v1335, %v1343
    %v1352 = vadd.f32 %v1336, %v1344
    %v1353 = vadd.f32 %v1337, %v1345
    %v1354 = vadd.f32 %v1338, %v1346
    %v1355 = vadd.f32 %v1339, %v1347
    %v1356 = vadd.f32 %v1340, %v1348
    %v1357 = vmul.f32 %v208, %v1212
    %v1358 = vmul.f32 %v208, %v1213
    %v1359 = vmul.f32 %v208, %v1214
    %v1360 = vmul.f32 %v208, %v1215
    %v1361 = vmul.f32 %v208, %v1216
    %v1362 = vmul.f32 %v208, %v1217
    %v1363 = vmul.f32 %v208, %v1218
    %v1364 = vmul.f32 %v208, %v1219
    %v1365 = vadd.f32 %v1349, %v1357
    %v1366 = vadd.f32 %v1350, %v1358
    %v1367 = vadd.f32 %v1351, %v1359
    %v1368 = vadd.f32 %v1352, %v1360
    %v1369 = vadd.f32 %v1353, %v1361
    %v1370 = vadd.f32 %v1354, %v1362
    %v1371 = vadd.f32 %v1355, %v1363
    %v1372 = vadd.f32 %v1356, %v1364
    %v1373 = vmul.f32 %v235, %v1237
    %v1374 = vmul.f32 %v235, %v1238
    %v1375 = vmul.f32 %v235, %v1239
    %v1376 = vmul.f32 %v235, %v1240
    %v1377 = vmul.f32 %v235, %v1241
    %v1378 = vmul.f32 %v235, %v1242
    %v1379 = vmul.f32 %v235, %v1243
    %v1380 = vmul.f32 %v235, %v1244
    %v1381 = vadd.f32 %v1365, %v1373
    %v1382 = vadd.f32 %v1366, %v1374
    %v1383 = vadd.f32 %v1367, %v1375
    %v1384 = vadd.f32 %v1368, %v1376
    %v1385 = vadd.f32 %v1369, %v1377
    %v1386 = vadd.f32 %v1370, %v1378
    %v1387 = vadd.f32 %v1371, %v1379
    %v1388 = vadd.f32 %v1372, %v1380
    %s1389 = scalar_lea.vmem %s0, 1472
    %v1390 = vld [vmem:[%s1389] sm:$0xff]
    %v1391 = vld [vmem:[%s1389 + $0x8] sm:$0xff]
    %v1392 = vld [vmem:[%s1389 + $0x10] sm:$0xff]
    %v1393 = vld [vmem:[%s1389 + $0x18] sm:$0xff]
    %v1394 = vld [vmem:[%s1389 + $0x20] sm:$0xff]
    %v1395 = vld [vmem:[%s1389 + $0x28] sm:$0xff]
    %v1396 = vld [vmem:[%s1389 + $0x30] sm:$0xff]
    %v1397 = vld [vmem:[%s1389 + $0x38] sm:$0xff]
    %v1398 = vmul.f32 %v262, %v1390
    %v1399 = vmul.f32 %v262, %v1391
    %v1400 = vmul.f32 %v262, %v1392
    %v1401 = vmul.f32 %v262, %v1393
    %v1402 = vmul.f32 %v262, %v1394
    %v1403 = vmul.f32 %v262, %v1395
    %v1404 = vmul.f32 %v262, %v1396
    %v1405 = vmul.f32 %v262, %v1397
    %v1406 = vadd.f32 %v1381, %v1398
    %v1407 = vadd.f32 %v1382, %v1399
    %v1408 = vadd.f32 %v1383, %v1400
    %v1409 = vadd.f32 %v1384, %v1401
    %v1410 = vadd.f32 %v1385, %v1402
    %v1411 = vadd.f32 %v1386, %v1403
    %v1412 = vadd.f32 %v1387, %v1404
    %v1413 = vadd.f32 %v1388, %v1405
    %v1414 = vmax.f32 %v1261, %v1406
    %v1415 = vmax.f32 %v1262, %v1407
    %v1416 = vmax.f32 %v1263, %v1408
    %v1417 = vmax.f32 %v1264, %v1409
    %v1418 = vmax.f32 %v1265, %v1410
    %v1419 = vmax.f32 %v1266, %v1411
    %v1420 = vmax.f32 %v1267, %v1412
    %v1421 = vmax.f32 %v1268, %v1413
    %v1422 = vmul.f32 %v54, %v253
    %v1423 = vmul.f32 %v54, %v254
    %v1424 = vmul.f32 %v54, %v255
    %v1425 = vmul.f32 %v54, %v256
    %v1426 = vmul.f32 %v54, %v257
    %v1427 = vmul.f32 %v54, %v258
    %v1428 = vmul.f32 %v54, %v259
    %v1429 = vmul.f32 %v54, %v260
    %v1430 = vmul.f32 %v73, %v418
    %v1431 = vmul.f32 %v73, %v419
    %v1432 = vmul.f32 %v73, %v420
    %v1433 = vmul.f32 %v73, %v421
    %v1434 = vmul.f32 %v73, %v422
    %v1435 = vmul.f32 %v73, %v423
    %v1436 = vmul.f32 %v73, %v424
    %v1437 = vmul.f32 %v73, %v425
    %v1438 = vadd.f32 %v1422, %v1430
    %v1439 = vadd.f32 %v1423, %v1431
    %v1440 = vadd.f32 %v1424, %v1432
    %v1441 = vadd.f32 %v1425, %v1433
    %v1442 = vadd.f32 %v1426, %v1434
    %v1443 = vadd.f32 %v1427, %v1435
    %v1444 = vadd.f32 %v1428, %v1436
    %v1445 = vadd.f32 %v1429, %v1437
    %v1446 = vmul.f32 %v100, %v589
    %v1447 = vmul.f32 %v100, %v590
    %v1448 = vmul.f32 %v100, %v591
    %v1449 = vmul.f32 %v100, %v592
    %v1450 = vmul.f32 %v100, %v593
    %v1451 = vmul.f32 %v100, %v594
    %v1452 = vmul.f32 %v100, %v595
    %v1453 = vmul.f32 %v100, %v596
    %v1454 = vadd.f32 %v1438, %v1446
    %v1455 = vadd.f32 %v1439, %v1447
    %v1456 = vadd.f32 %v1440, %v1448
    %v1457 = vadd.f32 %v1441, %v1449
    %v1458 = vadd.f32 %v1442, %v1450
    %v1459 = vadd.f32 %v1443, %v1451
    %v1460 = vadd.f32 %v1444, %v1452
    %v1461 = vadd.f32 %v1445, %v1453
    %v1462 = vmul.f32 %v127, %v760
    %v1463 = vmul.f32 %v127, %v761
    %v1464 = vmul.f32 %v127, %v762
    %v1465 = vmul.f32 %v127, %v763
    %v1466 = vmul.f32 %v127, %v764
    %v1467 = vmul.f32 %v127, %v765
    %v1468 = vmul.f32 %v127, %v766
    %v1469 = vmul.f32 %v127, %v767
    %v1470 = vadd.f32 %v1454, %v1462
    %v1471 = vadd.f32 %v1455, %v1463
    %v1472 = vadd.f32 %v1456, %v1464
    %v1473 = vadd.f32 %v1457, %v1465
    %v1474 = vadd.f32 %v1458, %v1466
    %v1475 = vadd.f32 %v1459, %v1467
    %v1476 = vadd.f32 %v1460, %v1468
    %v1477 = vadd.f32 %v1461, %v1469
    %v1478 = vmul.f32 %v154, %v913
    %v1479 = vmul.f32 %v154, %v914
    %v1480 = vmul.f32 %v154, %v915
    %v1481 = vmul.f32 %v154, %v916
    %v1482 = vmul.f32 %v154, %v917
    %v1483 = vmul.f32 %v154, %v918
    %v1484 = vmul.f32 %v154, %v919
    %v1485 = vmul.f32 %v154, %v920
    %v1486 = vadd.f32 %v1470, %v1478
    %v1487 = vadd.f32 %v1471, %v1479
    %v1488 = vadd.f32 %v1472, %v1480
    %v1489 = vadd.f32 %v1473, %v1481
    %v1490 = vadd.f32 %v1474, %v1482
    %v1491 = vadd.f32 %v1475, %v1483
    %v1492 = vadd.f32 %v1476, %v1484
    %v1493 = vadd.f32 %v1477, %v1485
    %v1494 = vmul.f32 %v181, %v1066
    %v1495 = vmul.f32 %v181, %v1067
    %v1496 = vmul.f32 %v181, %v1068
    %v1497 = vmul.f32 %v181, %v1069
    %v1498 = vmul.f32 %v181, %v1070
    %v1499 = vmul.f32 %v181, %v1071
    %v1500 = vmul.f32 %v181, %v1072
    %v1501 = vmul.f32 %v181, %v1073
    %v1502 = vadd.f32 %v1486, %v1494
    %v1503 = vadd.f32 %v1487, %v1495
    %v1504 = vadd.f32 %v1488, %v1496
    %v1505 = vadd.f32 %v1489, %v1497
    %v1506 = vadd.f32 %v1490, %v1498
    %v1507 = vadd.f32 %v1491, %v1499
    %v1508 = vadd.f32 %v1492, %v1500
    %v1509 = vadd.f32 %v1493, %v1501
    %v1510 = vmul.f32 %v208, %v1237
    %v1511 = vmul.f32 %v208, %v1238
    %v1512 = vmul.f32 %v208, %v1239
    %v1513 = vmul.f32 %v208, %v1240
    %v1514 = vmul.f32 %v208, %v1241
    %v1515 = vmul.f32 %v208, %v1242
    %v1516 = vmul.f32 %v208, %v1243
    %v1517 = vmul.f32 %v208, %v1244
    %v1518 = vadd.f32 %v1502, %v1510
    %v1519 = vadd.f32 %v1503, %v1511
    %v1520 = vadd.f32 %v1504, %v1512
    %v1521 = vadd.f32 %v1505, %v1513
    %v1522 = vadd.f32 %v1506, %v1514
    %v1523 = vadd.f32 %v1507, %v1515
    %v1524 = vadd.f32 %v1508, %v1516
    %v1525 = vadd.f32 %v1509, %v1517
    %v1526 = vmul.f32 %v235, %v1390
    %v1527 = vmul.f32 %v235, %v1391
    %v1528 = vmul.f32 %v235, %v1392
    %v1529 = vmul.f32 %v235, %v1393
    %v1530 = vmul.f32 %v235, %v1394
    %v1531 = vmul.f32 %v235, %v1395
    %v1532 = vmul.f32 %v235, %v1396
    %v1533 = vmul.f32 %v235, %v1397
    %v1534 = vadd.f32 %v1518, %v1526
    %v1535 = vadd.f32 %v1519, %v1527
    %v1536 = vadd.f32 %v1520, %v1528
    %v1537 = vadd.f32 %v1521, %v1529
    %v1538 = vadd.f32 %v1522, %v1530
    %v1539 = vadd.f32 %v1523, %v1531
    %v1540 = vadd.f32 %v1524, %v1532
    %v1541 = vadd.f32 %v1525, %v1533
    %s1542 = scalar_lea.vmem %s0, 1536
    %v1543 = vld [vmem:[%s1542] sm:$0xff]
    %v1544 = vld [vmem:[%s1542 + $0x8] sm:$0xff]
    %v1545 = vld [vmem:[%s1542 + $0x10] sm:$0xff]
    %v1546 = vld [vmem:[%s1542 + $0x18] sm:$0xff]
    %v1547 = vld [vmem:[%s1542 + $0x20] sm:$0xff]
    %v1548 = vld [vmem:[%s1542 + $0x28] sm:$0xff]
    %v1549 = vld [vmem:[%s1542 + $0x30] sm:$0xff]
    %v1550 = vld [vmem:[%s1542 + $0x38] sm:$0xff]
    %v1551 = vmul.f32 %v262, %v1543
    %v1552 = vmul.f32 %v262, %v1544
    %v1553 = vmul.f32 %v262, %v1545
    %v1554 = vmul.f32 %v262, %v1546
    %v1555 = vmul.f32 %v262, %v1547
    %v1556 = vmul.f32 %v262, %v1548
    %v1557 = vmul.f32 %v262, %v1549
    %v1558 = vmul.f32 %v262, %v1550
    %v1559 = vadd.f32 %v1534, %v1551
    %v1560 = vadd.f32 %v1535, %v1552
    %v1561 = vadd.f32 %v1536, %v1553
    %v1562 = vadd.f32 %v1537, %v1554
    %v1563 = vadd.f32 %v1538, %v1555
    %v1564 = vadd.f32 %v1539, %v1556
    %v1565 = vadd.f32 %v1540, %v1557
    %v1566 = vadd.f32 %v1541, %v1558
    %v1567 = vmax.f32 %v1414, %v1559
    %v1568 = vmax.f32 %v1415, %v1560
    %v1569 = vmax.f32 %v1416, %v1561
    %v1570 = vmax.f32 %v1417, %v1562
    %v1571 = vmax.f32 %v1418, %v1563
    %v1572 = vmax.f32 %v1419, %v1564
    %v1573 = vmax.f32 %v1420, %v1565
    %v1574 = vmax.f32 %v1421, %v1566
    %s1575 = sld [smem:[#allocation4]]
    %v1576 = vstv %s1575
    %v1577 = vadd.f32 %v1567, %v1576
    %v1578 = vadd.f32 %v1568, %v1576
    %v1579 = vadd.f32 %v1569, %v1576
    %v1580 = vadd.f32 %v1570, %v1576
    %v1581 = vadd.f32 %v1571, %v1576
    %v1582 = vadd.f32 %v1572, %v1576
    %v1583 = vadd.f32 %v1573, %v1576
    %v1584 = vadd.f32 %v1574, %v1576
    %v1585 = vmax.f32 %v1577, 0.0
    %v1586 = vmax.f32 %v1578, 0.0
    %v1587 = vmax.f32 %v1579, 0.0
    %v1588 = vmax.f32 %v1580, 0.0
    %v1589 = vmax.f32 %v1581, 0.0
    %v1590 = vmax.f32 %v1582, 0.0
    %v1591 = vmax.f32 %v1583, 0.0
    %v1592 = vmax.f32 %v1584, 0.0
    %v1593 = vld [vmem:[%s3] sm:$0xff]
    %v1594 = vld [vmem:[%s3 + $0x8] sm:$0x3]
    %s1595 = sld [smem:[#allocation2 + $0x80]]
    %v1596 = vstv %s1595
    %v1597 = vmul.f32 %v1596, %v45
    %v1598 = vmul.f32 %v1596, %v46
    %v1599 = vmul.f32 %v1596, %v47
    %v1600 = vmul.f32 %v1596, %v48
    %v1601 = vmul.f32 %v1596, %v49
    %v1602 = vmul.f32 %v1596, %v50
    %v1603 = vmul.f32 %v1596, %v51
    %v1604 = vmul.f32 %v1596, %v52
    %s1605 = sld [smem:[#allocation2 + $0x81]]
    %v1606 = vstv %s1605
    %v1607 = vmul.f32 %v1606, %v64
    %v1608 = vmul.f32 %v1606, %v65
    %v1609 = vmul.f32 %v1606, %v66
    %v1610 = vmul.f32 %v1606, %v67
    %v1611 = vmul.f32 %v1606, %v68
    %v1612 = vmul.f32 %v1606, %v69
    %v1613 = vmul.f32 %v1606, %v70
    %v1614 = vmul.f32 %v1606, %v71
    %v1615 = vadd.f32 %v1597, %v1607
    %v1616 = vadd.f32 %v1598, %v1608
    %v1617 = vadd.f32 %v1599, %v1609
    %v1618 = vadd.f32 %v1600, %v1610
    %v1619 = vadd.f32 %v1601, %v1611
    %v1620 = vadd.f32 %v1602, %v1612
    %v1621 = vadd.f32 %v1603, %v1613
    %v1622 = vadd.f32 %v1604, %v1614
    %s1623 = sld [smem:[#allocation2 + $0x82]]
    %v1624 = vstv %s1623
    %v1625 = vmul.f32 %v1624, %v91
    %v1626 = vmul.f32 %v1624, %v92
    %v1627 = vmul.f32 %v1624, %v93
    %v1628 = vmul.f32 %v1624, %v94
    %v1629 = vmul.f32 %v1624, %v95
    %v1630 = vmul.f32 %v1624, %v96
    %v1631 = vmul.f32 %v1624, %v97
    %v1632 = vmul.f32 %v1624, %v98
    %v1633 = vadd.f32 %v1615, %v1625
    %v1634 = vadd.f32 %v1616, %v1626
    %v1635 = vadd.f32 %v1617, %v1627
    %v1636 = vadd.f32 %v1618, %v1628
    %v1637 = vadd.f32 %v1619, %v1629
    %v1638 = vadd.f32 %v1620, %v1630
    %v1639 = vadd.f32 %v1621, %v1631
    %v1640 = vadd.f32 %v1622, %v1632
    %s1641 = sld [smem:[#allocation2 + $0x83]]
    %v1642 = vstv %s1641
    %v1643 = vmul.f32 %v1642, %v118
    %v1644 = vmul.f32 %v1642, %v119
    %v1645 = vmul.f32 %v1642, %v120
    %v1646 = vmul.f32 %v1642, %v121
    %v1647 = vmul.f32 %v1642, %v122
    %v1648 = vmul.f32 %v1642, %v123
    %v1649 = vmul.f32 %v1642, %v124
    %v1650 = vmul.f32 %v1642, %v125
    %v1651 = vadd.f32 %v1633, %v1643
    %v1652 = vadd.f32 %v1634, %v1644
    %v1653 = vadd.f32 %v1635, %v1645
    %v1654 = vadd.f32 %v1636, %v1646
    %v1655 = vadd.f32 %v1637, %v1647
    %v1656 = vadd.f32 %v1638, %v1648
    %v1657 = vadd.f32 %v1639, %v1649
    %v1658 = vadd.f32 %v1640, %v1650
    %s1659 = sld [smem:[#allocation2 + $0x84]]
    %v1660 = vstv %s1659
    %v1661 = vmul.f32 %v1660, %v145
    %v1662 = vmul.f32 %v1660, %v146
    %v1663 = vmul.f32 %v1660, %v147
    %v1664 = vmul.f32 %v1660, %v148
    %v1665 = vmul.f32 %v1660, %v149
    %v1666 = vmul.f32 %v1660, %v150
    %v1667 = vmul.f32 %v1660, %v151
    %v1668 = vmul.f32 %v1660, %v152
    %v1669 = vadd.f32 %v1651, %v1661
    %v1670 = vadd.f32 %v1652, %v1662
    %v1671 = vadd.f32 %v1653, %v1663
    %v1672 = vadd.f32 %v1654, %v1664
    %v1673 = vadd.f32 %v1655, %v1665
    %v1674 = vadd.f32 %v1656, %v1666
    %v1675 = vadd.f32 %v1657, %v1667
    %v1676 = vadd.f32 %v1658, %v1668
    %s1677 = sld [smem:[#allocation2 + $0x85]]
    %v1678 = vstv %s1677
    %v1679 = vmul.f32 %v1678, %v172
    %v1680 = vmul.f32 %v1678, %v173
    %v1681 = vmul.f32 %v1678, %v174
    %v1682 = vmul.f32 %v1678, %v175
    %v1683 = vmul.f32 %v1678, %v176
    %v1684 = vmul.f32 %v1678, %v177
    %v1685 = vmul.f32 %v1678, %v178
    %v1686 = vmul.f32 %v1678, %v179
    %v1687 = vadd.f32 %v1669, %v1679
    %v1688 = vadd.f32 %v1670, %v1680
    %v1689 = vadd.f32 %v1671, %v1681
    %v1690 = vadd.f32 %v1672, %v1682
    %v1691 = vadd.f32 %v1673, %v1683
    %v1692 = vadd.f32 %v1674, %v1684
    %v1693 = vadd.f32 %v1675, %v1685
    %v1694 = vadd.f32 %v1676, %v1686
    %s1695 = sld [smem:[#allocation2 + $0x86]]
    %v1696 = vstv %s1695
    %v1697 = vmul.f32 %v1696, %v199
    %v1698 = vmul.f32 %v1696, %v200
    %v1699 = vmul.f32 %v1696, %v201
    %v1700 = vmul.f32 %v1696, %v202
    %v1701 = vmul.f32 %v1696, %v203
    %v1702 = vmul.f32 %v1696, %v204
    %v1703 = vmul.f32 %v1696, %v205
    %v1704 = vmul.f32 %v1696, %v206
    %v1705 = vadd.f32 %v1687, %v1697
    %v1706 = vadd.f32 %v1688, %v1698
    %v1707 = vadd.f32 %v1689, %v1699
    %v1708 = vadd.f32 %v1690, %v1700
    %v1709 = vadd.f32 %v1691, %v1701
    %v1710 = vadd.f32 %v1692, %v1702
    %v1711 = vadd.f32 %v1693, %v1703
    %v1712 = vadd.f32 %v1694, %v1704
    %s1713 = sld [smem:[#allocation2 + $0x87]]
    %v1714 = vstv %s1713
    %v1715 = vmul.f32 %v1714, %v226
    %v1716 = vmul.f32 %v1714, %v227
    %v1717 = vmul.f32 %v1714, %v228
    %v1718 = vmul.f32 %v1714, %v229
    %v1719 = vmul.f32 %v1714, %v230
    %v1720 = vmul.f32 %v1714, %v231
    %v1721 = vmul.f32 %v1714, %v232
    %v1722 = vmul.f32 %v1714, %v233
    %v1723 = vadd.f32 %v1705, %v1715
    %v1724 = vadd.f32 %v1706, %v1716
    %v1725 = vadd.f32 %v1707, %v1717
    %v1726 = vadd.f32 %v1708, %v1718
    %v1727 = vadd.f32 %v1709, %v1719
    %v1728 = vadd.f32 %v1710, %v1720
    %v1729 = vadd.f32 %v1711, %v1721
    %v1730 = vadd.f32 %v1712, %v1722
    %s1731 = sld [smem:[#allocation2 + $0x88]]
    %v1732 = vstv %s1731
    %v1733 = vmul.f32 %v1732, %v253
    %v1734 = vmul.f32 %v1732, %v254
    %v1735 = vmul.f32 %v1732, %v255
    %v1736 = vmul.f32 %v1732, %v256
    %v1737 = vmul.f32 %v1732, %v257
    %v1738 = vmul.f32 %v1732, %v258
    %v1739 = vmul.f32 %v1732, %v259
    %v1740 = vmul.f32 %v1732, %v260
    %v1741 = vadd.f32 %v1723, %v1733
    %v1742 = vadd.f32 %v1724, %v1734
    %v1743 = vadd.f32 %v1725, %v1735
    %v1744 = vadd.f32 %v1726, %v1736
    %v1745 = vadd.f32 %v1727, %v1737
    %v1746 = vadd.f32 %v1728, %v1738
    %v1747 = vadd.f32 %v1729, %v1739
    %v1748 = vadd.f32 %v1730, %v1740
    %v1749 = vmul.f32 %v1596, %v64
    %v1750 = vmul.f32 %v1596, %v65
    %v1751 = vmul.f32 %v1596, %v66
    %v1752 = vmul.f32 %v1596, %v67
    %v1753 = vmul.f32 %v1596, %v68
    %v1754 = vmul.f32 %v1596, %v69
    %v1755 = vmul.f32 %v1596, %v70
    %v1756 = vmul.f32 %v1596, %v71
    %v1757 = vmul.f32 %v1606, %v91
    %v1758 = vmul.f32 %v1606, %v92
    %v1759 = vmul.f32 %v1606, %v93
    %v1760 = vmul.f32 %v1606, %v94
    %v1761 = vmul.f32 %v1606, %v95
    %v1762 = vmul.f32 %v1606, %v96
    %v1763 = vmul.f32 %v1606, %v97
    %v1764 = vmul.f32 %v1606, %v98
    %v1765 = vadd.f32 %v1749, %v1757
    %v1766 = vadd.f32 %v1750, %v1758
    %v1767 = vadd.f32 %v1751, %v1759
    %v1768 = vadd.f32 %v1752, %v1760
    %v1769 = vadd.f32 %v1753, %v1761
    %v1770 = vadd.f32 %v1754, %v1762
    %v1771 = vadd.f32 %v1755, %v1763
    %v1772 = vadd.f32 %v1756, %v1764
    %v1773 = vmul.f32 %v1624, %v304
    %v1774 = vmul.f32 %v1624, %v305
    %v1775 = vmul.f32 %v1624, %v306
    %v1776 = vmul.f32 %v1624, %v307
    %v1777 = vmul.f32 %v1624, %v308
    %v1778 = vmul.f32 %v1624, %v309
    %v1779 = vmul.f32 %v1624, %v310
    %v1780 = vmul.f32 %v1624, %v311
    %v1781 = vadd.f32 %v1765, %v1773
    %v1782 = vadd.f32 %v1766, %v1774
    %v1783 = vadd.f32 %v1767, %v1775
    %v1784 = vadd.f32 %v1768, %v1776
    %v1785 = vadd.f32 %v1769, %v1777
    %v1786 = vadd.f32 %v1770, %v1778
    %v1787 = vadd.f32 %v1771, %v1779
    %v1788 = vadd.f32 %v1772, %v1780
    %v1789 = vmul.f32 %v1642, %v145
    %v1790 = vmul.f32 %v1642, %v146
    %v1791 = vmul.f32 %v1642, %v147
    %v1792 = vmul.f32 %v1642, %v148
    %v1793 = vmul.f32 %v1642, %v149
    %v1794 = vmul.f32 %v1642, %v150
    %v1795 = vmul.f32 %v1642, %v151
    %v1796 = vmul.f32 %v1642, %v152
    %v1797 = vadd.f32 %v1781, %v1789
    %v1798 = vadd.f32 %v1782, %v1790
    %v1799 = vadd.f32 %v1783, %v1791
    %v1800 = vadd.f32 %v1784, %v1792
    %v1801 = vadd.f32 %v1785, %v1793
    %v1802 = vadd.f32 %v1786, %v1794
    %v1803 = vadd.f32 %v1787, %v1795
    %v1804 = vadd.f32 %v1788, %v1796
    %v1805 = vmul.f32 %v1660, %v172
    %v1806 = vmul.f32 %v1660, %v173
    %v1807 = vmul.f32 %v1660, %v174
    %v1808 = vmul.f32 %v1660, %v175
    %v1809 = vmul.f32 %v1660, %v176
    %v1810 = vmul.f32 %v1660, %v177
    %v1811 = vmul.f32 %v1660, %v178
    %v1812 = vmul.f32 %v1660, %v179
    %v1813 = vadd.f32 %v1797, %v1805
    %v1814 = vadd.f32 %v1798, %v1806
    %v1815 = vadd.f32 %v1799, %v1807
    %v1816 = vadd.f32 %v1800, %v1808
    %v1817 = vadd.f32 %v1801, %v1809
    %v1818 = vadd.f32 %v1802, %v1810
    %v1819 = vadd.f32 %v1803, %v1811
    %v1820 = vadd.f32 %v1804, %v1812
    %v1821 = vmul.f32 %v1678, %v361
    %v1822 = vmul.f32 %v1678, %v362
    %v1823 = vmul.f32 %v1678, %v363
    %v1824 = vmul.f32 %v1678, %v364
    %v1825 = vmul.f32 %v1678, %v365
    %v1826 = vmul.f32 %v1678, %v366
    %v1827 = vmul.f32 %v1678, %v367
    %v1828 = vmul.f32 %v1678, %v368
    %v1829 = vadd.f32 %v1813, %v1821
    %v1830 = vadd.f32 %v1814, %v1822
    %v1831 = vadd.f32 %v1815, %v1823
    %v1832 = vadd.f32 %v1816, %v1824
    %v1833 = vadd.f32 %v1817, %v1825
    %v1834 = vadd.f32 %v1818, %v1826
    %v1835 = vadd.f32 %v1819, %v1827
    %v1836 = vadd.f32 %v1820, %v1828
    %v1837 = vmul.f32 %v1696, %v226
    %v1838 = vmul.f32 %v1696, %v227
    %v1839 = vmul.f32 %v1696, %v228
    %v1840 = vmul.f32 %v1696, %v229
    %v1841 = vmul.f32 %v1696, %v230
    %v1842 = vmul.f32 %v1696, %v231
    %v1843 = vmul.f32 %v1696, %v232
    %v1844 = vmul.f32 %v1696, %v233
    %v1845 = vadd.f32 %v1829, %v1837
    %v1846 = vadd.f32 %v1830, %v1838
    %v1847 = vadd.f32 %v1831, %v1839
    %v1848 = vadd.f32 %v1832, %v1840
    %v1849 = vadd.f32 %v1833, %v1841
    %v1850 = vadd.f32 %v1834, %v1842
    %v1851 = vadd.f32 %v1835, %v1843
    %v1852 = vadd.f32 %v1836, %v1844
    %v1853 = vmul.f32 %v1714, %v253
    %v1854 = vmul.f32 %v1714, %v254
    %v1855 = vmul.f32 %v1714, %v255
    %v1856 = vmul.f32 %v1714, %v256
    %v1857 = vmul.f32 %v1714, %v257
    %v1858 = vmul.f32 %v1714, %v258
    %v1859 = vmul.f32 %v1714, %v259
    %v1860 = vmul.f32 %v1714, %v260
    %v1861 = vadd.f32 %v1845, %v1853
    %v1862 = vadd.f32 %v1846, %v1854
    %v1863 = vadd.f32 %v1847, %v1855
    %v1864 = vadd.f32 %v1848, %v1856
    %v1865 = vadd.f32 %v1849, %v1857
    %v1866 = vadd.f32 %v1850, %v1858
    %v1867 = vadd.f32 %v1851, %v1859
    %v1868 = vadd.f32 %v1852, %v1860
    %v1869 = vmul.f32 %v1732, %v418
    %v1870 = vmul.f32 %v1732, %v419
    %v1871 = vmul.f32 %v1732, %v420
    %v1872 = vmul.f32 %v1732, %v421
    %v1873 = vmul.f32 %v1732, %v422
    %v1874 = vmul.f32 %v1732, %v423
    %v1875 = vmul.f32 %v1732, %v424
    %v1876 = vmul.f32 %v1732, %v425
    %v1877 = vadd.f32 %v1861, %v1869
    %v1878 = vadd.f32 %v1862, %v1870
    %v1879 = vadd.f32 %v1863, %v1871
    %v1880 = vadd.f32 %v1864, %v1872
    %v1881 = vadd.f32 %v1865, %v1873
    %v1882 = vadd.f32 %v1866, %v1874
    %v1883 = vadd.f32 %v1867, %v1875
    %v1884 = vadd.f32 %v1868, %v1876
    %v1885 = vmax.f32 %v1741, %v1877
    %v1886 = vmax.f32 %v1742, %v1878
    %v1887 = vmax.f32 %v1743, %v1879
    %v1888 = vmax.f32 %v1744, %v1880
    %v1889 = vmax.f32 %v1745, %v1881
    %v1890 = vmax.f32 %v1746, %v1882
    %v1891 = vmax.f32 %v1747, %v1883
    %v1892 = vmax.f32 %v1748, %v1884
    %v1893 = vmul.f32 %v1596, %v91
    %v1894 = vmul.f32 %v1596, %v92
    %v1895 = vmul.f32 %v1596, %v93
    %v1896 = vmul.f32 %v1596, %v94
    %v1897 = vmul.f32 %v1596, %v95
    %v1898 = vmul.f32 %v1596, %v96
    %v1899 = vmul.f32 %v1596, %v97
    %v1900 = vmul.f32 %v1596, %v98
    %v1901 = vmul.f32 %v1606, %v304
    %v1902 = vmul.f32 %v1606, %v305
    %v1903 = vmul.f32 %v1606, %v306
    %v1904 = vmul.f32 %v1606, %v307
    %v1905 = vmul.f32 %v1606, %v308
    %v1906 = vmul.f32 %v1606, %v309
    %v1907 = vmul.f32 %v1606, %v310
    %v1908 = vmul.f32 %v1606, %v311
    %v1909 = vadd.f32 %v1893, %v1901
    %v1910 = vadd.f32 %v1894, %v1902
    %v1911 = vadd.f32 %v1895, %v1903
    %v1912 = vadd.f32 %v1896, %v1904
    %v1913 = vadd.f32 %v1897, %v1905
    %v1914 = vadd.f32 %v1898, %v1906
    %v1915 = vadd.f32 %v1899, %v1907
    %v1916 = vadd.f32 %v1900, %v1908
    %v1917 = vmul.f32 %v1624, %v475
    %v1918 = vmul.f32 %v1624, %v476
    %v1919 = vmul.f32 %v1624, %v477
    %v1920 = vmul.f32 %v1624, %v478
    %v1921 = vmul.f32 %v1624, %v479
    %v1922 = vmul.f32 %v1624, %v480
    %v1923 = vmul.f32 %v1624, %v481
    %v1924 = vmul.f32 %v1624, %v482
    %v1925 = vadd.f32 %v1909, %v1917
    %v1926 = vadd.f32 %v1910, %v1918
    %v1927 = vadd.f32 %v1911, %v1919
    %v1928 = vadd.f32 %v1912, %v1920
    %v1929 = vadd.f32 %v1913, %v1921
    %v1930 = vadd.f32 %v1914, %v1922
    %v1931 = vadd.f32 %v1915, %v1923
    %v1932 = vadd.f32 %v1916, %v1924
    %v1933 = vmul.f32 %v1642, %v172
    %v1934 = vmul.f32 %v1642, %v173
    %v1935 = vmul.f32 %v1642, %v174
    %v1936 = vmul.f32 %v1642, %v175
    %v1937 = vmul.f32 %v1642, %v176
    %v1938 = vmul.f32 %v1642, %v177
    %v1939 = vmul.f32 %v1642, %v178
    %v1940 = vmul.f32 %v1642, %v179
    %v1941 = vadd.f32 %v1925, %v1933
    %v1942 = vadd.f32 %v1926, %v1934
    %v1943 = vadd.f32 %v1927, %v1935
    %v1944 = vadd.f32 %v1928, %v1936
    %v1945 = vadd.f32 %v1929, %v1937
    %v1946 = vadd.f32 %v1930, %v1938
    %v1947 = vadd.f32 %v1931, %v1939
    %v1948 = vadd.f32 %v1932, %v1940
    %v1949 = vmul.f32 %v1660, %v361
    %v1950 = vmul.f32 %v1660, %v362
    %v1951 = vmul.f32 %v1660, %v363
    %v1952 = vmul.f32 %v1660, %v364
    %v1953 = vmul.f32 %v1660, %v365
    %v1954 = vmul.f32 %v1660, %v366
    %v1955 = vmul.f32 %v1660, %v367
    %v1956 = vmul.f32 %v1660, %v368
    %v1957 = vadd.f32 %v1941, %v1949
    %v1958 = vadd.f32 %v1942, %v1950
    %v1959 = vadd.f32 %v1943, %v1951
    %v1960 = vadd.f32 %v1944, %v1952
    %v1961 = vadd.f32 %v1945, %v1953
    %v1962 = vadd.f32 %v1946, %v1954
    %v1963 = vadd.f32 %v1947, %v1955
    %v1964 = vadd.f32 %v1948, %v1956
    %v1965 = vmul.f32 %v1678, %v532
    %v1966 = vmul.f32 %v1678, %v533
    %v1967 = vmul.f32 %v1678, %v534
    %v1968 = vmul.f32 %v1678, %v535
    %v1969 = vmul.f32 %v1678, %v536
    %v1970 = vmul.f32 %v1678, %v537
    %v1971 = vmul.f32 %v1678, %v538
    %v1972 = vmul.f32 %v1678, %v539
    %v1973 = vadd.f32 %v1957, %v1965
    %v1974 = vadd.f32 %v1958, %v1966
    %v1975 = vadd.f32 %v1959, %v1967
    %v1976 = vadd.f32 %v1960, %v1968
    %v1977 = vadd.f32 %v1961, %v1969
    %v1978 = vadd.f32 %v1962, %v1970
    %v1979 = vadd.f32 %v1963, %v1971
    %v1980 = vadd.f32 %v1964, %v1972
    %v1981 = vmul.f32 %v1696, %v253
    %v1982 = vmul.f32 %v1696, %v254
    %v1983 = vmul.f32 %v1696, %v255
    %v1984 = vmul.f32 %v1696, %v256
    %v1985 = vmul.f32 %v1696, %v257
    %v1986 = vmul.f32 %v1696, %v258
    %v1987 = vmul.f32 %v1696, %v259
    %v1988 = vmul.f32 %v1696, %v260
    %v1989 = vadd.f32 %v1973, %v1981
    %v1990 = vadd.f32 %v1974, %v1982
    %v1991 = vadd.f32 %v1975, %v1983
    %v1992 = vadd.f32 %v1976, %v1984
    %v1993 = vadd.f32 %v1977, %v1985
    %v1994 = vadd.f32 %v1978, %v1986
    %v1995 = vadd.f32 %v1979, %v1987
    %v1996 = vadd.f32 %v1980, %v1988
    %v1997 = vmul.f32 %v1714, %v418
    %v1998 = vmul.f32 %v1714, %v419
    %v1999 = vmul.f32 %v1714, %v420
    %v2000 = vmul.f32 %v1714, %v421
    %v2001 = vmul.f32 %v1714, %v422
    %v2002 = vmul.f32 %v1714, %v423
    %v2003 = vmul.f32 %v1714, %v424
    %v2004 = vmul.f32 %v1714, %v425
    %v2005 = vadd.f32 %v1989, %v1997
    %v2006 = vadd.f32 %v1990, %v1998
    %v2007 = vadd.f32 %v1991, %v1999
    %v2008 = vadd.f32 %v1992, %v2000
    %v2009 = vadd.f32 %v1993, %v2001
    %v2010 = vadd.f32 %v1994, %v2002
    %v2011 = vadd.f32 %v1995, %v2003
    %v2012 = vadd.f32 %v1996, %v2004
    %v2013 = vmul.f32 %v1732, %v589
    %v2014 = vmul.f32 %v1732, %v590
    %v2015 = vmul.f32 %v1732, %v591
    %v2016 = vmul.f32 %v1732, %v592
    %v2017 = vmul.f32 %v1732, %v593
    %v2018 = vmul.f32 %v1732, %v594
    %v2019 = vmul.f32 %v1732, %v595
    %v2020 = vmul.f32 %v1732, %v596
    %v2021 = vadd.f32 %v2005, %v2013
    %v2022 = vadd.f32 %v2006, %v2014
    %v2023 = vadd.f32 %v2007, %v2015
    %v2024 = vadd.f32 %v2008, %v2016
    %v2025 = vadd.f32 %v2009, %v2017
    %v2026 = vadd.f32 %v2010, %v2018
    %v2027 = vadd.f32 %v2011, %v2019
    %v2028 = vadd.f32 %v2012, %v2020
    %v2029 = vmax.f32 %v1885, %v2021
    %v2030 = vmax.f32 %v1886, %v2022
    %v2031 = vmax.f32 %v1887, %v2023
    %v2032 = vmax.f32 %v1888, %v2024
    %v2033 = vmax.f32 %v1889, %v2025
    %v2034 = vmax.f32 %v1890, %v2026
    %v2035 = vmax.f32 %v1891, %v2027
    %v2036 = vmax.f32 %v1892, %v2028
    %v2037 = vmul.f32 %v1596, %v118
    %v2038 = vmul.f32 %v1596, %v119
    %v2039 = vmul.f32 %v1596, %v120
    %v2040 = vmul.f32 %v1596, %v121
    %v2041 = vmul.f32 %v1596, %v122
    %v2042 = vmul.f32 %v1596, %v123
    %v2043 = vmul.f32 %v1596, %v124
    %v2044 = vmul.f32 %v1596, %v125
    %v2045 = vmul.f32 %v1606, %v145
    %v2046 = vmul.f32 %v1606, %v146
    %v2047 = vmul.f32 %v1606, %v147
    %v2048 = vmul.f32 %v1606, %v148
    %v2049 = vmul.f32 %v1606, %v149
    %v2050 = vmul.f32 %v1606, %v150
    %v2051 = vmul.f32 %v1606, %v151
    %v2052 = vmul.f32 %v1606, %v152
    %v2053 = vadd.f32 %v2037, %v2045
    %v2054 = vadd.f32 %v2038, %v2046
    %v2055 = vadd.f32 %v2039, %v2047
    %v2056 = vadd.f32 %v2040, %v2048
    %v2057 = vadd.f32 %v2041, %v2049
    %v2058 = vadd.f32 %v2042, %v2050
    %v2059 = vadd.f32 %v2043, %v2051
    %v2060 = vadd.f32 %v2044, %v2052
    %v2061 = vmul.f32 %v1624, %v172
    %v2062 = vmul.f32 %v1624, %v173
    %v2063 = vmul.f32 %v1624, %v174
    %v2064 = vmul.f32 %v1624, %v175
    %v2065 = vmul.f32 %v1624, %v176
    %v2066 = vmul.f32 %v1624, %v177
    %v2067 = vmul.f32 %v1624, %v178
    %v2068 = vmul.f32 %v1624, %v179
    %v2069 = vadd.f32 %v2053, %v2061
    %v2070 = vadd.f32 %v2054, %v2062
    %v2071 = vadd.f32 %v2055, %v2063
    %v2072 = vadd.f32 %v2056, %v2064
    %v2073 = vadd.f32 %v2057, %v2065
    %v2074 = vadd.f32 %v2058, %v2066
    %v2075 = vadd.f32 %v2059, %v2067
    %v2076 = vadd.f32 %v2060, %v2068
    %v2077 = vmul.f32 %v1642, %v199
    %v2078 = vmul.f32 %v1642, %v200
    %v2079 = vmul.f32 %v1642, %v201
    %v2080 = vmul.f32 %v1642, %v202
    %v2081 = vmul.f32 %v1642, %v203
    %v2082 = vmul.f32 %v1642, %v204
    %v2083 = vmul.f32 %v1642, %v205
    %v2084 = vmul.f32 %v1642, %v206
    %v2085 = vadd.f32 %v2069, %v2077
    %v2086 = vadd.f32 %v2070, %v2078
    %v2087 = vadd.f32 %v2071, %v2079
    %v2088 = vadd.f32 %v2072, %v2080
    %v2089 = vadd.f32 %v2073, %v2081
    %v2090 = vadd.f32 %v2074, %v2082
    %v2091 = vadd.f32 %v2075, %v2083
    %v2092 = vadd.f32 %v2076, %v2084
    %v2093 = vmul.f32 %v1660, %v226
    %v2094 = vmul.f32 %v1660, %v227
    %v2095 = vmul.f32 %v1660, %v228
    %v2096 = vmul.f32 %v1660, %v229
    %v2097 = vmul.f32 %v1660, %v230
    %v2098 = vmul.f32 %v1660, %v231
    %v2099 = vmul.f32 %v1660, %v232
    %v2100 = vmul.f32 %v1660, %v233
    %v2101 = vadd.f32 %v2085, %v2093
    %v2102 = vadd.f32 %v2086, %v2094
    %v2103 = vadd.f32 %v2087, %v2095
    %v2104 = vadd.f32 %v2088, %v2096
    %v2105 = vadd.f32 %v2089, %v2097
    %v2106 = vadd.f32 %v2090, %v2098
    %v2107 = vadd.f32 %v2091, %v2099
    %v2108 = vadd.f32 %v2092, %v2100
    %v2109 = vmul.f32 %v1678, %v253
    %v2110 = vmul.f32 %v1678, %v254
    %v2111 = vmul.f32 %v1678, %v255
    %v2112 = vmul.f32 %v1678, %v256
    %v2113 = vmul.f32 %v1678, %v257
    %v2114 = vmul.f32 %v1678, %v258
    %v2115 = vmul.f32 %v1678, %v259
    %v2116 = vmul.f32 %v1678, %v260
    %v2117 = vadd.f32 %v2101, %v2109
    %v2118 = vadd.f32 %v2102, %v2110
    %v2119 = vadd.f32 %v2103, %v2111
    %v2120 = vadd.f32 %v2104, %v2112
    %v2121 = vadd.f32 %v2105, %v2113
    %v2122 = vadd.f32 %v2106, %v2114
    %v2123 = vadd.f32 %v2107, %v2115
    %v2124 = vadd.f32 %v2108, %v2116
    %v2125 = vmul.f32 %v1696, %v710
    %v2126 = vmul.f32 %v1696, %v711
    %v2127 = vmul.f32 %v1696, %v712
    %v2128 = vmul.f32 %v1696, %v713
    %v2129 = vmul.f32 %v1696, %v714
    %v2130 = vmul.f32 %v1696, %v715
    %v2131 = vmul.f32 %v1696, %v716
    %v2132 = vmul.f32 %v1696, %v717
    %v2133 = vadd.f32 %v2117, %v2125
    %v2134 = vadd.f32 %v2118, %v2126
    %v2135 = vadd.f32 %v2119, %v2127
    %v2136 = vadd.f32 %v2120, %v2128
    %v2137 = vadd.f32 %v2121, %v2129
    %v2138 = vadd.f32 %v2122, %v2130
    %v2139 = vadd.f32 %v2123, %v2131
    %v2140 = vadd.f32 %v2124, %v2132
    %v2141 = vmul.f32 %v1714, %v735
    %v2142 = vmul.f32 %v1714, %v736
    %v2143 = vmul.f32 %v1714, %v737
    %v2144 = vmul.f32 %v1714, %v738
    %v2145 = vmul.f32 %v1714, %v739
    %v2146 = vmul.f32 %v1714, %v740
    %v2147 = vmul.f32 %v1714, %v741
    %v2148 = vmul.f32 %v1714, %v742
    %v2149 = vadd.f32 %v2133, %v2141
    %v2150 = vadd.f32 %v2134, %v2142
    %v2151 = vadd.f32 %v2135, %v2143
    %v2152 = vadd.f32 %v2136, %v2144
    %v2153 = vadd.f32 %v2137, %v2145
    %v2154 = vadd.f32 %v2138, %v2146
    %v2155 = vadd.f32 %v2139, %v2147
    %v2156 = vadd.f32 %v2140, %v2148
    %v2157 = vmul.f32 %v1732, %v760
    %v2158 = vmul.f32 %v1732, %v761
    %v2159 = vmul.f32 %v1732, %v762
    %v2160 = vmul.f32 %v1732, %v763
    %v2161 = vmul.f32 %v1732, %v764
    %v2162 = vmul.f32 %v1732, %v765
    %v2163 = vmul.f32 %v1732, %v766
    %v2164 = vmul.f32 %v1732, %v767
    %v2165 = vadd.f32 %v2149, %v2157
    %v2166 = vadd.f32 %v2150, %v2158
    %v2167 = vadd.f32 %v2151, %v2159
    %v2168 = vadd.f32 %v2152, %v2160
    %v2169 = vadd.f32 %v2153, %v2161
    %v2170 = vadd.f32 %v2154, %v2162
    %v2171 = vadd.f32 %v2155, %v2163
    %v2172 = vadd.f32 %v2156, %v2164
    %v2173 = vmax.f32 %v2029, %v2165
    %v2174 = vmax.f32 %v2030, %v2166
    %v2175 = vmax.f32 %v2031, %v2167
    %v2176 = vmax.f32 %v2032, %v2168
    %v2177 = vmax.f32 %v2033, %v2169
    %v2178 = vmax.f32 %v2034, %v2170
    %v2179 = vmax.f32 %v2035, %v2171
    %v2180 = vmax.f32 %v2036, %v2172
    %v2181 = vmul.f32 %v1596, %v145
    %v2182 = vmul.f32 %v1596, %v146
    %v2183 = vmul.f32 %v1596, %v147
    %v2184 = vmul.f32 %v1596, %v148
    %v2185 = vmul.f32 %v1596, %v149
    %v2186 = vmul.f32 %v1596, %v150
    %v2187 = vmul.f32 %v1596, %v151
    %v2188 = vmul.f32 %v1596, %v152
    %v2189 = vmul.f32 %v1606, %v172
    %v2190 = vmul.f32 %v1606, %v173
    %v2191 = vmul.f32 %v1606, %v174
    %v2192 = vmul.f32 %v1606, %v175
    %v2193 = vmul.f32 %v1606, %v176
    %v2194 = vmul.f32 %v1606, %v177
    %v2195 = vmul.f32 %v1606, %v178
    %v2196 = vmul.f32 %v1606, %v179
    %v2197 = vadd.f32 %v2181, %v2189
    %v2198 = vadd.f32 %v2182, %v2190
    %v2199 = vadd.f32 %v2183, %v2191
    %v2200 = vadd.f32 %v2184, %v2192
    %v2201 = vadd.f32 %v2185, %v2193
    %v2202 = vadd.f32 %v2186, %v2194
    %v2203 = vadd.f32 %v2187, %v2195
    %v2204 = vadd.f32 %v2188, %v2196
    %v2205 = vmul.f32 %v1624, %v361
    %v2206 = vmul.f32 %v1624, %v362
    %v2207 = vmul.f32 %v1624, %v363
    %v2208 = vmul.f32 %v1624, %v364
    %v2209 = vmul.f32 %v1624, %v365
    %v2210 = vmul.f32 %v1624, %v366
    %v2211 = vmul.f32 %v1624, %v367
    %v2212 = vmul.f32 %v1624, %v368
    %v2213 = vadd.f32 %v2197, %v2205
    %v2214 = vadd.f32 %v2198, %v2206
    %v2215 = vadd.f32 %v2199, %v2207
    %v2216 = vadd.f32 %v2200, %v2208
    %v2217 = vadd.f32 %v2201, %v2209
    %v2218 = vadd.f32 %v2202, %v2210
    %v2219 = vadd.f32 %v2203, %v2211
    %v2220 = vadd.f32 %v2204, %v2212
    %v2221 = vmul.f32 %v1642, %v226
    %v2222 = vmul.f32 %v1642, %v227
    %v2223 = vmul.f32 %v1642, %v228
    %v2224 = vmul.f32 %v1642, %v229
    %v2225 = vmul.f32 %v1642, %v230
    %v2226 = vmul.f32 %v1642, %v231
    %v2227 = vmul.f32 %v1642, %v232
    %v2228 = vmul.f32 %v1642, %v233
    %v2229 = vadd.f32 %v2213, %v2221
    %v2230 = vadd.f32 %v2214, %v2222
    %v2231 = vadd.f32 %v2215, %v2223
    %v2232 = vadd.f32 %v2216, %v2224
    %v2233 = vadd.f32 %v2217, %v2225
    %v2234 = vadd.f32 %v2218, %v2226
    %v2235 = vadd.f32 %v2219, %v2227
    %v2236 = vadd.f32 %v2220, %v2228
    %v2237 = vmul.f32 %v1660, %v253
    %v2238 = vmul.f32 %v1660, %v254
    %v2239 = vmul.f32 %v1660, %v255
    %v2240 = vmul.f32 %v1660, %v256
    %v2241 = vmul.f32 %v1660, %v257
    %v2242 = vmul.f32 %v1660, %v258
    %v2243 = vmul.f32 %v1660, %v259
    %v2244 = vmul.f32 %v1660, %v260
    %v2245 = vadd.f32 %v2229, %v2237
    %v2246 = vadd.f32 %v2230, %v2238
    %v2247 = vadd.f32 %v2231, %v2239
    %v2248 = vadd.f32 %v2232, %v2240
    %v2249 = vadd.f32 %v2233, %v2241
    %v2250 = vadd.f32 %v2234, %v2242
    %v2251 = vadd.f32 %v2235, %v2243
    %v2252 = vadd.f32 %v2236, %v2244
    %v2253 = vmul.f32 %v1678, %v418
    %v2254 = vmul.f32 %v1678, %v419
    %v2255 = vmul.f32 %v1678, %v420
    %v2256 = vmul.f32 %v1678, %v421
    %v2257 = vmul.f32 %v1678, %v422
    %v2258 = vmul.f32 %v1678, %v423
    %v2259 = vmul.f32 %v1678, %v424
    %v2260 = vmul.f32 %v1678, %v425
    %v2261 = vadd.f32 %v2245, %v2253
    %v2262 = vadd.f32 %v2246, %v2254
    %v2263 = vadd.f32 %v2247, %v2255
    %v2264 = vadd.f32 %v2248, %v2256
    %v2265 = vadd.f32 %v2249, %v2257
    %v2266 = vadd.f32 %v2250, %v2258
    %v2267 = vadd.f32 %v2251, %v2259
    %v2268 = vadd.f32 %v2252, %v2260
    %v2269 = vmul.f32 %v1696, %v735
    %v2270 = vmul.f32 %v1696, %v736
    %v2271 = vmul.f32 %v1696, %v737
    %v2272 = vmul.f32 %v1696, %v738
    %v2273 = vmul.f32 %v1696, %v739
    %v2274 = vmul.f32 %v1696, %v740
    %v2275 = vmul.f32 %v1696, %v741
    %v2276 = vmul.f32 %v1696, %v742
    %v2277 = vadd.f32 %v2261, %v2269
    %v2278 = vadd.f32 %v2262, %v2270
    %v2279 = vadd.f32 %v2263, %v2271
    %v2280 = vadd.f32 %v2264, %v2272
    %v2281 = vadd.f32 %v2265, %v2273
    %v2282 = vadd.f32 %v2266, %v2274
    %v2283 = vadd.f32 %v2267, %v2275
    %v2284 = vadd.f32 %v2268, %v2276
    %v2285 = vmul.f32 %v1714, %v760
    %v2286 = vmul.f32 %v1714, %v761
    %v2287 = vmul.f32 %v1714, %v762
    %v2288 = vmul.f32 %v1714, %v763
    %v2289 = vmul.f32 %v1714, %v764
    %v2290 = vmul.f32 %v1714, %v765
    %v2291 = vmul.f32 %v1714, %v766
    %v2292 = vmul.f32 %v1714, %v767
    %v2293 = vadd.f32 %v2277, %v2285
    %v2294 = vadd.f32 %v2278, %v2286
    %v2295 = vadd.f32 %v2279, %v2287
    %v2296 = vadd.f32 %v2280, %v2288
    %v2297 = vadd.f32 %v2281, %v2289
    %v2298 = vadd.f32 %v2282, %v2290
    %v2299 = vadd.f32 %v2283, %v2291
    %v2300 = vadd.f32 %v2284, %v2292
    %v2301 = vmul.f32 %v1732, %v913
    %v2302 = vmul.f32 %v1732, %v914
    %v2303 = vmul.f32 %v1732, %v915
    %v2304 = vmul.f32 %v1732, %v916
    %v2305 = vmul.f32 %v1732, %v917
    %v2306 = vmul.f32 %v1732, %v918
    %v2307 = vmul.f32 %v1732, %v919
    %v2308 = vmul.f32 %v1732, %v920
    %v2309 = vadd.f32 %v2293, %v2301
    %v2310 = vadd.f32 %v2294, %v2302
    %v2311 = vadd.f32 %v2295, %v2303
    %v2312 = vadd.f32 %v2296, %v2304
    %v2313 = vadd.f32 %v2297, %v2305
    %v2314 = vadd.f32 %v2298, %v2306
    %v2315 = vadd.f32 %v2299, %v2307
    %v2316 = vadd.f32 %v2300, %v2308
    %v2317 = vmax.f32 %v2173, %v2309
    %v2318 = vmax.f32 %v2174, %v2310
    %v2319 = vmax.f32 %v2175, %v2311
    %v2320 = vmax.f32 %v2176, %v2312
    %v2321 = vmax.f32 %v2177, %v2313
    %v2322 = vmax.f32 %v2178, %v2314
    %v2323 = vmax.f32 %v2179, %v2315
    %v2324 = vmax.f32 %v2180, %v2316
    %v2325 = vmul.f32 %v1596, %v172
    %v2326 = vmul.f32 %v1596, %v173
    %v2327 = vmul.f32 %v1596, %v174
    %v2328 = vmul.f32 %v1596, %v175
    %v2329 = vmul.f32 %v1596, %v176
    %v2330 = vmul.f32 %v1596, %v177
    %v2331 = vmul.f32 %v1596, %v178
    %v2332 = vmul.f32 %v1596, %v179
    %v2333 = vmul.f32 %v1606, %v361
    %v2334 = vmul.f32 %v1606, %v362
    %v2335 = vmul.f32 %v1606, %v363
    %v2336 = vmul.f32 %v1606, %v364
    %v2337 = vmul.f32 %v1606, %v365
    %v2338 = vmul.f32 %v1606, %v366
    %v2339 = vmul.f32 %v1606, %v367
    %v2340 = vmul.f32 %v1606, %v368
    %v2341 = vadd.f32 %v2325, %v2333
    %v2342 = vadd.f32 %v2326, %v2334
    %v2343 = vadd.f32 %v2327, %v2335
    %v2344 = vadd.f32 %v2328, %v2336
    %v2345 = vadd.f32 %v2329, %v2337
    %v2346 = vadd.f32 %v2330, %v2338
    %v2347 = vadd.f32 %v2331, %v2339
    %v2348 = vadd.f32 %v2332, %v2340
    %v2349 = vmul.f32 %v1624, %v532
    %v2350 = vmul.f32 %v1624, %v533
    %v2351 = vmul.f32 %v1624, %v534
    %v2352 = vmul.f32 %v1624, %v535
    %v2353 = vmul.f32 %v1624, %v536
    %v2354 = vmul.f32 %v1624, %v537
    %v2355 = vmul.f32 %v1624, %v538
    %v2356 = vmul.f32 %v1624, %v539
    %v2357 = vadd.f32 %v2341, %v2349
    %v2358 = vadd.f32 %v2342, %v2350
    %v2359 = vadd.f32 %v2343, %v2351
    %v2360 = vadd.f32 %v2344, %v2352
    %v2361 = vadd.f32 %v2345, %v2353
    %v2362 = vadd.f32 %v2346, %v2354
    %v2363 = vadd.f32 %v2347, %v2355
    %v2364 = vadd.f32 %v2348, %v2356
    %v2365 = vmul.f32 %v1642, %v253
    %v2366 = vmul.f32 %v1642, %v254
    %v2367 = vmul.f32 %v1642, %v255
    %v2368 = vmul.f32 %v1642, %v256
    %v2369 = vmul.f32 %v1642, %v257
    %v2370 = vmul.f32 %v1642, %v258
    %v2371 = vmul.f32 %v1642, %v259
    %v2372 = vmul.f32 %v1642, %v260
    %v2373 = vadd.f32 %v2357, %v2365
    %v2374 = vadd.f32 %v2358, %v2366
    %v2375 = vadd.f32 %v2359, %v2367
    %v2376 = vadd.f32 %v2360, %v2368
    %v2377 = vadd.f32 %v2361, %v2369
    %v2378 = vadd.f32 %v2362, %v2370
    %v2379 = vadd.f32 %v2363, %v2371
    %v2380 = vadd.f32 %v2364, %v2372
    %v2381 = vmul.f32 %v1660, %v418
    %v2382 = vmul.f32 %v1660, %v419
    %v2383 = vmul.f32 %v1660, %v420
    %v2384 = vmul.f32 %v1660, %v421
    %v2385 = vmul.f32 %v1660, %v422
    %v2386 = vmul.f32 %v1660, %v423
    %v2387 = vmul.f32 %v1660, %v424
    %v2388 = vmul.f32 %v1660, %v425
    %v2389 = vadd.f32 %v2373, %v2381
    %v2390 = vadd.f32 %v2374, %v2382
    %v2391 = vadd.f32 %v2375, %v2383
    %v2392 = vadd.f32 %v2376, %v2384
    %v2393 = vadd.f32 %v2377, %v2385
    %v2394 = vadd.f32 %v2378, %v2386
    %v2395 = vadd.f32 %v2379, %v2387
    %v2396 = vadd.f32 %v2380, %v2388
    %v2397 = vmul.f32 %v1678, %v589
    %v2398 = vmul.f32 %v1678, %v590
    %v2399 = vmul.f32 %v1678, %v591
    %v2400 = vmul.f32 %v1678, %v592
    %v2401 = vmul.f32 %v1678, %v593
    %v2402 = vmul.f32 %v1678, %v594
    %v2403 = vmul.f32 %v1678, %v595
    %v2404 = vmul.f32 %v1678, %v596
    %v2405 = vadd.f32 %v2389, %v2397
    %v2406 = vadd.f32 %v2390, %v2398
    %v2407 = vadd.f32 %v2391, %v2399
    %v2408 = vadd.f32 %v2392, %v2400
    %v2409 = vadd.f32 %v2393, %v2401
    %v2410 = vadd.f32 %v2394, %v2402
    %v2411 = vadd.f32 %v2395, %v2403
    %v2412 = vadd.f32 %v2396, %v2404
    %v2413 = vmul.f32 %v1696, %v760
    %v2414 = vmul.f32 %v1696, %v761
    %v2415 = vmul.f32 %v1696, %v762
    %v2416 = vmul.f32 %v1696, %v763
    %v2417 = vmul.f32 %v1696, %v764
    %v2418 = vmul.f32 %v1696, %v765
    %v2419 = vmul.f32 %v1696, %v766
    %v2420 = vmul.f32 %v1696, %v767
    %v2421 = vadd.f32 %v2405, %v2413
    %v2422 = vadd.f32 %v2406, %v2414
    %v2423 = vadd.f32 %v2407, %v2415
    %v2424 = vadd.f32 %v2408, %v2416
    %v2425 = vadd.f32 %v2409, %v2417
    %v2426 = vadd.f32 %v2410, %v2418
    %v2427 = vadd.f32 %v2411, %v2419
    %v2428 = vadd.f32 %v2412, %v2420
    %v2429 = vmul.f32 %v1714, %v913
    %v2430 = vmul.f32 %v1714, %v914
    %v2431 = vmul.f32 %v1714, %v915
    %v2432 = vmul.f32 %v1714, %v916
    %v2433 = vmul.f32 %v1714, %v917
    %v2434 = vmul.f32 %v1714, %v918
    %v2435 = vmul.f32 %v1714, %v919
    %v2436 = vmul.f32 %v1714, %v920
    %v2437 = vadd.f32 %v2421, %v2429
    %v2438 = vadd.f32 %v2422, %v2430
    %v2439 = vadd.f32 %v2423, %v2431
    %v2440 = vadd.f32 %v2424, %v2432
    %v2441 = vadd.f32 %v2425, %v2433
    %v2442 = vadd.f32 %v2426, %v2434
    %v2443 = vadd.f32 %v2427, %v2435
    %v2444 = vadd.f32 %v2428, %v2436
    %v2445 = vmul.f32 %v1732, %v1066
    %v2446 = vmul.f32 %v1732, %v1067
    %v2447 = vmul.f32 %v1732, %v1068
    %v2448 = vmul.f32 %v1732, %v1069
    %v2449 = vmul.f32 %v1732, %v1070
    %v2450 = vmul.f32 %v1732, %v1071
    %v2451 = vmul.f32 %v1732, %v1072
    %v2452 = vmul.f32 %v1732, %v1073
    %v2453 = vadd.f32 %v2437, %v2445
    %v2454 = vadd.f32 %v2438, %v2446
    %v2455 = vadd.f32 %v2439, %v2447
    %v2456 = vadd.f32 %v2440, %v2448
    %v2457 = vadd.f32 %v2441, %v2449
    %v2458 = vadd.f32 %v2442, %v2450
    %v2459 = vadd.f32 %v2443, %v2451
    %v2460 = vadd.f32 %v2444, %v2452
    %v2461 = vmax.f32 %v2317, %v2453
    %v2462 = vmax.f32 %v2318, %v2454
    %v2463 = vmax.f32 %v2319, %v2455
    %v2464 = vmax.f32 %v2320, %v2456
    %v2465 = vmax.f32 %v2321, %v2457
    %v2466 = vmax.f32 %v2322, %v2458
    %v2467 = vmax.f32 %v2323, %v2459
    %v2468 = vmax.f32 %v2324, %v2460
    %v2469 = vmul.f32 %v1596, %v199
    %v2470 = vmul.f32 %v1596, %v200
    %v2471 = vmul.f32 %v1596, %v201
    %v2472 = vmul.f32 %v1596, %v202
    %v2473 = vmul.f32 %v1596, %v203
    %v2474 = vmul.f32 %v1596, %v204
    %v2475 = vmul.f32 %v1596, %v205
    %v2476 = vmul.f32 %v1596, %v206
    %v2477 = vmul.f32 %v1606, %v226
    %v2478 = vmul.f32 %v1606, %v227
    %v2479 = vmul.f32 %v1606, %v228
    %v2480 = vmul.f32 %v1606, %v229
    %v2481 = vmul.f32 %v1606, %v230
    %v2482 = vmul.f32 %v1606, %v231
    %v2483 = vmul.f32 %v1606, %v232
    %v2484 = vmul.f32 %v1606, %v233
    %v2485 = vadd.f32 %v2469, %v2477
    %v2486 = vadd.f32 %v2470, %v2478
    %v2487 = vadd.f32 %v2471, %v2479
    %v2488 = vadd.f32 %v2472, %v2480
    %v2489 = vadd.f32 %v2473, %v2481
    %v2490 = vadd.f32 %v2474, %v2482
    %v2491 = vadd.f32 %v2475, %v2483
    %v2492 = vadd.f32 %v2476, %v2484
    %v2493 = vmul.f32 %v1624, %v253
    %v2494 = vmul.f32 %v1624, %v254
    %v2495 = vmul.f32 %v1624, %v255
    %v2496 = vmul.f32 %v1624, %v256
    %v2497 = vmul.f32 %v1624, %v257
    %v2498 = vmul.f32 %v1624, %v258
    %v2499 = vmul.f32 %v1624, %v259
    %v2500 = vmul.f32 %v1624, %v260
    %v2501 = vadd.f32 %v2485, %v2493
    %v2502 = vadd.f32 %v2486, %v2494
    %v2503 = vadd.f32 %v2487, %v2495
    %v2504 = vadd.f32 %v2488, %v2496
    %v2505 = vadd.f32 %v2489, %v2497
    %v2506 = vadd.f32 %v2490, %v2498
    %v2507 = vadd.f32 %v2491, %v2499
    %v2508 = vadd.f32 %v2492, %v2500
    %v2509 = vmul.f32 %v1642, %v710
    %v2510 = vmul.f32 %v1642, %v711
    %v2511 = vmul.f32 %v1642, %v712
    %v2512 = vmul.f32 %v1642, %v713
    %v2513 = vmul.f32 %v1642, %v714
    %v2514 = vmul.f32 %v1642, %v715
    %v2515 = vmul.f32 %v1642, %v716
    %v2516 = vmul.f32 %v1642, %v717
    %v2517 = vadd.f32 %v2501, %v2509
    %v2518 = vadd.f32 %v2502, %v2510
    %v2519 = vadd.f32 %v2503, %v2511
    %v2520 = vadd.f32 %v2504, %v2512
    %v2521 = vadd.f32 %v2505, %v2513
    %v2522 = vadd.f32 %v2506, %v2514
    %v2523 = vadd.f32 %v2507, %v2515
    %v2524 = vadd.f32 %v2508, %v2516
    %v2525 = vmul.f32 %v1660, %v735
    %v2526 = vmul.f32 %v1660, %v736
    %v2527 = vmul.f32 %v1660, %v737
    %v2528 = vmul.f32 %v1660, %v738
    %v2529 = vmul.f32 %v1660, %v739
    %v2530 = vmul.f32 %v1660, %v740
    %v2531 = vmul.f32 %v1660, %v741
    %v2532 = vmul.f32 %v1660, %v742
    %v2533 = vadd.f32 %v2517, %v2525
    %v2534 = vadd.f32 %v2518, %v2526
    %v2535 = vadd.f32 %v2519, %v2527
    %v2536 = vadd.f32 %v2520, %v2528
    %v2537 = vadd.f32 %v2521, %v2529
    %v2538 = vadd.f32 %v2522, %v2530
    %v2539 = vadd.f32 %v2523, %v2531
    %v2540 = vadd.f32 %v2524, %v2532
    %v2541 = vmul.f32 %v1678, %v760
    %v2542 = vmul.f32 %v1678, %v761
    %v2543 = vmul.f32 %v1678, %v762
    %v2544 = vmul.f32 %v1678, %v763
    %v2545 = vmul.f32 %v1678, %v764
    %v2546 = vmul.f32 %v1678, %v765
    %v2547 = vmul.f32 %v1678, %v766
    %v2548 = vmul.f32 %v1678, %v767
    %v2549 = vadd.f32 %v2533, %v2541
    %v2550 = vadd.f32 %v2534, %v2542
    %v2551 = vadd.f32 %v2535, %v2543
    %v2552 = vadd.f32 %v2536, %v2544
    %v2553 = vadd.f32 %v2537, %v2545
    %v2554 = vadd.f32 %v2538, %v2546
    %v2555 = vadd.f32 %v2539, %v2547
    %v2556 = vadd.f32 %v2540, %v2548
    %v2557 = vmul.f32 %v1696, %v1187
    %v2558 = vmul.f32 %v1696, %v1188
    %v2559 = vmul.f32 %v1696, %v1189
    %v2560 = vmul.f32 %v1696, %v1190
    %v2561 = vmul.f32 %v1696, %v1191
    %v2562 = vmul.f32 %v1696, %v1192
    %v2563 = vmul.f32 %v1696, %v1193
    %v2564 = vmul.f32 %v1696, %v1194
    %v2565 = vadd.f32 %v2549, %v2557
    %v2566 = vadd.f32 %v2550, %v2558
    %v2567 = vadd.f32 %v2551, %v2559
    %v2568 = vadd.f32 %v2552, %v2560
    %v2569 = vadd.f32 %v2553, %v2561
    %v2570 = vadd.f32 %v2554, %v2562
    %v2571 = vadd.f32 %v2555, %v2563
    %v2572 = vadd.f32 %v2556, %v2564
    %v2573 = vmul.f32 %v1714, %v1212
    %v2574 = vmul.f32 %v1714, %v1213
    %v2575 = vmul.f32 %v1714, %v1214
    %v2576 = vmul.f32 %v1714, %v1215
    %v2577 = vmul.f32 %v1714, %v1216
    %v2578 = vmul.f32 %v1714, %v1217
    %v2579 = vmul.f32 %v1714, %v1218
    %v2580 = vmul.f32 %v1714, %v1219
    %v2581 = vadd.f32 %v2565, %v2573
    %v2582 = vadd.f32 %v2566, %v2574
    %v2583 = vadd.f32 %v2567, %v2575
    %v2584 = vadd.f32 %v2568, %v2576
    %v2585 = vadd.f32 %v2569, %v2577
    %v2586 = vadd.f32 %v2570, %v2578
    %v2587 = vadd.f32 %v2571, %v2579
    %v2588 = vadd.f32 %v2572, %v2580
    %v2589 = vmul.f32 %v1732, %v1237
    %v2590 = vmul.f32 %v1732, %v1238
    %v2591 = vmul.f32 %v1732, %v1239
    %v2592 = vmul.f32 %v1732, %v1240
    %v2593 = vmul.f32 %v1732, %v1241
    %v2594 = vmul.f32 %v1732, %v1242
    %v2595 = vmul.f32 %v1732, %v1243
    %v2596 = vmul.f32 %v1732, %v1244
    %v2597 = vadd.f32 %v2581, %v2589
    %v2598 = vadd.f32 %v2582, %v2590
    %v2599 = vadd.f32 %v2583, %v2591
    %v2600 = vadd.f32 %v2584, %v2592
    %v2601 = vadd.f32 %v2585, %v2593
    %v2602 = vadd.f32 %v2586, %v2594
    %v2603 = vadd.f32 %v2587, %v2595
    %v2604 = vadd.f32 %v2588, %v2596
    %v2605 = vmax.f32 %v2461, %v2597
    %v2606 = vmax.f32 %v2462, %v2598
    %v2607 = vmax.f32 %v2463, %v2599
    %v2608 = vmax.f32 %v2464, %v2600
    %v2609 = vmax.f32 %v2465, %v2601
    %v2610 = vmax.f32 %v2466, %v2602
    %v2611 = vmax.f32 %v2467, %v2603
    %v2612 = vmax.f32 %v2468, %v2604
    %v2613 = vmul.f32 %v1596, %v226
    %v2614 = vmul.f32 %v1596, %v227
    %v2615 = vmul.f32 %v1596, %v228
    %v2616 = vmul.f32 %v1596, %v229
    %v2617 = vmul.f32 %v1596, %v230
    %v2618 = vmul.f32 %v1596, %v231
    %v2619 = vmul.f32 %v1596, %v232
    %v2620 = vmul.f32 %v1596, %v233
    %v2621 = vmul.f32 %v1606, %v253
    %v2622 = vmul.f32 %v1606, %v254
    %v2623 = vmul.f32 %v1606, %v255
    %v2624 = vmul.f32 %v1606, %v256
    %v2625 = vmul.f32 %v1606, %v257
    %v2626 = vmul.f32 %v1606, %v258
    %v2627 = vmul.f32 %v1606, %v259
    %v2628 = vmul.f32 %v1606, %v260
    %v2629 = vadd.f32 %v2613, %v2621
    %v2630 = vadd.f32 %v2614, %v2622
    %v2631 = vadd.f32 %v2615, %v2623
    %v2632 = vadd.f32 %v2616, %v2624
    %v2633 = vadd.f32 %v2617, %v2625
    %v2634 = vadd.f32 %v2618, %v2626
    %v2635 = vadd.f32 %v2619, %v2627
    %v2636 = vadd.f32 %v2620, %v2628
    %v2637 = vmul.f32 %v1624, %v418
    %v2638 = vmul.f32 %v1624, %v419
    %v2639 = vmul.f32 %v1624, %v420
    %v2640 = vmul.f32 %v1624, %v421
    %v2641 = vmul.f32 %v1624, %v422
    %v2642 = vmul.f32 %v1624, %v423
    %v2643 = vmul.f32 %v1624, %v424
    %v2644 = vmul.f32 %v1624, %v425
    %v2645 = vadd.f32 %v2629, %v2637
    %v2646 = vadd.f32 %v2630, %v2638
    %v2647 = vadd.f32 %v2631, %v2639
    %v2648 = vadd.f32 %v2632, %v2640
    %v2649 = vadd.f32 %v2633, %v2641
    %v2650 = vadd.f32 %v2634, %v2642
    %v2651 = vadd.f32 %v2635, %v2643
    %v2652 = vadd.f32 %v2636, %v2644
    %v2653 = vmul.f32 %v1642, %v735
    %v2654 = vmul.f32 %v1642, %v736
    %v2655 = vmul.f32 %v1642, %v737
    %v2656 = vmul.f32 %v1642, %v738
    %v2657 = vmul.f32 %v1642, %v739
    %v2658 = vmul.f32 %v1642, %v740
    %v2659 = vmul.f32 %v1642, %v741
    %v2660 = vmul.f32 %v1642, %v742
    %v2661 = vadd.f32 %v2645, %v2653
    %v2662 = vadd.f32 %v2646, %v2654
    %v2663 = vadd.f32 %v2647, %v2655
    %v2664 = vadd.f32 %v2648, %v2656
    %v2665 = vadd.f32 %v2649, %v2657
    %v2666 = vadd.f32 %v2650, %v2658
    %v2667 = vadd.f32 %v2651, %v2659
    %v2668 = vadd.f32 %v2652, %v2660
    %v2669 = vmul.f32 %v1660, %v760
    %v2670 = vmul.f32 %v1660, %v761
    %v2671 = vmul.f32 %v1660, %v762
    %v2672 = vmul.f32 %v1660, %v763
    %v2673 = vmul.f32 %v1660, %v764
    %v2674 = vmul.f32 %v1660, %v765
    %v2675 = vmul.f32 %v1660, %v766
    %v2676 = vmul.f32 %v1660, %v767
    %v2677 = vadd.f32 %v2661, %v2669
    %v2678 = vadd.f32 %v2662, %v2670
    %v2679 = vadd.f32 %v2663, %v2671
    %v2680 = vadd.f32 %v2664, %v2672
    %v2681 = vadd.f32 %v2665, %v2673
    %v2682 = vadd.f32 %v2666, %v2674
    %v2683 = vadd.f32 %v2667, %v2675
    %v2684 = vadd.f32 %v2668, %v2676
    %v2685 = vmul.f32 %v1678, %v913
    %v2686 = vmul.f32 %v1678, %v914
    %v2687 = vmul.f32 %v1678, %v915
    %v2688 = vmul.f32 %v1678, %v916
    %v2689 = vmul.f32 %v1678, %v917
    %v2690 = vmul.f32 %v1678, %v918
    %v2691 = vmul.f32 %v1678, %v919
    %v2692 = vmul.f32 %v1678, %v920
    %v2693 = vadd.f32 %v2677, %v2685
    %v2694 = vadd.f32 %v2678, %v2686
    %v2695 = vadd.f32 %v2679, %v2687
    %v2696 = vadd.f32 %v2680, %v2688
    %v2697 = vadd.f32 %v2681, %v2689
    %v2698 = vadd.f32 %v2682, %v2690
    %v2699 = vadd.f32 %v2683, %v2691
    %v2700 = vadd.f32 %v2684, %v2692
    %v2701 = vmul.f32 %v1696, %v1212
    %v2702 = vmul.f32 %v1696, %v1213
    %v2703 = vmul.f32 %v1696, %v1214
    %v2704 = vmul.f32 %v1696, %v1215
    %v2705 = vmul.f32 %v1696, %v1216
    %v2706 = vmul.f32 %v1696, %v1217
    %v2707 = vmul.f32 %v1696, %v1218
    %v2708 = vmul.f32 %v1696, %v1219
    %v2709 = vadd.f32 %v2693, %v2701
    %v2710 = vadd.f32 %v2694, %v2702
    %v2711 = vadd.f32 %v2695, %v2703
    %v2712 = vadd.f32 %v2696, %v2704
    %v2713 = vadd.f32 %v2697, %v2705
    %v2714 = vadd.f32 %v2698, %v2706
    %v2715 = vadd.f32 %v2699, %v2707
    %v2716 = vadd.f32 %v2700, %v2708
    %v2717 = vmul.f32 %v1714, %v1237
    %v2718 = vmul.f32 %v1714, %v1238
    %v2719 = vmul.f32 %v1714, %v1239
    %v2720 = vmul.f32 %v1714, %v1240
    %v2721 = vmul.f32 %v1714, %v1241
    %v2722 = vmul.f32 %v1714, %v1242
    %v2723 = vmul.f32 %v1714, %v1243
    %v2724 = vmul.f32 %v1714, %v1244
    %v2725 = vadd.f32 %v2709, %v2717
    %v2726 = vadd.f32 %v2710, %v2718
    %v2727 = vadd.f32 %v2711, %v2719
    %v2728 = vadd.f32 %v2712, %v2720
    %v2729 = vadd.f32 %v2713, %v2721
    %v2730 = vadd.f32 %v2714, %v2722
    %v2731 = vadd.f32 %v2715, %v2723
    %v2732 = vadd.f32 %v2716, %v2724
    %v2733 = vmul.f32 %v1732, %v1390
    %v2734 = vmul.f32 %v1732, %v1391
    %v2735 = vmul.f32 %v1732, %v1392
    %v2736 = vmul.f32 %v1732, %v1393
    %v2737 = vmul.f32 %v1732, %v1394
    %v2738 = vmul.f32 %v1732, %v1395
    %v2739 = vmul.f32 %v1732, %v1396
    %v2740 = vmul.f32 %v1732, %v1397
    %v2741 = vadd.f32 %v2725, %v2733
    %v2742 = vadd.f32 %v2726, %v2734
    %v2743 = vadd.f32 %v2727, %v2735
    %v2744 = vadd.f32 %v2728, %v2736
    %v2745 = vadd.f32 %v2729, %v2737
    %v2746 = vadd.f32 %v2730, %v2738
    %v2747 = vadd.f32 %v2731, %v2739
    %v2748 = vadd.f32 %v2732, %v2740
    %v2749 = vmax.f32 %v2605, %v2741
    %v2750 = vmax.f32 %v2606, %v2742
    %v2751 = vmax.f32 %v2607, %v2743
    %v2752 = vmax.f32 %v2608, %v2744
    %v2753 = vmax.f32 %v2609, %v2745
    %v2754 = vmax.f32 %v2610, %v2746
    %v2755 = vmax.f32 %v2611, %v2747
    %v2756 = vmax.f32 %v2612, %v2748
    %v2757 = vmul.f32 %v1596, %v253
    %v2758 = vmul.f32 %v1596, %v254
    %v2759 = vmul.f32 %v1596, %v255
    %v2760 = vmul.f32 %v1596, %v256
    %v2761 = vmul.f32 %v1596, %v257
    %v2762 = vmul.f32 %v1596, %v258
    %v2763 = vmul.f32 %v1596, %v259
    %v2764 = vmul.f32 %v1596, %v260
    %v2765 = vmul.f32 %v1606, %v418
    %v2766 = vmul.f32 %v1606, %v419
    %v2767 = vmul.f32 %v1606, %v420
    %v2768 = vmul.f32 %v1606, %v421
    %v2769 = vmul.f32 %v1606, %v422
    %v2770 = vmul.f32 %v1606, %v423
    %v2771 = vmul.f32 %v1606, %v424
    %v2772 = vmul.f32 %v1606, %v425
    %v2773 = vadd.f32 %v2757, %v2765
    %v2774 = vadd.f32 %v2758, %v2766
    %v2775 = vadd.f32 %v2759, %v2767
    %v2776 = vadd.f32 %v2760, %v2768
    %v2777 = vadd.f32 %v2761, %v2769
    %v2778 = vadd.f32 %v2762, %v2770
    %v2779 = vadd.f32 %v2763, %v2771
    %v2780 = vadd.f32 %v2764, %v2772
    %v2781 = vmul.f32 %v1624, %v589
    %v2782 = vmul.f32 %v1624, %v590
    %v2783 = vmul.f32 %v1624, %v591
    %v2784 = vmul.f32 %v1624, %v592
    %v2785 = vmul.f32 %v1624, %v593
    %v2786 = vmul.f32 %v1624, %v594
    %v2787 = vmul.f32 %v1624, %v595
    %v2788 = vmul.f32 %v1624, %v596
    %v2789 = vadd.f32 %v2773, %v2781
    %v2790 = vadd.f32 %v2774, %v2782
    %v2791 = vadd.f32 %v2775, %v2783
    %v2792 = vadd.f32 %v2776, %v2784
    %v2793 = vadd.f32 %v2777, %v2785
    %v2794 = vadd.f32 %v2778, %v2786
    %v2795 = vadd.f32 %v2779, %v2787
    %v2796 = vadd.f32 %v2780, %v2788
    %v2797 = vmul.f32 %v1642, %v760
    %v2798 = vmul.f32 %v1642, %v761
    %v2799 = vmul.f32 %v1642, %v762
    %v2800 = vmul.f32 %v1642, %v763
    %v2801 = vmul.f32 %v1642, %v764
    %v2802 = vmul.f32 %v1642, %v765
    %v2803 = vmul.f32 %v1642, %v766
    %v2804 = vmul.f32 %v1642, %v767
    %v2805 = vadd.f32 %v2789, %v2797
    %v2806 = vadd.f32 %v2790, %v2798
    %v2807 = vadd.f32 %v2791, %v2799
    %v2808 = vadd.f32 %v2792, %v2800
    %v2809 = vadd.f32 %v2793, %v2801
    %v2810 = vadd.f32 %v2794, %v2802
    %v2811 = vadd.f32 %v2795, %v2803
    %v2812 = vadd.f32 %v2796, %v2804
    %v2813 = vmul.f32 %v1660, %v913
    %v2814 = vmul.f32 %v1660, %v914
    %v2815 = vmul.f32 %v1660, %v915
    %v2816 = vmul.f32 %v1660, %v916
    %v2817 = vmul.f32 %v1660, %v917
    %v2818 = vmul.f32 %v1660, %v918
    %v2819 = vmul.f32 %v1660, %v919
    %v2820 = vmul.f32 %v1660, %v920
    %v2821 = vadd.f32 %v2805, %v2813
    %v2822 = vadd.f32 %v2806, %v2814
    %v2823 = vadd.f32 %v2807, %v2815
    %v2824 = vadd.f32 %v2808, %v2816
    %v2825 = vadd.f32 %v2809, %v2817
    %v2826 = vadd.f32 %v2810, %v2818
    %v2827 = vadd.f32 %v2811, %v2819
    %v2828 = vadd.f32 %v2812, %v2820
    %v2829 = vmul.f32 %v1678, %v1066
    %v2830 = vmul.f32 %v1678, %v1067
    %v2831 = vmul.f32 %v1678, %v1068
    %v2832 = vmul.f32 %v1678, %v1069
    %v2833 = vmul.f32 %v1678, %v1070
    %v2834 = vmul.f32 %v1678, %v1071
    %v2835 = vmul.f32 %v1678, %v1072
    %v2836 = vmul.f32 %v1678, %v1073
    %v2837 = vadd.f32 %v2821, %v2829
    %v2838 = vadd.f32 %v2822, %v2830
    %v2839 = vadd.f32 %v2823, %v2831
    %v2840 = vadd.f32 %v2824, %v2832
    %v2841 = vadd.f32 %v2825, %v2833
    %v2842 = vadd.f32 %v2826, %v2834
    %v2843 = vadd.f32 %v2827, %v2835
    %v2844 = vadd.f32 %v2828, %v2836
    %v2845 = vmul.f32 %v1696, %v1237
    %v2846 = vmul.f32 %v1696, %v1238
    %v2847 = vmul.f32 %v1696, %v1239
    %v2848 = vmul.f32 %v1696, %v1240
    %v2849 = vmul.f32 %v1696, %v1241
    %v2850 = vmul.f32 %v1696, %v1242
    %v2851 = vmul.f32 %v1696, %v1243
    %v2852 = vmul.f32 %v1696, %v1244
    %v2853 = vadd.f32 %v2837, %v2845
    %v2854 = vadd.f32 %v2838, %v2846
    %v2855 = vadd.f32 %v2839, %v2847
    %v2856 = vadd.f32 %v2840, %v2848
    %v2857 = vadd.f32 %v2841, %v2849
    %v2858 = vadd.f32 %v2842, %v2850
    %v2859 = vadd.f32 %v2843, %v2851
    %v2860 = vadd.f32 %v2844, %v2852
    %v2861 = vmul.f32 %v1714, %v1390
    %v2862 = vmul.f32 %v1714, %v1391
    %v2863 = vmul.f32 %v1714, %v1392
    %v2864 = vmul.f32 %v1714, %v1393
    %v2865 = vmul.f32 %v1714, %v1394
    %v2866 = vmul.f32 %v1714, %v1395
    %v2867 = vmul.f32 %v1714, %v1396
    %v2868 = vmul.f32 %v1714, %v1397
    %v2869 = vadd.f32 %v2853, %v2861
    %v2870 = vadd.f32 %v2854, %v2862
    %v2871 = vadd.f32 %v2855, %v2863
    %v2872 = vadd.f32 %v2856, %v2864
    %v2873 = vadd.f32 %v2857, %v2865
    %v2874 = vadd.f32 %v2858, %v2866
    %v2875 = vadd.f32 %v2859, %v2867
    %v2876 = vadd.f32 %v2860, %v2868
    %v2877 = vmul.f32 %v1732, %v1543
    %v2878 = vmul.f32 %v1732, %v1544
    %v2879 = vmul.f32 %v1732, %v1545
    %v2880 = vmul.f32 %v1732, %v1546
    %v2881 = vmul.f32 %v1732, %v1547
    %v2882 = vmul.f32 %v1732, %v1548
    %v2883 = vmul.f32 %v1732, %v1549
    %v2884 = vmul.f32 %v1732, %v1550
    %v2885 = vadd.f32 %v2869, %v2877
    %v2886 = vadd.f32 %v2870, %v2878
    %v2887 = vadd.f32 %v2871, %v2879
    %v2888 = vadd.f32 %v2872, %v2880
    %v2889 = vadd.f32 %v2873, %v2881
    %v2890 = vadd.f32 %v2874, %v2882
    %v2891 = vadd.f32 %v2875, %v2883
    %v2892 = vadd.f32 %v2876, %v2884
    %v2893 = vmax.f32 %v2749, %v2885
    %v2894 = vmax.f32 %v2750, %v2886
    %v2895 = vmax.f32 %v2751, %v2887
    %v2896 = vmax.f32 %v2752, %v2888
    %v2897 = vmax.f32 %v2753, %v2889
    %v2898 = vmax.f32 %v2754, %v2890
    %v2899 = vmax.f32 %v2755, %v2891
    %v2900 = vmax.f32 %v2756, %v2892
    %s2901 = sld [smem:[#allocation4 + $0x1]]
    %v2902 = vstv %s2901
    %v2903 = vadd.f32 %v2893, %v2902
    %v2904 = vadd.f32 %v2894, %v2902
    %v2905 = vadd.f32 %v2895, %v2902
    %v2906 = vadd.f32 %v2896, %v2902
    %v2907 = vadd.f32 %v2897, %v2902
    %v2908 = vadd.f32 %v2898, %v2902
    %v2909 = vadd.f32 %v2899, %v2902
    %v2910 = vadd.f32 %v2900, %v2902
    %v2911 = vmax.f32 %v2903, 0.0
    %v2912 = vmax.f32 %v2904, 0.0
    %v2913 = vmax.f32 %v2905, 0.0
    %v2914 = vmax.f32 %v2906, 0.0
    %v2915 = vmax.f32 %v2907, 0.0
    %v2916 = vmax.f32 %v2908, 0.0
    %v2917 = vmax.f32 %v2909, 0.0
    %v2918 = vmax.f32 %v2910, 0.0
    %s2919 = scalar_lea.vmem %s3, 16
    %v2920 = vld [vmem:[%s2919] sm:$0xff]
    %v2921 = vld [vmem:[%s2919 + $0x8] sm:$0x3]
    %vm2922 = vcmask 523264
    %v2924 = vsel %vm2922, %v2920, 0
    %v2927 = vsel %vm2922, %v2921, 0
    %2929 = vmatprep.subr.mxu0 0.0
    %2930 = vmatpush1.msra.mxu0 0.0
    %2931 = vmatprep.subr.mxu0 0.0
    %2932 = vmatpush1.msra.mxu0 0.0
    %2933 = vmatprep.subr.mxu0 0.0
    %2934 = vmatpush1.msra.mxu0 0.0
    %2935 = vmatprep.subr.mxu0 0.0
    %2936 = vmatpush1.msra.mxu0 0.0
    %2937 = vmatprep.subr.mxu0 0.0
    %2938 = vmatpush1.msra.mxu0 0.0
    %2939 = vmatprep.subr.mxu0 0.0
    %2940 = vmatpush1.msra.mxu0 0.0
    %2941 = vmatprep.subr.mxu0 0.0
    %2942 = vmatpush1.msra.mxu0 0.0
    %2943 = vmatprep.subr.mxu0 0.0
    %2944 = vmatpush1.msra.mxu0 0.0
    %2945 = vmatprep.subr.mxu0 0.0
    %2946 = vmatpush1.msra.mxu0 %v2918
    %2947 = vmatprep.subr.mxu0 0.0
    %2948 = vmatpush1.msra.mxu0 %v2917
    %2949 = vmatprep.subr.mxu0 0.0
    %2950 = vmatpush1.msra.mxu0 %v2916
    %2951 = vmatprep.subr.mxu0 0.0
    %2952 = vmatpush1.msra.mxu0 %v2915
    %2953 = vmatprep.subr.mxu0 0.0
    %2954 = vmatpush1.msra.mxu0 %v2914
    %2955 = vmatprep.subr.mxu0 0.0
    %2956 = vmatpush1.msra.mxu0 %v2913
    %2957 = vmatprep.subr.mxu0 0.0
    %2958 = vmatpush1.msra.mxu0 %v2912
    %2959 = vmatprep.subr.mxu0 0.0
    %2960 = vmatpush1.msra.mxu0 %v2911
    %2961 = vmatprep.subr.mxu0 0.0
    %2962 = vmatpush2.msra.mxu0 0.0
    %2963 = vmatprep.subr.mxu0 0.0
    %2964 = vmatpush2.msra.mxu0 0.0
    %2965 = vmatprep.subr.mxu0 0.0
    %2966 = vmatpush2.msra.mxu0 0.0
    %2967 = vmatprep.subr.mxu0 0.0
    %2968 = vmatpush2.msra.mxu0 0.0
    %2969 = vmatprep.subr.mxu0 0.0
    %2970 = vmatpush2.msra.mxu0 0.0
    %2971 = vmatprep.subr.mxu0 0.0
    %2972 = vmatpush2.msra.mxu0 0.0
    %2973 = vmatprep.subr.mxu0 0.0
    %2974 = vmatpush2.msra.mxu0 0.0
    %2975 = vmatprep.subr.mxu0 0.0
    %2976 = vmatpush2.msra.mxu0 0.0
    %2977 = vmatprep.subr.mxu0 0.0
    %2978 = vmatpush2.msra.mxu0 0.0
    %2979 = vmatprep.subr.mxu0 0.0
    %2980 = vmatpush2.msra.mxu0 0.0
    %2981 = vmatprep.subr.mxu0 0.0
    %2982 = vmatpush2.msra.mxu0 0.0
    %2983 = vmatprep.subr.mxu0 0.0
    %2984 = vmatpush2.msra.mxu0 0.0
    %2985 = vmatprep.subr.mxu0 0.0
    %2986 = vmatpush2.msra.mxu0 0.0
    %2987 = vmatprep.subr.mxu0 0.0
    %2988 = vmatpush2.msra.mxu0 0.0
    %2989 = vmatprep.subr.mxu0 0.0
    %2990 = vmatpush2.msra.mxu0 0.0
    %2991 = vmatprep.subr.mxu0 0.0
    %2992 = vmatpush2.msra.mxu0 0.0
    %2993 = vmatprep.mubr.f32.mxu0 0.0
    %2994 = vmatmul.mubr.f32.gmra.mxu0 %v2924
    %v2995 = vpop.f32.mrf.mxu0
    %v2996 = vadd.f32 0.0, %v2995
    %v2997 = vpop.f32.mrf.mxu0
    %2998 = vmatprep.mubr.f32.mxu0 0.0
    %2999 = vmatmul.mubr.f32.gmra.mxu0 %v2927
    %v3000 = vpop.f32.mrf.mxu0
    %v3001 = vadd.f32 0.0, %v3000
    %v3002 = vpop.f32.mrf.mxu0
    %3003 = vdwg.mxu0
    %v3005 = vsel %vm2922, %v1593, 0
    %v3008 = vsel %vm2922, %v1594, 0
    %3010 = vmatprep.subr.mxu0 0.0
    %3011 = vmatpush1.msra.mxu0 0.0
    %3012 = vmatprep.subr.mxu0 0.0
    %3013 = vmatpush1.msra.mxu0 0.0
    %3014 = vmatprep.subr.mxu0 0.0
    %3015 = vmatpush1.msra.mxu0 0.0
    %3016 = vmatprep.subr.mxu0 0.0
    %3017 = vmatpush1.msra.mxu0 0.0
    %3018 = vmatprep.subr.mxu0 0.0
    %3019 = vmatpush1.msra.mxu0 0.0
    %3020 = vmatprep.subr.mxu0 0.0
    %3021 = vmatpush1.msra.mxu0 0.0
    %3022 = vmatprep.subr.mxu0 0.0
    %3023 = vmatpush1.msra.mxu0 0.0
    %3024 = vmatprep.subr.mxu0 0.0
    %3025 = vmatpush1.msra.mxu0 0.0
    %3026 = vmatprep.subr.mxu0 0.0
    %3027 = vmatpush1.msra.mxu0 %v1592
    %3028 = vmatprep.subr.mxu0 0.0
    %3029 = vmatpush1.msra.mxu0 %v1591
    %3030 = vmatprep.subr.mxu0 0.0
    %3031 = vmatpush1.msra.mxu0 %v1590
    %3032 = vmatprep.subr.mxu0 0.0
    %3033 = vmatpush1.msra.mxu0 %v1589
    %3034 = vmatprep.subr.mxu0 0.0
    %3035 = vmatpush1.msra.mxu0 %v1588
    %3036 = vmatprep.subr.mxu0 0.0
    %3037 = vmatpush1.msra.mxu0 %v1587
    %3038 = vmatprep.subr.mxu0 0.0
    %3039 = vmatpush1.msra.mxu0 %v1586
    %3040 = vmatprep.subr.mxu0 0.0
    %3041 = vmatpush1.msra.mxu0 %v1585
    %3042 = vmatprep.subr.mxu0 0.0
    %3043 = vmatpush2.msra.mxu0 0.0
    %3044 = vmatprep.subr.mxu0 0.0
    %3045 = vmatpush2.msra.mxu0 0.0
    %3046 = vmatprep.subr.mxu0 0.0
    %3047 = vmatpush2.msra.mxu0 0.0
    %3048 = vmatprep.subr.mxu0 0.0
    %3049 = vmatpush2.msra.mxu0 0.0
    %3050 = vmatprep.subr.mxu0 0.0
    %3051 = vmatpush2.msra.mxu0 0.0
    %3052 = vmatprep.subr.mxu0 0.0
    %3053 = vmatpush2.msra.mxu0 0.0
    %3054 = vmatprep.subr.mxu0 0.0
    %3055 = vmatpush2.msra.mxu0 0.0
    %3056 = vmatprep.subr.mxu0 0.0
    %3057 = vmatpush2.msra.mxu0 0.0
    %3058 = vmatprep.subr.mxu0 0.0
    %3059 = vmatpush2.msra.mxu0 0.0
    %3060 = vmatprep.subr.mxu0 0.0
    %3061 = vmatpush2.msra.mxu0 0.0
    %3062 = vmatprep.subr.mxu0 0.0
    %3063 = vmatpush2.msra.mxu0 0.0
    %3064 = vmatprep.subr.mxu0 0.0
    %3065 = vmatpush2.msra.mxu0 0.0
    %3066 = vmatprep.subr.mxu0 0.0
    %3067 = vmatpush2.msra.mxu0 0.0
    %3068 = vmatprep.subr.mxu0 0.0
    %3069 = vmatpush2.msra.mxu0 0.0
    %3070 = vmatprep.subr.mxu0 0.0
    %3071 = vmatpush2.msra.mxu0 0.0
    %3072 = vmatprep.subr.mxu0 0.0
    %3073 = vmatpush2.msra.mxu0 0.0
    %3074 = vmatprep.mubr.f32.mxu0 0.0
    %3075 = vmatmul.mubr.f32.gmra.mxu0 %v3005
    %v3076 = vpop.f32.mrf.mxu0
    %v3077 = vadd.f32 %v2996, %v3076
    %v3078 = vpop.f32.mrf.mxu0
    %3079 = vmatprep.mubr.f32.mxu0 0.0
    %3080 = vmatmul.mubr.f32.gmra.mxu0 %v3008
    %v3081 = vpop.f32.mrf.mxu0
    %v3082 = vadd.f32 %v3001, %v3081
    %v3083 = vpop.f32.mrf.mxu0
    %3084 = vdwg.mxu0
    %s3085 = sld [smem:[#allocation2 + $0x100]]
    %v3086 = vstv %s3085
    %v3087 = vmul.f32 %v3086, %v45
    %v3088 = vmul.f32 %v3086, %v46
    %v3089 = vmul.f32 %v3086, %v47
    %v3090 = vmul.f32 %v3086, %v48
    %v3091 = vmul.f32 %v3086, %v49
    %v3092 = vmul.f32 %v3086, %v50
    %v3093 = vmul.f32 %v3086, %v51
    %v3094 = vmul.f32 %v3086, %v52
    %s3095 = sld [smem:[#allocation2 + $0x101]]
    %v3096 = vstv %s3095
    %v3097 = vmul.f32 %v3096, %v64
    %v3098 = vmul.f32 %v3096, %v65
    %v3099 = vmul.f32 %v3096, %v66
    %v3100 = vmul.f32 %v3096, %v67
    %v3101 = vmul.f32 %v3096, %v68
    %v3102 = vmul.f32 %v3096, %v69
    %v3103 = vmul.f32 %v3096, %v70
    %v3104 = vmul.f32 %v3096, %v71
    %v3105 = vadd.f32 %v3087, %v3097
    %v3106 = vadd.f32 %v3088, %v3098
    %v3107 = vadd.f32 %v3089, %v3099
    %v3108 = vadd.f32 %v3090, %v3100
    %v3109 = vadd.f32 %v3091, %v3101
    %v3110 = vadd.f32 %v3092, %v3102
    %v3111 = vadd.f32 %v3093, %v3103
    %v3112 = vadd.f32 %v3094, %v3104
    %s3113 = sld [smem:[#allocation2 + $0x102]]
    %v3114 = vstv %s3113
    %v3115 = vmul.f32 %v3114, %v91
    %v3116 = vmul.f32 %v3114, %v92
    %v3117 = vmul.f32 %v3114, %v93
    %v3118 = vmul.f32 %v3114, %v94
    %v3119 = vmul.f32 %v3114, %v95
    %v3120 = vmul.f32 %v3114, %v96
    %v3121 = vmul.f32 %v3114, %v97
    %v3122 = vmul.f32 %v3114, %v98
    %v3123 = vadd.f32 %v3105, %v3115
    %v3124 = vadd.f32 %v3106, %v3116
    %v3125 = vadd.f32 %v3107, %v3117
    %v3126 = vadd.f32 %v3108, %v3118
    %v3127 = vadd.f32 %v3109, %v3119
    %v3128 = vadd.f32 %v3110, %v3120
    %v3129 = vadd.f32 %v3111, %v3121
    %v3130 = vadd.f32 %v3112, %v3122
    %s3131 = sld [smem:[#allocation2 + $0x103]]
    %v3132 = vstv %s3131
    %v3133 = vmul.f32 %v3132, %v118
    %v3134 = vmul.f32 %v3132, %v119
    %v3135 = vmul.f32 %v3132, %v120
    %v3136 = vmul.f32 %v3132, %v121
    %v3137 = vmul.f32 %v3132, %v122
    %v3138 = vmul.f32 %v3132, %v123
    %v3139 = vmul.f32 %v3132, %v124
    %v3140 = vmul.f32 %v3132, %v125
    %v3141 = vadd.f32 %v3123, %v3133
    %v3142 = vadd.f32 %v3124, %v3134
    %v3143 = vadd.f32 %v3125, %v3135
    %v3144 = vadd.f32 %v3126, %v3136
    %v3145 = vadd.f32 %v3127, %v3137
    %v3146 = vadd.f32 %v3128, %v3138
    %v3147 = vadd.f32 %v3129, %v3139
    %v3148 = vadd.f32 %v3130, %v3140
    %s3149 = sld [smem:[#allocation2 + $0x104]]
    %v3150 = vstv %s3149
    %v3151 = vmul.f32 %v3150, %v145
    %v3152 = vmul.f32 %v3150, %v146
    %v3153 = vmul.f32 %v3150, %v147
    %v3154 = vmul.f32 %v3150, %v148
    %v3155 = vmul.f32 %v3150, %v149
    %v3156 = vmul.f32 %v3150, %v150
    %v3157 = vmul.f32 %v3150, %v151
    %v3158 = vmul.f32 %v3150, %v152
    %v3159 = vadd.f32 %v3141, %v3151
    %v3160 = vadd.f32 %v3142, %v3152
    %v3161 = vadd.f32 %v3143, %v3153
    %v3162 = vadd.f32 %v3144, %v3154
    %v3163 = vadd.f32 %v3145, %v3155
    %v3164 = vadd.f32 %v3146, %v3156
    %v3165 = vadd.f32 %v3147, %v3157
    %v3166 = vadd.f32 %v3148, %v3158
    %s3167 = sld [smem:[#allocation2 + $0x105]]
    %v3168 = vstv %s3167
    %v3169 = vmul.f32 %v3168, %v172
    %v3170 = vmul.f32 %v3168, %v173
    %v3171 = vmul.f32 %v3168, %v174
    %v3172 = vmul.f32 %v3168, %v175
    %v3173 = vmul.f32 %v3168, %v176
    %v3174 = vmul.f32 %v3168, %v177
    %v3175 = vmul.f32 %v3168, %v178
    %v3176 = vmul.f32 %v3168, %v179
    %v3177 = vadd.f32 %v3159, %v3169
    %v3178 = vadd.f32 %v3160, %v3170
    %v3179 = vadd.f32 %v3161, %v3171
    %v3180 = vadd.f32 %v3162, %v3172
    %v3181 = vadd.f32 %v3163, %v3173
    %v3182 = vadd.f32 %v3164, %v3174
    %v3183 = vadd.f32 %v3165, %v3175
    %v3184 = vadd.f32 %v3166, %v3176
    %s3185 = sld [smem:[#allocation2 + $0x106]]
    %v3186 = vstv %s3185
    %v3187 = vmul.f32 %v3186, %v199
    %v3188 = vmul.f32 %v3186, %v200
    %v3189 = vmul.f32 %v3186, %v201
    %v3190 = vmul.f32 %v3186, %v202
    %v3191 = vmul.f32 %v3186, %v203
    %v3192 = vmul.f32 %v3186, %v204
    %v3193 = vmul.f32 %v3186, %v205
    %v3194 = vmul.f32 %v3186, %v206
    %v3195 = vadd.f32 %v3177, %v3187
    %v3196 = vadd.f32 %v3178, %v3188
    %v3197 = vadd.f32 %v3179, %v3189
    %v3198 = vadd.f32 %v3180, %v3190
    %v3199 = vadd.f32 %v3181, %v3191
    %v3200 = vadd.f32 %v3182, %v3192
    %v3201 = vadd.f32 %v3183, %v3193
    %v3202 = vadd.f32 %v3184, %v3194
    %s3203 = sld [smem:[#allocation2 + $0x107]]
    %v3204 = vstv %s3203
    %v3205 = vmul.f32 %v3204, %v226
    %v3206 = vmul.f32 %v3204, %v227
    %v3207 = vmul.f32 %v3204, %v228
    %v3208 = vmul.f32 %v3204, %v229
    %v3209 = vmul.f32 %v3204, %v230
    %v3210 = vmul.f32 %v3204, %v231
    %v3211 = vmul.f32 %v3204, %v232
    %v3212 = vmul.f32 %v3204, %v233
    %v3213 = vadd.f32 %v3195, %v3205
    %v3214 = vadd.f32 %v3196, %v3206
    %v3215 = vadd.f32 %v3197, %v3207
    %v3216 = vadd.f32 %v3198, %v3208
    %v3217 = vadd.f32 %v3199, %v3209
    %v3218 = vadd.f32 %v3200, %v3210
    %v3219 = vadd.f32 %v3201, %v3211
    %v3220 = vadd.f32 %v3202, %v3212
    %s3221 = sld [smem:[#allocation2 + $0x108]]
    %v3222 = vstv %s3221
    %v3223 = vmul.f32 %v3222, %v253
    %v3224 = vmul.f32 %v3222, %v254
    %v3225 = vmul.f32 %v3222, %v255
    %v3226 = vmul.f32 %v3222, %v256
    %v3227 = vmul.f32 %v3222, %v257
    %v3228 = vmul.f32 %v3222, %v258
    %v3229 = vmul.f32 %v3222, %v259
    %v3230 = vmul.f32 %v3222, %v260
    %v3231 = vadd.f32 %v3213, %v3223
    %v3232 = vadd.f32 %v3214, %v3224
    %v3233 = vadd.f32 %v3215, %v3225
    %v3234 = vadd.f32 %v3216, %v3226
    %v3235 = vadd.f32 %v3217, %v3227
    %v3236 = vadd.f32 %v3218, %v3228
    %v3237 = vadd.f32 %v3219, %v3229
    %v3238 = vadd.f32 %v3220, %v3230
    %v3239 = vmul.f32 %v3086, %v64
    %v3240 = vmul.f32 %v3086, %v65
    %v3241 = vmul.f32 %v3086, %v66
    %v3242 = vmul.f32 %v3086, %v67
    %v3243 = vmul.f32 %v3086, %v68
    %v3244 = vmul.f32 %v3086, %v69
    %v3245 = vmul.f32 %v3086, %v70
    %v3246 = vmul.f32 %v3086, %v71
    %v3247 = vmul.f32 %v3096, %v91
    %v3248 = vmul.f32 %v3096, %v92
    %v3249 = vmul.f32 %v3096, %v93
    %v3250 = vmul.f32 %v3096, %v94
    %v3251 = vmul.f32 %v3096, %v95
    %v3252 = vmul.f32 %v3096, %v96
    %v3253 = vmul.f32 %v3096, %v97
    %v3254 = vmul.f32 %v3096, %v98
    %v3255 = vadd.f32 %v3239, %v3247
    %v3256 = vadd.f32 %v3240, %v3248
    %v3257 = vadd.f32 %v3241, %v3249
    %v3258 = vadd.f32 %v3242, %v3250
    %v3259 = vadd.f32 %v3243, %v3251
    %v3260 = vadd.f32 %v3244, %v3252
    %v3261 = vadd.f32 %v3245, %v3253
    %v3262 = vadd.f32 %v3246, %v3254
    %v3263 = vmul.f32 %v3114, %v304
    %v3264 = vmul.f32 %v3114, %v305
    %v3265 = vmul.f32 %v3114, %v306
    %v3266 = vmul.f32 %v3114, %v307
    %v3267 = vmul.f32 %v3114, %v308
    %v3268 = vmul.f32 %v3114, %v309
    %v3269 = vmul.f32 %v3114, %v310
    %v3270 = vmul.f32 %v3114, %v311
    %v3271 = vadd.f32 %v3255, %v3263
    %v3272 = vadd.f32 %v3256, %v3264
    %v3273 = vadd.f32 %v3257, %v3265
    %v3274 = vadd.f32 %v3258, %v3266
    %v3275 = vadd.f32 %v3259, %v3267
    %v3276 = vadd.f32 %v3260, %v3268
    %v3277 = vadd.f32 %v3261, %v3269
    %v3278 = vadd.f32 %v3262, %v3270
    %v3279 = vmul.f32 %v3132, %v145
    %v3280 = vmul.f32 %v3132, %v146
    %v3281 = vmul.f32 %v3132, %v147
    %v3282 = vmul.f32 %v3132, %v148
    %v3283 = vmul.f32 %v3132, %v149
    %v3284 = vmul.f32 %v3132, %v150
    %v3285 = vmul.f32 %v3132, %v151
    %v3286 = vmul.f32 %v3132, %v152
    %v3287 = vadd.f32 %v3271, %v3279
    %v3288 = vadd.f32 %v3272, %v3280
    %v3289 = vadd.f32 %v3273, %v3281
    %v3290 = vadd.f32 %v3274, %v3282
    %v3291 = vadd.f32 %v3275, %v3283
    %v3292 = vadd.f32 %v3276, %v3284
    %v3293 = vadd.f32 %v3277, %v3285
    %v3294 = vadd.f32 %v3278, %v3286
    %v3295 = vmul.f32 %v3150, %v172
    %v3296 = vmul.f32 %v3150, %v173
    %v3297 = vmul.f32 %v3150, %v174
    %v3298 = vmul.f32 %v3150, %v175
    %v3299 = vmul.f32 %v3150, %v176
    %v3300 = vmul.f32 %v3150, %v177
    %v3301 = vmul.f32 %v3150, %v178
    %v3302 = vmul.f32 %v3150, %v179
    %v3303 = vadd.f32 %v3287, %v3295
    %v3304 = vadd.f32 %v3288, %v3296
    %v3305 = vadd.f32 %v3289, %v3297
    %v3306 = vadd.f32 %v3290, %v3298
    %v3307 = vadd.f32 %v3291, %v3299
    %v3308 = vadd.f32 %v3292, %v3300
    %v3309 = vadd.f32 %v3293, %v3301
    %v3310 = vadd.f32 %v3294, %v3302
    %v3311 = vmul.f32 %v3168, %v361
    %v3312 = vmul.f32 %v3168, %v362
    %v3313 = vmul.f32 %v3168, %v363
    %v3314 = vmul.f32 %v3168, %v364
    %v3315 = vmul.f32 %v3168, %v365
    %v3316 = vmul.f32 %v3168, %v366
    %v3317 = vmul.f32 %v3168, %v367
    %v3318 = vmul.f32 %v3168, %v368
    %v3319 = vadd.f32 %v3303, %v3311
    %v3320 = vadd.f32 %v3304, %v3312
    %v3321 = vadd.f32 %v3305, %v3313
    %v3322 = vadd.f32 %v3306, %v3314
    %v3323 = vadd.f32 %v3307, %v3315
    %v3324 = vadd.f32 %v3308, %v3316
    %v3325 = vadd.f32 %v3309, %v3317
    %v3326 = vadd.f32 %v3310, %v3318
    %v3327 = vmul.f32 %v3186, %v226
    %v3328 = vmul.f32 %v3186, %v227
    %v3329 = vmul.f32 %v3186, %v228
    %v3330 = vmul.f32 %v3186, %v229
    %v3331 = vmul.f32 %v3186, %v230
    %v3332 = vmul.f32 %v3186, %v231
    %v3333 = vmul.f32 %v3186, %v232
    %v3334 = vmul.f32 %v3186, %v233
    %v3335 = vadd.f32 %v3319, %v3327
    %v3336 = vadd.f32 %v3320, %v3328
    %v3337 = vadd.f32 %v3321, %v3329
    %v3338 = vadd.f32 %v3322, %v3330
    %v3339 = vadd.f32 %v3323, %v3331
    %v3340 = vadd.f32 %v3324, %v3332
    %v3341 = vadd.f32 %v3325, %v3333
    %v3342 = vadd.f32 %v3326, %v3334
    %v3343 = vmul.f32 %v3204, %v253
    %v3344 = vmul.f32 %v3204, %v254
    %v3345 = vmul.f32 %v3204, %v255
    %v3346 = vmul.f32 %v3204, %v256
    %v3347 = vmul.f32 %v3204, %v257
    %v3348 = vmul.f32 %v3204, %v258
    %v3349 = vmul.f32 %v3204, %v259
    %v3350 = vmul.f32 %v3204, %v260
    %v3351 = vadd.f32 %v3335, %v3343
    %v3352 = vadd.f32 %v3336, %v3344
    %v3353 = vadd.f32 %v3337, %v3345
    %v3354 = vadd.f32 %v3338, %v3346
    %v3355 = vadd.f32 %v3339, %v3347
    %v3356 = vadd.f32 %v3340, %v3348
    %v3357 = vadd.f32 %v3341, %v3349
    %v3358 = vadd.f32 %v3342, %v3350
    %v3359 = vmul.f32 %v3222, %v418
    %v3360 = vmul.f32 %v3222, %v419
    %v3361 = vmul.f32 %v3222, %v420
    %v3362 = vmul.f32 %v3222, %v421
    %v3363 = vmul.f32 %v3222, %v422
    %v3364 = vmul.f32 %v3222, %v423
    %v3365 = vmul.f32 %v3222, %v424
    %v3366 = vmul.f32 %v3222, %v425
    %v3367 = vadd.f32 %v3351, %v3359
    %v3368 = vadd.f32 %v3352, %v3360
    %v3369 = vadd.f32 %v3353, %v3361
    %v3370 = vadd.f32 %v3354, %v3362
    %v3371 = vadd.f32 %v3355, %v3363
    %v3372 = vadd.f32 %v3356, %v3364
    %v3373 = vadd.f32 %v3357, %v3365
    %v3374 = vadd.f32 %v3358, %v3366
    %v3375 = vmax.f32 %v3231, %v3367
    %v3376 = vmax.f32 %v3232, %v3368
    %v3377 = vmax.f32 %v3233, %v3369
    %v3378 = vmax.f32 %v3234, %v3370
    %v3379 = vmax.f32 %v3235, %v3371
    %v3380 = vmax.f32 %v3236, %v3372
    %v3381 = vmax.f32 %v3237, %v3373
    %v3382 = vmax.f32 %v3238, %v3374
    %v3383 = vmul.f32 %v3086, %v91
    %v3384 = vmul.f32 %v3086, %v92
    %v3385 = vmul.f32 %v3086, %v93
    %v3386 = vmul.f32 %v3086, %v94
    %v3387 = vmul.f32 %v3086, %v95
    %v3388 = vmul.f32 %v3086, %v96
    %v3389 = vmul.f32 %v3086, %v97
    %v3390 = vmul.f32 %v3086, %v98
    %v3391 = vmul.f32 %v3096, %v304
    %v3392 = vmul.f32 %v3096, %v305
    %v3393 = vmul.f32 %v3096, %v306
    %v3394 = vmul.f32 %v3096, %v307
    %v3395 = vmul.f32 %v3096, %v308
    %v3396 = vmul.f32 %v3096, %v309
    %v3397 = vmul.f32 %v3096, %v310
    %v3398 = vmul.f32 %v3096, %v311
    %v3399 = vadd.f32 %v3383, %v3391
    %v3400 = vadd.f32 %v3384, %v3392
    %v3401 = vadd.f32 %v3385, %v3393
    %v3402 = vadd.f32 %v3386, %v3394
    %v3403 = vadd.f32 %v3387, %v3395
    %v3404 = vadd.f32 %v3388, %v3396
    %v3405 = vadd.f32 %v3389, %v3397
    %v3406 = vadd.f32 %v3390, %v3398
    %v3407 = vmul.f32 %v3114, %v475
    %v3408 = vmul.f32 %v3114, %v476
    %v3409 = vmul.f32 %v3114, %v477
    %v3410 = vmul.f32 %v3114, %v478
    %v3411 = vmul.f32 %v3114, %v479
    %v3412 = vmul.f32 %v3114, %v480
    %v3413 = vmul.f32 %v3114, %v481
    %v3414 = vmul.f32 %v3114, %v482
    %v3415 = vadd.f32 %v3399, %v3407
    %v3416 = vadd.f32 %v3400, %v3408
    %v3417 = vadd.f32 %v3401, %v3409
    %v3418 = vadd.f32 %v3402, %v3410
    %v3419 = vadd.f32 %v3403, %v3411
    %v3420 = vadd.f32 %v3404, %v3412
    %v3421 = vadd.f32 %v3405, %v3413
    %v3422 = vadd.f32 %v3406, %v3414
    %v3423 = vmul.f32 %v3132, %v172
    %v3424 = vmul.f32 %v3132, %v173
    %v3425 = vmul.f32 %v3132, %v174
    %v3426 = vmul.f32 %v3132, %v175
    %v3427 = vmul.f32 %v3132, %v176
    %v3428 = vmul.f32 %v3132, %v177
    %v3429 = vmul.f32 %v3132, %v178
    %v3430 = vmul.f32 %v3132, %v179
    %v3431 = vadd.f32 %v3415, %v3423
    %v3432 = vadd.f32 %v3416, %v3424
    %v3433 = vadd.f32 %v3417, %v3425
    %v3434 = vadd.f32 %v3418, %v3426
    %v3435 = vadd.f32 %v3419, %v3427
    %v3436 = vadd.f32 %v3420, %v3428
    %v3437 = vadd.f32 %v3421, %v3429
    %v3438 = vadd.f32 %v3422, %v3430
    %v3439 = vmul.f32 %v3150, %v361
    %v3440 = vmul.f32 %v3150, %v362
    %v3441 = vmul.f32 %v3150, %v363
    %v3442 = vmul.f32 %v3150, %v364
    %v3443 = vmul.f32 %v3150, %v365
    %v3444 = vmul.f32 %v3150, %v366
    %v3445 = vmul.f32 %v3150, %v367
    %v3446 = vmul.f32 %v3150, %v368
    %v3447 = vadd.f32 %v3431, %v3439
    %v3448 = vadd.f32 %v3432, %v3440
    %v3449 = vadd.f32 %v3433, %v3441
    %v3450 = vadd.f32 %v3434, %v3442
    %v3451 = vadd.f32 %v3435, %v3443
    %v3452 = vadd.f32 %v3436, %v3444
    %v3453 = vadd.f32 %v3437, %v3445
    %v3454 = vadd.f32 %v3438, %v3446
    %v3455 = vmul.f32 %v3168, %v532
    %v3456 = vmul.f32 %v3168, %v533
    %v3457 = vmul.f32 %v3168, %v534
    %v3458 = vmul.f32 %v3168, %v535
    %v3459 = vmul.f32 %v3168, %v536
    %v3460 = vmul.f32 %v3168, %v537
    %v3461 = vmul.f32 %v3168, %v538
    %v3462 = vmul.f32 %v3168, %v539
    %v3463 = vadd.f32 %v3447, %v3455
    %v3464 = vadd.f32 %v3448, %v3456
    %v3465 = vadd.f32 %v3449, %v3457
    %v3466 = vadd.f32 %v3450, %v3458
    %v3467 = vadd.f32 %v3451, %v3459
    %v3468 = vadd.f32 %v3452, %v3460
    %v3469 = vadd.f32 %v3453, %v3461
    %v3470 = vadd.f32 %v3454, %v3462
    %v3471 = vmul.f32 %v3186, %v253
    %v3472 = vmul.f32 %v3186, %v254
    %v3473 = vmul.f32 %v3186, %v255
    %v3474 = vmul.f32 %v3186, %v256
    %v3475 = vmul.f32 %v3186, %v257
    %v3476 = vmul.f32 %v3186, %v258
    %v3477 = vmul.f32 %v3186, %v259
    %v3478 = vmul.f32 %v3186, %v260
    %v3479 = vadd.f32 %v3463, %v3471
    %v3480 = vadd.f32 %v3464, %v3472
    %v3481 = vadd.f32 %v3465, %v3473
    %v3482 = vadd.f32 %v3466, %v3474
    %v3483 = vadd.f32 %v3467, %v3475
    %v3484 = vadd.f32 %v3468, %v3476
    %v3485 = vadd.f32 %v3469, %v3477
    %v3486 = vadd.f32 %v3470, %v3478
    %v3487 = vmul.f32 %v3204, %v418
    %v3488 = vmul.f32 %v3204, %v419
    %v3489 = vmul.f32 %v3204, %v420
    %v3490 = vmul.f32 %v3204, %v421
    %v3491 = vmul.f32 %v3204, %v422
    %v3492 = vmul.f32 %v3204, %v423
    %v3493 = vmul.f32 %v3204, %v424
    %v3494 = vmul.f32 %v3204, %v425
    %v3495 = vadd.f32 %v3479, %v3487
    %v3496 = vadd.f32 %v3480, %v3488
    %v3497 = vadd.f32 %v3481, %v3489
    %v3498 = vadd.f32 %v3482, %v3490
    %v3499 = vadd.f32 %v3483, %v3491
    %v3500 = vadd.f32 %v3484, %v3492
    %v3501 = vadd.f32 %v3485, %v3493
    %v3502 = vadd.f32 %v3486, %v3494
    %v3503 = vmul.f32 %v3222, %v589
    %v3504 = vmul.f32 %v3222, %v590
    %v3505 = vmul.f32 %v3222, %v591
    %v3506 = vmul.f32 %v3222, %v592
    %v3507 = vmul.f32 %v3222, %v593
    %v3508 = vmul.f32 %v3222, %v594
    %v3509 = vmul.f32 %v3222, %v595
    %v3510 = vmul.f32 %v3222, %v596
    %v3511 = vadd.f32 %v3495, %v3503
    %v3512 = vadd.f32 %v3496, %v3504
    %v3513 = vadd.f32 %v3497, %v3505
    %v3514 = vadd.f32 %v3498, %v3506
    %v3515 = vadd.f32 %v3499, %v3507
    %v3516 = vadd.f32 %v3500, %v3508
    %v3517 = vadd.f32 %v3501, %v3509
    %v3518 = vadd.f32 %v3502, %v3510
    %v3519 = vmax.f32 %v3375, %v3511
    %v3520 = vmax.f32 %v3376, %v3512
    %v3521 = vmax.f32 %v3377, %v3513
    %v3522 = vmax.f32 %v3378, %v3514
    %v3523 = vmax.f32 %v3379, %v3515
    %v3524 = vmax.f32 %v3380, %v3516
    %v3525 = vmax.f32 %v3381, %v3517
    %v3526 = vmax.f32 %v3382, %v3518
    %v3527 = vmul.f32 %v3086, %v118
    %v3528 = vmul.f32 %v3086, %v119
    %v3529 = vmul.f32 %v3086, %v120
    %v3530 = vmul.f32 %v3086, %v121
    %v3531 = vmul.f32 %v3086, %v122
    %v3532 = vmul.f32 %v3086, %v123
    %v3533 = vmul.f32 %v3086, %v124
    %v3534 = vmul.f32 %v3086, %v125
    %v3535 = vmul.f32 %v3096, %v145
    %v3536 = vmul.f32 %v3096, %v146
    %v3537 = vmul.f32 %v3096, %v147
    %v3538 = vmul.f32 %v3096, %v148
    %v3539 = vmul.f32 %v3096, %v149
    %v3540 = vmul.f32 %v3096, %v150
    %v3541 = vmul.f32 %v3096, %v151
    %v3542 = vmul.f32 %v3096, %v152
    %v3543 = vadd.f32 %v3527, %v3535
    %v3544 = vadd.f32 %v3528, %v3536
    %v3545 = vadd.f32 %v3529, %v3537
    %v3546 = vadd.f32 %v3530, %v3538
    %v3547 = vadd.f32 %v3531, %v3539
    %v3548 = vadd.f32 %v3532, %v3540
    %v3549 = vadd.f32 %v3533, %v3541
    %v3550 = vadd.f32 %v3534, %v3542
    %v3551 = vmul.f32 %v3114, %v172
    %v3552 = vmul.f32 %v3114, %v173
    %v3553 = vmul.f32 %v3114, %v174
    %v3554 = vmul.f32 %v3114, %v175
    %v3555 = vmul.f32 %v3114, %v176
    %v3556 = vmul.f32 %v3114, %v177
    %v3557 = vmul.f32 %v3114, %v178
    %v3558 = vmul.f32 %v3114, %v179
    %v3559 = vadd.f32 %v3543, %v3551
    %v3560 = vadd.f32 %v3544, %v3552
    %v3561 = vadd.f32 %v3545, %v3553
    %v3562 = vadd.f32 %v3546, %v3554
    %v3563 = vadd.f32 %v3547, %v3555
    %v3564 = vadd.f32 %v3548, %v3556
    %v3565 = vadd.f32 %v3549, %v3557
    %v3566 = vadd.f32 %v3550, %v3558
    %v3567 = vmul.f32 %v3132, %v199
    %v3568 = vmul.f32 %v3132, %v200
    %v3569 = vmul.f32 %v3132, %v201
    %v3570 = vmul.f32 %v3132, %v202
    %v3571 = vmul.f32 %v3132, %v203
    %v3572 = vmul.f32 %v3132, %v204
    %v3573 = vmul.f32 %v3132, %v205
    %v3574 = vmul.f32 %v3132, %v206
    %v3575 = vadd.f32 %v3559, %v3567
    %v3576 = vadd.f32 %v3560, %v3568
    %v3577 = vadd.f32 %v3561, %v3569
    %v3578 = vadd.f32 %v3562, %v3570
    %v3579 = vadd.f32 %v3563, %v3571
    %v3580 = vadd.f32 %v3564, %v3572
    %v3581 = vadd.f32 %v3565, %v3573
    %v3582 = vadd.f32 %v3566, %v3574
    %v3583 = vmul.f32 %v3150, %v226
    %v3584 = vmul.f32 %v3150, %v227
    %v3585 = vmul.f32 %v3150, %v228
    %v3586 = vmul.f32 %v3150, %v229
    %v3587 = vmul.f32 %v3150, %v230
    %v3588 = vmul.f32 %v3150, %v231
    %v3589 = vmul.f32 %v3150, %v232
    %v3590 = vmul.f32 %v3150, %v233
    %v3591 = vadd.f32 %v3575, %v3583
    %v3592 = vadd.f32 %v3576, %v3584
    %v3593 = vadd.f32 %v3577, %v3585
    %v3594 = vadd.f32 %v3578, %v3586
    %v3595 = vadd.f32 %v3579, %v3587
    %v3596 = vadd.f32 %v3580, %v3588
    %v3597 = vadd.f32 %v3581, %v3589
    %v3598 = vadd.f32 %v3582, %v3590
    %v3599 = vmul.f32 %v3168, %v253
    %v3600 = vmul.f32 %v3168, %v254
    %v3601 = vmul.f32 %v3168, %v255
    %v3602 = vmul.f32 %v3168, %v256
    %v3603 = vmul.f32 %v3168, %v257
    %v3604 = vmul.f32 %v3168, %v258
    %v3605 = vmul.f32 %v3168, %v259
    %v3606 = vmul.f32 %v3168, %v260
    %v3607 = vadd.f32 %v3591, %v3599
    %v3608 = vadd.f32 %v3592, %v3600
    %v3609 = vadd.f32 %v3593, %v3601
    %v3610 = vadd.f32 %v3594, %v3602
    %v3611 = vadd.f32 %v3595, %v3603
    %v3612 = vadd.f32 %v3596, %v3604
    %v3613 = vadd.f32 %v3597, %v3605
    %v3614 = vadd.f32 %v3598, %v3606
    %v3615 = vmul.f32 %v3186, %v710
    %v3616 = vmul.f32 %v3186, %v711
    %v3617 = vmul.f32 %v3186, %v712
    %v3618 = vmul.f32 %v3186, %v713
    %v3619 = vmul.f32 %v3186, %v714
    %v3620 = vmul.f32 %v3186, %v715
    %v3621 = vmul.f32 %v3186, %v716
    %v3622 = vmul.f32 %v3186, %v717
    %v3623 = vadd.f32 %v3607, %v3615
    %v3624 = vadd.f32 %v3608, %v3616
    %v3625 = vadd.f32 %v3609, %v3617
    %v3626 = vadd.f32 %v3610, %v3618
    %v3627 = vadd.f32 %v3611, %v3619
    %v3628 = vadd.f32 %v3612, %v3620
    %v3629 = vadd.f32 %v3613, %v3621
    %v3630 = vadd.f32 %v3614, %v3622
    %v3631 = vmul.f32 %v3204, %v735
    %v3632 = vmul.f32 %v3204, %v736
    %v3633 = vmul.f32 %v3204, %v737
    %v3634 = vmul.f32 %v3204, %v738
    %v3635 = vmul.f32 %v3204, %v739
    %v3636 = vmul.f32 %v3204, %v740
    %v3637 = vmul.f32 %v3204, %v741
    %v3638 = vmul.f32 %v3204, %v742
    %v3639 = vadd.f32 %v3623, %v3631
    %v3640 = vadd.f32 %v3624, %v3632
    %v3641 = vadd.f32 %v3625, %v3633
    %v3642 = vadd.f32 %v3626, %v3634
    %v3643 = vadd.f32 %v3627, %v3635
    %v3644 = vadd.f32 %v3628, %v3636
    %v3645 = vadd.f32 %v3629, %v3637
    %v3646 = vadd.f32 %v3630, %v3638
    %v3647 = vmul.f32 %v3222, %v760
    %v3648 = vmul.f32 %v3222, %v761
    %v3649 = vmul.f32 %v3222, %v762
    %v3650 = vmul.f32 %v3222, %v763
    %v3651 = vmul.f32 %v3222, %v764
    %v3652 = vmul.f32 %v3222, %v765
    %v3653 = vmul.f32 %v3222, %v766
    %v3654 = vmul.f32 %v3222, %v767
    %v3655 = vadd.f32 %v3639, %v3647
    %v3656 = vadd.f32 %v3640, %v3648
    %v3657 = vadd.f32 %v3641, %v3649
    %v3658 = vadd.f32 %v3642, %v3650
    %v3659 = vadd.f32 %v3643, %v3651
    %v3660 = vadd.f32 %v3644, %v3652
    %v3661 = vadd.f32 %v3645, %v3653
    %v3662 = vadd.f32 %v3646, %v3654
    %v3663 = vmax.f32 %v3519, %v3655
    %v3664 = vmax.f32 %v3520, %v3656
    %v3665 = vmax.f32 %v3521, %v3657
    %v3666 = vmax.f32 %v3522, %v3658
    %v3667 = vmax.f32 %v3523, %v3659
    %v3668 = vmax.f32 %v3524, %v3660
    %v3669 = vmax.f32 %v3525, %v3661
    %v3670 = vmax.f32 %v3526, %v3662
    %v3671 = vmul.f32 %v3086, %v145
    %v3672 = vmul.f32 %v3086, %v146
    %v3673 = vmul.f32 %v3086, %v147
    %v3674 = vmul.f32 %v3086, %v148
    %v3675 = vmul.f32 %v3086, %v149
    %v3676 = vmul.f32 %v3086, %v150
    %v3677 = vmul.f32 %v3086, %v151
    %v3678 = vmul.f32 %v3086, %v152
    %v3679 = vmul.f32 %v3096, %v172
    %v3680 = vmul.f32 %v3096, %v173
    %v3681 = vmul.f32 %v3096, %v174
    %v3682 = vmul.f32 %v3096, %v175
    %v3683 = vmul.f32 %v3096, %v176
    %v3684 = vmul.f32 %v3096, %v177
    %v3685 = vmul.f32 %v3096, %v178
    %v3686 = vmul.f32 %v3096, %v179
    %v3687 = vadd.f32 %v3671, %v3679
    %v3688 = vadd.f32 %v3672, %v3680
    %v3689 = vadd.f32 %v3673, %v3681
    %v3690 = vadd.f32 %v3674, %v3682
    %v3691 = vadd.f32 %v3675, %v3683
    %v3692 = vadd.f32 %v3676, %v3684
    %v3693 = vadd.f32 %v3677, %v3685
    %v3694 = vadd.f32 %v3678, %v3686
    %v3695 = vmul.f32 %v3114, %v361
    %v3696 = vmul.f32 %v3114, %v362
    %v3697 = vmul.f32 %v3114, %v363
    %v3698 = vmul.f32 %v3114, %v364
    %v3699 = vmul.f32 %v3114, %v365
    %v3700 = vmul.f32 %v3114, %v366
    %v3701 = vmul.f32 %v3114, %v367
    %v3702 = vmul.f32 %v3114, %v368
    %v3703 = vadd.f32 %v3687, %v3695
    %v3704 = vadd.f32 %v3688, %v3696
    %v3705 = vadd.f32 %v3689, %v3697
    %v3706 = vadd.f32 %v3690, %v3698
    %v3707 = vadd.f32 %v3691, %v3699
    %v3708 = vadd.f32 %v3692, %v3700
    %v3709 = vadd.f32 %v3693, %v3701
    %v3710 = vadd.f32 %v3694, %v3702
    %v3711 = vmul.f32 %v3132, %v226
    %v3712 = vmul.f32 %v3132, %v227
    %v3713 = vmul.f32 %v3132, %v228
    %v3714 = vmul.f32 %v3132, %v229
    %v3715 = vmul.f32 %v3132, %v230
    %v3716 = vmul.f32 %v3132, %v231
    %v3717 = vmul.f32 %v3132, %v232
    %v3718 = vmul.f32 %v3132, %v233
    %v3719 = vadd.f32 %v3703, %v3711
    %v3720 = vadd.f32 %v3704, %v3712
    %v3721 = vadd.f32 %v3705, %v3713
    %v3722 = vadd.f32 %v3706, %v3714
    %v3723 = vadd.f32 %v3707, %v3715
    %v3724 = vadd.f32 %v3708, %v3716
    %v3725 = vadd.f32 %v3709, %v3717
    %v3726 = vadd.f32 %v3710, %v3718
    %v3727 = vmul.f32 %v3150, %v253
    %v3728 = vmul.f32 %v3150, %v254
    %v3729 = vmul.f32 %v3150, %v255
    %v3730 = vmul.f32 %v3150, %v256
    %v3731 = vmul.f32 %v3150, %v257
    %v3732 = vmul.f32 %v3150, %v258
    %v3733 = vmul.f32 %v3150, %v259
    %v3734 = vmul.f32 %v3150, %v260
    %v3735 = vadd.f32 %v3719, %v3727
    %v3736 = vadd.f32 %v3720, %v3728
    %v3737 = vadd.f32 %v3721, %v3729
    %v3738 = vadd.f32 %v3722, %v3730
    %v3739 = vadd.f32 %v3723, %v3731
    %v3740 = vadd.f32 %v3724, %v3732
    %v3741 = vadd.f32 %v3725, %v3733
    %v3742 = vadd.f32 %v3726, %v3734
    %v3743 = vmul.f32 %v3168, %v418
    %v3744 = vmul.f32 %v3168, %v419
    %v3745 = vmul.f32 %v3168, %v420
    %v3746 = vmul.f32 %v3168, %v421
    %v3747 = vmul.f32 %v3168, %v422
    %v3748 = vmul.f32 %v3168, %v423
    %v3749 = vmul.f32 %v3168, %v424
    %v3750 = vmul.f32 %v3168, %v425
    %v3751 = vadd.f32 %v3735, %v3743
    %v3752 = vadd.f32 %v3736, %v3744
    %v3753 = vadd.f32 %v3737, %v3745
    %v3754 = vadd.f32 %v3738, %v3746
    %v3755 = vadd.f32 %v3739, %v3747
    %v3756 = vadd.f32 %v3740, %v3748
    %v3757 = vadd.f32 %v3741, %v3749
    %v3758 = vadd.f32 %v3742, %v3750
    %v3759 = vmul.f32 %v3186, %v735
    %v3760 = vmul.f32 %v3186, %v736
    %v3761 = vmul.f32 %v3186, %v737
    %v3762 = vmul.f32 %v3186, %v738
    %v3763 = vmul.f32 %v3186, %v739
    %v3764 = vmul.f32 %v3186, %v740
    %v3765 = vmul.f32 %v3186, %v741
    %v3766 = vmul.f32 %v3186, %v742
    %v3767 = vadd.f32 %v3751, %v3759
    %v3768 = vadd.f32 %v3752, %v3760
    %v3769 = vadd.f32 %v3753, %v3761
    %v3770 = vadd.f32 %v3754, %v3762
    %v3771 = vadd.f32 %v3755, %v3763
    %v3772 = vadd.f32 %v3756, %v3764
    %v3773 = vadd.f32 %v3757, %v3765
    %v3774 = vadd.f32 %v3758, %v3766
    %v3775 = vmul.f32 %v3204, %v760
    %v3776 = vmul.f32 %v3204, %v761
    %v3777 = vmul.f32 %v3204, %v762
    %v3778 = vmul.f32 %v3204, %v763
    %v3779 = vmul.f32 %v3204, %v764
    %v3780 = vmul.f32 %v3204, %v765
    %v3781 = vmul.f32 %v3204, %v766
    %v3782 = vmul.f32 %v3204, %v767
    %v3783 = vadd.f32 %v3767, %v3775
    %v3784 = vadd.f32 %v3768, %v3776
    %v3785 = vadd.f32 %v3769, %v3777
    %v3786 = vadd.f32 %v3770, %v3778
    %v3787 = vadd.f32 %v3771, %v3779
    %v3788 = vadd.f32 %v3772, %v3780
    %v3789 = vadd.f32 %v3773, %v3781
    %v3790 = vadd.f32 %v3774, %v3782
    %v3791 = vmul.f32 %v3222, %v913
    %v3792 = vmul.f32 %v3222, %v914
    %v3793 = vmul.f32 %v3222, %v915
    %v3794 = vmul.f32 %v3222, %v916
    %v3795 = vmul.f32 %v3222, %v917
    %v3796 = vmul.f32 %v3222, %v918
    %v3797 = vmul.f32 %v3222, %v919
    %v3798 = vmul.f32 %v3222, %v920
    %v3799 = vadd.f32 %v3783, %v3791
    %v3800 = vadd.f32 %v3784, %v3792
    %v3801 = vadd.f32 %v3785, %v3793
    %v3802 = vadd.f32 %v3786, %v3794
    %v3803 = vadd.f32 %v3787, %v3795
    %v3804 = vadd.f32 %v3788, %v3796
    %v3805 = vadd.f32 %v3789, %v3797
    %v3806 = vadd.f32 %v3790, %v3798
    %v3807 = vmax.f32 %v3663, %v3799
    %v3808 = vmax.f32 %v3664, %v3800
    %v3809 = vmax.f32 %v3665, %v3801
    %v3810 = vmax.f32 %v3666, %v3802
    %v3811 = vmax.f32 %v3667, %v3803
    %v3812 = vmax.f32 %v3668, %v3804
    %v3813 = vmax.f32 %v3669, %v3805
    %v3814 = vmax.f32 %v3670, %v3806
    %v3815 = vmul.f32 %v3086, %v172
    %v3816 = vmul.f32 %v3086, %v173
    %v3817 = vmul.f32 %v3086, %v174
    %v3818 = vmul.f32 %v3086, %v175
    %v3819 = vmul.f32 %v3086, %v176
    %v3820 = vmul.f32 %v3086, %v177
    %v3821 = vmul.f32 %v3086, %v178
    %v3822 = vmul.f32 %v3086, %v179
    %v3823 = vmul.f32 %v3096, %v361
    %v3824 = vmul.f32 %v3096, %v362
    %v3825 = vmul.f32 %v3096, %v363
    %v3826 = vmul.f32 %v3096, %v364
    %v3827 = vmul.f32 %v3096, %v365
    %v3828 = vmul.f32 %v3096, %v366
    %v3829 = vmul.f32 %v3096, %v367
    %v3830 = vmul.f32 %v3096, %v368
    %v3831 = vadd.f32 %v3815, %v3823
    %v3832 = vadd.f32 %v3816, %v3824
    %v3833 = vadd.f32 %v3817, %v3825
    %v3834 = vadd.f32 %v3818, %v3826
    %v3835 = vadd.f32 %v3819, %v3827
    %v3836 = vadd.f32 %v3820, %v3828
    %v3837 = vadd.f32 %v3821, %v3829
    %v3838 = vadd.f32 %v3822, %v3830
    %v3839 = vmul.f32 %v3114, %v532
    %v3840 = vmul.f32 %v3114, %v533
    %v3841 = vmul.f32 %v3114, %v534
    %v3842 = vmul.f32 %v3114, %v535
    %v3843 = vmul.f32 %v3114, %v536
    %v3844 = vmul.f32 %v3114, %v537
    %v3845 = vmul.f32 %v3114, %v538
    %v3846 = vmul.f32 %v3114, %v539
    %v3847 = vadd.f32 %v3831, %v3839
    %v3848 = vadd.f32 %v3832, %v3840
    %v3849 = vadd.f32 %v3833, %v3841
    %v3850 = vadd.f32 %v3834, %v3842
    %v3851 = vadd.f32 %v3835, %v3843
    %v3852 = vadd.f32 %v3836, %v3844
    %v3853 = vadd.f32 %v3837, %v3845
    %v3854 = vadd.f32 %v3838, %v3846
    %v3855 = vmul.f32 %v3132, %v253
    %v3856 = vmul.f32 %v3132, %v254
    %v3857 = vmul.f32 %v3132, %v255
    %v3858 = vmul.f32 %v3132, %v256
    %v3859 = vmul.f32 %v3132, %v257
    %v3860 = vmul.f32 %v3132, %v258
    %v3861 = vmul.f32 %v3132, %v259
    %v3862 = vmul.f32 %v3132, %v260
    %v3863 = vadd.f32 %v3847, %v3855
    %v3864 = vadd.f32 %v3848, %v3856
    %v3865 = vadd.f32 %v3849, %v3857
    %v3866 = vadd.f32 %v3850, %v3858
    %v3867 = vadd.f32 %v3851, %v3859
    %v3868 = vadd.f32 %v3852, %v3860
    %v3869 = vadd.f32 %v3853, %v3861
    %v3870 = vadd.f32 %v3854, %v3862
    %v3871 = vmul.f32 %v3150, %v418
    %v3872 = vmul.f32 %v3150, %v419
    %v3873 = vmul.f32 %v3150, %v420
    %v3874 = vmul.f32 %v3150, %v421
    %v3875 = vmul.f32 %v3150, %v422
    %v3876 = vmul.f32 %v3150, %v423
    %v3877 = vmul.f32 %v3150, %v424
    %v3878 = vmul.f32 %v3150, %v425
    %v3879 = vadd.f32 %v3863, %v3871
    %v3880 = vadd.f32 %v3864, %v3872
    %v3881 = vadd.f32 %v3865, %v3873
    %v3882 = vadd.f32 %v3866, %v3874
    %v3883 = vadd.f32 %v3867, %v3875
    %v3884 = vadd.f32 %v3868, %v3876
    %v3885 = vadd.f32 %v3869, %v3877
    %v3886 = vadd.f32 %v3870, %v3878
    %v3887 = vmul.f32 %v3168, %v589
    %v3888 = vmul.f32 %v3168, %v590
    %v3889 = vmul.f32 %v3168, %v591
    %v3890 = vmul.f32 %v3168, %v592
    %v3891 = vmul.f32 %v3168, %v593
    %v3892 = vmul.f32 %v3168, %v594
    %v3893 = vmul.f32 %v3168, %v595
    %v3894 = vmul.f32 %v3168, %v596
    %v3895 = vadd.f32 %v3879, %v3887
    %v3896 = vadd.f32 %v3880, %v3888
    %v3897 = vadd.f32 %v3881, %v3889
    %v3898 = vadd.f32 %v3882, %v3890
    %v3899 = vadd.f32 %v3883, %v3891
    %v3900 = vadd.f32 %v3884, %v3892
    %v3901 = vadd.f32 %v3885, %v3893
    %v3902 = vadd.f32 %v3886, %v3894
    %v3903 = vmul.f32 %v3186, %v760
    %v3904 = vmul.f32 %v3186, %v761
    %v3905 = vmul.f32 %v3186, %v762
    %v3906 = vmul.f32 %v3186, %v763
    %v3907 = vmul.f32 %v3186, %v764
    %v3908 = vmul.f32 %v3186, %v765
    %v3909 = vmul.f32 %v3186, %v766
    %v3910 = vmul.f32 %v3186, %v767
    %v3911 = vadd.f32 %v3895, %v3903
    %v3912 = vadd.f32 %v3896, %v3904
    %v3913 = vadd.f32 %v3897, %v3905
    %v3914 = vadd.f32 %v3898, %v3906
    %v3915 = vadd.f32 %v3899, %v3907
    %v3916 = vadd.f32 %v3900, %v3908
    %v3917 = vadd.f32 %v3901, %v3909
    %v3918 = vadd.f32 %v3902, %v3910
    %v3919 = vmul.f32 %v3204, %v913
    %v3920 = vmul.f32 %v3204, %v914
    %v3921 = vmul.f32 %v3204, %v915
    %v3922 = vmul.f32 %v3204, %v916
    %v3923 = vmul.f32 %v3204, %v917
    %v3924 = vmul.f32 %v3204, %v918
    %v3925 = vmul.f32 %v3204, %v919
    %v3926 = vmul.f32 %v3204, %v920
    %v3927 = vadd.f32 %v3911, %v3919
    %v3928 = vadd.f32 %v3912, %v3920
    %v3929 = vadd.f32 %v3913, %v3921
    %v3930 = vadd.f32 %v3914, %v3922
    %v3931 = vadd.f32 %v3915, %v3923
    %v3932 = vadd.f32 %v3916, %v3924
    %v3933 = vadd.f32 %v3917, %v3925
    %v3934 = vadd.f32 %v3918, %v3926
    %v3935 = vmul.f32 %v3222, %v1066
    %v3936 = vmul.f32 %v3222, %v1067
    %v3937 = vmul.f32 %v3222, %v1068
    %v3938 = vmul.f32 %v3222, %v1069
    %v3939 = vmul.f32 %v3222, %v1070
    %v3940 = vmul.f32 %v3222, %v1071
    %v3941 = vmul.f32 %v3222, %v1072
    %v3942 = vmul.f32 %v3222, %v1073
    %v3943 = vadd.f32 %v3927, %v3935
    %v3944 = vadd.f32 %v3928, %v3936
    %v3945 = vadd.f32 %v3929, %v3937
    %v3946 = vadd.f32 %v3930, %v3938
    %v3947 = vadd.f32 %v3931, %v3939
    %v3948 = vadd.f32 %v3932, %v3940
    %v3949 = vadd.f32 %v3933, %v3941
    %v3950 = vadd.f32 %v3934, %v3942
    %v3951 = vmax.f32 %v3807, %v3943
    %v3952 = vmax.f32 %v3808, %v3944
    %v3953 = vmax.f32 %v3809, %v3945
    %v3954 = vmax.f32 %v3810, %v3946
    %v3955 = vmax.f32 %v3811, %v3947
    %v3956 = vmax.f32 %v3812, %v3948
    %v3957 = vmax.f32 %v3813, %v3949
    %v3958 = vmax.f32 %v3814, %v3950
    %v3959 = vmul.f32 %v3086, %v199
    %v3960 = vmul.f32 %v3086, %v200
    %v3961 = vmul.f32 %v3086, %v201
    %v3962 = vmul.f32 %v3086, %v202
    %v3963 = vmul.f32 %v3086, %v203
    %v3964 = vmul.f32 %v3086, %v204
    %v3965 = vmul.f32 %v3086, %v205
    %v3966 = vmul.f32 %v3086, %v206
    %v3967 = vmul.f32 %v3096, %v226
    %v3968 = vmul.f32 %v3096, %v227
    %v3969 = vmul.f32 %v3096, %v228
    %v3970 = vmul.f32 %v3096, %v229
    %v3971 = vmul.f32 %v3096, %v230
    %v3972 = vmul.f32 %v3096, %v231
    %v3973 = vmul.f32 %v3096, %v232
    %v3974 = vmul.f32 %v3096, %v233
    %v3975 = vadd.f32 %v3959, %v3967
    %v3976 = vadd.f32 %v3960, %v3968
    %v3977 = vadd.f32 %v3961, %v3969
    %v3978 = vadd.f32 %v3962, %v3970
    %v3979 = vadd.f32 %v3963, %v3971
    %v3980 = vadd.f32 %v3964, %v3972
    %v3981 = vadd.f32 %v3965, %v3973
    %v3982 = vadd.f32 %v3966, %v3974
    %v3983 = vmul.f32 %v3114, %v253
    %v3984 = vmul.f32 %v3114, %v254
    %v3985 = vmul.f32 %v3114, %v255
    %v3986 = vmul.f32 %v3114, %v256
    %v3987 = vmul.f32 %v3114, %v257
    %v3988 = vmul.f32 %v3114, %v258
    %v3989 = vmul.f32 %v3114, %v259
    %v3990 = vmul.f32 %v3114, %v260
    %v3991 = vadd.f32 %v3975, %v3983
    %v3992 = vadd.f32 %v3976, %v3984
    %v3993 = vadd.f32 %v3977, %v3985
    %v3994 = vadd.f32 %v3978, %v3986
    %v3995 = vadd.f32 %v3979, %v3987
    %v3996 = vadd.f32 %v3980, %v3988
    %v3997 = vadd.f32 %v3981, %v3989
    %v3998 = vadd.f32 %v3982, %v3990
    %v3999 = vmul.f32 %v3132, %v710
    %v4000 = vmul.f32 %v3132, %v711
    %v4001 = vmul.f32 %v3132, %v712
    %v4002 = vmul.f32 %v3132, %v713
    %v4003 = vmul.f32 %v3132, %v714
    %v4004 = vmul.f32 %v3132, %v715
    %v4005 = vmul.f32 %v3132, %v716
    %v4006 = vmul.f32 %v3132, %v717
    %v4007 = vadd.f32 %v3991, %v3999
    %v4008 = vadd.f32 %v3992, %v4000
    %v4009 = vadd.f32 %v3993, %v4001
    %v4010 = vadd.f32 %v3994, %v4002
    %v4011 = vadd.f32 %v3995, %v4003
    %v4012 = vadd.f32 %v3996, %v4004
    %v4013 = vadd.f32 %v3997, %v4005
    %v4014 = vadd.f32 %v3998, %v4006
    %v4015 = vmul.f32 %v3150, %v735
    %v4016 = vmul.f32 %v3150, %v736
    %v4017 = vmul.f32 %v3150, %v737
    %v4018 = vmul.f32 %v3150, %v738
    %v4019 = vmul.f32 %v3150, %v739
    %v4020 = vmul.f32 %v3150, %v740
    %v4021 = vmul.f32 %v3150, %v741
    %v4022 = vmul.f32 %v3150, %v742
    %v4023 = vadd.f32 %v4007, %v4015
    %v4024 = vadd.f32 %v4008, %v4016
    %v4025 = vadd.f32 %v4009, %v4017
    %v4026 = vadd.f32 %v4010, %v4018
    %v4027 = vadd.f32 %v4011, %v4019
    %v4028 = vadd.f32 %v4012, %v4020
    %v4029 = vadd.f32 %v4013, %v4021
    %v4030 = vadd.f32 %v4014, %v4022
    %v4031 = vmul.f32 %v3168, %v760
    %v4032 = vmul.f32 %v3168, %v761
    %v4033 = vmul.f32 %v3168, %v762
    %v4034 = vmul.f32 %v3168, %v763
    %v4035 = vmul.f32 %v3168, %v764
    %v4036 = vmul.f32 %v3168, %v765
    %v4037 = vmul.f32 %v3168, %v766
    %v4038 = vmul.f32 %v3168, %v767
    %v4039 = vadd.f32 %v4023, %v4031
    %v4040 = vadd.f32 %v4024, %v4032
    %v4041 = vadd.f32 %v4025, %v4033
    %v4042 = vadd.f32 %v4026, %v4034
    %v4043 = vadd.f32 %v4027, %v4035
    %v4044 = vadd.f32 %v4028, %v4036
    %v4045 = vadd.f32 %v4029, %v4037
    %v4046 = vadd.f32 %v4030, %v4038
    %v4047 = vmul.f32 %v3186, %v1187
    %v4048 = vmul.f32 %v3186, %v1188
    %v4049 = vmul.f32 %v3186, %v1189
    %v4050 = vmul.f32 %v3186, %v1190
    %v4051 = vmul.f32 %v3186, %v1191
    %v4052 = vmul.f32 %v3186, %v1192
    %v4053 = vmul.f32 %v3186, %v1193
    %v4054 = vmul.f32 %v3186, %v1194
    %v4055 = vadd.f32 %v4039, %v4047
    %v4056 = vadd.f32 %v4040, %v4048
    %v4057 = vadd.f32 %v4041, %v4049
    %v4058 = vadd.f32 %v4042, %v4050
    %v4059 = vadd.f32 %v4043, %v4051
    %v4060 = vadd.f32 %v4044, %v4052
    %v4061 = vadd.f32 %v4045, %v4053
    %v4062 = vadd.f32 %v4046, %v4054
    %v4063 = vmul.f32 %v3204, %v1212
    %v4064 = vmul.f32 %v3204, %v1213
    %v4065 = vmul.f32 %v3204, %v1214
    %v4066 = vmul.f32 %v3204, %v1215
    %v4067 = vmul.f32 %v3204, %v1216
    %v4068 = vmul.f32 %v3204, %v1217
    %v4069 = vmul.f32 %v3204, %v1218
    %v4070 = vmul.f32 %v3204, %v1219
    %v4071 = vadd.f32 %v4055, %v4063
    %v4072 = vadd.f32 %v4056, %v4064
    %v4073 = vadd.f32 %v4057, %v4065
    %v4074 = vadd.f32 %v4058, %v4066
    %v4075 = vadd.f32 %v4059, %v4067
    %v4076 = vadd.f32 %v4060, %v4068
    %v4077 = vadd.f32 %v4061, %v4069
    %v4078 = vadd.f32 %v4062, %v4070
    %v4079 = vmul.f32 %v3222, %v1237
    %v4080 = vmul.f32 %v3222, %v1238
    %v4081 = vmul.f32 %v3222, %v1239
    %v4082 = vmul.f32 %v3222, %v1240
    %v4083 = vmul.f32 %v3222, %v1241
    %v4084 = vmul.f32 %v3222, %v1242
    %v4085 = vmul.f32 %v3222, %v1243
    %v4086 = vmul.f32 %v3222, %v1244
    %v4087 = vadd.f32 %v4071, %v4079
    %v4088 = vadd.f32 %v4072, %v4080
    %v4089 = vadd.f32 %v4073, %v4081
    %v4090 = vadd.f32 %v4074, %v4082
    %v4091 = vadd.f32 %v4075, %v4083
    %v4092 = vadd.f32 %v4076, %v4084
    %v4093 = vadd.f32 %v4077, %v4085
    %v4094 = vadd.f32 %v4078, %v4086
    %v4095 = vmax.f32 %v3951, %v4087
    %v4096 = vmax.f32 %v3952, %v4088
    %v4097 = vmax.f32 %v3953, %v4089
    %v4098 = vmax.f32 %v3954, %v4090
    %v4099 = vmax.f32 %v3955, %v4091
    %v4100 = vmax.f32 %v3956, %v4092
    %v4101 = vmax.f32 %v3957, %v4093
    %v4102 = vmax.f32 %v3958, %v4094
    %v4103 = vmul.f32 %v3086, %v226
    %v4104 = vmul.f32 %v3086, %v227
    %v4105 = vmul.f32 %v3086, %v228
    %v4106 = vmul.f32 %v3086, %v229
    %v4107 = vmul.f32 %v3086, %v230
    %v4108 = vmul.f32 %v3086, %v231
    %v4109 = vmul.f32 %v3086, %v232
    %v4110 = vmul.f32 %v3086, %v233
    %v4111 = vmul.f32 %v3096, %v253
    %v4112 = vmul.f32 %v3096, %v254
    %v4113 = vmul.f32 %v3096, %v255
    %v4114 = vmul.f32 %v3096, %v256
    %v4115 = vmul.f32 %v3096, %v257
    %v4116 = vmul.f32 %v3096, %v258
    %v4117 = vmul.f32 %v3096, %v259
    %v4118 = vmul.f32 %v3096, %v260
    %v4119 = vadd.f32 %v4103, %v4111
    %v4120 = vadd.f32 %v4104, %v4112
    %v4121 = vadd.f32 %v4105, %v4113
    %v4122 = vadd.f32 %v4106, %v4114
    %v4123 = vadd.f32 %v4107, %v4115
    %v4124 = vadd.f32 %v4108, %v4116
    %v4125 = vadd.f32 %v4109, %v4117
    %v4126 = vadd.f32 %v4110, %v4118
    %v4127 = vmul.f32 %v3114, %v418
    %v4128 = vmul.f32 %v3114, %v419
    %v4129 = vmul.f32 %v3114, %v420
    %v4130 = vmul.f32 %v3114, %v421
    %v4131 = vmul.f32 %v3114, %v422
    %v4132 = vmul.f32 %v3114, %v423
    %v4133 = vmul.f32 %v3114, %v424
    %v4134 = vmul.f32 %v3114, %v425
    %v4135 = vadd.f32 %v4119, %v4127
    %v4136 = vadd.f32 %v4120, %v4128
    %v4137 = vadd.f32 %v4121, %v4129
    %v4138 = vadd.f32 %v4122, %v4130
    %v4139 = vadd.f32 %v4123, %v4131
    %v4140 = vadd.f32 %v4124, %v4132
    %v4141 = vadd.f32 %v4125, %v4133
    %v4142 = vadd.f32 %v4126, %v4134
    %v4143 = vmul.f32 %v3132, %v735
    %v4144 = vmul.f32 %v3132, %v736
    %v4145 = vmul.f32 %v3132, %v737
    %v4146 = vmul.f32 %v3132, %v738
    %v4147 = vmul.f32 %v3132, %v739
    %v4148 = vmul.f32 %v3132, %v740
    %v4149 = vmul.f32 %v3132, %v741
    %v4150 = vmul.f32 %v3132, %v742
    %v4151 = vadd.f32 %v4135, %v4143
    %v4152 = vadd.f32 %v4136, %v4144
    %v4153 = vadd.f32 %v4137, %v4145
    %v4154 = vadd.f32 %v4138, %v4146
    %v4155 = vadd.f32 %v4139, %v4147
    %v4156 = vadd.f32 %v4140, %v4148
    %v4157 = vadd.f32 %v4141, %v4149
    %v4158 = vadd.f32 %v4142, %v4150
    %v4159 = vmul.f32 %v3150, %v760
    %v4160 = vmul.f32 %v3150, %v761
    %v4161 = vmul.f32 %v3150, %v762
    %v4162 = vmul.f32 %v3150, %v763
    %v4163 = vmul.f32 %v3150, %v764
    %v4164 = vmul.f32 %v3150, %v765
    %v4165 = vmul.f32 %v3150, %v766
    %v4166 = vmul.f32 %v3150, %v767
    %v4167 = vadd.f32 %v4151, %v4159
    %v4168 = vadd.f32 %v4152, %v4160
    %v4169 = vadd.f32 %v4153, %v4161
    %v4170 = vadd.f32 %v4154, %v4162
    %v4171 = vadd.f32 %v4155, %v4163
    %v4172 = vadd.f32 %v4156, %v4164
    %v4173 = vadd.f32 %v4157, %v4165
    %v4174 = vadd.f32 %v4158, %v4166
    %v4175 = vmul.f32 %v3168, %v913
    %v4176 = vmul.f32 %v3168, %v914
    %v4177 = vmul.f32 %v3168, %v915
    %v4178 = vmul.f32 %v3168, %v916
    %v4179 = vmul.f32 %v3168, %v917
    %v4180 = vmul.f32 %v3168, %v918
    %v4181 = vmul.f32 %v3168, %v919
    %v4182 = vmul.f32 %v3168, %v920
    %v4183 = vadd.f32 %v4167, %v4175
    %v4184 = vadd.f32 %v4168, %v4176
    %v4185 = vadd.f32 %v4169, %v4177
    %v4186 = vadd.f32 %v4170, %v4178
    %v4187 = vadd.f32 %v4171, %v4179
    %v4188 = vadd.f32 %v4172, %v4180
    %v4189 = vadd.f32 %v4173, %v4181
    %v4190 = vadd.f32 %v4174, %v4182
    %v4191 = vmul.f32 %v3186, %v1212
    %v4192 = vmul.f32 %v3186, %v1213
    %v4193 = vmul.f32 %v3186, %v1214
    %v4194 = vmul.f32 %v3186, %v1215
    %v4195 = vmul.f32 %v3186, %v1216
    %v4196 = vmul.f32 %v3186, %v1217
    %v4197 = vmul.f32 %v3186, %v1218
    %v4198 = vmul.f32 %v3186, %v1219
    %v4199 = vadd.f32 %v4183, %v4191
    %v4200 = vadd.f32 %v4184, %v4192
    %v4201 = vadd.f32 %v4185, %v4193
    %v4202 = vadd.f32 %v4186, %v4194
    %v4203 = vadd.f32 %v4187, %v4195
    %v4204 = vadd.f32 %v4188, %v4196
    %v4205 = vadd.f32 %v4189, %v4197
    %v4206 = vadd.f32 %v4190, %v4198
    %v4207 = vmul.f32 %v3204, %v1237
    %v4208 = vmul.f32 %v3204, %v1238
    %v4209 = vmul.f32 %v3204, %v1239
    %v4210 = vmul.f32 %v3204, %v1240
    %v4211 = vmul.f32 %v3204, %v1241
    %v4212 = vmul.f32 %v3204, %v1242
    %v4213 = vmul.f32 %v3204, %v1243
    %v4214 = vmul.f32 %v3204, %v1244
    %v4215 = vadd.f32 %v4199, %v4207
    %v4216 = vadd.f32 %v4200, %v4208
    %v4217 = vadd.f32 %v4201, %v4209
    %v4218 = vadd.f32 %v4202, %v4210
    %v4219 = vadd.f32 %v4203, %v4211
    %v4220 = vadd.f32 %v4204, %v4212
    %v4221 = vadd.f32 %v4205, %v4213
    %v4222 = vadd.f32 %v4206, %v4214
    %v4223 = vmul.f32 %v3222, %v1390
    %v4224 = vmul.f32 %v3222, %v1391
    %v4225 = vmul.f32 %v3222, %v1392
    %v4226 = vmul.f32 %v3222, %v1393
    %v4227 = vmul.f32 %v3222, %v1394
    %v4228 = vmul.f32 %v3222, %v1395
    %v4229 = vmul.f32 %v3222, %v1396
    %v4230 = vmul.f32 %v3222, %v1397
    %v4231 = vadd.f32 %v4215, %v4223
    %v4232 = vadd.f32 %v4216, %v4224
    %v4233 = vadd.f32 %v4217, %v4225
    %v4234 = vadd.f32 %v4218, %v4226
    %v4235 = vadd.f32 %v4219, %v4227
    %v4236 = vadd.f32 %v4220, %v4228
    %v4237 = vadd.f32 %v4221, %v4229
    %v4238 = vadd.f32 %v4222, %v4230
    %v4239 = vmax.f32 %v4095, %v4231
    %v4240 = vmax.f32 %v4096, %v4232
    %v4241 = vmax.f32 %v4097, %v4233
    %v4242 = vmax.f32 %v4098, %v4234
    %v4243 = vmax.f32 %v4099, %v4235
    %v4244 = vmax.f32 %v4100, %v4236
    %v4245 = vmax.f32 %v4101, %v4237
    %v4246 = vmax.f32 %v4102, %v4238
    %v4247 = vmul.f32 %v3086, %v253
    %v4248 = vmul.f32 %v3086, %v254
    %v4249 = vmul.f32 %v3086, %v255
    %v4250 = vmul.f32 %v3086, %v256
    %v4251 = vmul.f32 %v3086, %v257
    %v4252 = vmul.f32 %v3086, %v258
    %v4253 = vmul.f32 %v3086, %v259
    %v4254 = vmul.f32 %v3086, %v260
    %v4255 = vmul.f32 %v3096, %v418
    %v4256 = vmul.f32 %v3096, %v419
    %v4257 = vmul.f32 %v3096, %v420
    %v4258 = vmul.f32 %v3096, %v421
    %v4259 = vmul.f32 %v3096, %v422
    %v4260 = vmul.f32 %v3096, %v423
    %v4261 = vmul.f32 %v3096, %v424
    %v4262 = vmul.f32 %v3096, %v425
    %v4263 = vadd.f32 %v4247, %v4255
    %v4264 = vadd.f32 %v4248, %v4256
    %v4265 = vadd.f32 %v4249, %v4257
    %v4266 = vadd.f32 %v4250, %v4258
    %v4267 = vadd.f32 %v4251, %v4259
    %v4268 = vadd.f32 %v4252, %v4260
    %v4269 = vadd.f32 %v4253, %v4261
    %v4270 = vadd.f32 %v4254, %v4262
    %v4271 = vmul.f32 %v3114, %v589
    %v4272 = vmul.f32 %v3114, %v590
    %v4273 = vmul.f32 %v3114, %v591
    %v4274 = vmul.f32 %v3114, %v592
    %v4275 = vmul.f32 %v3114, %v593
    %v4276 = vmul.f32 %v3114, %v594
    %v4277 = vmul.f32 %v3114, %v595
    %v4278 = vmul.f32 %v3114, %v596
    %v4279 = vadd.f32 %v4263, %v4271
    %v4280 = vadd.f32 %v4264, %v4272
    %v4281 = vadd.f32 %v4265, %v4273
    %v4282 = vadd.f32 %v4266, %v4274
    %v4283 = vadd.f32 %v4267, %v4275
    %v4284 = vadd.f32 %v4268, %v4276
    %v4285 = vadd.f32 %v4269, %v4277
    %v4286 = vadd.f32 %v4270, %v4278
    %v4287 = vmul.f32 %v3132, %v760
    %v4288 = vmul.f32 %v3132, %v761
    %v4289 = vmul.f32 %v3132, %v762
    %v4290 = vmul.f32 %v3132, %v763
    %v4291 = vmul.f32 %v3132, %v764
    %v4292 = vmul.f32 %v3132, %v765
    %v4293 = vmul.f32 %v3132, %v766
    %v4294 = vmul.f32 %v3132, %v767
    %v4295 = vadd.f32 %v4279, %v4287
    %v4296 = vadd.f32 %v4280, %v4288
    %v4297 = vadd.f32 %v4281, %v4289
    %v4298 = vadd.f32 %v4282, %v4290
    %v4299 = vadd.f32 %v4283, %v4291
    %v4300 = vadd.f32 %v4284, %v4292
    %v4301 = vadd.f32 %v4285, %v4293
    %v4302 = vadd.f32 %v4286, %v4294
    %v4303 = vmul.f32 %v3150, %v913
    %v4304 = vmul.f32 %v3150, %v914
    %v4305 = vmul.f32 %v3150, %v915
    %v4306 = vmul.f32 %v3150, %v916
    %v4307 = vmul.f32 %v3150, %v917
    %v4308 = vmul.f32 %v3150, %v918
    %v4309 = vmul.f32 %v3150, %v919
    %v4310 = vmul.f32 %v3150, %v920
    %v4311 = vadd.f32 %v4295, %v4303
    %v4312 = vadd.f32 %v4296, %v4304
    %v4313 = vadd.f32 %v4297, %v4305
    %v4314 = vadd.f32 %v4298, %v4306
    %v4315 = vadd.f32 %v4299, %v4307
    %v4316 = vadd.f32 %v4300, %v4308
    %v4317 = vadd.f32 %v4301, %v4309
    %v4318 = vadd.f32 %v4302, %v4310
    %v4319 = vmul.f32 %v3168, %v1066
    %v4320 = vmul.f32 %v3168, %v1067
    %v4321 = vmul.f32 %v3168, %v1068
    %v4322 = vmul.f32 %v3168, %v1069
    %v4323 = vmul.f32 %v3168, %v1070
    %v4324 = vmul.f32 %v3168, %v1071
    %v4325 = vmul.f32 %v3168, %v1072
    %v4326 = vmul.f32 %v3168, %v1073
    %v4327 = vadd.f32 %v4311, %v4319
    %v4328 = vadd.f32 %v4312, %v4320
    %v4329 = vadd.f32 %v4313, %v4321
    %v4330 = vadd.f32 %v4314, %v4322
    %v4331 = vadd.f32 %v4315, %v4323
    %v4332 = vadd.f32 %v4316, %v4324
    %v4333 = vadd.f32 %v4317, %v4325
    %v4334 = vadd.f32 %v4318, %v4326
    %v4335 = vmul.f32 %v3186, %v1237
    %v4336 = vmul.f32 %v3186, %v1238
    %v4337 = vmul.f32 %v3186, %v1239
    %v4338 = vmul.f32 %v3186, %v1240
    %v4339 = vmul.f32 %v3186, %v1241
    %v4340 = vmul.f32 %v3186, %v1242
    %v4341 = vmul.f32 %v3186, %v1243
    %v4342 = vmul.f32 %v3186, %v1244
    %v4343 = vadd.f32 %v4327, %v4335
    %v4344 = vadd.f32 %v4328, %v4336
    %v4345 = vadd.f32 %v4329, %v4337
    %v4346 = vadd.f32 %v4330, %v4338
    %v4347 = vadd.f32 %v4331, %v4339
    %v4348 = vadd.f32 %v4332, %v4340
    %v4349 = vadd.f32 %v4333, %v4341
    %v4350 = vadd.f32 %v4334, %v4342
    %v4351 = vmul.f32 %v3204, %v1390
    %v4352 = vmul.f32 %v3204, %v1391
    %v4353 = vmul.f32 %v3204, %v1392
    %v4354 = vmul.f32 %v3204, %v1393
    %v4355 = vmul.f32 %v3204, %v1394
    %v4356 = vmul.f32 %v3204, %v1395
    %v4357 = vmul.f32 %v3204, %v1396
    %v4358 = vmul.f32 %v3204, %v1397
    %v4359 = vadd.f32 %v4343, %v4351
    %v4360 = vadd.f32 %v4344, %v4352
    %v4361 = vadd.f32 %v4345, %v4353
    %v4362 = vadd.f32 %v4346, %v4354
    %v4363 = vadd.f32 %v4347, %v4355
    %v4364 = vadd.f32 %v4348, %v4356
    %v4365 = vadd.f32 %v4349, %v4357
    %v4366 = vadd.f32 %v4350, %v4358
    %v4367 = vmul.f32 %v3222, %v1543
    %v4368 = vmul.f32 %v3222, %v1544
    %v4369 = vmul.f32 %v3222, %v1545
    %v4370 = vmul.f32 %v3222, %v1546
    %v4371 = vmul.f32 %v3222, %v1547
    %v4372 = vmul.f32 %v3222, %v1548
    %v4373 = vmul.f32 %v3222, %v1549
    %v4374 = vmul.f32 %v3222, %v1550
    %v4375 = vadd.f32 %v4359, %v4367
    %v4376 = vadd.f32 %v4360, %v4368
    %v4377 = vadd.f32 %v4361, %v4369
    %v4378 = vadd.f32 %v4362, %v4370
    %v4379 = vadd.f32 %v4363, %v4371
    %v4380 = vadd.f32 %v4364, %v4372
    %v4381 = vadd.f32 %v4365, %v4373
    %v4382 = vadd.f32 %v4366, %v4374
    %v4383 = vmax.f32 %v4239, %v4375
    %v4384 = vmax.f32 %v4240, %v4376
    %v4385 = vmax.f32 %v4241, %v4377
    %v4386 = vmax.f32 %v4242, %v4378
    %v4387 = vmax.f32 %v4243, %v4379
    %v4388 = vmax.f32 %v4244, %v4380
    %v4389 = vmax.f32 %v4245, %v4381
    %v4390 = vmax.f32 %v4246, %v4382
    %s4391 = sld [smem:[#allocation4 + $0x2]]
    %v4392 = vstv %s4391
    %v4393 = vadd.f32 %v4383, %v4392
    %v4394 = vadd.f32 %v4384, %v4392
    %v4395 = vadd.f32 %v4385, %v4392
    %v4396 = vadd.f32 %v4386, %v4392
    %v4397 = vadd.f32 %v4387, %v4392
    %v4398 = vadd.f32 %v4388, %v4392
    %v4399 = vadd.f32 %v4389, %v4392
    %v4400 = vadd.f32 %v4390, %v4392
    %v4401 = vmax.f32 %v4393, 0.0
    %v4402 = vmax.f32 %v4394, 0.0
    %v4403 = vmax.f32 %v4395, 0.0
    %v4404 = vmax.f32 %v4396, 0.0
    %v4405 = vmax.f32 %v4397, 0.0
    %v4406 = vmax.f32 %v4398, 0.0
    %v4407 = vmax.f32 %v4399, 0.0
    %v4408 = vmax.f32 %v4400, 0.0
    %s4409 = scalar_lea.vmem %s3, 32
    %v4410 = vld [vmem:[%s4409] sm:$0xff]
    %v4411 = vld [vmem:[%s4409 + $0x8] sm:$0x3]
    %v4413 = vsel %vm2922, %v4410, 0
    %v4416 = vsel %vm2922, %v4411, 0
    %4418 = vmatprep.subr.mxu0 0.0
    %4419 = vmatpush1.msra.mxu0 0.0
    %4420 = vmatprep.subr.mxu0 0.0
    %4421 = vmatpush1.msra.mxu0 0.0
    %4422 = vmatprep.subr.mxu0 0.0
    %4423 = vmatpush1.msra.mxu0 0.0
    %4424 = vmatprep.subr.mxu0 0.0
    %4425 = vmatpush1.msra.mxu0 0.0
    %4426 = vmatprep.subr.mxu0 0.0
    %4427 = vmatpush1.msra.mxu0 0.0
    %4428 = vmatprep.subr.mxu0 0.0
    %4429 = vmatpush1.msra.mxu0 0.0
    %4430 = vmatprep.subr.mxu0 0.0
    %4431 = vmatpush1.msra.mxu0 0.0
    %4432 = vmatprep.subr.mxu0 0.0
    %4433 = vmatpush1.msra.mxu0 0.0
    %4434 = vmatprep.subr.mxu0 0.0
    %4435 = vmatpush1.msra.mxu0 %v4408
    %4436 = vmatprep.subr.mxu0 0.0
    %4437 = vmatpush1.msra.mxu0 %v4407
    %4438 = vmatprep.subr.mxu0 0.0
    %4439 = vmatpush1.msra.mxu0 %v4406
    %4440 = vmatprep.subr.mxu0 0.0
    %4441 = vmatpush1.msra.mxu0 %v4405
    %4442 = vmatprep.subr.mxu0 0.0
    %4443 = vmatpush1.msra.mxu0 %v4404
    %4444 = vmatprep.subr.mxu0 0.0
    %4445 = vmatpush1.msra.mxu0 %v4403
    %4446 = vmatprep.subr.mxu0 0.0
    %4447 = vmatpush1.msra.mxu0 %v4402
    %4448 = vmatprep.subr.mxu0 0.0
    %4449 = vmatpush1.msra.mxu0 %v4401
    %4450 = vmatprep.subr.mxu0 0.0
    %4451 = vmatpush2.msra.mxu0 0.0
    %4452 = vmatprep.subr.mxu0 0.0
    %4453 = vmatpush2.msra.mxu0 0.0
    %4454 = vmatprep.subr.mxu0 0.0
    %4455 = vmatpush2.msra.mxu0 0.0
    %4456 = vmatprep.subr.mxu0 0.0
    %4457 = vmatpush2.msra.mxu0 0.0
    %4458 = vmatprep.subr.mxu0 0.0
    %4459 = vmatpush2.msra.mxu0 0.0
    %4460 = vmatprep.subr.mxu0 0.0
    %4461 = vmatpush2.msra.mxu0 0.0
    %4462 = vmatprep.subr.mxu0 0.0
    %4463 = vmatpush2.msra.mxu0 0.0
    %4464 = vmatprep.subr.mxu0 0.0
    %4465 = vmatpush2.msra.mxu0 0.0
    %4466 = vmatprep.subr.mxu0 0.0
    %4467 = vmatpush2.msra.mxu0 0.0
    %4468 = vmatprep.subr.mxu0 0.0
    %4469 = vmatpush2.msra.mxu0 0.0
    %4470 = vmatprep.subr.mxu0 0.0
    %4471 = vmatpush2.msra.mxu0 0.0
    %4472 = vmatprep.subr.mxu0 0.0
    %4473 = vmatpush2.msra.mxu0 0.0
    %4474 = vmatprep.subr.mxu0 0.0
    %4475 = vmatpush2.msra.mxu0 0.0
    %4476 = vmatprep.subr.mxu0 0.0
    %4477 = vmatpush2.msra.mxu0 0.0
    %4478 = vmatprep.subr.mxu0 0.0
    %4479 = vmatpush2.msra.mxu0 0.0
    %4480 = vmatprep.subr.mxu0 0.0
    %4481 = vmatpush2.msra.mxu0 0.0
    %4482 = vmatprep.mubr.f32.mxu0 0.0
    %4483 = vmatmul.mubr.f32.gmra.mxu0 %v4413
    %v4484 = vpop.f32.mrf.mxu0
    %v4485 = vadd.f32 0.0, %v4484
    %v4486 = vpop.f32.mrf.mxu0
    %4487 = vmatprep.mubr.f32.mxu0 0.0
    %4488 = vmatmul.mubr.f32.gmra.mxu0 %v4416
    %v4489 = vpop.f32.mrf.mxu0
    %v4490 = vadd.f32 0.0, %v4489
    %v4491 = vpop.f32.mrf.mxu0
    %4492 = vdwg.mxu0
    %v4493 = vadd.f32 %v3077, %v4485
    %v4494 = vadd.f32 %v3082, %v4490
    %v4495 = vld [vmem:[%s4] sm:$0xff]
    %v4496 = vld [vmem:[%s4 + $0x8] sm:$0x3]
    %4498 = vset.pattern.permute.xlu0 0
    %4499 = vperm.xlu0 %4498, %v4495
    %v4500 = vpop.permute.xlu0 %4499
    %4503 = vset.pattern.permute.xlu0 0
    %4504 = vperm.xlu0 %4503, %v4496
    %v4505 = vpop.permute.xlu0 %4504
    %v4507 = vadd.f32 %v4493, %v4500
    %v4508 = vadd.f32 %v4494, %v4505
    %vm4509 = vcmask 15360
    %v4510 = vsel %vm4509, %v4507, -inf
    %vm4511 = vcmask 9216
    %v4512 = vsel %vm4511, %v4508, -inf
    %v4513 = vmax.f32 %v4510, %v4512
    %v4514 = vrot.slane %v4513, 4
    %v4515 = vmax.f32 %v4513, %v4514
    %v4516 = vrot.slane %v4515, 2
    %v4517 = vmax.f32 %v4515, %v4516
    %v4518 = vrot.slane %v4517, 1
    %v4519 = vmax.f32 %v4517, %v4518
    %v4520 = vsub.f32 %v4507, %v4519
    %v4521 = vsub.f32 %v4508, %v4519
    %v4522 = vmul.f32 %v4520, 1.442695
    %v4523 = vpow.pop %v4522
    %v4524 = vmul.f32 %v4521, 1.442695
    %v4525 = vpow.pop %v4524
    %v4526 = vsel %vm4509, %v4523, 0.0
    %v4527 = vsel %vm4511, %v4525, 0.0
    %v4528 = vadd.f32 %v4526, %v4527
    %v4529 = vrot.slane %v4528, 4
    %v4530 = vadd.f32 %v4528, %v4529
    %v4531 = vrot.slane %v4530, 2
    %v4532 = vadd.f32 %v4530, %v4531
    %v4533 = vrot.slane %v4532, 1
    %v4534 = vadd.f32 %v4532, %v4533
    %v4535 = vlog2.pop %v4534
    %v4536 = vmul.f32 %v4535, 0.6931472
    %v4537 = vsub.f32 %v4520, %v4536
    %v4538 = vsub.f32 %v4521, %v4536
    %4539 = vst.msk [vmem:[%s5] sm:$0xff] %vm4509, %v4537
    %4540 = vst.msk [vmem:[%s5 + $0x8] sm:$0x3] %vm4511, %v4538
    // Predicated region
    $region30: #{convnet_forward.1} parent=1 // pred_check
      _
    $region31: #{convnet_forward.1} parent=1 // pred_check_branch
      %4542 = sbr.rel (0) target = $region33
    $region32: #{convnet_forward.1} parent=1 // pred_region
      _
    $region33: #{convnet_forward.1} parent=1 // pred_fallthru
      _
    // Predicated region
    $region34: #{convnet_forward.1} parent=1 // pred_check
      _
    $region35: #{convnet_forward.1} parent=1 // pred_check_branch
      %4544 = sbr.rel (0) target = $region37
    $region36: #{convnet_forward.1} parent=1 // pred_region
      _
    $region37: #{convnet_forward.1} parent=1 // pred_fallthru
      _
    %4545 = vsyncpa [#allocation3], 1
    %4546 = vsyncpa [#allocation5], 1

</llo_original>
